<compile_context>
chip_gen: v7x
topology: tpu7x:2x2x1
jax: 0.10.0
libtpu: 0.0.40
codegen_flags: <defaults>
</compile_context>

<pallas_src>
import functools

import jax
import jax.numpy as jnp
from jax.experimental import pallas as pl
from jax.experimental.pallas import tpu as pltpu


_LAYER_SIZES = lambda state_size, action_size: [
    (state_size, 2048), (2048, 1024), (1024, 512), (512, action_size)
]
_MODEL_INDEX = {"online": 0, "target": 1}
_VMEM_LIMIT = 32 * 1024 * 1024  # fits v5e/v6e/v7x; covers double-buffered weights


# ----------------------------- Pallas kernels --------------------------------

def _mlp_body(x, w1, b1, w2, b2, w3, b3, w4, b4):
    """4-layer MLP on values: bf16 matmuls on the MXU, f32 accumulation."""
    h = x.astype(jnp.bfloat16)
    h = jnp.maximum(jnp.dot(h, w1, preferred_element_type=jnp.float32) + b1, 0.0)
    h = h.astype(jnp.bfloat16)
    h = jnp.maximum(jnp.dot(h, w2, preferred_element_type=jnp.float32) + b2, 0.0)
    h = h.astype(jnp.bfloat16)
    h = jnp.maximum(jnp.dot(h, w3, preferred_element_type=jnp.float32) + b3, 0.0)
    h = h.astype(jnp.bfloat16)
    return jnp.dot(h, w4, preferred_element_type=jnp.float32) + b4


def _fused_mlp_kernel_single(x_ref, w1_ref, b1_ref, w2_ref, b2_ref,
                             w3_ref, b3_ref, w4_ref, b4_ref, o_ref):
    # weight / bias blocks carry a leading singleton "model" dim; drop it.
    out = _mlp_body(x_ref[...],
                    w1_ref[0], b1_ref[0], w2_ref[0], b2_ref[0],
                    w3_ref[0], b3_ref[0], w4_ref[0], b4_ref[0])
    o_ref[...] = out.astype(o_ref.dtype)


def _fused_mlp_kernel_both(x_ref, w1_ref, b1_ref, w2_ref, b2_ref,
                           w3_ref, b3_ref, w4_ref, b4_ref, o_ref):
    out = _mlp_body(x_ref[...],
                    w1_ref[0], b1_ref[0], w2_ref[0], b2_ref[0],
                    w3_ref[0], b3_ref[0], w4_ref[0], b4_ref[0])
    o_ref[0] = out.astype(o_ref.dtype)


def _stacked_param_specs(params, index_map):
    """BlockSpecs + flat args for w1,b1,...,w4,b4 (stacked on model axis)."""
    specs, args = [], []
    for k in (1, 2, 3, 4):
        w, b = params[f"w{k}"], params[f"b{k}"]
        specs.append(pl.BlockSpec((1,) + w.shape[1:], index_map))
        specs.append(pl.BlockSpec((1,) + b.shape[1:], index_map))
        args += [w, b]
    return specs, args


# ------------------------------ Forward pass ----------------------------------

@functools.partial(jax.jit, static_argnames=("model",))
def rdn_forward(params, x, model):
    """Equivalent of RDN_neural_network.forward(input, model): one fused kernel."""
    if model not in _MODEL_INDEX:
        raise ValueError("model must be 'online' or 'target'")
    midx = _MODEL_INDEX[model]

    B, S = x.shape
    A = params["w4"].shape[-1]

    wmap = lambda i: (midx, 0, 0)           # static model selection, no HBM copy
    p_specs, p_args = _stacked_param_specs(params, wmap)

    return pl.pallas_call(
        _fused_mlp_kernel_single,
        out_shape=jax.ShapeDtypeStruct((B, A), jnp.float32),
        grid=(1,),
        in_specs=[pl.BlockSpec((B, S), lambda i: (0, 0))] + p_specs,
        out_specs=pl.BlockSpec((B, A), lambda i: (0, 0)),
        compiler_params=pltpu.CompilerParams(
            dimension_semantics=("arbitrary",),
            vmem_limit_bytes=_VMEM_LIMIT),
    )(x, *p_args)


@jax.jit
def rdn_forward_both(params, x):
    """Run both stacks in a single pallas_call; grid=(2,) 'parallel' so v7x's
    two TensorCores each stream one model's weights."""
    B, S = x.shape
    A = params["w4"].shape[-1]

    wmap = lambda m: (m, 0, 0)
    p_specs, p_args = _stacked_param_specs(params, wmap)

    return pl.pallas_call(
        _fused_mlp_kernel_both,
        out_shape=jax.ShapeDtypeStruct((2, B, A), jnp.float32),
        grid=(2,),
        in_specs=[pl.BlockSpec((B, S), lambda m: (0, 0))] + p_specs,
        out_specs=pl.BlockSpec((1, B, A), lambda m: (m, 0, 0)),
        compiler_params=pltpu.CompilerParams(
            dimension_semantics=("parallel",),
            vmem_limit_bytes=_VMEM_LIMIT),
    )(x, *p_args)


# --------------------------- Parameter handling -------------------------------

def init_rdn_params(key, state_size, action_size):
    """Torch-default U(-1/sqrt(fan_in), 1/sqrt(fan_in)) init for both stacks.

    Weights are stacked on a leading model axis (0=online, 1=target) and cast
    to bf16 for streaming; biases stay f32 with shape (2, 1, N).
    """
    sizes = _LAYER_SIZES(state_size, action_size)
    k_on, k_tg = jax.random.split(key)
    per_model = []
    for mkey in (k_on, k_tg):
        layers = []
        for fan_in, fan_out in sizes:
            mkey, kw, kb = jax.random.split(mkey, 3)
            bound = 1.0 / float(fan_in) ** 0.5
            w = jax.random.uniform(kw, (fan_in, fan_out), jnp.float32, -bound, bound)
            b = jax.random.uniform(kb, (fan_out,), jnp.float32, -bound, bound)
            layers.append((w, b))
        per_model.append(layers)

    params = {}
    for k in range(4):
        w_stack = jnp.stack([per_model[0][k][0], per_model[1][k][0]])
        b_stack = jnp.stack([per_model[0][k][1], per_model[1][k][1]])
        params[f"w{k + 1}"] = w_stack.astype(jnp.bfloat16)
        params[f"b{k + 1}"] = b_stack.reshape(2, 1, -1).astype(jnp.float32)
    return params


# TODO(synk): load_model (torch.load checkpoint I/O) has no Pallas equivalent.


# ---------------------------------- Main ---------------------------------------

if __name__ == "__main__":
    state_size = 32
    action_size = 8
    batch = 2

    key = jax.random.PRNGKey(0)
    k_params, k_input = jax.random.split(key)

    params = init_rdn_params(k_params, state_size, action_size)
    x = jax.random.normal(k_input, (batch, state_size), dtype=jnp.float32)

    y_online = rdn_forward(params, x, "online")
    y_target = rdn_forward(params, x, "target")
    y_both = rdn_forward_both(params, x)
    jax.block_until_ready((y_online, y_target, y_both))

    assert y_online.shape == (batch, action_size)
    assert y_target.shape == (batch, action_size)
    assert y_both.shape == (2, batch, action_size)

    # Plain-JAX reference with the same bf16-weight / f32-accumulation recipe.
    def ref_forward(p, xin, midx):
        h = xin.astype(jnp.bfloat16)
        for k in (1, 2, 3, 4):
            w = p[f"w{k}"][midx]
            b = p[f"b{k}"][midx][0]
            h = jnp.dot(h, w, preferred_element_type=jnp.float32) + b
            if k < 4:
                h = jnp.maximum(h, 0.0).astype(jnp.bfloat16)
        return h

    ref_online = ref_forward(params, x, 0)
    ref_target = ref_forward(params, x, 1)
    assert jnp.allclose(y_online, ref_online, atol=1e-2, rtol=1e-2)
    assert jnp.allclose(y_target, ref_target, atol=1e-2, rtol=1e-2)
    assert jnp.allclose(y_both[0], y_online, atol=1e-5, rtol=1e-5)
    assert jnp.allclose(y_both[1], y_target, atol=1e-5, rtol=1e-5)

    print("KERNEL_OK")
</pallas_src>

<mosaic_0001>
module attributes {stable_mosaic.version = 11 : i64} {
  func.func @_fused_mlp_kernel_single(%arg0: i32, %arg1: memref<2x32xf32, #tpu.memory_space<vmem>>, %arg2: memref<1x32x2048xbf16, #tpu.memory_space<vmem>>, %arg3: memref<1x1x2048xf32, #tpu.memory_space<vmem>>, %arg4: memref<1x2048x1024xbf16, #tpu.memory_space<vmem>>, %arg5: memref<1x1x1024xf32, #tpu.memory_space<vmem>>, %arg6: memref<1x1024x512xbf16, #tpu.memory_space<vmem>>, %arg7: memref<1x1x512xf32, #tpu.memory_space<vmem>>, %arg8: memref<1x512x8xbf16, #tpu.memory_space<vmem>>, %arg9: memref<1x1x8xf32, #tpu.memory_space<vmem>>, %arg10: memref<2x8xf32, #tpu.memory_space<vmem>>) attributes {dimension_semantics = [#tpu.dimension_semantics<arbitrary>], iteration_bounds = array<i64: 1>, scalar_prefetch = 0 : i64, scratch_operands = 0 : i64, tpu.core_type = #tpu.core_type<tc>, window_params = [{pipeline_mode = #tpu.pipeline_mode<synchronous>, transform_indices = @transform_0, window_bounds = array<i64: 2, 32>}, {transform_indices = @transform_1, window_bounds = array<i64: 1, 32, 2048>}, {transform_indices = @transform_2, window_bounds = array<i64: 1, 1, 2048>}, {transform_indices = @transform_3, window_bounds = array<i64: 1, 2048, 1024>}, {transform_indices = @transform_4, window_bounds = array<i64: 1, 1, 1024>}, {transform_indices = @transform_5, window_bounds = array<i64: 1, 1024, 512>}, {transform_indices = @transform_6, window_bounds = array<i64: 1, 1, 512>}, {transform_indices = @transform_7, window_bounds = array<i64: 1, 512, 8>}, {transform_indices = @transform_8, window_bounds = array<i64: 1, 1, 8>}, {pipeline_mode = #tpu.pipeline_mode<synchronous>, transform_indices = @transform_9, window_bounds = array<i64: 2, 8>}]} {
    %c0 = arith.constant 0 : index
    %c0_0 = arith.constant 0 : index
    %0 = vector.load %arg1[%c0, %c0_0] : memref<2x32xf32, #tpu.memory_space<vmem>>, vector<2x32xf32>
    %c0_1 = arith.constant 0 : index
    %c0_2 = arith.constant 0 : index
    %c0_3 = arith.constant 0 : index
    %1 = vector.load %arg2[%c0_1, %c0_2, %c0_3] : memref<1x32x2048xbf16, #tpu.memory_space<vmem>>, vector<1x32x2048xbf16>
    %2 = vector.shape_cast %1 : vector<1x32x2048xbf16> to vector<32x2048xbf16>
    %c0_4 = arith.constant 0 : index
    %c0_5 = arith.constant 0 : index
    %c0_6 = arith.constant 0 : index
    %3 = vector.load %arg3[%c0_4, %c0_5, %c0_6] : memref<1x1x2048xf32, #tpu.memory_space<vmem>>, vector<1x1x2048xf32>
    %4 = vector.shape_cast %3 : vector<1x1x2048xf32> to vector<1x2048xf32>
    %c0_7 = arith.constant 0 : index
    %c0_8 = arith.constant 0 : index
    %c0_9 = arith.constant 0 : index
    %5 = vector.load %arg4[%c0_7, %c0_8, %c0_9] : memref<1x2048x1024xbf16, #tpu.memory_space<vmem>>, vector<1x2048x1024xbf16>
    %6 = vector.shape_cast %5 : vector<1x2048x1024xbf16> to vector<2048x1024xbf16>
    %c0_10 = arith.constant 0 : index
    %c0_11 = arith.constant 0 : index
    %c0_12 = arith.constant 0 : index
    %7 = vector.load %arg5[%c0_10, %c0_11, %c0_12] : memref<1x1x1024xf32, #tpu.memory_space<vmem>>, vector<1x1x1024xf32>
    %8 = vector.shape_cast %7 : vector<1x1x1024xf32> to vector<1x1024xf32>
    %c0_13 = arith.constant 0 : index
    %c0_14 = arith.constant 0 : index
    %c0_15 = arith.constant 0 : index
    %9 = vector.load %arg6[%c0_13, %c0_14, %c0_15] : memref<1x1024x512xbf16, #tpu.memory_space<vmem>>, vector<1x1024x512xbf16>
    %10 = vector.shape_cast %9 : vector<1x1024x512xbf16> to vector<1024x512xbf16>
    %c0_16 = arith.constant 0 : index
    %c0_17 = arith.constant 0 : index
    %c0_18 = arith.constant 0 : index
    %11 = vector.load %arg7[%c0_16, %c0_17, %c0_18] : memref<1x1x512xf32, #tpu.memory_space<vmem>>, vector<1x1x512xf32>
    %12 = vector.shape_cast %11 : vector<1x1x512xf32> to vector<1x512xf32>
    %c0_19 = arith.constant 0 : index
    %c0_20 = arith.constant 0 : index
    %c0_21 = arith.constant 0 : index
    %13 = vector.load %arg8[%c0_19, %c0_20, %c0_21] : memref<1x512x8xbf16, #tpu.memory_space<vmem>>, vector<1x512x8xbf16>
    %14 = vector.shape_cast %13 : vector<1x512x8xbf16> to vector<512x8xbf16>
    %c0_22 = arith.constant 0 : index
    %c0_23 = arith.constant 0 : index
    %c0_24 = arith.constant 0 : index
    %15 = vector.load %arg9[%c0_22, %c0_23, %c0_24] : memref<1x1x8xf32, #tpu.memory_space<vmem>>, vector<1x1x8xf32>
    %16 = vector.shape_cast %15 : vector<1x1x8xf32> to vector<1x8xf32>
    %17 = arith.truncf %0 : vector<2x32xf32> to vector<2x32xbf16>
    %cst = arith.constant dense<0.000000e+00> : vector<2x2048xf32>
    %18 = tpu.matmul %17, %2, %cst {dimension_numbers = #tpu.dot_dimension_numbers<[1], [0], [0], [1], [0, 0, 1, 1], [], []>} : vector<2x32xbf16>, vector<32x2048xbf16>, vector<2x2048xf32> -> vector<2x2048xf32>
    %19 = vector.broadcast %4 : vector<1x2048xf32> to vector<2x2048xf32>
    %20 = arith.addf %18, %19 : vector<2x2048xf32>
    %cst_25 = arith.constant 0.000000e+00 : f32
    %21 = vector.broadcast %cst_25 : f32 to vector<2x2048xf32>
    %22 = arith.maximumf %20, %21 : vector<2x2048xf32>
    %23 = arith.truncf %22 : vector<2x2048xf32> to vector<2x2048xbf16>
    %cst_26 = arith.constant dense<0.000000e+00> : vector<2x1024xf32>
    %24 = tpu.matmul %23, %6, %cst_26 {dimension_numbers = #tpu.dot_dimension_numbers<[1], [0], [0], [1], [0, 0, 1, 1], [], []>} : vector<2x2048xbf16>, vector<2048x1024xbf16>, vector<2x1024xf32> -> vector<2x1024xf32>
    %25 = vector.broadcast %8 : vector<1x1024xf32> to vector<2x1024xf32>
    %26 = arith.addf %24, %25 : vector<2x1024xf32>
    %cst_27 = arith.constant 0.000000e+00 : f32
    %27 = vector.broadcast %cst_27 : f32 to vector<2x1024xf32>
    %28 = arith.maximumf %26, %27 : vector<2x1024xf32>
    %29 = arith.truncf %28 : vector<2x1024xf32> to vector<2x1024xbf16>
    %cst_28 = arith.constant dense<0.000000e+00> : vector<2x512xf32>
    %30 = tpu.matmul %29, %10, %cst_28 {dimension_numbers = #tpu.dot_dimension_numbers<[1], [0], [0], [1], [0, 0, 1, 1], [], []>} : vector<2x1024xbf16>, vector<1024x512xbf16>, vector<2x512xf32> -> vector<2x512xf32>
    %31 = vector.broadcast %12 : vector<1x512xf32> to vector<2x512xf32>
    %32 = arith.addf %30, %31 : vector<2x512xf32>
    %cst_29 = arith.constant 0.000000e+00 : f32
    %33 = vector.broadcast %cst_29 : f32 to vector<2x512xf32>
    %34 = arith.maximumf %32, %33 : vector<2x512xf32>
    %35 = arith.truncf %34 : vector<2x512xf32> to vector<2x512xbf16>
    %cst_30 = arith.constant dense<0.000000e+00> : vector<2x8xf32>
    %36 = tpu.matmul %35, %14, %cst_30 {dimension_numbers = #tpu.dot_dimension_numbers<[1], [0], [0], [1], [0, 0, 1, 1], [], []>} : vector<2x512xbf16>, vector<512x8xbf16>, vector<2x8xf32> -> vector<2x8xf32>
    %37 = vector.broadcast %16 : vector<1x8xf32> to vector<2x8xf32>
    %38 = arith.addf %36, %37 : vector<2x8xf32>
    %c0_31 = arith.constant 0 : index
    %c0_32 = arith.constant 0 : index
    %39 = vector.load %arg10[%c0_31, %c0_32] : memref<2x8xf32, #tpu.memory_space<vmem>>, vector<2x8xf32>
    tpu.vector_store %arg10[%c0_31, %c0_32], %38 {strides = array<i32>} : memref<2x8xf32, #tpu.memory_space<vmem>>, vector<2x8xf32>,
    return
  }
  func.func @transform_0(%arg0: i32) -> (i32, i32) {
    %c0_i32 = arith.constant 0 : i32
    %c0_i32_0 = arith.constant 0 : i32
    %c0_i32_1 = arith.constant 0 : i32
    return %c0_i32, %c0_i32_0 : i32, i32
  }
  func.func @transform_1(%arg0: i32) -> (i32, i32, i32) {
    %c0_i32 = arith.constant 0 : i32
    %c0_i32_0 = arith.constant 0 : i32
    %c0_i32_1 = arith.constant 0 : i32
    %c0_i32_2 = arith.constant 0 : i32
    return %c0_i32, %c0_i32_0, %c0_i32_1 : i32, i32, i32
  }
  func.func @transform_2(%arg0: i32) -> (i32, i32, i32) {
    %c0_i32 = arith.constant 0 : i32
    %c0_i32_0 = arith.constant 0 : i32
    %c0_i32_1 = arith.constant 0 : i32
    %c0_i32_2 = arith.constant 0 : i32
    return %c0_i32, %c0_i32_0, %c0_i32_1 : i32, i32, i32
  }
  func.func @transform_3(%arg0: i32) -> (i32, i32, i32) {
    %c0_i32 = arith.constant 0 : i32
    %c0_i32_0 = arith.constant 0 : i32
    %c0_i32_1 = arith.constant 0 : i32
    %c0_i32_2 = arith.constant 0 : i32
    return %c0_i32, %c0_i32_0, %c0_i32_1 : i32, i32, i32
  }
  func.func @transform_4(%arg0: i32) -> (i32, i32, i32) {
    %c0_i32 = arith.constant 0 : i32
    %c0_i32_0 = arith.constant 0 : i32
    %c0_i32_1 = arith.constant 0 : i32
    %c0_i32_2 = arith.constant 0 : i32
    return %c0_i32, %c0_i32_0, %c0_i32_1 : i32, i32, i32
  }
  func.func @transform_5(%arg0: i32) -> (i32, i32, i32) {
    %c0_i32 = arith.constant 0 : i32
    %c0_i32_0 = arith.constant 0 : i32
    %c0_i32_1 = arith.constant 0 : i32
    %c0_i32_2 = arith.constant 0 : i32
    return %c0_i32, %c0_i32_0, %c0_i32_1 : i32, i32, i32
  }
  func.func @transform_6(%arg0: i32) -> (i32, i32, i32) {
    %c0_i32 = arith.constant 0 : i32
    %c0_i32_0 = arith.constant 0 : i32
    %c0_i32_1 = arith.constant 0 : i32
    %c0_i32_2 = arith.constant 0 : i32
    return %c0_i32, %c0_i32_0, %c0_i32_1 : i32, i32, i32
  }
  func.func @transform_7(%arg0: i32) -> (i32, i32, i32) {
    %c0_i32 = arith.constant 0 : i32
    %c0_i32_0 = arith.constant 0 : i32
    %c0_i32_1 = arith.constant 0 : i32
    %c0_i32_2 = arith.constant 0 : i32
    return %c0_i32, %c0_i32_0, %c0_i32_1 : i32, i32, i32
  }
  func.func @transform_8(%arg0: i32) -> (i32, i32, i32) {
    %c0_i32 = arith.constant 0 : i32
    %c0_i32_0 = arith.constant 0 : i32
    %c0_i32_1 = arith.constant 0 : i32
    %c0_i32_2 = arith.constant 0 : i32
    return %c0_i32, %c0_i32_0, %c0_i32_1 : i32, i32, i32
  }
  func.func @transform_9(%arg0: i32) -> (i32, i32) {
    %c0_i32 = arith.constant 0 : i32
    %c0_i32_0 = arith.constant 0 : i32
    %c0_i32_1 = arith.constant 0 : i32
    return %c0_i32, %c0_i32_0 : i32, i32
  }
}

</mosaic_0001>

<llo_original>
// kernel: rdn_forward.1
$region0: #{rdn_forward.1}
  #allocation0 [shape = 'u32[]', space=smem, size = 0x4, offset = 0x4, fixed_abs, tag = 'smem constant byte address 0x4 - core index']
  #allocation1 [shape = 'u32[144,128]{1,0:T(1,128)}', space=vmem, size = 0x12000, scoped, tag = 'internal scratch']
  %s0 = inlined_call_operand.hbm [shape: f32[2,32], index: 0, kind: input, shape index: {}]
  %s1 = inlined_call_operand.hbm [shape: bf16[2,32,2048], index: 1, kind: input, shape index: {}]
  %s2 = inlined_call_operand.hbm [shape: f32[2,1,2048], index: 2, kind: input, shape index: {}]
  %s3 = inlined_call_operand.hbm [shape: bf16[2,2048,1024], index: 3, kind: input, shape index: {}]
  %s4 = inlined_call_operand.hbm [shape: f32[2,1,1024], index: 4, kind: input, shape index: {}]
  %s5 = inlined_call_operand.hbm [shape: bf16[2,1024,512], index: 5, kind: input, shape index: {}]
  %s6 = inlined_call_operand.hbm [shape: f32[2,1,512], index: 6, kind: input, shape index: {}]
  %s7 = inlined_call_operand.vmem [shape: bf16[2,512,8], index: 7, kind: input, shape index: {}]
  %s8 = inlined_call_operand.hbm [shape: f32[2,1,8], index: 8, kind: input, shape index: {}]
  %s9 = inlined_call_operand.hbm [shape: f32[2,8], index: 9, kind: output, shape index: {}]
  %s10 = sld [smem:[#allocation0]]
  $region78: #{rdn_forward.1} parent=0
    _
  %s12 = ssub.s32 1, %s10
  %s13 = scalar_select 0, %s12, %s10
  $region1: #{rdn_forward.1} parent=0
    #allocation2 [shape = 'u8[1024]{0}', space=vmem, size = 0x400, scoped, tag = 'input window, operand 0, single buffered']
    #allocation3 [shape = 's32[1]{0}', space=sflag, size = 0x4, scoped, tag = 'scoped memory for rdn_forward.1']
    #allocation4 [shape = 's32[1]{0}', space=sflag, size = 0x4, scoped, tag = 'scoped memory for rdn_forward.1']
    #allocation5 [shape = 'u8[131072]{0}', space=vmem, size = 0x20000, scoped, tag = 'input window, operand 1, single buffered']
    #allocation6 [shape = 's32[1]{0}', space=sflag, size = 0x4, scoped, tag = 'scoped memory for rdn_forward.1']
    #allocation7 [shape = 'u8[8192]{0}', space=vmem, size = 0x2000, scoped, tag = 'input window, operand 2, single buffered']
    #allocation8 [shape = 'u8[4194304]{0}', space=vmem, size = 0x400000, scoped, tag = 'input window, operand 3, single buffered']
    #allocation9 [shape = 's32[1]{0}', space=sflag, size = 0x4, scoped, tag = 'scoped memory for rdn_forward.1']
    #allocation10 [shape = 'u8[4096]{0}', space=vmem, size = 0x1000, scoped, tag = 'input window, operand 4, single buffered']
    #allocation11 [shape = 'u8[1048576]{0}', space=vmem, size = 0x100000, scoped, tag = 'input window, operand 5, single buffered']
    #allocation12 [shape = 's32[1]{0}', space=sflag, size = 0x4, scoped, tag = 'scoped memory for rdn_forward.1']
    #allocation13 [shape = 'u8[2048]{0}', space=vmem, size = 0x800, scoped, tag = 'input window, operand 6, single buffered']
    #allocation14 [shape = 'u8[512]{0}', space=vmem, size = 0x400, scoped, tag = 'input window, operand 8, single buffered']
    #allocation15 [shape = 's32[1]{0}', space=sflag, size = 0x4, scoped, tag = 'scoped memory for rdn_forward.1']
    #allocation16 [shape = 'u8[1024]{0}', space=vmem, size = 0x400, scoped, tag = 'output window, operand 0, single buffered']
    %14 = vsyncpa [#allocation3], 0
    %15 = vsyncpa [#allocation6], 0
    %16 = vsyncpa [#allocation9], 0
    %17 = vsyncpa [#allocation12], 0
    %18 = vsyncpa [#allocation15], 0
    %19 = vsyncpa [#allocation4], 0
    // Predicated region
    $region2: #{rdn_forward.1} parent=1 // pred_check
      _
    $region3: #{rdn_forward.1} parent=1 // pred_check_branch
      %21 = sbr.rel (0) target = $region5
    $region4: #{rdn_forward.1} parent=1 // pred_region
      %s23 = ssub.s32 32, 32
      %24 = vsyncadd [#allocation3], %s23
      %s26 = sshll.u32 [#allocation2], 4
      %s27 = int_to_ptr.vmem [resolvable:$true] %s26
      %29 = dma.hbm_to_vmem [thread:$0]  %s0, 32, %s27, [#allocation3]
    $region5: #{rdn_forward.1} parent=1 // pred_fallthru
      _
    // Predicated region
    $region6: #{rdn_forward.1} parent=1 // pred_check
      _
    $region7: #{rdn_forward.1} parent=1 // pred_check_branch
      %31 = sbr.rel (0) target = $region9
    $region8: #{rdn_forward.1} parent=1 // pred_region
      %s33 = ssub.s32 4096, 4096
      %34 = vsyncadd [#allocation6], %s33
      %s35 = sshll.u32 [#allocation5], 4
      %s36 = int_to_ptr.vmem [resolvable:$true] %s35
      %41 = dma.hbm_to_vmem [thread:$0]  %s1, 4096, %s36, [#allocation6], 1024, 1024, 64
    $region9: #{rdn_forward.1} parent=1 // pred_fallthru
      _
    // Predicated region
    $region10: #{rdn_forward.1} parent=1 // pred_check
      _
    $region11: #{rdn_forward.1} parent=1 // pred_check_branch
      %43 = sbr.rel (0) target = $region13
    $region12: #{rdn_forward.1} parent=1 // pred_region
      %s45 = ssub.s32 256, 256
      %46 = vsyncadd [#allocation6], %s45
      %s48 = sshll.u32 [#allocation7], 4
      %s49 = int_to_ptr.vmem [resolvable:$true] %s48
      %51 = dma.hbm_to_vmem [thread:$0]  %s2, 256, %s49, [#allocation6]
    $region13: #{rdn_forward.1} parent=1 // pred_fallthru
      _
    // Predicated region
    $region14: #{rdn_forward.1} parent=1 // pred_check
      _
    $region15: #{rdn_forward.1} parent=1 // pred_check_branch
      %53 = sbr.rel (0) target = $region17
    $region16: #{rdn_forward.1} parent=1 // pred_region
      %s55 = ssub.s32 131072, 131072
      %56 = vsyncadd [#allocation9], %s55
      %s57 = sshll.u32 [#allocation8], 4
      %s58 = int_to_ptr.vmem [resolvable:$true] %s57
      %63 = dma.hbm_to_vmem [thread:$0]  %s3, 131072, %s58, [#allocation9], 512, 512, 32
    $region17: #{rdn_forward.1} parent=1 // pred_fallthru
      _
    // Predicated region
    $region18: #{rdn_forward.1} parent=1 // pred_check
      _
    $region19: #{rdn_forward.1} parent=1 // pred_check_branch
      %65 = sbr.rel (0) target = $region21
    $region20: #{rdn_forward.1} parent=1 // pred_region
      %s67 = ssub.s32 128, 128
      %68 = vsyncadd [#allocation9], %s67
      %s70 = sshll.u32 [#allocation10], 4
      %s71 = int_to_ptr.vmem [resolvable:$true] %s70
      %73 = dma.hbm_to_vmem [thread:$0]  %s4, 128, %s71, [#allocation9]
    $region21: #{rdn_forward.1} parent=1 // pred_fallthru
      _
    // Predicated region
    $region22: #{rdn_forward.1} parent=1 // pred_check
      _
    $region23: #{rdn_forward.1} parent=1 // pred_check_branch
      %75 = sbr.rel (0) target = $region25
    $region24: #{rdn_forward.1} parent=1 // pred_region
      %s77 = ssub.s32 32768, 32768
      %78 = vsyncadd [#allocation12], %s77
      %s79 = sshll.u32 [#allocation11], 4
      %s80 = int_to_ptr.vmem [resolvable:$true] %s79
      %85 = dma.hbm_to_vmem [thread:$0]  %s5, 32768, %s80, [#allocation12], 256, 256, 16
    $region25: #{rdn_forward.1} parent=1 // pred_fallthru
      _
    // Predicated region
    $region26: #{rdn_forward.1} parent=1 // pred_check
      _
    $region27: #{rdn_forward.1} parent=1 // pred_check_branch
      %87 = sbr.rel (0) target = $region29
    $region28: #{rdn_forward.1} parent=1 // pred_region
      %s89 = ssub.s32 64, 64
      %90 = vsyncadd [#allocation12], %s89
      %s92 = sshll.u32 [#allocation13], 4
      %s93 = int_to_ptr.vmem [resolvable:$true] %s92
      %95 = dma.hbm_to_vmem [thread:$0]  %s6, 64, %s93, [#allocation12]
    $region29: #{rdn_forward.1} parent=1 // pred_fallthru
      _
    // Predicated region
    $region30: #{rdn_forward.1} parent=1 // pred_check
      _
    $region31: #{rdn_forward.1} parent=1 // pred_check_branch
      %97 = sbr.rel (0) target = $region33
    $region32: #{rdn_forward.1} parent=1 // pred_region
      _
    $region33: #{rdn_forward.1} parent=1 // pred_fallthru
      _
    // Predicated region
    $region34: #{rdn_forward.1} parent=1 // pred_check
      _
    $region35: #{rdn_forward.1} parent=1 // pred_check_branch
      %99 = sbr.rel (0) target = $region37
    $region36: #{rdn_forward.1} parent=1 // pred_region
      %s101 = ssub.s32 16, 16
      %102 = vsyncadd [#allocation15], %s101
      %s104 = sshll.u32 [#allocation14], 4
      %s105 = int_to_ptr.vmem [resolvable:$true] %s104
      %107 = dma.hbm_to_vmem [thread:$0]  %s8, 16, %s105, [#allocation15]
    $region37: #{rdn_forward.1} parent=1 // pred_fallthru
      _
    // Predicated region
    $region38: #{rdn_forward.1} parent=1 // pred_check
      _
    $region39: #{rdn_forward.1} parent=1 // pred_check_branch
      %109 = sbr.rel (0) target = $region41
    $region40: #{rdn_forward.1} parent=1 // pred_region
      %110 = dma.done [#allocation3], 32
    $region41: #{rdn_forward.1} parent=1 // pred_fallthru
      _
    // Predicated region
    $region42: #{rdn_forward.1} parent=1 // pred_check
      _
    $region43: #{rdn_forward.1} parent=1 // pred_check_branch
      %112 = sbr.rel (0) target = $region45
    $region44: #{rdn_forward.1} parent=1 // pred_region
      %113 = dma.done [#allocation6], 4096
    $region45: #{rdn_forward.1} parent=1 // pred_fallthru
      _
    // Predicated region
    $region46: #{rdn_forward.1} parent=1 // pred_check
      _
    $region47: #{rdn_forward.1} parent=1 // pred_check_branch
      %115 = sbr.rel (0) target = $region49
    $region48: #{rdn_forward.1} parent=1 // pred_region
      %116 = dma.done [#allocation6], 256
    $region49: #{rdn_forward.1} parent=1 // pred_fallthru
      _
    // Predicated region
    $region50: #{rdn_forward.1} parent=1 // pred_check
      _
    $region51: #{rdn_forward.1} parent=1 // pred_check_branch
      %118 = sbr.rel (0) target = $region53
    $region52: #{rdn_forward.1} parent=1 // pred_region
      %119 = dma.done [#allocation9], 131072
    $region53: #{rdn_forward.1} parent=1 // pred_fallthru
      _
    // Predicated region
    $region54: #{rdn_forward.1} parent=1 // pred_check
      _
    $region55: #{rdn_forward.1} parent=1 // pred_check_branch
      %121 = sbr.rel (0) target = $region57
    $region56: #{rdn_forward.1} parent=1 // pred_region
      %122 = dma.done [#allocation9], 128
    $region57: #{rdn_forward.1} parent=1 // pred_fallthru
      _
    // Predicated region
    $region58: #{rdn_forward.1} parent=1 // pred_check
      _
    $region59: #{rdn_forward.1} parent=1 // pred_check_branch
      %124 = sbr.rel (0) target = $region61
    $region60: #{rdn_forward.1} parent=1 // pred_region
      %125 = dma.done [#allocation12], 32768
    $region61: #{rdn_forward.1} parent=1 // pred_fallthru
      _
    // Predicated region
    $region62: #{rdn_forward.1} parent=1 // pred_check
      _
    $region63: #{rdn_forward.1} parent=1 // pred_check_branch
      %127 = sbr.rel (0) target = $region65
    $region64: #{rdn_forward.1} parent=1 // pred_region
      %128 = dma.done [#allocation12], 64
    $region65: #{rdn_forward.1} parent=1 // pred_fallthru
      _
    // Predicated region
    $region66: #{rdn_forward.1} parent=1 // pred_check
      _
    $region67: #{rdn_forward.1} parent=1 // pred_check_branch
      %130 = sbr.rel (0) target = $region69
    $region68: #{rdn_forward.1} parent=1 // pred_region
      %131 = dma.done [#allocation15], 16
    $region69: #{rdn_forward.1} parent=1 // pred_fallthru
      _
    %v133 = vld [vmem:[#allocation2] sm:$0x3]
    %v134 = vld [vmem:[#allocation5] sm:$0xff]
    %v135 = vld [vmem:[#allocation5 + $0x8] sm:$0xff]
    %v136 = vld [vmem:[#allocation5 + $0x10] sm:$0xff]
    %v137 = vld [vmem:[#allocation5 + $0x18] sm:$0xff]
    %v138 = vld [vmem:[#allocation5 + $0x20] sm:$0xff]
    %v139 = vld [vmem:[#allocation5 + $0x28] sm:$0xff]
    %v140 = vld [vmem:[#allocation5 + $0x30] sm:$0xff]
    %v141 = vld [vmem:[#allocation5 + $0x38] sm:$0xff]
    %v142 = vld [vmem:[#allocation5 + $0x40] sm:$0xff]
    %v143 = vld [vmem:[#allocation5 + $0x48] sm:$0xff]
    %v144 = vld [vmem:[#allocation5 + $0x50] sm:$0xff]
    %v145 = vld [vmem:[#allocation5 + $0x58] sm:$0xff]
    %v146 = vld [vmem:[#allocation5 + $0x60] sm:$0xff]
    %v147 = vld [vmem:[#allocation5 + $0x68] sm:$0xff]
    %v148 = vld [vmem:[#allocation5 + $0x70] sm:$0xff]
    %v149 = vld [vmem:[#allocation5 + $0x78] sm:$0xff]
    %v150 = vld [vmem:[#allocation5 + $0x80] sm:$0xff]
    %v151 = vld [vmem:[#allocation5 + $0x88] sm:$0xff]
    %v152 = vld [vmem:[#allocation5 + $0x90] sm:$0xff]
    %v153 = vld [vmem:[#allocation5 + $0x98] sm:$0xff]
    %v154 = vld [vmem:[#allocation5 + $0xa0] sm:$0xff]
    %v155 = vld [vmem:[#allocation5 + $0xa8] sm:$0xff]
    %v156 = vld [vmem:[#allocation5 + $0xb0] sm:$0xff]
    %v157 = vld [vmem:[#allocation5 + $0xb8] sm:$0xff]
    %v158 = vld [vmem:[#allocation5 + $0xc0] sm:$0xff]
    %v159 = vld [vmem:[#allocation5 + $0xc8] sm:$0xff]
    %v160 = vld [vmem:[#allocation5 + $0xd0] sm:$0xff]
    %v161 = vld [vmem:[#allocation5 + $0xd8] sm:$0xff]
    %v162 = vld [vmem:[#allocation5 + $0xe0] sm:$0xff]
    %v163 = vld [vmem:[#allocation5 + $0xe8] sm:$0xff]
    %v164 = vld [vmem:[#allocation5 + $0xf0] sm:$0xff]
    %v165 = vld [vmem:[#allocation5 + $0xf8] sm:$0xff]
    %v166 = vld [vmem:[#allocation7] sm:$0xff]
    %v167 = vld [vmem:[#allocation7 + $0x8] sm:$0xff]
    %v168 = vld [vmem:[#allocation8] sm:$0xff]
    %v169 = vld [vmem:[#allocation8 + $0x8] sm:$0xff]
    %v170 = vld [vmem:[#allocation8 + $0x10] sm:$0xff]
    %v171 = vld [vmem:[#allocation8 + $0x18] sm:$0xff]
    %v172 = vld [vmem:[#allocation8 + $0x20] sm:$0xff]
    %v173 = vld [vmem:[#allocation8 + $0x28] sm:$0xff]
    %v174 = vld [vmem:[#allocation8 + $0x30] sm:$0xff]
    %v175 = vld [vmem:[#allocation8 + $0x38] sm:$0xff]
    %v176 = vld [vmem:[#allocation8 + $0x40] sm:$0xff]
    %v177 = vld [vmem:[#allocation8 + $0x48] sm:$0xff]
    %v178 = vld [vmem:[#allocation8 + $0x50] sm:$0xff]
    %v179 = vld [vmem:[#allocation8 + $0x58] sm:$0xff]
    %v180 = vld [vmem:[#allocation8 + $0x60] sm:$0xff]
    %v181 = vld [vmem:[#allocation8 + $0x68] sm:$0xff]
    %v182 = vld [vmem:[#allocation8 + $0x70] sm:$0xff]
    %v183 = vld [vmem:[#allocation8 + $0x78] sm:$0xff]
    %v184 = vld [vmem:[#allocation8 + $0x80] sm:$0xff]
    %v185 = vld [vmem:[#allocation8 + $0x88] sm:$0xff]
    %v186 = vld [vmem:[#allocation8 + $0x90] sm:$0xff]
    %v187 = vld [vmem:[#allocation8 + $0x98] sm:$0xff]
    %v188 = vld [vmem:[#allocation8 + $0xa0] sm:$0xff]
    %v189 = vld [vmem:[#allocation8 + $0xa8] sm:$0xff]
    %v190 = vld [vmem:[#allocation8 + $0xb0] sm:$0xff]
    %v191 = vld [vmem:[#allocation8 + $0xb8] sm:$0xff]
    %v192 = vld [vmem:[#allocation8 + $0xc0] sm:$0xff]
    %v193 = vld [vmem:[#allocation8 + $0xc8] sm:$0xff]
    %v194 = vld [vmem:[#allocation8 + $0xd0] sm:$0xff]
    %v195 = vld [vmem:[#allocation8 + $0xd8] sm:$0xff]
    %v196 = vld [vmem:[#allocation8 + $0xe0] sm:$0xff]
    %v197 = vld [vmem:[#allocation8 + $0xe8] sm:$0xff]
    %v198 = vld [vmem:[#allocation8 + $0xf0] sm:$0xff]
    %v199 = vld [vmem:[#allocation8 + $0xf8] sm:$0xff]
    %v200 = vld [vmem:[#allocation8 + $0x100] sm:$0xff]
    %v201 = vld [vmem:[#allocation8 + $0x108] sm:$0xff]
    %v202 = vld [vmem:[#allocation8 + $0x110] sm:$0xff]
    %v203 = vld [vmem:[#allocation8 + $0x118] sm:$0xff]
    %v204 = vld [vmem:[#allocation8 + $0x120] sm:$0xff]
    %v205 = vld [vmem:[#allocation8 + $0x128] sm:$0xff]
    %v206 = vld [vmem:[#allocation8 + $0x130] sm:$0xff]
    %v207 = vld [vmem:[#allocation8 + $0x138] sm:$0xff]
    %v208 = vld [vmem:[#allocation8 + $0x140] sm:$0xff]
    %v209 = vld [vmem:[#allocation8 + $0x148] sm:$0xff]
    %v210 = vld [vmem:[#allocation8 + $0x150] sm:$0xff]
    %v211 = vld [vmem:[#allocation8 + $0x158] sm:$0xff]
    %v212 = vld [vmem:[#allocation8 + $0x160] sm:$0xff]
    %v213 = vld [vmem:[#allocation8 + $0x168] sm:$0xff]
    %v214 = vld [vmem:[#allocation8 + $0x170] sm:$0xff]
    %v215 = vld [vmem:[#allocation8 + $0x178] sm:$0xff]
    %v216 = vld [vmem:[#allocation8 + $0x180] sm:$0xff]
    %v217 = vld [vmem:[#allocation8 + $0x188] sm:$0xff]
    %v218 = vld [vmem:[#allocation8 + $0x190] sm:$0xff]
    %v219 = vld [vmem:[#allocation8 + $0x198] sm:$0xff]
    %v220 = vld [vmem:[#allocation8 + $0x1a0] sm:$0xff]
    %v221 = vld [vmem:[#allocation8 + $0x1a8] sm:$0xff]
    %v222 = vld [vmem:[#allocation8 + $0x1b0] sm:$0xff]
    %v223 = vld [vmem:[#allocation8 + $0x1b8] sm:$0xff]
    %v224 = vld [vmem:[#allocation8 + $0x1c0] sm:$0xff]
    %v225 = vld [vmem:[#allocation8 + $0x1c8] sm:$0xff]
    %v226 = vld [vmem:[#allocation8 + $0x1d0] sm:$0xff]
    %v227 = vld [vmem:[#allocation8 + $0x1d8] sm:$0xff]
    %v228 = vld [vmem:[#allocation8 + $0x1e0] sm:$0xff]
    %v229 = vld [vmem:[#allocation8 + $0x1e8] sm:$0xff]
    %v230 = vld [vmem:[#allocation8 + $0x1f0] sm:$0xff]
    %v231 = vld [vmem:[#allocation8 + $0x1f8] sm:$0xff]
    %v232 = vld [vmem:[#allocation8 + $0x200] sm:$0xff]
    %v233 = vld [vmem:[#allocation8 + $0x208] sm:$0xff]
    %v234 = vld [vmem:[#allocation8 + $0x210] sm:$0xff]
    %v235 = vld [vmem:[#allocation8 + $0x218] sm:$0xff]
    %v236 = vld [vmem:[#allocation8 + $0x220] sm:$0xff]
    %v237 = vld [vmem:[#allocation8 + $0x228] sm:$0xff]
    %v238 = vld [vmem:[#allocation8 + $0x230] sm:$0xff]
    %v239 = vld [vmem:[#allocation8 + $0x238] sm:$0xff]
    %v240 = vld [vmem:[#allocation8 + $0x240] sm:$0xff]
    %v241 = vld [vmem:[#allocation8 + $0x248] sm:$0xff]
    %v242 = vld [vmem:[#allocation8 + $0x250] sm:$0xff]
    %v243 = vld [vmem:[#allocation8 + $0x258] sm:$0xff]
    %v244 = vld [vmem:[#allocation8 + $0x260] sm:$0xff]
    %v245 = vld [vmem:[#allocation8 + $0x268] sm:$0xff]
    %v246 = vld [vmem:[#allocation8 + $0x270] sm:$0xff]
    %v247 = vld [vmem:[#allocation8 + $0x278] sm:$0xff]
    %v248 = vld [vmem:[#allocation8 + $0x280] sm:$0xff]
    %v249 = vld [vmem:[#allocation8 + $0x288] sm:$0xff]
    %v250 = vld [vmem:[#allocation8 + $0x290] sm:$0xff]
    %v251 = vld [vmem:[#allocation8 + $0x298] sm:$0xff]
    %v252 = vld [vmem:[#allocation8 + $0x2a0] sm:$0xff]
    %v253 = vld [vmem:[#allocation8 + $0x2a8] sm:$0xff]
    %v254 = vld [vmem:[#allocation8 + $0x2b0] sm:$0xff]
    %v255 = vld [vmem:[#allocation8 + $0x2b8] sm:$0xff]
    %v256 = vld [vmem:[#allocation8 + $0x2c0] sm:$0xff]
    %v257 = vld [vmem:[#allocation8 + $0x2c8] sm:$0xff]
    %v258 = vld [vmem:[#allocation8 + $0x2d0] sm:$0xff]
    %v259 = vld [vmem:[#allocation8 + $0x2d8] sm:$0xff]
    %v260 = vld [vmem:[#allocation8 + $0x2e0] sm:$0xff]
    %v261 = vld [vmem:[#allocation8 + $0x2e8] sm:$0xff]
    %v262 = vld [vmem:[#allocation8 + $0x2f0] sm:$0xff]
    %v263 = vld [vmem:[#allocation8 + $0x2f8] sm:$0xff]
    %v264 = vld [vmem:[#allocation8 + $0x300] sm:$0xff]
    %v265 = vld [vmem:[#allocation8 + $0x308] sm:$0xff]
    %v266 = vld [vmem:[#allocation8 + $0x310] sm:$0xff]
    %v267 = vld [vmem:[#allocation8 + $0x318] sm:$0xff]
    %v268 = vld [vmem:[#allocation8 + $0x320] sm:$0xff]
    %v269 = vld [vmem:[#allocation8 + $0x328] sm:$0xff]
    %v270 = vld [vmem:[#allocation8 + $0x330] sm:$0xff]
    %v271 = vld [vmem:[#allocation8 + $0x338] sm:$0xff]
    %v272 = vld [vmem:[#allocation8 + $0x340] sm:$0xff]
    %v273 = vld [vmem:[#allocation8 + $0x348] sm:$0xff]
    %v274 = vld [vmem:[#allocation8 + $0x350] sm:$0xff]
    %v275 = vld [vmem:[#allocation8 + $0x358] sm:$0xff]
    %v276 = vld [vmem:[#allocation8 + $0x360] sm:$0xff]
    %v277 = vld [vmem:[#allocation8 + $0x368] sm:$0xff]
    %v278 = vld [vmem:[#allocation8 + $0x370] sm:$0xff]
    %v279 = vld [vmem:[#allocation8 + $0x378] sm:$0xff]
    %v280 = vld [vmem:[#allocation8 + $0x380] sm:$0xff]
    %v281 = vld [vmem:[#allocation8 + $0x388] sm:$0xff]
    %v282 = vld [vmem:[#allocation8 + $0x390] sm:$0xff]
    %v283 = vld [vmem:[#allocation8 + $0x398] sm:$0xff]
    %v284 = vld [vmem:[#allocation8 + $0x3a0] sm:$0xff]
    %v285 = vld [vmem:[#allocation8 + $0x3a8] sm:$0xff]
    %v286 = vld [vmem:[#allocation8 + $0x3b0] sm:$0xff]
    %v287 = vld [vmem:[#allocation8 + $0x3b8] sm:$0xff]
    %v288 = vld [vmem:[#allocation8 + $0x3c0] sm:$0xff]
    %v289 = vld [vmem:[#allocation8 + $0x3c8] sm:$0xff]
    %v290 = vld [vmem:[#allocation8 + $0x3d0] sm:$0xff]
    %v291 = vld [vmem:[#allocation8 + $0x3d8] sm:$0xff]
    %v292 = vld [vmem:[#allocation8 + $0x3e0] sm:$0xff]
    %v293 = vld [vmem:[#allocation8 + $0x3e8] sm:$0xff]
    %v294 = vld [vmem:[#allocation8 + $0x3f0] sm:$0xff]
    %v295 = vld [vmem:[#allocation8 + $0x3f8] sm:$0xff]
    %v296 = vld [vmem:[#allocation8 + $0x400] sm:$0xff]
    %v297 = vld [vmem:[#allocation8 + $0x408] sm:$0xff]
    %v298 = vld [vmem:[#allocation8 + $0x410] sm:$0xff]
    %v299 = vld [vmem:[#allocation8 + $0x418] sm:$0xff]
    %v300 = vld [vmem:[#allocation8 + $0x420] sm:$0xff]
    %v301 = vld [vmem:[#allocation8 + $0x428] sm:$0xff]
    %v302 = vld [vmem:[#allocation8 + $0x430] sm:$0xff]
    %v303 = vld [vmem:[#allocation8 + $0x438] sm:$0xff]
    %v304 = vld [vmem:[#allocation8 + $0x440] sm:$0xff]
    %v305 = vld [vmem:[#allocation8 + $0x448] sm:$0xff]
    %v306 = vld [vmem:[#allocation8 + $0x450] sm:$0xff]
    %v307 = vld [vmem:[#allocation8 + $0x458] sm:$0xff]
    %v308 = vld [vmem:[#allocation8 + $0x460] sm:$0xff]
    %v309 = vld [vmem:[#allocation8 + $0x468] sm:$0xff]
    %v310 = vld [vmem:[#allocation8 + $0x470] sm:$0xff]
    %v311 = vld [vmem:[#allocation8 + $0x478] sm:$0xff]
    %v312 = vld [vmem:[#allocation8 + $0x480] sm:$0xff]
    %v313 = vld [vmem:[#allocation8 + $0x488] sm:$0xff]
    %v314 = vld [vmem:[#allocation8 + $0x490] sm:$0xff]
    %v315 = vld [vmem:[#allocation8 + $0x498] sm:$0xff]
    %v316 = vld [vmem:[#allocation8 + $0x4a0] sm:$0xff]
    %v317 = vld [vmem:[#allocation8 + $0x4a8] sm:$0xff]
    %v318 = vld [vmem:[#allocation8 + $0x4b0] sm:$0xff]
    %v319 = vld [vmem:[#allocation8 + $0x4b8] sm:$0xff]
    %v320 = vld [vmem:[#allocation8 + $0x4c0] sm:$0xff]
    %v321 = vld [vmem:[#allocation8 + $0x4c8] sm:$0xff]
    %v322 = vld [vmem:[#allocation8 + $0x4d0] sm:$0xff]
    %v323 = vld [vmem:[#allocation8 + $0x4d8] sm:$0xff]
    %v324 = vld [vmem:[#allocation8 + $0x4e0] sm:$0xff]
    %v325 = vld [vmem:[#allocation8 + $0x4e8] sm:$0xff]
    %v326 = vld [vmem:[#allocation8 + $0x4f0] sm:$0xff]
    %v327 = vld [vmem:[#allocation8 + $0x4f8] sm:$0xff]
    %v328 = vld [vmem:[#allocation8 + $0x500] sm:$0xff]
    %v329 = vld [vmem:[#allocation8 + $0x508] sm:$0xff]
    %v330 = vld [vmem:[#allocation8 + $0x510] sm:$0xff]
    %v331 = vld [vmem:[#allocation8 + $0x518] sm:$0xff]
    %v332 = vld [vmem:[#allocation8 + $0x520] sm:$0xff]
    %v333 = vld [vmem:[#allocation8 + $0x528] sm:$0xff]
    %v334 = vld [vmem:[#allocation8 + $0x530] sm:$0xff]
    %v335 = vld [vmem:[#allocation8 + $0x538] sm:$0xff]
    %v336 = vld [vmem:[#allocation8 + $0x540] sm:$0xff]
    %v337 = vld [vmem:[#allocation8 + $0x548] sm:$0xff]
    %v338 = vld [vmem:[#allocation8 + $0x550] sm:$0xff]
    %v339 = vld [vmem:[#allocation8 + $0x558] sm:$0xff]
    %v340 = vld [vmem:[#allocation8 + $0x560] sm:$0xff]
    %v341 = vld [vmem:[#allocation8 + $0x568] sm:$0xff]
    %v342 = vld [vmem:[#allocation8 + $0x570] sm:$0xff]
    %v343 = vld [vmem:[#allocation8 + $0x578] sm:$0xff]
    %v344 = vld [vmem:[#allocation8 + $0x580] sm:$0xff]
    %v345 = vld [vmem:[#allocation8 + $0x588] sm:$0xff]
    %v346 = vld [vmem:[#allocation8 + $0x590] sm:$0xff]
    %v347 = vld [vmem:[#allocation8 + $0x598] sm:$0xff]
    %v348 = vld [vmem:[#allocation8 + $0x5a0] sm:$0xff]
    %v349 = vld [vmem:[#allocation8 + $0x5a8] sm:$0xff]
    %v350 = vld [vmem:[#allocation8 + $0x5b0] sm:$0xff]
    %v351 = vld [vmem:[#allocation8 + $0x5b8] sm:$0xff]
    %v352 = vld [vmem:[#allocation8 + $0x5c0] sm:$0xff]
    %v353 = vld [vmem:[#allocation8 + $0x5c8] sm:$0xff]
    %v354 = vld [vmem:[#allocation8 + $0x5d0] sm:$0xff]
    %v355 = vld [vmem:[#allocation8 + $0x5d8] sm:$0xff]
    %v356 = vld [vmem:[#allocation8 + $0x5e0] sm:$0xff]
    %v357 = vld [vmem:[#allocation8 + $0x5e8] sm:$0xff]
    %v358 = vld [vmem:[#allocation8 + $0x5f0] sm:$0xff]
    %v359 = vld [vmem:[#allocation8 + $0x5f8] sm:$0xff]
    %v360 = vld [vmem:[#allocation8 + $0x600] sm:$0xff]
    %v361 = vld [vmem:[#allocation8 + $0x608] sm:$0xff]
    %v362 = vld [vmem:[#allocation8 + $0x610] sm:$0xff]
    %v363 = vld [vmem:[#allocation8 + $0x618] sm:$0xff]
    %v364 = vld [vmem:[#allocation8 + $0x620] sm:$0xff]
    %v365 = vld [vmem:[#allocation8 + $0x628] sm:$0xff]
    %v366 = vld [vmem:[#allocation8 + $0x630] sm:$0xff]
    %v367 = vld [vmem:[#allocation8 + $0x638] sm:$0xff]
    %v368 = vld [vmem:[#allocation8 + $0x640] sm:$0xff]
    %v369 = vld [vmem:[#allocation8 + $0x648] sm:$0xff]
    %v370 = vld [vmem:[#allocation8 + $0x650] sm:$0xff]
    %v371 = vld [vmem:[#allocation8 + $0x658] sm:$0xff]
    %v372 = vld [vmem:[#allocation8 + $0x660] sm:$0xff]
    %v373 = vld [vmem:[#allocation8 + $0x668] sm:$0xff]
    %v374 = vld [vmem:[#allocation8 + $0x670] sm:$0xff]
    %v375 = vld [vmem:[#allocation8 + $0x678] sm:$0xff]
    %v376 = vld [vmem:[#allocation8 + $0x680] sm:$0xff]
    %v377 = vld [vmem:[#allocation8 + $0x688] sm:$0xff]
    %v378 = vld [vmem:[#allocation8 + $0x690] sm:$0xff]
    %v379 = vld [vmem:[#allocation8 + $0x698] sm:$0xff]
    %v380 = vld [vmem:[#allocation8 + $0x6a0] sm:$0xff]
    %v381 = vld [vmem:[#allocation8 + $0x6a8] sm:$0xff]
    %v382 = vld [vmem:[#allocation8 + $0x6b0] sm:$0xff]
    %v383 = vld [vmem:[#allocation8 + $0x6b8] sm:$0xff]
    %v384 = vld [vmem:[#allocation8 + $0x6c0] sm:$0xff]
    %v385 = vld [vmem:[#allocation8 + $0x6c8] sm:$0xff]
    %v386 = vld [vmem:[#allocation8 + $0x6d0] sm:$0xff]
    %v387 = vld [vmem:[#allocation8 + $0x6d8] sm:$0xff]
    %v388 = vld [vmem:[#allocation8 + $0x6e0] sm:$0xff]
    %v389 = vld [vmem:[#allocation8 + $0x6e8] sm:$0xff]
    %v390 = vld [vmem:[#allocation8 + $0x6f0] sm:$0xff]
    %v391 = vld [vmem:[#allocation8 + $0x6f8] sm:$0xff]
    %v392 = vld [vmem:[#allocation8 + $0x700] sm:$0xff]
    %v393 = vld [vmem:[#allocation8 + $0x708] sm:$0xff]
    %v394 = vld [vmem:[#allocation8 + $0x710] sm:$0xff]
    %v395 = vld [vmem:[#allocation8 + $0x718] sm:$0xff]
    %v396 = vld [vmem:[#allocation8 + $0x720] sm:$0xff]
    %v397 = vld [vmem:[#allocation8 + $0x728] sm:$0xff]
    %v398 = vld [vmem:[#allocation8 + $0x730] sm:$0xff]
    %v399 = vld [vmem:[#allocation8 + $0x738] sm:$0xff]
    %v400 = vld [vmem:[#allocation8 + $0x740] sm:$0xff]
    %v401 = vld [vmem:[#allocation8 + $0x748] sm:$0xff]
    %v402 = vld [vmem:[#allocation8 + $0x750] sm:$0xff]
    %v403 = vld [vmem:[#allocation8 + $0x758] sm:$0xff]
    %v404 = vld [vmem:[#allocation8 + $0x760] sm:$0xff]
    %v405 = vld [vmem:[#allocation8 + $0x768] sm:$0xff]
    %v406 = vld [vmem:[#allocation8 + $0x770] sm:$0xff]
    %v407 = vld [vmem:[#allocation8 + $0x778] sm:$0xff]
    %v408 = vld [vmem:[#allocation8 + $0x780] sm:$0xff]
    %v409 = vld [vmem:[#allocation8 + $0x788] sm:$0xff]
    %v410 = vld [vmem:[#allocation8 + $0x790] sm:$0xff]
    %v411 = vld [vmem:[#allocation8 + $0x798] sm:$0xff]
    %v412 = vld [vmem:[#allocation8 + $0x7a0] sm:$0xff]
    %v413 = vld [vmem:[#allocation8 + $0x7a8] sm:$0xff]
    %v414 = vld [vmem:[#allocation8 + $0x7b0] sm:$0xff]
    %v415 = vld [vmem:[#allocation8 + $0x7b8] sm:$0xff]
    %v416 = vld [vmem:[#allocation8 + $0x7c0] sm:$0xff]
    %v417 = vld [vmem:[#allocation8 + $0x7c8] sm:$0xff]
    %v418 = vld [vmem:[#allocation8 + $0x7d0] sm:$0xff]
    %v419 = vld [vmem:[#allocation8 + $0x7d8] sm:$0xff]
    %v420 = vld [vmem:[#allocation8 + $0x7e0] sm:$0xff]
    %v421 = vld [vmem:[#allocation8 + $0x7e8] sm:$0xff]
    %v422 = vld [vmem:[#allocation8 + $0x7f0] sm:$0xff]
    %v423 = vld [vmem:[#allocation8 + $0x7f8] sm:$0xff]
    %v424 = vld [vmem:[#allocation8 + $0x800] sm:$0xff]
    %v425 = vld [vmem:[#allocation8 + $0x808] sm:$0xff]
    %v426 = vld [vmem:[#allocation8 + $0x810] sm:$0xff]
    %v427 = vld [vmem:[#allocation8 + $0x818] sm:$0xff]
    %v428 = vld [vmem:[#allocation8 + $0x820] sm:$0xff]
    %v429 = vld [vmem:[#allocation8 + $0x828] sm:$0xff]
    %v430 = vld [vmem:[#allocation8 + $0x830] sm:$0xff]
    %v431 = vld [vmem:[#allocation8 + $0x838] sm:$0xff]
    %v432 = vld [vmem:[#allocation8 + $0x840] sm:$0xff]
    %v433 = vld [vmem:[#allocation8 + $0x848] sm:$0xff]
    %v434 = vld [vmem:[#allocation8 + $0x850] sm:$0xff]
    %v435 = vld [vmem:[#allocation8 + $0x858] sm:$0xff]
    %v436 = vld [vmem:[#allocation8 + $0x860] sm:$0xff]
    %v437 = vld [vmem:[#allocation8 + $0x868] sm:$0xff]
    %v438 = vld [vmem:[#allocation8 + $0x870] sm:$0xff]
    %v439 = vld [vmem:[#allocation8 + $0x878] sm:$0xff]
    %v440 = vld [vmem:[#allocation8 + $0x880] sm:$0xff]
    %v441 = vld [vmem:[#allocation8 + $0x888] sm:$0xff]
    %v442 = vld [vmem:[#allocation8 + $0x890] sm:$0xff]
    %v443 = vld [vmem:[#allocation8 + $0x898] sm:$0xff]
    %v444 = vld [vmem:[#allocation8 + $0x8a0] sm:$0xff]
    %v445 = vld [vmem:[#allocation8 + $0x8a8] sm:$0xff]
    %v446 = vld [vmem:[#allocation8 + $0x8b0] sm:$0xff]
    %v447 = vld [vmem:[#allocation8 + $0x8b8] sm:$0xff]
    %v448 = vld [vmem:[#allocation8 + $0x8c0] sm:$0xff]
    %v449 = vld [vmem:[#allocation8 + $0x8c8] sm:$0xff]
    %v450 = vld [vmem:[#allocation8 + $0x8d0] sm:$0xff]
    %v451 = vld [vmem:[#allocation8 + $0x8d8] sm:$0xff]
    %v452 = vld [vmem:[#allocation8 + $0x8e0] sm:$0xff]
    %v453 = vld [vmem:[#allocation8 + $0x8e8] sm:$0xff]
    %v454 = vld [vmem:[#allocation8 + $0x8f0] sm:$0xff]
    %v455 = vld [vmem:[#allocation8 + $0x8f8] sm:$0xff]
    %v456 = vld [vmem:[#allocation8 + $0x900] sm:$0xff]
    %v457 = vld [vmem:[#allocation8 + $0x908] sm:$0xff]
    %v458 = vld [vmem:[#allocation8 + $0x910] sm:$0xff]
    %v459 = vld [vmem:[#allocation8 + $0x918] sm:$0xff]
    %v460 = vld [vmem:[#allocation8 + $0x920] sm:$0xff]
    %v461 = vld [vmem:[#allocation8 + $0x928] sm:$0xff]
    %v462 = vld [vmem:[#allocation8 + $0x930] sm:$0xff]
    %v463 = vld [vmem:[#allocation8 + $0x938] sm:$0xff]
    %v464 = vld [vmem:[#allocation8 + $0x940] sm:$0xff]
    %v465 = vld [vmem:[#allocation8 + $0x948] sm:$0xff]
    %v466 = vld [vmem:[#allocation8 + $0x950] sm:$0xff]
    %v467 = vld [vmem:[#allocation8 + $0x958] sm:$0xff]
    %v468 = vld [vmem:[#allocation8 + $0x960] sm:$0xff]
    %v469 = vld [vmem:[#allocation8 + $0x968] sm:$0xff]
    %v470 = vld [vmem:[#allocation8 + $0x970] sm:$0xff]
    %v471 = vld [vmem:[#allocation8 + $0x978] sm:$0xff]
    %v472 = vld [vmem:[#allocation8 + $0x980] sm:$0xff]
    %v473 = vld [vmem:[#allocation8 + $0x988] sm:$0xff]
    %v474 = vld [vmem:[#allocation8 + $0x990] sm:$0xff]
    %v475 = vld [vmem:[#allocation8 + $0x998] sm:$0xff]
    %v476 = vld [vmem:[#allocation8 + $0x9a0] sm:$0xff]
    %v477 = vld [vmem:[#allocation8 + $0x9a8] sm:$0xff]
    %v478 = vld [vmem:[#allocation8 + $0x9b0] sm:$0xff]
    %v479 = vld [vmem:[#allocation8 + $0x9b8] sm:$0xff]
    %v480 = vld [vmem:[#allocation8 + $0x9c0] sm:$0xff]
    %v481 = vld [vmem:[#allocation8 + $0x9c8] sm:$0xff]
    %v482 = vld [vmem:[#allocation8 + $0x9d0] sm:$0xff]
    %v483 = vld [vmem:[#allocation8 + $0x9d8] sm:$0xff]
    %v484 = vld [vmem:[#allocation8 + $0x9e0] sm:$0xff]
    %v485 = vld [vmem:[#allocation8 + $0x9e8] sm:$0xff]
    %v486 = vld [vmem:[#allocation8 + $0x9f0] sm:$0xff]
    %v487 = vld [vmem:[#allocation8 + $0x9f8] sm:$0xff]
    %v488 = vld [vmem:[#allocation8 + $0xa00] sm:$0xff]
    %v489 = vld [vmem:[#allocation8 + $0xa08] sm:$0xff]
    %v490 = vld [vmem:[#allocation8 + $0xa10] sm:$0xff]
    %v491 = vld [vmem:[#allocation8 + $0xa18] sm:$0xff]
    %v492 = vld [vmem:[#allocation8 + $0xa20] sm:$0xff]
    %v493 = vld [vmem:[#allocation8 + $0xa28] sm:$0xff]
    %v494 = vld [vmem:[#allocation8 + $0xa30] sm:$0xff]
    %v495 = vld [vmem:[#allocation8 + $0xa38] sm:$0xff]
    %v496 = vld [vmem:[#allocation8 + $0xa40] sm:$0xff]
    %v497 = vld [vmem:[#allocation8 + $0xa48] sm:$0xff]
    %v498 = vld [vmem:[#allocation8 + $0xa50] sm:$0xff]
    %v499 = vld [vmem:[#allocation8 + $0xa58] sm:$0xff]
    %v500 = vld [vmem:[#allocation8 + $0xa60] sm:$0xff]
    %v501 = vld [vmem:[#allocation8 + $0xa68] sm:$0xff]
    %v502 = vld [vmem:[#allocation8 + $0xa70] sm:$0xff]
    %v503 = vld [vmem:[#allocation8 + $0xa78] sm:$0xff]
    %v504 = vld [vmem:[#allocation8 + $0xa80] sm:$0xff]
    %v505 = vld [vmem:[#allocation8 + $0xa88] sm:$0xff]
    %v506 = vld [vmem:[#allocation8 + $0xa90] sm:$0xff]
    %v507 = vld [vmem:[#allocation8 + $0xa98] sm:$0xff]
    %v508 = vld [vmem:[#allocation8 + $0xaa0] sm:$0xff]
    %v509 = vld [vmem:[#allocation8 + $0xaa8] sm:$0xff]
    %v510 = vld [vmem:[#allocation8 + $0xab0] sm:$0xff]
    %v511 = vld [vmem:[#allocation8 + $0xab8] sm:$0xff]
    %v512 = vld [vmem:[#allocation8 + $0xac0] sm:$0xff]
    %v513 = vld [vmem:[#allocation8 + $0xac8] sm:$0xff]
    %v514 = vld [vmem:[#allocation8 + $0xad0] sm:$0xff]
    %v515 = vld [vmem:[#allocation8 + $0xad8] sm:$0xff]
    %v516 = vld [vmem:[#allocation8 + $0xae0] sm:$0xff]
    %v517 = vld [vmem:[#allocation8 + $0xae8] sm:$0xff]
    %v518 = vld [vmem:[#allocation8 + $0xaf0] sm:$0xff]
    %v519 = vld [vmem:[#allocation8 + $0xaf8] sm:$0xff]
    %v520 = vld [vmem:[#allocation8 + $0xb00] sm:$0xff]
    %v521 = vld [vmem:[#allocation8 + $0xb08] sm:$0xff]
    %v522 = vld [vmem:[#allocation8 + $0xb10] sm:$0xff]
    %v523 = vld [vmem:[#allocation8 + $0xb18] sm:$0xff]
    %v524 = vld [vmem:[#allocation8 + $0xb20] sm:$0xff]
    %v525 = vld [vmem:[#allocation8 + $0xb28] sm:$0xff]
    %v526 = vld [vmem:[#allocation8 + $0xb30] sm:$0xff]
    %v527 = vld [vmem:[#allocation8 + $0xb38] sm:$0xff]
    %v528 = vld [vmem:[#allocation8 + $0xb40] sm:$0xff]
    %v529 = vld [vmem:[#allocation8 + $0xb48] sm:$0xff]
    %v530 = vld [vmem:[#allocation8 + $0xb50] sm:$0xff]
    %v531 = vld [vmem:[#allocation8 + $0xb58] sm:$0xff]
    %v532 = vld [vmem:[#allocation8 + $0xb60] sm:$0xff]
    %v533 = vld [vmem:[#allocation8 + $0xb68] sm:$0xff]
    %v534 = vld [vmem:[#allocation8 + $0xb70] sm:$0xff]
    %v535 = vld [vmem:[#allocation8 + $0xb78] sm:$0xff]
    %v536 = vld [vmem:[#allocation8 + $0xb80] sm:$0xff]
    %v537 = vld [vmem:[#allocation8 + $0xb88] sm:$0xff]
    %v538 = vld [vmem:[#allocation8 + $0xb90] sm:$0xff]
    %v539 = vld [vmem:[#allocation8 + $0xb98] sm:$0xff]
    %v540 = vld [vmem:[#allocation8 + $0xba0] sm:$0xff]
    %v541 = vld [vmem:[#allocation8 + $0xba8] sm:$0xff]
    %v542 = vld [vmem:[#allocation8 + $0xbb0] sm:$0xff]
    %v543 = vld [vmem:[#allocation8 + $0xbb8] sm:$0xff]
    %v544 = vld [vmem:[#allocation8 + $0xbc0] sm:$0xff]
    %v545 = vld [vmem:[#allocation8 + $0xbc8] sm:$0xff]
    %v546 = vld [vmem:[#allocation8 + $0xbd0] sm:$0xff]
    %v547 = vld [vmem:[#allocation8 + $0xbd8] sm:$0xff]
    %v548 = vld [vmem:[#allocation8 + $0xbe0] sm:$0xff]
    %v549 = vld [vmem:[#allocation8 + $0xbe8] sm:$0xff]
    %v550 = vld [vmem:[#allocation8 + $0xbf0] sm:$0xff]
    %v551 = vld [vmem:[#allocation8 + $0xbf8] sm:$0xff]
    %v552 = vld [vmem:[#allocation8 + $0xc00] sm:$0xff]
    %v553 = vld [vmem:[#allocation8 + $0xc08] sm:$0xff]
    %v554 = vld [vmem:[#allocation8 + $0xc10] sm:$0xff]
    %v555 = vld [vmem:[#allocation8 + $0xc18] sm:$0xff]
    %v556 = vld [vmem:[#allocation8 + $0xc20] sm:$0xff]
    %v557 = vld [vmem:[#allocation8 + $0xc28] sm:$0xff]
    %v558 = vld [vmem:[#allocation8 + $0xc30] sm:$0xff]
    %v559 = vld [vmem:[#allocation8 + $0xc38] sm:$0xff]
    %v560 = vld [vmem:[#allocation8 + $0xc40] sm:$0xff]
    %v561 = vld [vmem:[#allocation8 + $0xc48] sm:$0xff]
    %v562 = vld [vmem:[#allocation8 + $0xc50] sm:$0xff]
    %v563 = vld [vmem:[#allocation8 + $0xc58] sm:$0xff]
    %v564 = vld [vmem:[#allocation8 + $0xc60] sm:$0xff]
    %v565 = vld [vmem:[#allocation8 + $0xc68] sm:$0xff]
    %v566 = vld [vmem:[#allocation8 + $0xc70] sm:$0xff]
    %v567 = vld [vmem:[#allocation8 + $0xc78] sm:$0xff]
    %v568 = vld [vmem:[#allocation8 + $0xc80] sm:$0xff]
    %v569 = vld [vmem:[#allocation8 + $0xc88] sm:$0xff]
    %v570 = vld [vmem:[#allocation8 + $0xc90] sm:$0xff]
    %v571 = vld [vmem:[#allocation8 + $0xc98] sm:$0xff]
    %v572 = vld [vmem:[#allocation8 + $0xca0] sm:$0xff]
    %v573 = vld [vmem:[#allocation8 + $0xca8] sm:$0xff]
    %v574 = vld [vmem:[#allocation8 + $0xcb0] sm:$0xff]
    %v575 = vld [vmem:[#allocation8 + $0xcb8] sm:$0xff]
    %v576 = vld [vmem:[#allocation8 + $0xcc0] sm:$0xff]
    %v577 = vld [vmem:[#allocation8 + $0xcc8] sm:$0xff]
    %v578 = vld [vmem:[#allocation8 + $0xcd0] sm:$0xff]
    %v579 = vld [vmem:[#allocation8 + $0xcd8] sm:$0xff]
    %v580 = vld [vmem:[#allocation8 + $0xce0] sm:$0xff]
    %v581 = vld [vmem:[#allocation8 + $0xce8] sm:$0xff]
    %v582 = vld [vmem:[#allocation8 + $0xcf0] sm:$0xff]
    %v583 = vld [vmem:[#allocation8 + $0xcf8] sm:$0xff]
    %v584 = vld [vmem:[#allocation8 + $0xd00] sm:$0xff]
    %v585 = vld [vmem:[#allocation8 + $0xd08] sm:$0xff]
    %v586 = vld [vmem:[#allocation8 + $0xd10] sm:$0xff]
    %v587 = vld [vmem:[#allocation8 + $0xd18] sm:$0xff]
    %v588 = vld [vmem:[#allocation8 + $0xd20] sm:$0xff]
    %v589 = vld [vmem:[#allocation8 + $0xd28] sm:$0xff]
    %v590 = vld [vmem:[#allocation8 + $0xd30] sm:$0xff]
    %v591 = vld [vmem:[#allocation8 + $0xd38] sm:$0xff]
    %v592 = vld [vmem:[#allocation8 + $0xd40] sm:$0xff]
    %v593 = vld [vmem:[#allocation8 + $0xd48] sm:$0xff]
    %v594 = vld [vmem:[#allocation8 + $0xd50] sm:$0xff]
    %v595 = vld [vmem:[#allocation8 + $0xd58] sm:$0xff]
    %v596 = vld [vmem:[#allocation8 + $0xd60] sm:$0xff]
    %v597 = vld [vmem:[#allocation8 + $0xd68] sm:$0xff]
    %v598 = vld [vmem:[#allocation8 + $0xd70] sm:$0xff]
    %v599 = vld [vmem:[#allocation8 + $0xd78] sm:$0xff]
    %v600 = vld [vmem:[#allocation8 + $0xd80] sm:$0xff]
    %v601 = vld [vmem:[#allocation8 + $0xd88] sm:$0xff]
    %v602 = vld [vmem:[#allocation8 + $0xd90] sm:$0xff]
    %v603 = vld [vmem:[#allocation8 + $0xd98] sm:$0xff]
    %v604 = vld [vmem:[#allocation8 + $0xda0] sm:$0xff]
    %v605 = vld [vmem:[#allocation8 + $0xda8] sm:$0xff]
    %v606 = vld [vmem:[#allocation8 + $0xdb0] sm:$0xff]
    %v607 = vld [vmem:[#allocation8 + $0xdb8] sm:$0xff]
    %v608 = vld [vmem:[#allocation8 + $0xdc0] sm:$0xff]
    %v609 = vld [vmem:[#allocation8 + $0xdc8] sm:$0xff]
    %v610 = vld [vmem:[#allocation8 + $0xdd0] sm:$0xff]
    %v611 = vld [vmem:[#allocation8 + $0xdd8] sm:$0xff]
    %v612 = vld [vmem:[#allocation8 + $0xde0] sm:$0xff]
    %v613 = vld [vmem:[#allocation8 + $0xde8] sm:$0xff]
    %v614 = vld [vmem:[#allocation8 + $0xdf0] sm:$0xff]
    %v615 = vld [vmem:[#allocation8 + $0xdf8] sm:$0xff]
    %v616 = vld [vmem:[#allocation8 + $0xe00] sm:$0xff]
    %v617 = vld [vmem:[#allocation8 + $0xe08] sm:$0xff]
    %v618 = vld [vmem:[#allocation8 + $0xe10] sm:$0xff]
    %v619 = vld [vmem:[#allocation8 + $0xe18] sm:$0xff]
    %v620 = vld [vmem:[#allocation8 + $0xe20] sm:$0xff]
    %v621 = vld [vmem:[#allocation8 + $0xe28] sm:$0xff]
    %v622 = vld [vmem:[#allocation8 + $0xe30] sm:$0xff]
    %v623 = vld [vmem:[#allocation8 + $0xe38] sm:$0xff]
    %v624 = vld [vmem:[#allocation8 + $0xe40] sm:$0xff]
    %v625 = vld [vmem:[#allocation8 + $0xe48] sm:$0xff]
    %v626 = vld [vmem:[#allocation8 + $0xe50] sm:$0xff]
    %v627 = vld [vmem:[#allocation8 + $0xe58] sm:$0xff]
    %v628 = vld [vmem:[#allocation8 + $0xe60] sm:$0xff]
    %v629 = vld [vmem:[#allocation8 + $0xe68] sm:$0xff]
    %v630 = vld [vmem:[#allocation8 + $0xe70] sm:$0xff]
    %v631 = vld [vmem:[#allocation8 + $0xe78] sm:$0xff]
    %v632 = vld [vmem:[#allocation8 + $0xe80] sm:$0xff]
    %v633 = vld [vmem:[#allocation8 + $0xe88] sm:$0xff]
    %v634 = vld [vmem:[#allocation8 + $0xe90] sm:$0xff]
    %v635 = vld [vmem:[#allocation8 + $0xe98] sm:$0xff]
    %v636 = vld [vmem:[#allocation8 + $0xea0] sm:$0xff]
    %v637 = vld [vmem:[#allocation8 + $0xea8] sm:$0xff]
    %v638 = vld [vmem:[#allocation8 + $0xeb0] sm:$0xff]
    %v639 = vld [vmem:[#allocation8 + $0xeb8] sm:$0xff]
    %v640 = vld [vmem:[#allocation8 + $0xec0] sm:$0xff]
    %v641 = vld [vmem:[#allocation8 + $0xec8] sm:$0xff]
    %v642 = vld [vmem:[#allocation8 + $0xed0] sm:$0xff]
    %v643 = vld [vmem:[#allocation8 + $0xed8] sm:$0xff]
    %v644 = vld [vmem:[#allocation8 + $0xee0] sm:$0xff]
    %v645 = vld [vmem:[#allocation8 + $0xee8] sm:$0xff]
    %v646 = vld [vmem:[#allocation8 + $0xef0] sm:$0xff]
    %v647 = vld [vmem:[#allocation8 + $0xef8] sm:$0xff]
    %v648 = vld [vmem:[#allocation8 + $0xf00] sm:$0xff]
    %v649 = vld [vmem:[#allocation8 + $0xf08] sm:$0xff]
    %v650 = vld [vmem:[#allocation8 + $0xf10] sm:$0xff]
    %v651 = vld [vmem:[#allocation8 + $0xf18] sm:$0xff]
    %v652 = vld [vmem:[#allocation8 + $0xf20] sm:$0xff]
    %v653 = vld [vmem:[#allocation8 + $0xf28] sm:$0xff]
    %v654 = vld [vmem:[#allocation8 + $0xf30] sm:$0xff]
    %v655 = vld [vmem:[#allocation8 + $0xf38] sm:$0xff]
    %v656 = vld [vmem:[#allocation8 + $0xf40] sm:$0xff]
    %v657 = vld [vmem:[#allocation8 + $0xf48] sm:$0xff]
    %v658 = vld [vmem:[#allocation8 + $0xf50] sm:$0xff]
    %v659 = vld [vmem:[#allocation8 + $0xf58] sm:$0xff]
    %v660 = vld [vmem:[#allocation8 + $0xf60] sm:$0xff]
    %v661 = vld [vmem:[#allocation8 + $0xf68] sm:$0xff]
    %v662 = vld [vmem:[#allocation8 + $0xf70] sm:$0xff]
    %v663 = vld [vmem:[#allocation8 + $0xf78] sm:$0xff]
    %v664 = vld [vmem:[#allocation8 + $0xf80] sm:$0xff]
    %v665 = vld [vmem:[#allocation8 + $0xf88] sm:$0xff]
    %v666 = vld [vmem:[#allocation8 + $0xf90] sm:$0xff]
    %v667 = vld [vmem:[#allocation8 + $0xf98] sm:$0xff]
    %v668 = vld [vmem:[#allocation8 + $0xfa0] sm:$0xff]
    %v669 = vld [vmem:[#allocation8 + $0xfa8] sm:$0xff]
    %v670 = vld [vmem:[#allocation8 + $0xfb0] sm:$0xff]
    %v671 = vld [vmem:[#allocation8 + $0xfb8] sm:$0xff]
    %v672 = vld [vmem:[#allocation8 + $0xfc0] sm:$0xff]
    %v673 = vld [vmem:[#allocation8 + $0xfc8] sm:$0xff]
    %v674 = vld [vmem:[#allocation8 + $0xfd0] sm:$0xff]
    %v675 = vld [vmem:[#allocation8 + $0xfd8] sm:$0xff]
    %v676 = vld [vmem:[#allocation8 + $0xfe0] sm:$0xff]
    %v677 = vld [vmem:[#allocation8 + $0xfe8] sm:$0xff]
    %v678 = vld [vmem:[#allocation8 + $0xff0] sm:$0xff]
    %v679 = vld [vmem:[#allocation8 + $0xff8] sm:$0xff]
    %v680 = vld [vmem:[#allocation8 + $0x1000] sm:$0xff]
    %v681 = vld [vmem:[#allocation8 + $0x1008] sm:$0xff]
    %v682 = vld [vmem:[#allocation8 + $0x1010] sm:$0xff]
    %v683 = vld [vmem:[#allocation8 + $0x1018] sm:$0xff]
    %v684 = vld [vmem:[#allocation8 + $0x1020] sm:$0xff]
    %v685 = vld [vmem:[#allocation8 + $0x1028] sm:$0xff]
    %v686 = vld [vmem:[#allocation8 + $0x1030] sm:$0xff]
    %v687 = vld [vmem:[#allocation8 + $0x1038] sm:$0xff]
    %v688 = vld [vmem:[#allocation8 + $0x1040] sm:$0xff]
    %v689 = vld [vmem:[#allocation8 + $0x1048] sm:$0xff]
    %v690 = vld [vmem:[#allocation8 + $0x1050] sm:$0xff]
    %v691 = vld [vmem:[#allocation8 + $0x1058] sm:$0xff]
    %v692 = vld [vmem:[#allocation8 + $0x1060] sm:$0xff]
    %v693 = vld [vmem:[#allocation8 + $0x1068] sm:$0xff]
    %v694 = vld [vmem:[#allocation8 + $0x1070] sm:$0xff]
    %v695 = vld [vmem:[#allocation8 + $0x1078] sm:$0xff]
    %v696 = vld [vmem:[#allocation8 + $0x1080] sm:$0xff]
    %v697 = vld [vmem:[#allocation8 + $0x1088] sm:$0xff]
    %v698 = vld [vmem:[#allocation8 + $0x1090] sm:$0xff]
    %v699 = vld [vmem:[#allocation8 + $0x1098] sm:$0xff]
    %v700 = vld [vmem:[#allocation8 + $0x10a0] sm:$0xff]
    %v701 = vld [vmem:[#allocation8 + $0x10a8] sm:$0xff]
    %v702 = vld [vmem:[#allocation8 + $0x10b0] sm:$0xff]
    %v703 = vld [vmem:[#allocation8 + $0x10b8] sm:$0xff]
    %v704 = vld [vmem:[#allocation8 + $0x10c0] sm:$0xff]
    %v705 = vld [vmem:[#allocation8 + $0x10c8] sm:$0xff]
    %v706 = vld [vmem:[#allocation8 + $0x10d0] sm:$0xff]
    %v707 = vld [vmem:[#allocation8 + $0x10d8] sm:$0xff]
    %v708 = vld [vmem:[#allocation8 + $0x10e0] sm:$0xff]
    %v709 = vld [vmem:[#allocation8 + $0x10e8] sm:$0xff]
    %v710 = vld [vmem:[#allocation8 + $0x10f0] sm:$0xff]
    %v711 = vld [vmem:[#allocation8 + $0x10f8] sm:$0xff]
    %v712 = vld [vmem:[#allocation8 + $0x1100] sm:$0xff]
    %v713 = vld [vmem:[#allocation8 + $0x1108] sm:$0xff]
    %v714 = vld [vmem:[#allocation8 + $0x1110] sm:$0xff]
    %v715 = vld [vmem:[#allocation8 + $0x1118] sm:$0xff]
    %v716 = vld [vmem:[#allocation8 + $0x1120] sm:$0xff]
    %v717 = vld [vmem:[#allocation8 + $0x1128] sm:$0xff]
    %v718 = vld [vmem:[#allocation8 + $0x1130] sm:$0xff]
    %v719 = vld [vmem:[#allocation8 + $0x1138] sm:$0xff]
    %v720 = vld [vmem:[#allocation8 + $0x1140] sm:$0xff]
    %v721 = vld [vmem:[#allocation8 + $0x1148] sm:$0xff]
    %v722 = vld [vmem:[#allocation8 + $0x1150] sm:$0xff]
    %v723 = vld [vmem:[#allocation8 + $0x1158] sm:$0xff]
    %v724 = vld [vmem:[#allocation8 + $0x1160] sm:$0xff]
    %v725 = vld [vmem:[#allocation8 + $0x1168] sm:$0xff]
    %v726 = vld [vmem:[#allocation8 + $0x1170] sm:$0xff]
    %v727 = vld [vmem:[#allocation8 + $0x1178] sm:$0xff]
    %v728 = vld [vmem:[#allocation8 + $0x1180] sm:$0xff]
    %v729 = vld [vmem:[#allocation8 + $0x1188] sm:$0xff]
    %v730 = vld [vmem:[#allocation8 + $0x1190] sm:$0xff]
    %v731 = vld [vmem:[#allocation8 + $0x1198] sm:$0xff]
    %v732 = vld [vmem:[#allocation8 + $0x11a0] sm:$0xff]
    %v733 = vld [vmem:[#allocation8 + $0x11a8] sm:$0xff]
    %v734 = vld [vmem:[#allocation8 + $0x11b0] sm:$0xff]
    %v735 = vld [vmem:[#allocation8 + $0x11b8] sm:$0xff]
    %v736 = vld [vmem:[#allocation8 + $0x11c0] sm:$0xff]
    %v737 = vld [vmem:[#allocation8 + $0x11c8] sm:$0xff]
    %v738 = vld [vmem:[#allocation8 + $0x11d0] sm:$0xff]
    %v739 = vld [vmem:[#allocation8 + $0x11d8] sm:$0xff]
    %v740 = vld [vmem:[#allocation8 + $0x11e0] sm:$0xff]
    %v741 = vld [vmem:[#allocation8 + $0x11e8] sm:$0xff]
    %v742 = vld [vmem:[#allocation8 + $0x11f0] sm:$0xff]
    %v743 = vld [vmem:[#allocation8 + $0x11f8] sm:$0xff]
    %v744 = vld [vmem:[#allocation8 + $0x1200] sm:$0xff]
    %v745 = vld [vmem:[#allocation8 + $0x1208] sm:$0xff]
    %v746 = vld [vmem:[#allocation8 + $0x1210] sm:$0xff]
    %v747 = vld [vmem:[#allocation8 + $0x1218] sm:$0xff]
    %v748 = vld [vmem:[#allocation8 + $0x1220] sm:$0xff]
    %v749 = vld [vmem:[#allocation8 + $0x1228] sm:$0xff]
    %v750 = vld [vmem:[#allocation8 + $0x1230] sm:$0xff]
    %v751 = vld [vmem:[#allocation8 + $0x1238] sm:$0xff]
    %v752 = vld [vmem:[#allocation8 + $0x1240] sm:$0xff]
    %v753 = vld [vmem:[#allocation8 + $0x1248] sm:$0xff]
    %v754 = vld [vmem:[#allocation8 + $0x1250] sm:$0xff]
    %v755 = vld [vmem:[#allocation8 + $0x1258] sm:$0xff]
    %v756 = vld [vmem:[#allocation8 + $0x1260] sm:$0xff]
    %v757 = vld [vmem:[#allocation8 + $0x1268] sm:$0xff]
    %v758 = vld [vmem:[#allocation8 + $0x1270] sm:$0xff]
    %v759 = vld [vmem:[#allocation8 + $0x1278] sm:$0xff]
    %v760 = vld [vmem:[#allocation8 + $0x1280] sm:$0xff]
    %v761 = vld [vmem:[#allocation8 + $0x1288] sm:$0xff]
    %v762 = vld [vmem:[#allocation8 + $0x1290] sm:$0xff]
    %v763 = vld [vmem:[#allocation8 + $0x1298] sm:$0xff]
    %v764 = vld [vmem:[#allocation8 + $0x12a0] sm:$0xff]
    %v765 = vld [vmem:[#allocation8 + $0x12a8] sm:$0xff]
    %v766 = vld [vmem:[#allocation8 + $0x12b0] sm:$0xff]
    %v767 = vld [vmem:[#allocation8 + $0x12b8] sm:$0xff]
    %v768 = vld [vmem:[#allocation8 + $0x12c0] sm:$0xff]
    %v769 = vld [vmem:[#allocation8 + $0x12c8] sm:$0xff]
    %v770 = vld [vmem:[#allocation8 + $0x12d0] sm:$0xff]
    %v771 = vld [vmem:[#allocation8 + $0x12d8] sm:$0xff]
    %v772 = vld [vmem:[#allocation8 + $0x12e0] sm:$0xff]
    %v773 = vld [vmem:[#allocation8 + $0x12e8] sm:$0xff]
    %v774 = vld [vmem:[#allocation8 + $0x12f0] sm:$0xff]
    %v775 = vld [vmem:[#allocation8 + $0x12f8] sm:$0xff]
    %v776 = vld [vmem:[#allocation8 + $0x1300] sm:$0xff]
    %v777 = vld [vmem:[#allocation8 + $0x1308] sm:$0xff]
    %v778 = vld [vmem:[#allocation8 + $0x1310] sm:$0xff]
    %v779 = vld [vmem:[#allocation8 + $0x1318] sm:$0xff]
    %v780 = vld [vmem:[#allocation8 + $0x1320] sm:$0xff]
    %v781 = vld [vmem:[#allocation8 + $0x1328] sm:$0xff]
    %v782 = vld [vmem:[#allocation8 + $0x1330] sm:$0xff]
    %v783 = vld [vmem:[#allocation8 + $0x1338] sm:$0xff]
    %v784 = vld [vmem:[#allocation8 + $0x1340] sm:$0xff]
    %v785 = vld [vmem:[#allocation8 + $0x1348] sm:$0xff]
    %v786 = vld [vmem:[#allocation8 + $0x1350] sm:$0xff]
    %v787 = vld [vmem:[#allocation8 + $0x1358] sm:$0xff]
    %v788 = vld [vmem:[#allocation8 + $0x1360] sm:$0xff]
    %v789 = vld [vmem:[#allocation8 + $0x1368] sm:$0xff]
    %v790 = vld [vmem:[#allocation8 + $0x1370] sm:$0xff]
    %v791 = vld [vmem:[#allocation8 + $0x1378] sm:$0xff]
    %v792 = vld [vmem:[#allocation8 + $0x1380] sm:$0xff]
    %v793 = vld [vmem:[#allocation8 + $0x1388] sm:$0xff]
    %v794 = vld [vmem:[#allocation8 + $0x1390] sm:$0xff]
    %v795 = vld [vmem:[#allocation8 + $0x1398] sm:$0xff]
    %v796 = vld [vmem:[#allocation8 + $0x13a0] sm:$0xff]
    %v797 = vld [vmem:[#allocation8 + $0x13a8] sm:$0xff]
    %v798 = vld [vmem:[#allocation8 + $0x13b0] sm:$0xff]
    %v799 = vld [vmem:[#allocation8 + $0x13b8] sm:$0xff]
    %v800 = vld [vmem:[#allocation8 + $0x13c0] sm:$0xff]
    %v801 = vld [vmem:[#allocation8 + $0x13c8] sm:$0xff]
    %v802 = vld [vmem:[#allocation8 + $0x13d0] sm:$0xff]
    %v803 = vld [vmem:[#allocation8 + $0x13d8] sm:$0xff]
    %v804 = vld [vmem:[#allocation8 + $0x13e0] sm:$0xff]
    %v805 = vld [vmem:[#allocation8 + $0x13e8] sm:$0xff]
    %v806 = vld [vmem:[#allocation8 + $0x13f0] sm:$0xff]
    %v807 = vld [vmem:[#allocation8 + $0x13f8] sm:$0xff]
    %v808 = vld [vmem:[#allocation8 + $0x1400] sm:$0xff]
    %v809 = vld [vmem:[#allocation8 + $0x1408] sm:$0xff]
    %v810 = vld [vmem:[#allocation8 + $0x1410] sm:$0xff]
    %v811 = vld [vmem:[#allocation8 + $0x1418] sm:$0xff]
    %v812 = vld [vmem:[#allocation8 + $0x1420] sm:$0xff]
    %v813 = vld [vmem:[#allocation8 + $0x1428] sm:$0xff]
    %v814 = vld [vmem:[#allocation8 + $0x1430] sm:$0xff]
    %v815 = vld [vmem:[#allocation8 + $0x1438] sm:$0xff]
    %v816 = vld [vmem:[#allocation8 + $0x1440] sm:$0xff]
    %v817 = vld [vmem:[#allocation8 + $0x1448] sm:$0xff]
    %v818 = vld [vmem:[#allocation8 + $0x1450] sm:$0xff]
    %v819 = vld [vmem:[#allocation8 + $0x1458] sm:$0xff]
    %v820 = vld [vmem:[#allocation8 + $0x1460] sm:$0xff]
    %v821 = vld [vmem:[#allocation8 + $0x1468] sm:$0xff]
    %v822 = vld [vmem:[#allocation8 + $0x1470] sm:$0xff]
    %v823 = vld [vmem:[#allocation8 + $0x1478] sm:$0xff]
    %v824 = vld [vmem:[#allocation8 + $0x1480] sm:$0xff]
    %v825 = vld [vmem:[#allocation8 + $0x1488] sm:$0xff]
    %v826 = vld [vmem:[#allocation8 + $0x1490] sm:$0xff]
    %v827 = vld [vmem:[#allocation8 + $0x1498] sm:$0xff]
    %v828 = vld [vmem:[#allocation8 + $0x14a0] sm:$0xff]
    %v829 = vld [vmem:[#allocation8 + $0x14a8] sm:$0xff]
    %v830 = vld [vmem:[#allocation8 + $0x14b0] sm:$0xff]
    %v831 = vld [vmem:[#allocation8 + $0x14b8] sm:$0xff]
    %v832 = vld [vmem:[#allocation8 + $0x14c0] sm:$0xff]
    %v833 = vld [vmem:[#allocation8 + $0x14c8] sm:$0xff]
    %v834 = vld [vmem:[#allocation8 + $0x14d0] sm:$0xff]
    %v835 = vld [vmem:[#allocation8 + $0x14d8] sm:$0xff]
    %v836 = vld [vmem:[#allocation8 + $0x14e0] sm:$0xff]
    %v837 = vld [vmem:[#allocation8 + $0x14e8] sm:$0xff]
    %v838 = vld [vmem:[#allocation8 + $0x14f0] sm:$0xff]
    %v839 = vld [vmem:[#allocation8 + $0x14f8] sm:$0xff]
    %v840 = vld [vmem:[#allocation8 + $0x1500] sm:$0xff]
    %v841 = vld [vmem:[#allocation8 + $0x1508] sm:$0xff]
    %v842 = vld [vmem:[#allocation8 + $0x1510] sm:$0xff]
    %v843 = vld [vmem:[#allocation8 + $0x1518] sm:$0xff]
    %v844 = vld [vmem:[#allocation8 + $0x1520] sm:$0xff]
    %v845 = vld [vmem:[#allocation8 + $0x1528] sm:$0xff]
    %v846 = vld [vmem:[#allocation8 + $0x1530] sm:$0xff]
    %v847 = vld [vmem:[#allocation8 + $0x1538] sm:$0xff]
    %v848 = vld [vmem:[#allocation8 + $0x1540] sm:$0xff]
    %v849 = vld [vmem:[#allocation8 + $0x1548] sm:$0xff]
    %v850 = vld [vmem:[#allocation8 + $0x1550] sm:$0xff]
    %v851 = vld [vmem:[#allocation8 + $0x1558] sm:$0xff]
    %v852 = vld [vmem:[#allocation8 + $0x1560] sm:$0xff]
    %v853 = vld [vmem:[#allocation8 + $0x1568] sm:$0xff]
    %v854 = vld [vmem:[#allocation8 + $0x1570] sm:$0xff]
    %v855 = vld [vmem:[#allocation8 + $0x1578] sm:$0xff]
    %v856 = vld [vmem:[#allocation8 + $0x1580] sm:$0xff]
    %v857 = vld [vmem:[#allocation8 + $0x1588] sm:$0xff]
    %v858 = vld [vmem:[#allocation8 + $0x1590] sm:$0xff]
    %v859 = vld [vmem:[#allocation8 + $0x1598] sm:$0xff]
    %v860 = vld [vmem:[#allocation8 + $0x15a0] sm:$0xff]
    %v861 = vld [vmem:[#allocation8 + $0x15a8] sm:$0xff]
    %v862 = vld [vmem:[#allocation8 + $0x15b0] sm:$0xff]
    %v863 = vld [vmem:[#allocation8 + $0x15b8] sm:$0xff]
    %v864 = vld [vmem:[#allocation8 + $0x15c0] sm:$0xff]
    %v865 = vld [vmem:[#allocation8 + $0x15c8] sm:$0xff]
    %v866 = vld [vmem:[#allocation8 + $0x15d0] sm:$0xff]
    %v867 = vld [vmem:[#allocation8 + $0x15d8] sm:$0xff]
    %v868 = vld [vmem:[#allocation8 + $0x15e0] sm:$0xff]
    %v869 = vld [vmem:[#allocation8 + $0x15e8] sm:$0xff]
    %v870 = vld [vmem:[#allocation8 + $0x15f0] sm:$0xff]
    %v871 = vld [vmem:[#allocation8 + $0x15f8] sm:$0xff]
    %v872 = vld [vmem:[#allocation8 + $0x1600] sm:$0xff]
    %v873 = vld [vmem:[#allocation8 + $0x1608] sm:$0xff]
    %v874 = vld [vmem:[#allocation8 + $0x1610] sm:$0xff]
    %v875 = vld [vmem:[#allocation8 + $0x1618] sm:$0xff]
    %v876 = vld [vmem:[#allocation8 + $0x1620] sm:$0xff]
    %v877 = vld [vmem:[#allocation8 + $0x1628] sm:$0xff]
    %v878 = vld [vmem:[#allocation8 + $0x1630] sm:$0xff]
    %v879 = vld [vmem:[#allocation8 + $0x1638] sm:$0xff]
    %v880 = vld [vmem:[#allocation8 + $0x1640] sm:$0xff]
    %v881 = vld [vmem:[#allocation8 + $0x1648] sm:$0xff]
    %v882 = vld [vmem:[#allocation8 + $0x1650] sm:$0xff]
    %v883 = vld [vmem:[#allocation8 + $0x1658] sm:$0xff]
    %v884 = vld [vmem:[#allocation8 + $0x1660] sm:$0xff]
    %v885 = vld [vmem:[#allocation8 + $0x1668] sm:$0xff]
    %v886 = vld [vmem:[#allocation8 + $0x1670] sm:$0xff]
    %v887 = vld [vmem:[#allocation8 + $0x1678] sm:$0xff]
    %v888 = vld [vmem:[#allocation8 + $0x1680] sm:$0xff]
    %v889 = vld [vmem:[#allocation8 + $0x1688] sm:$0xff]
    %v890 = vld [vmem:[#allocation8 + $0x1690] sm:$0xff]
    %v891 = vld [vmem:[#allocation8 + $0x1698] sm:$0xff]
    %v892 = vld [vmem:[#allocation8 + $0x16a0] sm:$0xff]
    %v893 = vld [vmem:[#allocation8 + $0x16a8] sm:$0xff]
    %v894 = vld [vmem:[#allocation8 + $0x16b0] sm:$0xff]
    %v895 = vld [vmem:[#allocation8 + $0x16b8] sm:$0xff]
    %v896 = vld [vmem:[#allocation8 + $0x16c0] sm:$0xff]
    %v897 = vld [vmem:[#allocation8 + $0x16c8] sm:$0xff]
    %v898 = vld [vmem:[#allocation8 + $0x16d0] sm:$0xff]
    %v899 = vld [vmem:[#allocation8 + $0x16d8] sm:$0xff]
    %v900 = vld [vmem:[#allocation8 + $0x16e0] sm:$0xff]
    %v901 = vld [vmem:[#allocation8 + $0x16e8] sm:$0xff]
    %v902 = vld [vmem:[#allocation8 + $0x16f0] sm:$0xff]
    %v903 = vld [vmem:[#allocation8 + $0x16f8] sm:$0xff]
    %v904 = vld [vmem:[#allocation8 + $0x1700] sm:$0xff]
    %v905 = vld [vmem:[#allocation8 + $0x1708] sm:$0xff]
    %v906 = vld [vmem:[#allocation8 + $0x1710] sm:$0xff]
    %v907 = vld [vmem:[#allocation8 + $0x1718] sm:$0xff]
    %v908 = vld [vmem:[#allocation8 + $0x1720] sm:$0xff]
    %v909 = vld [vmem:[#allocation8 + $0x1728] sm:$0xff]
    %v910 = vld [vmem:[#allocation8 + $0x1730] sm:$0xff]
    %v911 = vld [vmem:[#allocation8 + $0x1738] sm:$0xff]
    %v912 = vld [vmem:[#allocation8 + $0x1740] sm:$0xff]
    %v913 = vld [vmem:[#allocation8 + $0x1748] sm:$0xff]
    %v914 = vld [vmem:[#allocation8 + $0x1750] sm:$0xff]
    %v915 = vld [vmem:[#allocation8 + $0x1758] sm:$0xff]
    %v916 = vld [vmem:[#allocation8 + $0x1760] sm:$0xff]
    %v917 = vld [vmem:[#allocation8 + $0x1768] sm:$0xff]
    %v918 = vld [vmem:[#allocation8 + $0x1770] sm:$0xff]
    %v919 = vld [vmem:[#allocation8 + $0x1778] sm:$0xff]
    %v920 = vld [vmem:[#allocation8 + $0x1780] sm:$0xff]
    %v921 = vld [vmem:[#allocation8 + $0x1788] sm:$0xff]
    %v922 = vld [vmem:[#allocation8 + $0x1790] sm:$0xff]
    %v923 = vld [vmem:[#allocation8 + $0x1798] sm:$0xff]
    %v924 = vld [vmem:[#allocation8 + $0x17a0] sm:$0xff]
    %v925 = vld [vmem:[#allocation8 + $0x17a8] sm:$0xff]
    %v926 = vld [vmem:[#allocation8 + $0x17b0] sm:$0xff]
    %v927 = vld [vmem:[#allocation8 + $0x17b8] sm:$0xff]
    %v928 = vld [vmem:[#allocation8 + $0x17c0] sm:$0xff]
    %v929 = vld [vmem:[#allocation8 + $0x17c8] sm:$0xff]
    %v930 = vld [vmem:[#allocation8 + $0x17d0] sm:$0xff]
    %v931 = vld [vmem:[#allocation8 + $0x17d8] sm:$0xff]
    %v932 = vld [vmem:[#allocation8 + $0x17e0] sm:$0xff]
    %v933 = vld [vmem:[#allocation8 + $0x17e8] sm:$0xff]
    %v934 = vld [vmem:[#allocation8 + $0x17f0] sm:$0xff]
    %v935 = vld [vmem:[#allocation8 + $0x17f8] sm:$0xff]
    %v936 = vld [vmem:[#allocation8 + $0x1800] sm:$0xff]
    %v937 = vld [vmem:[#allocation8 + $0x1808] sm:$0xff]
    %v938 = vld [vmem:[#allocation8 + $0x1810] sm:$0xff]
    %v939 = vld [vmem:[#allocation8 + $0x1818] sm:$0xff]
    %v940 = vld [vmem:[#allocation8 + $0x1820] sm:$0xff]
    %v941 = vld [vmem:[#allocation8 + $0x1828] sm:$0xff]
    %v942 = vld [vmem:[#allocation8 + $0x1830] sm:$0xff]
    %v943 = vld [vmem:[#allocation8 + $0x1838] sm:$0xff]
    %v944 = vld [vmem:[#allocation8 + $0x1840] sm:$0xff]
    %v945 = vld [vmem:[#allocation8 + $0x1848] sm:$0xff]
    %v946 = vld [vmem:[#allocation8 + $0x1850] sm:$0xff]
    %v947 = vld [vmem:[#allocation8 + $0x1858] sm:$0xff]
    %v948 = vld [vmem:[#allocation8 + $0x1860] sm:$0xff]
    %v949 = vld [vmem:[#allocation8 + $0x1868] sm:$0xff]
    %v950 = vld [vmem:[#allocation8 + $0x1870] sm:$0xff]
    %v951 = vld [vmem:[#allocation8 + $0x1878] sm:$0xff]
    %v952 = vld [vmem:[#allocation8 + $0x1880] sm:$0xff]
    %v953 = vld [vmem:[#allocation8 + $0x1888] sm:$0xff]
    %v954 = vld [vmem:[#allocation8 + $0x1890] sm:$0xff]
    %v955 = vld [vmem:[#allocation8 + $0x1898] sm:$0xff]
    %v956 = vld [vmem:[#allocation8 + $0x18a0] sm:$0xff]
    %v957 = vld [vmem:[#allocation8 + $0x18a8] sm:$0xff]
    %v958 = vld [vmem:[#allocation8 + $0x18b0] sm:$0xff]
    %v959 = vld [vmem:[#allocation8 + $0x18b8] sm:$0xff]
    %v960 = vld [vmem:[#allocation8 + $0x18c0] sm:$0xff]
    %v961 = vld [vmem:[#allocation8 + $0x18c8] sm:$0xff]
    %v962 = vld [vmem:[#allocation8 + $0x18d0] sm:$0xff]
    %v963 = vld [vmem:[#allocation8 + $0x18d8] sm:$0xff]
    %v964 = vld [vmem:[#allocation8 + $0x18e0] sm:$0xff]
    %v965 = vld [vmem:[#allocation8 + $0x18e8] sm:$0xff]
    %v966 = vld [vmem:[#allocation8 + $0x18f0] sm:$0xff]
    %v967 = vld [vmem:[#allocation8 + $0x18f8] sm:$0xff]
    %v968 = vld [vmem:[#allocation8 + $0x1900] sm:$0xff]
    %v969 = vld [vmem:[#allocation8 + $0x1908] sm:$0xff]
    %v970 = vld [vmem:[#allocation8 + $0x1910] sm:$0xff]
    %v971 = vld [vmem:[#allocation8 + $0x1918] sm:$0xff]
    %v972 = vld [vmem:[#allocation8 + $0x1920] sm:$0xff]
    %v973 = vld [vmem:[#allocation8 + $0x1928] sm:$0xff]
    %v974 = vld [vmem:[#allocation8 + $0x1930] sm:$0xff]
    %v975 = vld [vmem:[#allocation8 + $0x1938] sm:$0xff]
    %v976 = vld [vmem:[#allocation8 + $0x1940] sm:$0xff]
    %v977 = vld [vmem:[#allocation8 + $0x1948] sm:$0xff]
    %v978 = vld [vmem:[#allocation8 + $0x1950] sm:$0xff]
    %v979 = vld [vmem:[#allocation8 + $0x1958] sm:$0xff]
    %v980 = vld [vmem:[#allocation8 + $0x1960] sm:$0xff]
    %v981 = vld [vmem:[#allocation8 + $0x1968] sm:$0xff]
    %v982 = vld [vmem:[#allocation8 + $0x1970] sm:$0xff]
    %v983 = vld [vmem:[#allocation8 + $0x1978] sm:$0xff]
    %v984 = vld [vmem:[#allocation8 + $0x1980] sm:$0xff]
    %v985 = vld [vmem:[#allocation8 + $0x1988] sm:$0xff]
    %v986 = vld [vmem:[#allocation8 + $0x1990] sm:$0xff]
    %v987 = vld [vmem:[#allocation8 + $0x1998] sm:$0xff]
    %v988 = vld [vmem:[#allocation8 + $0x19a0] sm:$0xff]
    %v989 = vld [vmem:[#allocation8 + $0x19a8] sm:$0xff]
    %v990 = vld [vmem:[#allocation8 + $0x19b0] sm:$0xff]
    %v991 = vld [vmem:[#allocation8 + $0x19b8] sm:$0xff]
    %v992 = vld [vmem:[#allocation8 + $0x19c0] sm:$0xff]
    %v993 = vld [vmem:[#allocation8 + $0x19c8] sm:$0xff]
    %v994 = vld [vmem:[#allocation8 + $0x19d0] sm:$0xff]
    %v995 = vld [vmem:[#allocation8 + $0x19d8] sm:$0xff]
    %v996 = vld [vmem:[#allocation8 + $0x19e0] sm:$0xff]
    %v997 = vld [vmem:[#allocation8 + $0x19e8] sm:$0xff]
    %v998 = vld [vmem:[#allocation8 + $0x19f0] sm:$0xff]
    %v999 = vld [vmem:[#allocation8 + $0x19f8] sm:$0xff]
    %v1000 = vld [vmem:[#allocation8 + $0x1a00] sm:$0xff]
    %v1001 = vld [vmem:[#allocation8 + $0x1a08] sm:$0xff]
    %v1002 = vld [vmem:[#allocation8 + $0x1a10] sm:$0xff]
    %v1003 = vld [vmem:[#allocation8 + $0x1a18] sm:$0xff]
    %v1004 = vld [vmem:[#allocation8 + $0x1a20] sm:$0xff]
    %v1005 = vld [vmem:[#allocation8 + $0x1a28] sm:$0xff]
    %v1006 = vld [vmem:[#allocation8 + $0x1a30] sm:$0xff]
    %v1007 = vld [vmem:[#allocation8 + $0x1a38] sm:$0xff]
    %v1008 = vld [vmem:[#allocation8 + $0x1a40] sm:$0xff]
    %v1009 = vld [vmem:[#allocation8 + $0x1a48] sm:$0xff]
    %v1010 = vld [vmem:[#allocation8 + $0x1a50] sm:$0xff]
    %v1011 = vld [vmem:[#allocation8 + $0x1a58] sm:$0xff]
    %v1012 = vld [vmem:[#allocation8 + $0x1a60] sm:$0xff]
    %v1013 = vld [vmem:[#allocation8 + $0x1a68] sm:$0xff]
    %v1014 = vld [vmem:[#allocation8 + $0x1a70] sm:$0xff]
    %v1015 = vld [vmem:[#allocation8 + $0x1a78] sm:$0xff]
    %v1016 = vld [vmem:[#allocation8 + $0x1a80] sm:$0xff]
    %v1017 = vld [vmem:[#allocation8 + $0x1a88] sm:$0xff]
    %v1018 = vld [vmem:[#allocation8 + $0x1a90] sm:$0xff]
    %v1019 = vld [vmem:[#allocation8 + $0x1a98] sm:$0xff]
    %v1020 = vld [vmem:[#allocation8 + $0x1aa0] sm:$0xff]
    %v1021 = vld [vmem:[#allocation8 + $0x1aa8] sm:$0xff]
    %v1022 = vld [vmem:[#allocation8 + $0x1ab0] sm:$0xff]
    %v1023 = vld [vmem:[#allocation8 + $0x1ab8] sm:$0xff]
    %v1024 = vld [vmem:[#allocation8 + $0x1ac0] sm:$0xff]
    %v1025 = vld [vmem:[#allocation8 + $0x1ac8] sm:$0xff]
    %v1026 = vld [vmem:[#allocation8 + $0x1ad0] sm:$0xff]
    %v1027 = vld [vmem:[#allocation8 + $0x1ad8] sm:$0xff]
    %v1028 = vld [vmem:[#allocation8 + $0x1ae0] sm:$0xff]
    %v1029 = vld [vmem:[#allocation8 + $0x1ae8] sm:$0xff]
    %v1030 = vld [vmem:[#allocation8 + $0x1af0] sm:$0xff]
    %v1031 = vld [vmem:[#allocation8 + $0x1af8] sm:$0xff]
    %v1032 = vld [vmem:[#allocation8 + $0x1b00] sm:$0xff]
    %v1033 = vld [vmem:[#allocation8 + $0x1b08] sm:$0xff]
    %v1034 = vld [vmem:[#allocation8 + $0x1b10] sm:$0xff]
    %v1035 = vld [vmem:[#allocation8 + $0x1b18] sm:$0xff]
    %v1036 = vld [vmem:[#allocation8 + $0x1b20] sm:$0xff]
    %v1037 = vld [vmem:[#allocation8 + $0x1b28] sm:$0xff]
    %v1038 = vld [vmem:[#allocation8 + $0x1b30] sm:$0xff]
    %v1039 = vld [vmem:[#allocation8 + $0x1b38] sm:$0xff]
    %v1040 = vld [vmem:[#allocation8 + $0x1b40] sm:$0xff]
    %v1041 = vld [vmem:[#allocation8 + $0x1b48] sm:$0xff]
    %v1042 = vld [vmem:[#allocation8 + $0x1b50] sm:$0xff]
    %v1043 = vld [vmem:[#allocation8 + $0x1b58] sm:$0xff]
    %v1044 = vld [vmem:[#allocation8 + $0x1b60] sm:$0xff]
    %v1045 = vld [vmem:[#allocation8 + $0x1b68] sm:$0xff]
    %v1046 = vld [vmem:[#allocation8 + $0x1b70] sm:$0xff]
    %v1047 = vld [vmem:[#allocation8 + $0x1b78] sm:$0xff]
    %v1048 = vld [vmem:[#allocation8 + $0x1b80] sm:$0xff]
    %v1049 = vld [vmem:[#allocation8 + $0x1b88] sm:$0xff]
    %v1050 = vld [vmem:[#allocation8 + $0x1b90] sm:$0xff]
    %v1051 = vld [vmem:[#allocation8 + $0x1b98] sm:$0xff]
    %v1052 = vld [vmem:[#allocation8 + $0x1ba0] sm:$0xff]
    %v1053 = vld [vmem:[#allocation8 + $0x1ba8] sm:$0xff]
    %v1054 = vld [vmem:[#allocation8 + $0x1bb0] sm:$0xff]
    %v1055 = vld [vmem:[#allocation8 + $0x1bb8] sm:$0xff]
    %v1056 = vld [vmem:[#allocation8 + $0x1bc0] sm:$0xff]
    %v1057 = vld [vmem:[#allocation8 + $0x1bc8] sm:$0xff]
    %v1058 = vld [vmem:[#allocation8 + $0x1bd0] sm:$0xff]
    %v1059 = vld [vmem:[#allocation8 + $0x1bd8] sm:$0xff]
    %v1060 = vld [vmem:[#allocation8 + $0x1be0] sm:$0xff]
    %v1061 = vld [vmem:[#allocation8 + $0x1be8] sm:$0xff]
    %v1062 = vld [vmem:[#allocation8 + $0x1bf0] sm:$0xff]
    %v1063 = vld [vmem:[#allocation8 + $0x1bf8] sm:$0xff]
    %v1064 = vld [vmem:[#allocation8 + $0x1c00] sm:$0xff]
    %v1065 = vld [vmem:[#allocation8 + $0x1c08] sm:$0xff]
    %v1066 = vld [vmem:[#allocation8 + $0x1c10] sm:$0xff]
    %v1067 = vld [vmem:[#allocation8 + $0x1c18] sm:$0xff]
    %v1068 = vld [vmem:[#allocation8 + $0x1c20] sm:$0xff]
    %v1069 = vld [vmem:[#allocation8 + $0x1c28] sm:$0xff]
    %v1070 = vld [vmem:[#allocation8 + $0x1c30] sm:$0xff]
    %v1071 = vld [vmem:[#allocation8 + $0x1c38] sm:$0xff]
    %v1072 = vld [vmem:[#allocation8 + $0x1c40] sm:$0xff]
    %v1073 = vld [vmem:[#allocation8 + $0x1c48] sm:$0xff]
    %v1074 = vld [vmem:[#allocation8 + $0x1c50] sm:$0xff]
    %v1075 = vld [vmem:[#allocation8 + $0x1c58] sm:$0xff]
    %v1076 = vld [vmem:[#allocation8 + $0x1c60] sm:$0xff]
    %v1077 = vld [vmem:[#allocation8 + $0x1c68] sm:$0xff]
    %v1078 = vld [vmem:[#allocation8 + $0x1c70] sm:$0xff]
    %v1079 = vld [vmem:[#allocation8 + $0x1c78] sm:$0xff]
    %v1080 = vld [vmem:[#allocation8 + $0x1c80] sm:$0xff]
    %v1081 = vld [vmem:[#allocation8 + $0x1c88] sm:$0xff]
    %v1082 = vld [vmem:[#allocation8 + $0x1c90] sm:$0xff]
    %v1083 = vld [vmem:[#allocation8 + $0x1c98] sm:$0xff]
    %v1084 = vld [vmem:[#allocation8 + $0x1ca0] sm:$0xff]
    %v1085 = vld [vmem:[#allocation8 + $0x1ca8] sm:$0xff]
    %v1086 = vld [vmem:[#allocation8 + $0x1cb0] sm:$0xff]
    %v1087 = vld [vmem:[#allocation8 + $0x1cb8] sm:$0xff]
    %v1088 = vld [vmem:[#allocation8 + $0x1cc0] sm:$0xff]
    %v1089 = vld [vmem:[#allocation8 + $0x1cc8] sm:$0xff]
    %v1090 = vld [vmem:[#allocation8 + $0x1cd0] sm:$0xff]
    %v1091 = vld [vmem:[#allocation8 + $0x1cd8] sm:$0xff]
    %v1092 = vld [vmem:[#allocation8 + $0x1ce0] sm:$0xff]
    %v1093 = vld [vmem:[#allocation8 + $0x1ce8] sm:$0xff]
    %v1094 = vld [vmem:[#allocation8 + $0x1cf0] sm:$0xff]
    %v1095 = vld [vmem:[#allocation8 + $0x1cf8] sm:$0xff]
    %v1096 = vld [vmem:[#allocation8 + $0x1d00] sm:$0xff]
    %v1097 = vld [vmem:[#allocation8 + $0x1d08] sm:$0xff]
    %v1098 = vld [vmem:[#allocation8 + $0x1d10] sm:$0xff]
    %v1099 = vld [vmem:[#allocation8 + $0x1d18] sm:$0xff]
    %v1100 = vld [vmem:[#allocation8 + $0x1d20] sm:$0xff]
    %v1101 = vld [vmem:[#allocation8 + $0x1d28] sm:$0xff]
    %v1102 = vld [vmem:[#allocation8 + $0x1d30] sm:$0xff]
    %v1103 = vld [vmem:[#allocation8 + $0x1d38] sm:$0xff]
    %v1104 = vld [vmem:[#allocation8 + $0x1d40] sm:$0xff]
    %v1105 = vld [vmem:[#allocation8 + $0x1d48] sm:$0xff]
    %v1106 = vld [vmem:[#allocation8 + $0x1d50] sm:$0xff]
    %v1107 = vld [vmem:[#allocation8 + $0x1d58] sm:$0xff]
    %v1108 = vld [vmem:[#allocation8 + $0x1d60] sm:$0xff]
    %v1109 = vld [vmem:[#allocation8 + $0x1d68] sm:$0xff]
    %v1110 = vld [vmem:[#allocation8 + $0x1d70] sm:$0xff]
    %v1111 = vld [vmem:[#allocation8 + $0x1d78] sm:$0xff]
    %v1112 = vld [vmem:[#allocation8 + $0x1d80] sm:$0xff]
    %v1113 = vld [vmem:[#allocation8 + $0x1d88] sm:$0xff]
    %v1114 = vld [vmem:[#allocation8 + $0x1d90] sm:$0xff]
    %v1115 = vld [vmem:[#allocation8 + $0x1d98] sm:$0xff]
    %v1116 = vld [vmem:[#allocation8 + $0x1da0] sm:$0xff]
    %v1117 = vld [vmem:[#allocation8 + $0x1da8] sm:$0xff]
    %v1118 = vld [vmem:[#allocation8 + $0x1db0] sm:$0xff]
    %v1119 = vld [vmem:[#allocation8 + $0x1db8] sm:$0xff]
    %v1120 = vld [vmem:[#allocation8 + $0x1dc0] sm:$0xff]
    %v1121 = vld [vmem:[#allocation8 + $0x1dc8] sm:$0xff]
    %v1122 = vld [vmem:[#allocation8 + $0x1dd0] sm:$0xff]
    %v1123 = vld [vmem:[#allocation8 + $0x1dd8] sm:$0xff]
    %v1124 = vld [vmem:[#allocation8 + $0x1de0] sm:$0xff]
    %v1125 = vld [vmem:[#allocation8 + $0x1de8] sm:$0xff]
    %v1126 = vld [vmem:[#allocation8 + $0x1df0] sm:$0xff]
    %v1127 = vld [vmem:[#allocation8 + $0x1df8] sm:$0xff]
    %v1128 = vld [vmem:[#allocation8 + $0x1e00] sm:$0xff]
    %v1129 = vld [vmem:[#allocation8 + $0x1e08] sm:$0xff]
    %v1130 = vld [vmem:[#allocation8 + $0x1e10] sm:$0xff]
    %v1131 = vld [vmem:[#allocation8 + $0x1e18] sm:$0xff]
    %v1132 = vld [vmem:[#allocation8 + $0x1e20] sm:$0xff]
    %v1133 = vld [vmem:[#allocation8 + $0x1e28] sm:$0xff]
    %v1134 = vld [vmem:[#allocation8 + $0x1e30] sm:$0xff]
    %v1135 = vld [vmem:[#allocation8 + $0x1e38] sm:$0xff]
    %v1136 = vld [vmem:[#allocation8 + $0x1e40] sm:$0xff]
    %v1137 = vld [vmem:[#allocation8 + $0x1e48] sm:$0xff]
    %v1138 = vld [vmem:[#allocation8 + $0x1e50] sm:$0xff]
    %v1139 = vld [vmem:[#allocation8 + $0x1e58] sm:$0xff]
    %v1140 = vld [vmem:[#allocation8 + $0x1e60] sm:$0xff]
    %v1141 = vld [vmem:[#allocation8 + $0x1e68] sm:$0xff]
    %v1142 = vld [vmem:[#allocation8 + $0x1e70] sm:$0xff]
    %v1143 = vld [vmem:[#allocation8 + $0x1e78] sm:$0xff]
    %v1144 = vld [vmem:[#allocation8 + $0x1e80] sm:$0xff]
    %v1145 = vld [vmem:[#allocation8 + $0x1e88] sm:$0xff]
    %v1146 = vld [vmem:[#allocation8 + $0x1e90] sm:$0xff]
    %v1147 = vld [vmem:[#allocation8 + $0x1e98] sm:$0xff]
    %v1148 = vld [vmem:[#allocation8 + $0x1ea0] sm:$0xff]
    %v1149 = vld [vmem:[#allocation8 + $0x1ea8] sm:$0xff]
    %v1150 = vld [vmem:[#allocation8 + $0x1eb0] sm:$0xff]
    %v1151 = vld [vmem:[#allocation8 + $0x1eb8] sm:$0xff]
    %v1152 = vld [vmem:[#allocation8 + $0x1ec0] sm:$0xff]
    %v1153 = vld [vmem:[#allocation8 + $0x1ec8] sm:$0xff]
    %v1154 = vld [vmem:[#allocation8 + $0x1ed0] sm:$0xff]
    %v1155 = vld [vmem:[#allocation8 + $0x1ed8] sm:$0xff]
    %v1156 = vld [vmem:[#allocation8 + $0x1ee0] sm:$0xff]
    %v1157 = vld [vmem:[#allocation8 + $0x1ee8] sm:$0xff]
    %v1158 = vld [vmem:[#allocation8 + $0x1ef0] sm:$0xff]
    %v1159 = vld [vmem:[#allocation8 + $0x1ef8] sm:$0xff]
    %v1160 = vld [vmem:[#allocation8 + $0x1f00] sm:$0xff]
    %v1161 = vld [vmem:[#allocation8 + $0x1f08] sm:$0xff]
    %v1162 = vld [vmem:[#allocation8 + $0x1f10] sm:$0xff]
    %v1163 = vld [vmem:[#allocation8 + $0x1f18] sm:$0xff]
    %v1164 = vld [vmem:[#allocation8 + $0x1f20] sm:$0xff]
    %v1165 = vld [vmem:[#allocation8 + $0x1f28] sm:$0xff]
    %v1166 = vld [vmem:[#allocation8 + $0x1f30] sm:$0xff]
    %v1167 = vld [vmem:[#allocation8 + $0x1f38] sm:$0xff]
    %v1168 = vld [vmem:[#allocation8 + $0x1f40] sm:$0xff]
    %v1169 = vld [vmem:[#allocation8 + $0x1f48] sm:$0xff]
    %v1170 = vld [vmem:[#allocation8 + $0x1f50] sm:$0xff]
    %v1171 = vld [vmem:[#allocation8 + $0x1f58] sm:$0xff]
    %v1172 = vld [vmem:[#allocation8 + $0x1f60] sm:$0xff]
    %v1173 = vld [vmem:[#allocation8 + $0x1f68] sm:$0xff]
    %v1174 = vld [vmem:[#allocation8 + $0x1f70] sm:$0xff]
    %v1175 = vld [vmem:[#allocation8 + $0x1f78] sm:$0xff]
    %v1176 = vld [vmem:[#allocation8 + $0x1f80] sm:$0xff]
    %v1177 = vld [vmem:[#allocation8 + $0x1f88] sm:$0xff]
    %v1178 = vld [vmem:[#allocation8 + $0x1f90] sm:$0xff]
    %v1179 = vld [vmem:[#allocation8 + $0x1f98] sm:$0xff]
    %v1180 = vld [vmem:[#allocation8 + $0x1fa0] sm:$0xff]
    %v1181 = vld [vmem:[#allocation8 + $0x1fa8] sm:$0xff]
    %v1182 = vld [vmem:[#allocation8 + $0x1fb0] sm:$0xff]
    %v1183 = vld [vmem:[#allocation8 + $0x1fb8] sm:$0xff]
    %v1184 = vld [vmem:[#allocation8 + $0x1fc0] sm:$0xff]
    %v1185 = vld [vmem:[#allocation8 + $0x1fc8] sm:$0xff]
    %v1186 = vld [vmem:[#allocation8 + $0x1fd0] sm:$0xff]
    %v1187 = vld [vmem:[#allocation8 + $0x1fd8] sm:$0xff]
    %v1188 = vld [vmem:[#allocation8 + $0x1fe0] sm:$0xff]
    %v1189 = vld [vmem:[#allocation8 + $0x1fe8] sm:$0xff]
    %v1190 = vld [vmem:[#allocation8 + $0x1ff0] sm:$0xff]
    %v1191 = vld [vmem:[#allocation8 + $0x1ff8] sm:$0xff]
    %v1192 = vld [vmem:[#allocation10] sm:$0xff]
    %v1193 = vld [vmem:[#allocation11] sm:$0xff]
    %v1194 = vld [vmem:[#allocation11 + $0x8] sm:$0xff]
    %v1195 = vld [vmem:[#allocation11 + $0x10] sm:$0xff]
    %v1196 = vld [vmem:[#allocation11 + $0x18] sm:$0xff]
    %v1197 = vld [vmem:[#allocation11 + $0x20] sm:$0xff]
    %v1198 = vld [vmem:[#allocation11 + $0x28] sm:$0xff]
    %v1199 = vld [vmem:[#allocation11 + $0x30] sm:$0xff]
    %v1200 = vld [vmem:[#allocation11 + $0x38] sm:$0xff]
    %v1201 = vld [vmem:[#allocation11 + $0x40] sm:$0xff]
    %v1202 = vld [vmem:[#allocation11 + $0x48] sm:$0xff]
    %v1203 = vld [vmem:[#allocation11 + $0x50] sm:$0xff]
    %v1204 = vld [vmem:[#allocation11 + $0x58] sm:$0xff]
    %v1205 = vld [vmem:[#allocation11 + $0x60] sm:$0xff]
    %v1206 = vld [vmem:[#allocation11 + $0x68] sm:$0xff]
    %v1207 = vld [vmem:[#allocation11 + $0x70] sm:$0xff]
    %v1208 = vld [vmem:[#allocation11 + $0x78] sm:$0xff]
    %v1209 = vld [vmem:[#allocation11 + $0x80] sm:$0xff]
    %v1210 = vld [vmem:[#allocation11 + $0x88] sm:$0xff]
    %v1211 = vld [vmem:[#allocation11 + $0x90] sm:$0xff]
    %v1212 = vld [vmem:[#allocation11 + $0x98] sm:$0xff]
    %v1213 = vld [vmem:[#allocation11 + $0xa0] sm:$0xff]
    %v1214 = vld [vmem:[#allocation11 + $0xa8] sm:$0xff]
    %v1215 = vld [vmem:[#allocation11 + $0xb0] sm:$0xff]
    %v1216 = vld [vmem:[#allocation11 + $0xb8] sm:$0xff]
    %v1217 = vld [vmem:[#allocation11 + $0xc0] sm:$0xff]
    %v1218 = vld [vmem:[#allocation11 + $0xc8] sm:$0xff]
    %v1219 = vld [vmem:[#allocation11 + $0xd0] sm:$0xff]
    %v1220 = vld [vmem:[#allocation11 + $0xd8] sm:$0xff]
    %v1221 = vld [vmem:[#allocation11 + $0xe0] sm:$0xff]
    %v1222 = vld [vmem:[#allocation11 + $0xe8] sm:$0xff]
    %v1223 = vld [vmem:[#allocation11 + $0xf0] sm:$0xff]
    %v1224 = vld [vmem:[#allocation11 + $0xf8] sm:$0xff]
    %v1225 = vld [vmem:[#allocation11 + $0x100] sm:$0xff]
    %v1226 = vld [vmem:[#allocation11 + $0x108] sm:$0xff]
    %v1227 = vld [vmem:[#allocation11 + $0x110] sm:$0xff]
    %v1228 = vld [vmem:[#allocation11 + $0x118] sm:$0xff]
    %v1229 = vld [vmem:[#allocation11 + $0x120] sm:$0xff]
    %v1230 = vld [vmem:[#allocation11 + $0x128] sm:$0xff]
    %v1231 = vld [vmem:[#allocation11 + $0x130] sm:$0xff]
    %v1232 = vld [vmem:[#allocation11 + $0x138] sm:$0xff]
    %v1233 = vld [vmem:[#allocation11 + $0x140] sm:$0xff]
    %v1234 = vld [vmem:[#allocation11 + $0x148] sm:$0xff]
    %v1235 = vld [vmem:[#allocation11 + $0x150] sm:$0xff]
    %v1236 = vld [vmem:[#allocation11 + $0x158] sm:$0xff]
    %v1237 = vld [vmem:[#allocation11 + $0x160] sm:$0xff]
    %v1238 = vld [vmem:[#allocation11 + $0x168] sm:$0xff]
    %v1239 = vld [vmem:[#allocation11 + $0x170] sm:$0xff]
    %v1240 = vld [vmem:[#allocation11 + $0x178] sm:$0xff]
    %v1241 = vld [vmem:[#allocation11 + $0x180] sm:$0xff]
    %v1242 = vld [vmem:[#allocation11 + $0x188] sm:$0xff]
    %v1243 = vld [vmem:[#allocation11 + $0x190] sm:$0xff]
    %v1244 = vld [vmem:[#allocation11 + $0x198] sm:$0xff]
    %v1245 = vld [vmem:[#allocation11 + $0x1a0] sm:$0xff]
    %v1246 = vld [vmem:[#allocation11 + $0x1a8] sm:$0xff]
    %v1247 = vld [vmem:[#allocation11 + $0x1b0] sm:$0xff]
    %v1248 = vld [vmem:[#allocation11 + $0x1b8] sm:$0xff]
    %v1249 = vld [vmem:[#allocation11 + $0x1c0] sm:$0xff]
    %v1250 = vld [vmem:[#allocation11 + $0x1c8] sm:$0xff]
    %v1251 = vld [vmem:[#allocation11 + $0x1d0] sm:$0xff]
    %v1252 = vld [vmem:[#allocation11 + $0x1d8] sm:$0xff]
    %v1253 = vld [vmem:[#allocation11 + $0x1e0] sm:$0xff]
    %v1254 = vld [vmem:[#allocation11 + $0x1e8] sm:$0xff]
    %v1255 = vld [vmem:[#allocation11 + $0x1f0] sm:$0xff]
    %v1256 = vld [vmem:[#allocation11 + $0x1f8] sm:$0xff]
    %v1257 = vld [vmem:[#allocation11 + $0x200] sm:$0xff]
    %v1258 = vld [vmem:[#allocation11 + $0x208] sm:$0xff]
    %v1259 = vld [vmem:[#allocation11 + $0x210] sm:$0xff]
    %v1260 = vld [vmem:[#allocation11 + $0x218] sm:$0xff]
    %v1261 = vld [vmem:[#allocation11 + $0x220] sm:$0xff]
    %v1262 = vld [vmem:[#allocation11 + $0x228] sm:$0xff]
    %v1263 = vld [vmem:[#allocation11 + $0x230] sm:$0xff]
    %v1264 = vld [vmem:[#allocation11 + $0x238] sm:$0xff]
    %v1265 = vld [vmem:[#allocation11 + $0x240] sm:$0xff]
    %v1266 = vld [vmem:[#allocation11 + $0x248] sm:$0xff]
    %v1267 = vld [vmem:[#allocation11 + $0x250] sm:$0xff]
    %v1268 = vld [vmem:[#allocation11 + $0x258] sm:$0xff]
    %v1269 = vld [vmem:[#allocation11 + $0x260] sm:$0xff]
    %v1270 = vld [vmem:[#allocation11 + $0x268] sm:$0xff]
    %v1271 = vld [vmem:[#allocation11 + $0x270] sm:$0xff]
    %v1272 = vld [vmem:[#allocation11 + $0x278] sm:$0xff]
    %v1273 = vld [vmem:[#allocation11 + $0x280] sm:$0xff]
    %v1274 = vld [vmem:[#allocation11 + $0x288] sm:$0xff]
    %v1275 = vld [vmem:[#allocation11 + $0x290] sm:$0xff]
    %v1276 = vld [vmem:[#allocation11 + $0x298] sm:$0xff]
    %v1277 = vld [vmem:[#allocation11 + $0x2a0] sm:$0xff]
    %v1278 = vld [vmem:[#allocation11 + $0x2a8] sm:$0xff]
    %v1279 = vld [vmem:[#allocation11 + $0x2b0] sm:$0xff]
    %v1280 = vld [vmem:[#allocation11 + $0x2b8] sm:$0xff]
    %v1281 = vld [vmem:[#allocation11 + $0x2c0] sm:$0xff]
    %v1282 = vld [vmem:[#allocation11 + $0x2c8] sm:$0xff]
    %v1283 = vld [vmem:[#allocation11 + $0x2d0] sm:$0xff]
    %v1284 = vld [vmem:[#allocation11 + $0x2d8] sm:$0xff]
    %v1285 = vld [vmem:[#allocation11 + $0x2e0] sm:$0xff]
    %v1286 = vld [vmem:[#allocation11 + $0x2e8] sm:$0xff]
    %v1287 = vld [vmem:[#allocation11 + $0x2f0] sm:$0xff]
    %v1288 = vld [vmem:[#allocation11 + $0x2f8] sm:$0xff]
    %v1289 = vld [vmem:[#allocation11 + $0x300] sm:$0xff]
    %v1290 = vld [vmem:[#allocation11 + $0x308] sm:$0xff]
    %v1291 = vld [vmem:[#allocation11 + $0x310] sm:$0xff]
    %v1292 = vld [vmem:[#allocation11 + $0x318] sm:$0xff]
    %v1293 = vld [vmem:[#allocation11 + $0x320] sm:$0xff]
    %v1294 = vld [vmem:[#allocation11 + $0x328] sm:$0xff]
    %v1295 = vld [vmem:[#allocation11 + $0x330] sm:$0xff]
    %v1296 = vld [vmem:[#allocation11 + $0x338] sm:$0xff]
    %v1297 = vld [vmem:[#allocation11 + $0x340] sm:$0xff]
    %v1298 = vld [vmem:[#allocation11 + $0x348] sm:$0xff]
    %v1299 = vld [vmem:[#allocation11 + $0x350] sm:$0xff]
    %v1300 = vld [vmem:[#allocation11 + $0x358] sm:$0xff]
    %v1301 = vld [vmem:[#allocation11 + $0x360] sm:$0xff]
    %v1302 = vld [vmem:[#allocation11 + $0x368] sm:$0xff]
    %v1303 = vld [vmem:[#allocation11 + $0x370] sm:$0xff]
    %v1304 = vld [vmem:[#allocation11 + $0x378] sm:$0xff]
    %v1305 = vld [vmem:[#allocation11 + $0x380] sm:$0xff]
    %v1306 = vld [vmem:[#allocation11 + $0x388] sm:$0xff]
    %v1307 = vld [vmem:[#allocation11 + $0x390] sm:$0xff]
    %v1308 = vld [vmem:[#allocation11 + $0x398] sm:$0xff]
    %v1309 = vld [vmem:[#allocation11 + $0x3a0] sm:$0xff]
    %v1310 = vld [vmem:[#allocation11 + $0x3a8] sm:$0xff]
    %v1311 = vld [vmem:[#allocation11 + $0x3b0] sm:$0xff]
    %v1312 = vld [vmem:[#allocation11 + $0x3b8] sm:$0xff]
    %v1313 = vld [vmem:[#allocation11 + $0x3c0] sm:$0xff]
    %v1314 = vld [vmem:[#allocation11 + $0x3c8] sm:$0xff]
    %v1315 = vld [vmem:[#allocation11 + $0x3d0] sm:$0xff]
    %v1316 = vld [vmem:[#allocation11 + $0x3d8] sm:$0xff]
    %v1317 = vld [vmem:[#allocation11 + $0x3e0] sm:$0xff]
    %v1318 = vld [vmem:[#allocation11 + $0x3e8] sm:$0xff]
    %v1319 = vld [vmem:[#allocation11 + $0x3f0] sm:$0xff]
    %v1320 = vld [vmem:[#allocation11 + $0x3f8] sm:$0xff]
    %v1321 = vld [vmem:[#allocation11 + $0x400] sm:$0xff]
    %v1322 = vld [vmem:[#allocation11 + $0x408] sm:$0xff]
    %v1323 = vld [vmem:[#allocation11 + $0x410] sm:$0xff]
    %v1324 = vld [vmem:[#allocation11 + $0x418] sm:$0xff]
    %v1325 = vld [vmem:[#allocation11 + $0x420] sm:$0xff]
    %v1326 = vld [vmem:[#allocation11 + $0x428] sm:$0xff]
    %v1327 = vld [vmem:[#allocation11 + $0x430] sm:$0xff]
    %v1328 = vld [vmem:[#allocation11 + $0x438] sm:$0xff]
    %v1329 = vld [vmem:[#allocation11 + $0x440] sm:$0xff]
    %v1330 = vld [vmem:[#allocation11 + $0x448] sm:$0xff]
    %v1331 = vld [vmem:[#allocation11 + $0x450] sm:$0xff]
    %v1332 = vld [vmem:[#allocation11 + $0x458] sm:$0xff]
    %v1333 = vld [vmem:[#allocation11 + $0x460] sm:$0xff]
    %v1334 = vld [vmem:[#allocation11 + $0x468] sm:$0xff]
    %v1335 = vld [vmem:[#allocation11 + $0x470] sm:$0xff]
    %v1336 = vld [vmem:[#allocation11 + $0x478] sm:$0xff]
    %v1337 = vld [vmem:[#allocation11 + $0x480] sm:$0xff]
    %v1338 = vld [vmem:[#allocation11 + $0x488] sm:$0xff]
    %v1339 = vld [vmem:[#allocation11 + $0x490] sm:$0xff]
    %v1340 = vld [vmem:[#allocation11 + $0x498] sm:$0xff]
    %v1341 = vld [vmem:[#allocation11 + $0x4a0] sm:$0xff]
    %v1342 = vld [vmem:[#allocation11 + $0x4a8] sm:$0xff]
    %v1343 = vld [vmem:[#allocation11 + $0x4b0] sm:$0xff]
    %v1344 = vld [vmem:[#allocation11 + $0x4b8] sm:$0xff]
    %v1345 = vld [vmem:[#allocation11 + $0x4c0] sm:$0xff]
    %v1346 = vld [vmem:[#allocation11 + $0x4c8] sm:$0xff]
    %v1347 = vld [vmem:[#allocation11 + $0x4d0] sm:$0xff]
    %v1348 = vld [vmem:[#allocation11 + $0x4d8] sm:$0xff]
    %v1349 = vld [vmem:[#allocation11 + $0x4e0] sm:$0xff]
    %v1350 = vld [vmem:[#allocation11 + $0x4e8] sm:$0xff]
    %v1351 = vld [vmem:[#allocation11 + $0x4f0] sm:$0xff]
    %v1352 = vld [vmem:[#allocation11 + $0x4f8] sm:$0xff]
    %v1353 = vld [vmem:[#allocation11 + $0x500] sm:$0xff]
    %v1354 = vld [vmem:[#allocation11 + $0x508] sm:$0xff]
    %v1355 = vld [vmem:[#allocation11 + $0x510] sm:$0xff]
    %v1356 = vld [vmem:[#allocation11 + $0x518] sm:$0xff]
    %v1357 = vld [vmem:[#allocation11 + $0x520] sm:$0xff]
    %v1358 = vld [vmem:[#allocation11 + $0x528] sm:$0xff]
    %v1359 = vld [vmem:[#allocation11 + $0x530] sm:$0xff]
    %v1360 = vld [vmem:[#allocation11 + $0x538] sm:$0xff]
    %v1361 = vld [vmem:[#allocation11 + $0x540] sm:$0xff]
    %v1362 = vld [vmem:[#allocation11 + $0x548] sm:$0xff]
    %v1363 = vld [vmem:[#allocation11 + $0x550] sm:$0xff]
    %v1364 = vld [vmem:[#allocation11 + $0x558] sm:$0xff]
    %v1365 = vld [vmem:[#allocation11 + $0x560] sm:$0xff]
    %v1366 = vld [vmem:[#allocation11 + $0x568] sm:$0xff]
    %v1367 = vld [vmem:[#allocation11 + $0x570] sm:$0xff]
    %v1368 = vld [vmem:[#allocation11 + $0x578] sm:$0xff]
    %v1369 = vld [vmem:[#allocation11 + $0x580] sm:$0xff]
    %v1370 = vld [vmem:[#allocation11 + $0x588] sm:$0xff]
    %v1371 = vld [vmem:[#allocation11 + $0x590] sm:$0xff]
    %v1372 = vld [vmem:[#allocation11 + $0x598] sm:$0xff]
    %v1373 = vld [vmem:[#allocation11 + $0x5a0] sm:$0xff]
    %v1374 = vld [vmem:[#allocation11 + $0x5a8] sm:$0xff]
    %v1375 = vld [vmem:[#allocation11 + $0x5b0] sm:$0xff]
    %v1376 = vld [vmem:[#allocation11 + $0x5b8] sm:$0xff]
    %v1377 = vld [vmem:[#allocation11 + $0x5c0] sm:$0xff]
    %v1378 = vld [vmem:[#allocation11 + $0x5c8] sm:$0xff]
    %v1379 = vld [vmem:[#allocation11 + $0x5d0] sm:$0xff]
    %v1380 = vld [vmem:[#allocation11 + $0x5d8] sm:$0xff]
    %v1381 = vld [vmem:[#allocation11 + $0x5e0] sm:$0xff]
    %v1382 = vld [vmem:[#allocation11 + $0x5e8] sm:$0xff]
    %v1383 = vld [vmem:[#allocation11 + $0x5f0] sm:$0xff]
    %v1384 = vld [vmem:[#allocation11 + $0x5f8] sm:$0xff]
    %v1385 = vld [vmem:[#allocation11 + $0x600] sm:$0xff]
    %v1386 = vld [vmem:[#allocation11 + $0x608] sm:$0xff]
    %v1387 = vld [vmem:[#allocation11 + $0x610] sm:$0xff]
    %v1388 = vld [vmem:[#allocation11 + $0x618] sm:$0xff]
    %v1389 = vld [vmem:[#allocation11 + $0x620] sm:$0xff]
    %v1390 = vld [vmem:[#allocation11 + $0x628] sm:$0xff]
    %v1391 = vld [vmem:[#allocation11 + $0x630] sm:$0xff]
    %v1392 = vld [vmem:[#allocation11 + $0x638] sm:$0xff]
    %v1393 = vld [vmem:[#allocation11 + $0x640] sm:$0xff]
    %v1394 = vld [vmem:[#allocation11 + $0x648] sm:$0xff]
    %v1395 = vld [vmem:[#allocation11 + $0x650] sm:$0xff]
    %v1396 = vld [vmem:[#allocation11 + $0x658] sm:$0xff]
    %v1397 = vld [vmem:[#allocation11 + $0x660] sm:$0xff]
    %v1398 = vld [vmem:[#allocation11 + $0x668] sm:$0xff]
    %v1399 = vld [vmem:[#allocation11 + $0x670] sm:$0xff]
    %v1400 = vld [vmem:[#allocation11 + $0x678] sm:$0xff]
    %v1401 = vld [vmem:[#allocation11 + $0x680] sm:$0xff]
    %v1402 = vld [vmem:[#allocation11 + $0x688] sm:$0xff]
    %v1403 = vld [vmem:[#allocation11 + $0x690] sm:$0xff]
    %v1404 = vld [vmem:[#allocation11 + $0x698] sm:$0xff]
    %v1405 = vld [vmem:[#allocation11 + $0x6a0] sm:$0xff]
    %v1406 = vld [vmem:[#allocation11 + $0x6a8] sm:$0xff]
    %v1407 = vld [vmem:[#allocation11 + $0x6b0] sm:$0xff]
    %v1408 = vld [vmem:[#allocation11 + $0x6b8] sm:$0xff]
    %v1409 = vld [vmem:[#allocation11 + $0x6c0] sm:$0xff]
    %v1410 = vld [vmem:[#allocation11 + $0x6c8] sm:$0xff]
    %v1411 = vld [vmem:[#allocation11 + $0x6d0] sm:$0xff]
    %v1412 = vld [vmem:[#allocation11 + $0x6d8] sm:$0xff]
    %v1413 = vld [vmem:[#allocation11 + $0x6e0] sm:$0xff]
    %v1414 = vld [vmem:[#allocation11 + $0x6e8] sm:$0xff]
    %v1415 = vld [vmem:[#allocation11 + $0x6f0] sm:$0xff]
    %v1416 = vld [vmem:[#allocation11 + $0x6f8] sm:$0xff]
    %v1417 = vld [vmem:[#allocation11 + $0x700] sm:$0xff]
    %v1418 = vld [vmem:[#allocation11 + $0x708] sm:$0xff]
    %v1419 = vld [vmem:[#allocation11 + $0x710] sm:$0xff]
    %v1420 = vld [vmem:[#allocation11 + $0x718] sm:$0xff]
    %v1421 = vld [vmem:[#allocation11 + $0x720] sm:$0xff]
    %v1422 = vld [vmem:[#allocation11 + $0x728] sm:$0xff]
    %v1423 = vld [vmem:[#allocation11 + $0x730] sm:$0xff]
    %v1424 = vld [vmem:[#allocation11 + $0x738] sm:$0xff]
    %v1425 = vld [vmem:[#allocation11 + $0x740] sm:$0xff]
    %v1426 = vld [vmem:[#allocation11 + $0x748] sm:$0xff]
    %v1427 = vld [vmem:[#allocation11 + $0x750] sm:$0xff]
    %v1428 = vld [vmem:[#allocation11 + $0x758] sm:$0xff]
    %v1429 = vld [vmem:[#allocation11 + $0x760] sm:$0xff]
    %v1430 = vld [vmem:[#allocation11 + $0x768] sm:$0xff]
    %v1431 = vld [vmem:[#allocation11 + $0x770] sm:$0xff]
    %v1432 = vld [vmem:[#allocation11 + $0x778] sm:$0xff]
    %v1433 = vld [vmem:[#allocation11 + $0x780] sm:$0xff]
    %v1434 = vld [vmem:[#allocation11 + $0x788] sm:$0xff]
    %v1435 = vld [vmem:[#allocation11 + $0x790] sm:$0xff]
    %v1436 = vld [vmem:[#allocation11 + $0x798] sm:$0xff]
    %v1437 = vld [vmem:[#allocation11 + $0x7a0] sm:$0xff]
    %v1438 = vld [vmem:[#allocation11 + $0x7a8] sm:$0xff]
    %v1439 = vld [vmem:[#allocation11 + $0x7b0] sm:$0xff]
    %v1440 = vld [vmem:[#allocation11 + $0x7b8] sm:$0xff]
    %v1441 = vld [vmem:[#allocation11 + $0x7c0] sm:$0xff]
    %v1442 = vld [vmem:[#allocation11 + $0x7c8] sm:$0xff]
    %v1443 = vld [vmem:[#allocation11 + $0x7d0] sm:$0xff]
    %v1444 = vld [vmem:[#allocation11 + $0x7d8] sm:$0xff]
    %v1445 = vld [vmem:[#allocation11 + $0x7e0] sm:$0xff]
    %v1446 = vld [vmem:[#allocation11 + $0x7e8] sm:$0xff]
    %v1447 = vld [vmem:[#allocation11 + $0x7f0] sm:$0xff]
    %v1448 = vld [vmem:[#allocation11 + $0x7f8] sm:$0xff]
    %v1449 = vld [vmem:[#allocation13] sm:$0xf]
    %v1450 = vld [vmem:[%s7] sm:$0xf]
    %v1451 = vld [vmem:[%s7 + $0x4] sm:$0xf]
    %v1452 = vld [vmem:[%s7 + $0x8] sm:$0xf]
    %v1453 = vld [vmem:[%s7 + $0xc] sm:$0xf]
    %v1454 = vld [vmem:[%s7 + $0x10] sm:$0xf]
    %v1455 = vld [vmem:[%s7 + $0x14] sm:$0xf]
    %v1456 = vld [vmem:[%s7 + $0x18] sm:$0xf]
    %v1457 = vld [vmem:[%s7 + $0x1c] sm:$0xf]
    %v1458 = vld [vmem:[%s7 + $0x20] sm:$0xf]
    %v1459 = vld [vmem:[%s7 + $0x24] sm:$0xf]
    %v1460 = vld [vmem:[%s7 + $0x28] sm:$0xf]
    %v1461 = vld [vmem:[%s7 + $0x2c] sm:$0xf]
    %v1462 = vld [vmem:[%s7 + $0x30] sm:$0xf]
    %v1463 = vld [vmem:[%s7 + $0x34] sm:$0xf]
    %v1464 = vld [vmem:[%s7 + $0x38] sm:$0xf]
    %v1465 = vld [vmem:[%s7 + $0x3c] sm:$0xf]
    %v1466 = vld [vmem:[%s7 + $0x40] sm:$0xf]
    %v1467 = vld [vmem:[%s7 + $0x44] sm:$0xf]
    %v1468 = vld [vmem:[%s7 + $0x48] sm:$0xf]
    %v1469 = vld [vmem:[%s7 + $0x4c] sm:$0xf]
    %v1470 = vld [vmem:[%s7 + $0x50] sm:$0xf]
    %v1471 = vld [vmem:[%s7 + $0x54] sm:$0xf]
    %v1472 = vld [vmem:[%s7 + $0x58] sm:$0xf]
    %v1473 = vld [vmem:[%s7 + $0x5c] sm:$0xf]
    %v1474 = vld [vmem:[%s7 + $0x60] sm:$0xf]
    %v1475 = vld [vmem:[%s7 + $0x64] sm:$0xf]
    %v1476 = vld [vmem:[%s7 + $0x68] sm:$0xf]
    %v1477 = vld [vmem:[%s7 + $0x6c] sm:$0xf]
    %v1478 = vld [vmem:[%s7 + $0x70] sm:$0xf]
    %v1479 = vld [vmem:[%s7 + $0x74] sm:$0xf]
    %v1480 = vld [vmem:[%s7 + $0x78] sm:$0xf]
    %v1481 = vld [vmem:[%s7 + $0x7c] sm:$0xf]
    %v1482 = vld [vmem:[%s7 + $0x80] sm:$0xf]
    %v1483 = vld [vmem:[%s7 + $0x84] sm:$0xf]
    %v1484 = vld [vmem:[%s7 + $0x88] sm:$0xf]
    %v1485 = vld [vmem:[%s7 + $0x8c] sm:$0xf]
    %v1486 = vld [vmem:[%s7 + $0x90] sm:$0xf]
    %v1487 = vld [vmem:[%s7 + $0x94] sm:$0xf]
    %v1488 = vld [vmem:[%s7 + $0x98] sm:$0xf]
    %v1489 = vld [vmem:[%s7 + $0x9c] sm:$0xf]
    %v1490 = vld [vmem:[%s7 + $0xa0] sm:$0xf]
    %v1491 = vld [vmem:[%s7 + $0xa4] sm:$0xf]
    %v1492 = vld [vmem:[%s7 + $0xa8] sm:$0xf]
    %v1493 = vld [vmem:[%s7 + $0xac] sm:$0xf]
    %v1494 = vld [vmem:[%s7 + $0xb0] sm:$0xf]
    %v1495 = vld [vmem:[%s7 + $0xb4] sm:$0xf]
    %v1496 = vld [vmem:[%s7 + $0xb8] sm:$0xf]
    %v1497 = vld [vmem:[%s7 + $0xbc] sm:$0xf]
    %v1498 = vld [vmem:[%s7 + $0xc0] sm:$0xf]
    %v1499 = vld [vmem:[%s7 + $0xc4] sm:$0xf]
    %v1500 = vld [vmem:[%s7 + $0xc8] sm:$0xf]
    %v1501 = vld [vmem:[%s7 + $0xcc] sm:$0xf]
    %v1502 = vld [vmem:[%s7 + $0xd0] sm:$0xf]
    %v1503 = vld [vmem:[%s7 + $0xd4] sm:$0xf]
    %v1504 = vld [vmem:[%s7 + $0xd8] sm:$0xf]
    %v1505 = vld [vmem:[%s7 + $0xdc] sm:$0xf]
    %v1506 = vld [vmem:[%s7 + $0xe0] sm:$0xf]
    %v1507 = vld [vmem:[%s7 + $0xe4] sm:$0xf]
    %v1508 = vld [vmem:[%s7 + $0xe8] sm:$0xf]
    %v1509 = vld [vmem:[%s7 + $0xec] sm:$0xf]
    %v1510 = vld [vmem:[%s7 + $0xf0] sm:$0xf]
    %v1511 = vld [vmem:[%s7 + $0xf4] sm:$0xf]
    %v1512 = vld [vmem:[%s7 + $0xf8] sm:$0xf]
    %v1513 = vld [vmem:[%s7 + $0xfc] sm:$0xf]
    %v1514 = vld [vmem:[#allocation14] sm:$0x1]
    %v1515 = vpack.c.bf16 %v133, %v133
    %v1518 = vlaneseq
    %v1519 = vshrl.u32 %v1518, 7
    %v1520 = vsub.s32 0, %v1519
    %v1521 = vrot.slane %v166, %v1520
    %v1522 = vlaneseq
    %v1523 = vshrl.u32 %v1522, 7
    %v1524 = vsub.s32 1, %v1523
    %v1525 = vrot.slane %v166, %v1524
    %v1526 = vlaneseq
    %v1527 = vshrl.u32 %v1526, 7
    %v1528 = vsub.s32 2, %v1527
    %v1529 = vrot.slane %v166, %v1528
    %v1530 = vlaneseq
    %v1531 = vshrl.u32 %v1530, 7
    %v1532 = vsub.s32 3, %v1531
    %v1533 = vrot.slane %v166, %v1532
    %v1534 = vlaneseq
    %v1535 = vshrl.u32 %v1534, 7
    %v1536 = vsub.s32 4, %v1535
    %v1537 = vrot.slane %v166, %v1536
    %v1538 = vlaneseq
    %v1539 = vshrl.u32 %v1538, 7
    %v1540 = vsub.s32 5, %v1539
    %v1541 = vrot.slane %v166, %v1540
    %v1542 = vlaneseq
    %v1543 = vshrl.u32 %v1542, 7
    %v1544 = vsub.s32 6, %v1543
    %v1545 = vrot.slane %v166, %v1544
    %v1546 = vlaneseq
    %v1547 = vshrl.u32 %v1546, 7
    %v1548 = vsub.s32 7, %v1547
    %v1549 = vrot.slane %v166, %v1548
    %v1550 = vlaneseq
    %v1551 = vshrl.u32 %v1550, 7
    %v1552 = vsub.s32 0, %v1551
    %v1553 = vrot.slane %v167, %v1552
    %v1554 = vlaneseq
    %v1555 = vshrl.u32 %v1554, 7
    %v1556 = vsub.s32 1, %v1555
    %v1557 = vrot.slane %v167, %v1556
    %v1558 = vlaneseq
    %v1559 = vshrl.u32 %v1558, 7
    %v1560 = vsub.s32 2, %v1559
    %v1561 = vrot.slane %v167, %v1560
    %v1562 = vlaneseq
    %v1563 = vshrl.u32 %v1562, 7
    %v1564 = vsub.s32 3, %v1563
    %v1565 = vrot.slane %v167, %v1564
    %v1566 = vlaneseq
    %v1567 = vshrl.u32 %v1566, 7
    %v1568 = vsub.s32 4, %v1567
    %v1569 = vrot.slane %v167, %v1568
    %v1570 = vlaneseq
    %v1571 = vshrl.u32 %v1570, 7
    %v1572 = vsub.s32 5, %v1571
    %v1573 = vrot.slane %v167, %v1572
    %v1574 = vlaneseq
    %v1575 = vshrl.u32 %v1574, 7
    %v1576 = vsub.s32 6, %v1575
    %v1577 = vrot.slane %v167, %v1576
    %v1578 = vlaneseq
    %v1579 = vshrl.u32 %v1578, 7
    %v1580 = vsub.s32 7, %v1579
    %v1581 = vrot.slane %v167, %v1580
    %v1630 = vunpack.c.l.b16 %v134
    %v1631 = vunpack.c.h.b16 %v134
    %v1632 = vunpack.c.l.b16 %v135
    %v1633 = vunpack.c.h.b16 %v135
    %v1634 = vunpack.c.l.b16 %v136
    %v1635 = vunpack.c.h.b16 %v136
    %v1636 = vunpack.c.l.b16 %v137
    %v1637 = vunpack.c.h.b16 %v137
    %v1638 = vunpack.c.l.b16 %v138
    %v1639 = vunpack.c.h.b16 %v138
    %v1640 = vunpack.c.l.b16 %v139
    %v1641 = vunpack.c.h.b16 %v139
    %v1642 = vunpack.c.l.b16 %v140
    %v1643 = vunpack.c.h.b16 %v140
    %v1644 = vunpack.c.l.b16 %v141
    %v1645 = vunpack.c.h.b16 %v141
    %v1646 = vunpack.c.l.b16 %v142
    %v1647 = vunpack.c.h.b16 %v142
    %v1648 = vunpack.c.l.b16 %v143
    %v1649 = vunpack.c.h.b16 %v143
    %v1650 = vunpack.c.l.b16 %v144
    %v1651 = vunpack.c.h.b16 %v144
    %v1652 = vunpack.c.l.b16 %v145
    %v1653 = vunpack.c.h.b16 %v145
    %v1654 = vunpack.c.l.b16 %v146
    %v1655 = vunpack.c.h.b16 %v146
    %v1656 = vunpack.c.l.b16 %v147
    %v1657 = vunpack.c.h.b16 %v147
    %v1658 = vunpack.c.l.b16 %v148
    %v1659 = vunpack.c.h.b16 %v148
    %v1660 = vunpack.c.l.b16 %v149
    %v1661 = vunpack.c.h.b16 %v149
    %v1662 = vunpack.c.l.b16 %v150
    %v1663 = vunpack.c.h.b16 %v150
    %v1664 = vunpack.c.l.b16 %v151
    %v1665 = vunpack.c.h.b16 %v151
    %v1666 = vunpack.c.l.b16 %v152
    %v1667 = vunpack.c.h.b16 %v152
    %v1668 = vunpack.c.l.b16 %v153
    %v1669 = vunpack.c.h.b16 %v153
    %v1670 = vunpack.c.l.b16 %v154
    %v1671 = vunpack.c.h.b16 %v154
    %v1672 = vunpack.c.l.b16 %v155
    %v1673 = vunpack.c.h.b16 %v155
    %v1674 = vunpack.c.l.b16 %v156
    %v1675 = vunpack.c.h.b16 %v156
    %v1676 = vunpack.c.l.b16 %v157
    %v1677 = vunpack.c.h.b16 %v157
    %v1678 = vunpack.c.l.b16 %v158
    %v1679 = vunpack.c.h.b16 %v158
    %v1680 = vunpack.c.l.b16 %v159
    %v1681 = vunpack.c.h.b16 %v159
    %v1682 = vunpack.c.l.b16 %v160
    %v1683 = vunpack.c.h.b16 %v160
    %v1684 = vunpack.c.l.b16 %v161
    %v1685 = vunpack.c.h.b16 %v161
    %v1686 = vunpack.c.l.b16 %v162
    %v1687 = vunpack.c.h.b16 %v162
    %v1688 = vunpack.c.l.b16 %v163
    %v1689 = vunpack.c.h.b16 %v163
    %v1690 = vunpack.c.l.b16 %v164
    %v1691 = vunpack.c.h.b16 %v164
    %v1692 = vunpack.c.l.b16 %v165
    %v1693 = vunpack.c.h.b16 %v165
    %v1694 = vpack.c.b16 %v1646, %v1630
    %v1695 = vpack.c.b16 %v1647, %v1631
    %v1696 = vpack.c.b16 %v1648, %v1632
    %v1697 = vpack.c.b16 %v1649, %v1633
    %v1698 = vpack.c.b16 %v1650, %v1634
    %v1699 = vpack.c.b16 %v1651, %v1635
    %v1700 = vpack.c.b16 %v1652, %v1636
    %v1701 = vpack.c.b16 %v1653, %v1637
    %v1702 = vpack.c.b16 %v1654, %v1638
    %v1703 = vpack.c.b16 %v1655, %v1639
    %v1704 = vpack.c.b16 %v1656, %v1640
    %v1705 = vpack.c.b16 %v1657, %v1641
    %v1706 = vpack.c.b16 %v1658, %v1642
    %v1707 = vpack.c.b16 %v1659, %v1643
    %v1708 = vpack.c.b16 %v1660, %v1644
    %v1709 = vpack.c.b16 %v1661, %v1645
    %v1710 = vpack.c.b16 %v1678, %v1662
    %v1711 = vpack.c.b16 %v1679, %v1663
    %v1712 = vpack.c.b16 %v1680, %v1664
    %v1713 = vpack.c.b16 %v1681, %v1665
    %v1714 = vpack.c.b16 %v1682, %v1666
    %v1715 = vpack.c.b16 %v1683, %v1667
    %v1716 = vpack.c.b16 %v1684, %v1668
    %v1717 = vpack.c.b16 %v1685, %v1669
    %v1718 = vpack.c.b16 %v1686, %v1670
    %v1719 = vpack.c.b16 %v1687, %v1671
    %v1720 = vpack.c.b16 %v1688, %v1672
    %v1721 = vpack.c.b16 %v1689, %v1673
    %v1722 = vpack.c.b16 %v1690, %v1674
    %v1723 = vpack.c.b16 %v1691, %v1675
    %v1724 = vpack.c.b16 %v1692, %v1676
    %v1725 = vpack.c.b16 %v1693, %v1677
    %vm1758 = vcmask 261120
    %v1760 = vsel %vm1758, %v1515, 0
    %1762 = vmatprep.subr.bf16.mxu0 %v1695
    %1763 = vmatpush1.bf16.msra.mxu0 %v1694
    %1764 = vmatprep.subr.bf16.mxu0 %v1711
    %1765 = vmatpush1.bf16.msra.mxu0 %v1710
    %1766 = vmatprep.subr.bf16.mxu0 0
    %1767 = vmatpush1.bf16.msra.mxu0 0
    %1768 = vmatprep.subr.bf16.mxu0 0
    %1769 = vmatpush1.bf16.msra.mxu0 0
    %1770 = vmatprep.subr.bf16.mxu0 0
    %1771 = vmatpush1.bf16.msra.mxu0 0
    %1772 = vmatprep.subr.bf16.mxu0 0
    %1773 = vmatpush1.bf16.msra.mxu0 0
    %1774 = vmatprep.subr.bf16.mxu0 0
    %1775 = vmatpush1.bf16.msra.mxu0 0
    %1776 = vmatprep.subr.bf16.mxu0 0
    %1777 = vmatpush1.bf16.msra.mxu0 0
    %1778 = vmatprep.subr.bf16.mxu0 0
    %1779 = vmatpush1.bf16.msra.mxu0 0
    %1780 = vmatprep.subr.bf16.mxu0 0
    %1781 = vmatpush1.bf16.msra.mxu0 0
    %1782 = vmatprep.subr.bf16.mxu0 0
    %1783 = vmatpush1.bf16.msra.mxu0 0
    %1784 = vmatprep.subr.bf16.mxu0 0
    %1785 = vmatpush1.bf16.msra.mxu0 0
    %1786 = vmatprep.subr.bf16.mxu0 0
    %1787 = vmatpush1.bf16.msra.mxu0 0
    %1788 = vmatprep.subr.bf16.mxu0 0
    %1789 = vmatpush1.bf16.msra.mxu0 0
    %1790 = vmatprep.subr.bf16.mxu0 0
    %1791 = vmatpush1.bf16.msra.mxu0 0
    %1792 = vmatprep.subr.bf16.mxu0 0
    %1793 = vmatpush1.bf16.msra.mxu0 0
    %1794 = vmatprep.mubr.bf16.mxu0 0
    %1795 = vmatmul.mubr.bf16.gmra.mrb[0].mxu0 %v1760
    %v1796 = vpop.f32.mrb[0].mxu0
    %v1797 = vadd.f32 %v1521, %v1796
    %v1798 = vpop.f32.mrb[0].mxu0
    %v1799 = vadd.f32 %v1525, %v1798
    %v1800 = vpop.f32.mrb[0].mxu0
    %v1801 = vpop.f32.mrb[0].mxu0
    %1802 = vdwg.mxu0
    %1803 = vmatprep.subr.bf16.mxu0 %v1697
    %1804 = vmatpush1.bf16.msra.mxu0 %v1696
    %1805 = vmatprep.subr.bf16.mxu0 %v1713
    %1806 = vmatpush1.bf16.msra.mxu0 %v1712
    %1807 = vmatprep.subr.bf16.mxu0 0
    %1808 = vmatpush1.bf16.msra.mxu0 0
    %1809 = vmatprep.subr.bf16.mxu0 0
    %1810 = vmatpush1.bf16.msra.mxu0 0
    %1811 = vmatprep.subr.bf16.mxu0 0
    %1812 = vmatpush1.bf16.msra.mxu0 0
    %1813 = vmatprep.subr.bf16.mxu0 0
    %1814 = vmatpush1.bf16.msra.mxu0 0
    %1815 = vmatprep.subr.bf16.mxu0 0
    %1816 = vmatpush1.bf16.msra.mxu0 0
    %1817 = vmatprep.subr.bf16.mxu0 0
    %1818 = vmatpush1.bf16.msra.mxu0 0
    %1819 = vmatprep.subr.bf16.mxu0 0
    %1820 = vmatpush1.bf16.msra.mxu0 0
    %1821 = vmatprep.subr.bf16.mxu0 0
    %1822 = vmatpush1.bf16.msra.mxu0 0
    %1823 = vmatprep.subr.bf16.mxu0 0
    %1824 = vmatpush1.bf16.msra.mxu0 0
    %1825 = vmatprep.subr.bf16.mxu0 0
    %1826 = vmatpush1.bf16.msra.mxu0 0
    %1827 = vmatprep.subr.bf16.mxu0 0
    %1828 = vmatpush1.bf16.msra.mxu0 0
    %1829 = vmatprep.subr.bf16.mxu0 0
    %1830 = vmatpush1.bf16.msra.mxu0 0
    %1831 = vmatprep.subr.bf16.mxu0 0
    %1832 = vmatpush1.bf16.msra.mxu0 0
    %1833 = vmatprep.subr.bf16.mxu0 0
    %1834 = vmatpush1.bf16.msra.mxu0 0
    %1835 = vmatprep.mubr.bf16.mxu0 0
    %1836 = vmatmul.mubr.bf16.gmra.mrb[0].mxu0 %v1760
    %v1837 = vpop.f32.mrb[0].mxu0
    %v1838 = vadd.f32 %v1529, %v1837
    %v1839 = vpop.f32.mrb[0].mxu0
    %v1840 = vadd.f32 %v1533, %v1839
    %v1841 = vpop.f32.mrb[0].mxu0
    %v1842 = vpop.f32.mrb[0].mxu0
    %1843 = vdwg.mxu0
    %1844 = vmatprep.subr.bf16.mxu0 %v1699
    %1845 = vmatpush1.bf16.msra.mxu0 %v1698
    %1846 = vmatprep.subr.bf16.mxu0 %v1715
    %1847 = vmatpush1.bf16.msra.mxu0 %v1714
    %1848 = vmatprep.subr.bf16.mxu0 0
    %1849 = vmatpush1.bf16.msra.mxu0 0
    %1850 = vmatprep.subr.bf16.mxu0 0
    %1851 = vmatpush1.bf16.msra.mxu0 0
    %1852 = vmatprep.subr.bf16.mxu0 0
    %1853 = vmatpush1.bf16.msra.mxu0 0
    %1854 = vmatprep.subr.bf16.mxu0 0
    %1855 = vmatpush1.bf16.msra.mxu0 0
    %1856 = vmatprep.subr.bf16.mxu0 0
    %1857 = vmatpush1.bf16.msra.mxu0 0
    %1858 = vmatprep.subr.bf16.mxu0 0
    %1859 = vmatpush1.bf16.msra.mxu0 0
    %1860 = vmatprep.subr.bf16.mxu0 0
    %1861 = vmatpush1.bf16.msra.mxu0 0
    %1862 = vmatprep.subr.bf16.mxu0 0
    %1863 = vmatpush1.bf16.msra.mxu0 0
    %1864 = vmatprep.subr.bf16.mxu0 0
    %1865 = vmatpush1.bf16.msra.mxu0 0
    %1866 = vmatprep.subr.bf16.mxu0 0
    %1867 = vmatpush1.bf16.msra.mxu0 0
    %1868 = vmatprep.subr.bf16.mxu0 0
    %1869 = vmatpush1.bf16.msra.mxu0 0
    %1870 = vmatprep.subr.bf16.mxu0 0
    %1871 = vmatpush1.bf16.msra.mxu0 0
    %1872 = vmatprep.subr.bf16.mxu0 0
    %1873 = vmatpush1.bf16.msra.mxu0 0
    %1874 = vmatprep.subr.bf16.mxu0 0
    %1875 = vmatpush1.bf16.msra.mxu0 0
    %1876 = vmatprep.mubr.bf16.mxu0 0
    %1877 = vmatmul.mubr.bf16.gmra.mrb[0].mxu0 %v1760
    %v1878 = vpop.f32.mrb[0].mxu0
    %v1879 = vadd.f32 %v1537, %v1878
    %v1880 = vpop.f32.mrb[0].mxu0
    %v1881 = vadd.f32 %v1541, %v1880
    %v1882 = vpop.f32.mrb[0].mxu0
    %v1883 = vpop.f32.mrb[0].mxu0
    %1884 = vdwg.mxu0
    %1885 = vmatprep.subr.bf16.mxu0 %v1701
    %1886 = vmatpush1.bf16.msra.mxu0 %v1700
    %1887 = vmatprep.subr.bf16.mxu0 %v1717
    %1888 = vmatpush1.bf16.msra.mxu0 %v1716
    %1889 = vmatprep.subr.bf16.mxu0 0
    %1890 = vmatpush1.bf16.msra.mxu0 0
    %1891 = vmatprep.subr.bf16.mxu0 0
    %1892 = vmatpush1.bf16.msra.mxu0 0
    %1893 = vmatprep.subr.bf16.mxu0 0
    %1894 = vmatpush1.bf16.msra.mxu0 0
    %1895 = vmatprep.subr.bf16.mxu0 0
    %1896 = vmatpush1.bf16.msra.mxu0 0
    %1897 = vmatprep.subr.bf16.mxu0 0
    %1898 = vmatpush1.bf16.msra.mxu0 0
    %1899 = vmatprep.subr.bf16.mxu0 0
    %1900 = vmatpush1.bf16.msra.mxu0 0
    %1901 = vmatprep.subr.bf16.mxu0 0
    %1902 = vmatpush1.bf16.msra.mxu0 0
    %1903 = vmatprep.subr.bf16.mxu0 0
    %1904 = vmatpush1.bf16.msra.mxu0 0
    %1905 = vmatprep.subr.bf16.mxu0 0
    %1906 = vmatpush1.bf16.msra.mxu0 0
    %1907 = vmatprep.subr.bf16.mxu0 0
    %1908 = vmatpush1.bf16.msra.mxu0 0
    %1909 = vmatprep.subr.bf16.mxu0 0
    %1910 = vmatpush1.bf16.msra.mxu0 0
    %1911 = vmatprep.subr.bf16.mxu0 0
    %1912 = vmatpush1.bf16.msra.mxu0 0
    %1913 = vmatprep.subr.bf16.mxu0 0
    %1914 = vmatpush1.bf16.msra.mxu0 0
    %1915 = vmatprep.subr.bf16.mxu0 0
    %1916 = vmatpush1.bf16.msra.mxu0 0
    %1917 = vmatprep.mubr.bf16.mxu0 0
    %1918 = vmatmul.mubr.bf16.gmra.mrb[0].mxu0 %v1760
    %v1919 = vpop.f32.mrb[0].mxu0
    %v1920 = vadd.f32 %v1545, %v1919
    %v1921 = vpop.f32.mrb[0].mxu0
    %v1922 = vadd.f32 %v1549, %v1921
    %v1923 = vpop.f32.mrb[0].mxu0
    %v1924 = vpop.f32.mrb[0].mxu0
    %1925 = vdwg.mxu0
    %1926 = vmatprep.subr.bf16.mxu0 %v1703
    %1927 = vmatpush1.bf16.msra.mxu0 %v1702
    %1928 = vmatprep.subr.bf16.mxu0 %v1719
    %1929 = vmatpush1.bf16.msra.mxu0 %v1718
    %1930 = vmatprep.subr.bf16.mxu0 0
    %1931 = vmatpush1.bf16.msra.mxu0 0
    %1932 = vmatprep.subr.bf16.mxu0 0
    %1933 = vmatpush1.bf16.msra.mxu0 0
    %1934 = vmatprep.subr.bf16.mxu0 0
    %1935 = vmatpush1.bf16.msra.mxu0 0
    %1936 = vmatprep.subr.bf16.mxu0 0
    %1937 = vmatpush1.bf16.msra.mxu0 0
    %1938 = vmatprep.subr.bf16.mxu0 0
    %1939 = vmatpush1.bf16.msra.mxu0 0
    %1940 = vmatprep.subr.bf16.mxu0 0
    %1941 = vmatpush1.bf16.msra.mxu0 0
    %1942 = vmatprep.subr.bf16.mxu0 0
    %1943 = vmatpush1.bf16.msra.mxu0 0
    %1944 = vmatprep.subr.bf16.mxu0 0
    %1945 = vmatpush1.bf16.msra.mxu0 0
    %1946 = vmatprep.subr.bf16.mxu0 0
    %1947 = vmatpush1.bf16.msra.mxu0 0
    %1948 = vmatprep.subr.bf16.mxu0 0
    %1949 = vmatpush1.bf16.msra.mxu0 0
    %1950 = vmatprep.subr.bf16.mxu0 0
    %1951 = vmatpush1.bf16.msra.mxu0 0
    %1952 = vmatprep.subr.bf16.mxu0 0
    %1953 = vmatpush1.bf16.msra.mxu0 0
    %1954 = vmatprep.subr.bf16.mxu0 0
    %1955 = vmatpush1.bf16.msra.mxu0 0
    %1956 = vmatprep.subr.bf16.mxu0 0
    %1957 = vmatpush1.bf16.msra.mxu0 0
    %1958 = vmatprep.mubr.bf16.mxu0 0
    %1959 = vmatmul.mubr.bf16.gmra.mrb[0].mxu0 %v1760
    %v1960 = vpop.f32.mrb[0].mxu0
    %v1961 = vadd.f32 %v1553, %v1960
    %v1962 = vpop.f32.mrb[0].mxu0
    %v1963 = vadd.f32 %v1557, %v1962
    %v1964 = vpop.f32.mrb[0].mxu0
    %v1965 = vpop.f32.mrb[0].mxu0
    %1966 = vdwg.mxu0
    %1967 = vmatprep.subr.bf16.mxu0 %v1705
    %1968 = vmatpush1.bf16.msra.mxu0 %v1704
    %1969 = vmatprep.subr.bf16.mxu0 %v1721
    %1970 = vmatpush1.bf16.msra.mxu0 %v1720
    %1971 = vmatprep.subr.bf16.mxu0 0
    %1972 = vmatpush1.bf16.msra.mxu0 0
    %1973 = vmatprep.subr.bf16.mxu0 0
    %1974 = vmatpush1.bf16.msra.mxu0 0
    %1975 = vmatprep.subr.bf16.mxu0 0
    %1976 = vmatpush1.bf16.msra.mxu0 0
    %1977 = vmatprep.subr.bf16.mxu0 0
    %1978 = vmatpush1.bf16.msra.mxu0 0
    %1979 = vmatprep.subr.bf16.mxu0 0
    %1980 = vmatpush1.bf16.msra.mxu0 0
    %1981 = vmatprep.subr.bf16.mxu0 0
    %1982 = vmatpush1.bf16.msra.mxu0 0
    %1983 = vmatprep.subr.bf16.mxu0 0
    %1984 = vmatpush1.bf16.msra.mxu0 0
    %1985 = vmatprep.subr.bf16.mxu0 0
    %1986 = vmatpush1.bf16.msra.mxu0 0
    %1987 = vmatprep.subr.bf16.mxu0 0
    %1988 = vmatpush1.bf16.msra.mxu0 0
    %1989 = vmatprep.subr.bf16.mxu0 0
    %1990 = vmatpush1.bf16.msra.mxu0 0
    %1991 = vmatprep.subr.bf16.mxu0 0
    %1992 = vmatpush1.bf16.msra.mxu0 0
    %1993 = vmatprep.subr.bf16.mxu0 0
    %1994 = vmatpush1.bf16.msra.mxu0 0
    %1995 = vmatprep.subr.bf16.mxu0 0
    %1996 = vmatpush1.bf16.msra.mxu0 0
    %1997 = vmatprep.subr.bf16.mxu0 0
    %1998 = vmatpush1.bf16.msra.mxu0 0
    %1999 = vmatprep.mubr.bf16.mxu0 0
    %2000 = vmatmul.mubr.bf16.gmra.mrb[0].mxu0 %v1760
    %v2001 = vpop.f32.mrb[0].mxu0
    %v2002 = vadd.f32 %v1561, %v2001
    %v2003 = vpop.f32.mrb[0].mxu0
    %v2004 = vadd.f32 %v1565, %v2003
    %v2005 = vpop.f32.mrb[0].mxu0
    %v2006 = vpop.f32.mrb[0].mxu0
    %2007 = vdwg.mxu0
    %2008 = vmatprep.subr.bf16.mxu0 %v1707
    %2009 = vmatpush1.bf16.msra.mxu0 %v1706
    %2010 = vmatprep.subr.bf16.mxu0 %v1723
    %2011 = vmatpush1.bf16.msra.mxu0 %v1722
    %2012 = vmatprep.subr.bf16.mxu0 0
    %2013 = vmatpush1.bf16.msra.mxu0 0
    %2014 = vmatprep.subr.bf16.mxu0 0
    %2015 = vmatpush1.bf16.msra.mxu0 0
    %2016 = vmatprep.subr.bf16.mxu0 0
    %2017 = vmatpush1.bf16.msra.mxu0 0
    %2018 = vmatprep.subr.bf16.mxu0 0
    %2019 = vmatpush1.bf16.msra.mxu0 0
    %2020 = vmatprep.subr.bf16.mxu0 0
    %2021 = vmatpush1.bf16.msra.mxu0 0
    %2022 = vmatprep.subr.bf16.mxu0 0
    %2023 = vmatpush1.bf16.msra.mxu0 0
    %2024 = vmatprep.subr.bf16.mxu0 0
    %2025 = vmatpush1.bf16.msra.mxu0 0
    %2026 = vmatprep.subr.bf16.mxu0 0
    %2027 = vmatpush1.bf16.msra.mxu0 0
    %2028 = vmatprep.subr.bf16.mxu0 0
    %2029 = vmatpush1.bf16.msra.mxu0 0
    %2030 = vmatprep.subr.bf16.mxu0 0
    %2031 = vmatpush1.bf16.msra.mxu0 0
    %2032 = vmatprep.subr.bf16.mxu0 0
    %2033 = vmatpush1.bf16.msra.mxu0 0
    %2034 = vmatprep.subr.bf16.mxu0 0
    %2035 = vmatpush1.bf16.msra.mxu0 0
    %2036 = vmatprep.subr.bf16.mxu0 0
    %2037 = vmatpush1.bf16.msra.mxu0 0
    %2038 = vmatprep.subr.bf16.mxu0 0
    %2039 = vmatpush1.bf16.msra.mxu0 0
    %2040 = vmatprep.mubr.bf16.mxu0 0
    %2041 = vmatmul.mubr.bf16.gmra.mrb[0].mxu0 %v1760
    %v2042 = vpop.f32.mrb[0].mxu0
    %v2043 = vadd.f32 %v1569, %v2042
    %v2044 = vpop.f32.mrb[0].mxu0
    %v2045 = vadd.f32 %v1573, %v2044
    %v2046 = vpop.f32.mrb[0].mxu0
    %v2047 = vpop.f32.mrb[0].mxu0
    %2048 = vdwg.mxu0
    %2049 = vmatprep.subr.bf16.mxu0 %v1709
    %2050 = vmatpush1.bf16.msra.mxu0 %v1708
    %2051 = vmatprep.subr.bf16.mxu0 %v1725
    %2052 = vmatpush1.bf16.msra.mxu0 %v1724
    %2053 = vmatprep.subr.bf16.mxu0 0
    %2054 = vmatpush1.bf16.msra.mxu0 0
    %2055 = vmatprep.subr.bf16.mxu0 0
    %2056 = vmatpush1.bf16.msra.mxu0 0
    %2057 = vmatprep.subr.bf16.mxu0 0
    %2058 = vmatpush1.bf16.msra.mxu0 0
    %2059 = vmatprep.subr.bf16.mxu0 0
    %2060 = vmatpush1.bf16.msra.mxu0 0
    %2061 = vmatprep.subr.bf16.mxu0 0
    %2062 = vmatpush1.bf16.msra.mxu0 0
    %2063 = vmatprep.subr.bf16.mxu0 0
    %2064 = vmatpush1.bf16.msra.mxu0 0
    %2065 = vmatprep.subr.bf16.mxu0 0
    %2066 = vmatpush1.bf16.msra.mxu0 0
    %2067 = vmatprep.subr.bf16.mxu0 0
    %2068 = vmatpush1.bf16.msra.mxu0 0
    %2069 = vmatprep.subr.bf16.mxu0 0
    %2070 = vmatpush1.bf16.msra.mxu0 0
    %2071 = vmatprep.subr.bf16.mxu0 0
    %2072 = vmatpush1.bf16.msra.mxu0 0
    %2073 = vmatprep.subr.bf16.mxu0 0
    %2074 = vmatpush1.bf16.msra.mxu0 0
    %2075 = vmatprep.subr.bf16.mxu0 0
    %2076 = vmatpush1.bf16.msra.mxu0 0
    %2077 = vmatprep.subr.bf16.mxu0 0
    %2078 = vmatpush1.bf16.msra.mxu0 0
    %2079 = vmatprep.subr.bf16.mxu0 0
    %2080 = vmatpush1.bf16.msra.mxu0 0
    %2081 = vmatprep.mubr.bf16.mxu0 0
    %2082 = vmatmul.mubr.bf16.gmra.mrb[0].mxu0 %v1760
    %v2083 = vpop.f32.mrb[0].mxu0
    %v2084 = vadd.f32 %v1577, %v2083
    %v2085 = vpop.f32.mrb[0].mxu0
    %v2086 = vadd.f32 %v1581, %v2085
    %v2087 = vpop.f32.mrb[0].mxu0
    %v2088 = vpop.f32.mrb[0].mxu0
    %2089 = vdwg.mxu0
    %v2090 = vmax.f32 %v1797, 0.0
    %v2091 = vmax.f32 %v1799, 0.0
    %v2092 = vmax.f32 %v1838, 0.0
    %v2093 = vmax.f32 %v1840, 0.0
    %v2094 = vmax.f32 %v1879, 0.0
    %v2095 = vmax.f32 %v1881, 0.0
    %v2096 = vmax.f32 %v1920, 0.0
    %v2097 = vmax.f32 %v1922, 0.0
    %v2098 = vmax.f32 %v1961, 0.0
    %v2099 = vmax.f32 %v1963, 0.0
    %v2100 = vmax.f32 %v2002, 0.0
    %v2101 = vmax.f32 %v2004, 0.0
    %v2102 = vmax.f32 %v2043, 0.0
    %v2103 = vmax.f32 %v2045, 0.0
    %v2104 = vmax.f32 %v2084, 0.0
    %v2105 = vmax.f32 %v2086, 0.0
    %v2106 = vpack.c.bf16 %v2090, %v2090
    %v2107 = vpack.c.bf16 %v2091, %v2091
    %v2108 = vpack.c.bf16 %v2092, %v2092
    %v2109 = vpack.c.bf16 %v2093, %v2093
    %v2110 = vpack.c.bf16 %v2094, %v2094
    %v2111 = vpack.c.bf16 %v2095, %v2095
    %v2112 = vpack.c.bf16 %v2096, %v2096
    %v2113 = vpack.c.bf16 %v2097, %v2097
    %v2114 = vpack.c.bf16 %v2098, %v2098
    %v2115 = vpack.c.bf16 %v2099, %v2099
    %v2116 = vpack.c.bf16 %v2100, %v2100
    %v2117 = vpack.c.bf16 %v2101, %v2101
    %v2118 = vpack.c.bf16 %v2102, %v2102
    %v2119 = vpack.c.bf16 %v2103, %v2103
    %v2120 = vpack.c.bf16 %v2104, %v2104
    %v2121 = vpack.c.bf16 %v2105, %v2105
    %v2123 = vlaneseq
    %v2124 = vshrl.u32 %v2123, 7
    %v2125 = vsub.s32 0, %v2124
    %v2126 = vrot.slane %v1192, %v2125
    %v2127 = vlaneseq
    %v2128 = vshrl.u32 %v2127, 7
    %v2129 = vsub.s32 1, %v2128
    %v2130 = vrot.slane %v1192, %v2129
    %v2131 = vlaneseq
    %v2132 = vshrl.u32 %v2131, 7
    %v2133 = vsub.s32 2, %v2132
    %v2134 = vrot.slane %v1192, %v2133
    %v2135 = vlaneseq
    %v2136 = vshrl.u32 %v2135, 7
    %v2137 = vsub.s32 3, %v2136
    %v2138 = vrot.slane %v1192, %v2137
    %v2139 = vlaneseq
    %v2140 = vshrl.u32 %v2139, 7
    %v2141 = vsub.s32 4, %v2140
    %v2142 = vrot.slane %v1192, %v2141
    %v2143 = vlaneseq
    %v2144 = vshrl.u32 %v2143, 7
    %v2145 = vsub.s32 5, %v2144
    %v2146 = vrot.slane %v1192, %v2145
    %v2147 = vlaneseq
    %v2148 = vshrl.u32 %v2147, 7
    %v2149 = vsub.s32 6, %v2148
    %v2150 = vrot.slane %v1192, %v2149
    %v2151 = vlaneseq
    %v2152 = vshrl.u32 %v2151, 7
    %v2153 = vsub.s32 7, %v2152
    %v2154 = vrot.slane %v1192, %v2153
    %v3187 = vunpack.c.l.b16 %v168
    %v3188 = vunpack.c.h.b16 %v168
    %v3189 = vunpack.c.l.b16 %v169
    %v3190 = vunpack.c.h.b16 %v169
    %v3191 = vunpack.c.l.b16 %v170
    %v3192 = vunpack.c.h.b16 %v170
    %v3193 = vunpack.c.l.b16 %v171
    %v3194 = vunpack.c.h.b16 %v171
    %v3195 = vunpack.c.l.b16 %v172
    %v3196 = vunpack.c.h.b16 %v172
    %v3197 = vunpack.c.l.b16 %v173
    %v3198 = vunpack.c.h.b16 %v173
    %v3199 = vunpack.c.l.b16 %v174
    %v3200 = vunpack.c.h.b16 %v174
    %v3201 = vunpack.c.l.b16 %v175
    %v3202 = vunpack.c.h.b16 %v175
    %v3203 = vunpack.c.l.b16 %v176
    %v3204 = vunpack.c.h.b16 %v176
    %v3205 = vunpack.c.l.b16 %v177
    %v3206 = vunpack.c.h.b16 %v177
    %v3207 = vunpack.c.l.b16 %v178
    %v3208 = vunpack.c.h.b16 %v178
    %v3209 = vunpack.c.l.b16 %v179
    %v3210 = vunpack.c.h.b16 %v179
    %v3211 = vunpack.c.l.b16 %v180
    %v3212 = vunpack.c.h.b16 %v180
    %v3213 = vunpack.c.l.b16 %v181
    %v3214 = vunpack.c.h.b16 %v181
    %v3215 = vunpack.c.l.b16 %v182
    %v3216 = vunpack.c.h.b16 %v182
    %v3217 = vunpack.c.l.b16 %v183
    %v3218 = vunpack.c.h.b16 %v183
    %v3219 = vunpack.c.l.b16 %v184
    %v3220 = vunpack.c.h.b16 %v184
    %v3221 = vunpack.c.l.b16 %v185
    %v3222 = vunpack.c.h.b16 %v185
    %v3223 = vunpack.c.l.b16 %v186
    %v3224 = vunpack.c.h.b16 %v186
    %v3225 = vunpack.c.l.b16 %v187
    %v3226 = vunpack.c.h.b16 %v187
    %v3227 = vunpack.c.l.b16 %v188
    %v3228 = vunpack.c.h.b16 %v188
    %v3229 = vunpack.c.l.b16 %v189
    %v3230 = vunpack.c.h.b16 %v189
    %v3231 = vunpack.c.l.b16 %v190
    %v3232 = vunpack.c.h.b16 %v190
    %v3233 = vunpack.c.l.b16 %v191
    %v3234 = vunpack.c.h.b16 %v191
    %v3235 = vunpack.c.l.b16 %v192
    %v3236 = vunpack.c.h.b16 %v192
    %v3237 = vunpack.c.l.b16 %v193
    %v3238 = vunpack.c.h.b16 %v193
    %v3239 = vunpack.c.l.b16 %v194
    %v3240 = vunpack.c.h.b16 %v194
    %v3241 = vunpack.c.l.b16 %v195
    %v3242 = vunpack.c.h.b16 %v195
    %v3243 = vunpack.c.l.b16 %v196
    %v3244 = vunpack.c.h.b16 %v196
    %v3245 = vunpack.c.l.b16 %v197
    %v3246 = vunpack.c.h.b16 %v197
    %v3247 = vunpack.c.l.b16 %v198
    %v3248 = vunpack.c.h.b16 %v198
    %v3249 = vunpack.c.l.b16 %v199
    %v3250 = vunpack.c.h.b16 %v199
    %v3251 = vunpack.c.l.b16 %v200
    %v3252 = vunpack.c.h.b16 %v200
    %v3253 = vunpack.c.l.b16 %v201
    %v3254 = vunpack.c.h.b16 %v201
    %v3255 = vunpack.c.l.b16 %v202
    %v3256 = vunpack.c.h.b16 %v202
    %v3257 = vunpack.c.l.b16 %v203
    %v3258 = vunpack.c.h.b16 %v203
    %v3259 = vunpack.c.l.b16 %v204
    %v3260 = vunpack.c.h.b16 %v204
    %v3261 = vunpack.c.l.b16 %v205
    %v3262 = vunpack.c.h.b16 %v205
    %v3263 = vunpack.c.l.b16 %v206
    %v3264 = vunpack.c.h.b16 %v206
    %v3265 = vunpack.c.l.b16 %v207
    %v3266 = vunpack.c.h.b16 %v207
    %v3267 = vunpack.c.l.b16 %v208
    %v3268 = vunpack.c.h.b16 %v208
    %v3269 = vunpack.c.l.b16 %v209
    %v3270 = vunpack.c.h.b16 %v209
    %v3271 = vunpack.c.l.b16 %v210
    %v3272 = vunpack.c.h.b16 %v210
    %v3273 = vunpack.c.l.b16 %v211
    %v3274 = vunpack.c.h.b16 %v211
    %v3275 = vunpack.c.l.b16 %v212
    %v3276 = vunpack.c.h.b16 %v212
    %v3277 = vunpack.c.l.b16 %v213
    %v3278 = vunpack.c.h.b16 %v213
    %v3279 = vunpack.c.l.b16 %v214
    %v3280 = vunpack.c.h.b16 %v214
    %v3281 = vunpack.c.l.b16 %v215
    %v3282 = vunpack.c.h.b16 %v215
    %v3283 = vunpack.c.l.b16 %v216
    %v3284 = vunpack.c.h.b16 %v216
    %v3285 = vunpack.c.l.b16 %v217
    %v3286 = vunpack.c.h.b16 %v217
    %v3287 = vunpack.c.l.b16 %v218
    %v3288 = vunpack.c.h.b16 %v218
    %v3289 = vunpack.c.l.b16 %v219
    %v3290 = vunpack.c.h.b16 %v219
    %v3291 = vunpack.c.l.b16 %v220
    %v3292 = vunpack.c.h.b16 %v220
    %v3293 = vunpack.c.l.b16 %v221
    %v3294 = vunpack.c.h.b16 %v221
    %v3295 = vunpack.c.l.b16 %v222
    %v3296 = vunpack.c.h.b16 %v222
    %v3297 = vunpack.c.l.b16 %v223
    %v3298 = vunpack.c.h.b16 %v223
    %v3299 = vunpack.c.l.b16 %v224
    %v3300 = vunpack.c.h.b16 %v224
    %v3301 = vunpack.c.l.b16 %v225
    %v3302 = vunpack.c.h.b16 %v225
    %v3303 = vunpack.c.l.b16 %v226
    %v3304 = vunpack.c.h.b16 %v226
    %v3305 = vunpack.c.l.b16 %v227
    %v3306 = vunpack.c.h.b16 %v227
    %v3307 = vunpack.c.l.b16 %v228
    %v3308 = vunpack.c.h.b16 %v228
    %v3309 = vunpack.c.l.b16 %v229
    %v3310 = vunpack.c.h.b16 %v229
    %v3311 = vunpack.c.l.b16 %v230
    %v3312 = vunpack.c.h.b16 %v230
    %v3313 = vunpack.c.l.b16 %v231
    %v3314 = vunpack.c.h.b16 %v231
    %v3315 = vunpack.c.l.b16 %v232
    %v3316 = vunpack.c.h.b16 %v232
    %v3317 = vunpack.c.l.b16 %v233
    %v3318 = vunpack.c.h.b16 %v233
    %v3319 = vunpack.c.l.b16 %v234
    %v3320 = vunpack.c.h.b16 %v234
    %v3321 = vunpack.c.l.b16 %v235
    %v3322 = vunpack.c.h.b16 %v235
    %v3323 = vunpack.c.l.b16 %v236
    %v3324 = vunpack.c.h.b16 %v236
    %v3325 = vunpack.c.l.b16 %v237
    %v3326 = vunpack.c.h.b16 %v237
    %v3327 = vunpack.c.l.b16 %v238
    %v3328 = vunpack.c.h.b16 %v238
    %v3329 = vunpack.c.l.b16 %v239
    %v3330 = vunpack.c.h.b16 %v239
    %v3331 = vunpack.c.l.b16 %v240
    %v3332 = vunpack.c.h.b16 %v240
    %v3333 = vunpack.c.l.b16 %v241
    %v3334 = vunpack.c.h.b16 %v241
    %v3335 = vunpack.c.l.b16 %v242
    %v3336 = vunpack.c.h.b16 %v242
    %v3337 = vunpack.c.l.b16 %v243
    %v3338 = vunpack.c.h.b16 %v243
    %v3339 = vunpack.c.l.b16 %v244
    %v3340 = vunpack.c.h.b16 %v244
    %v3341 = vunpack.c.l.b16 %v245
    %v3342 = vunpack.c.h.b16 %v245
    %v3343 = vunpack.c.l.b16 %v246
    %v3344 = vunpack.c.h.b16 %v246
    %v3345 = vunpack.c.l.b16 %v247
    %v3346 = vunpack.c.h.b16 %v247
    %v3347 = vunpack.c.l.b16 %v248
    %v3348 = vunpack.c.h.b16 %v248
    %v3349 = vunpack.c.l.b16 %v249
    %v3350 = vunpack.c.h.b16 %v249
    %v3351 = vunpack.c.l.b16 %v250
    %v3352 = vunpack.c.h.b16 %v250
    %v3353 = vunpack.c.l.b16 %v251
    %v3354 = vunpack.c.h.b16 %v251
    %v3355 = vunpack.c.l.b16 %v252
    %v3356 = vunpack.c.h.b16 %v252
    %v3357 = vunpack.c.l.b16 %v253
    %v3358 = vunpack.c.h.b16 %v253
    %v3359 = vunpack.c.l.b16 %v254
    %v3360 = vunpack.c.h.b16 %v254
    %v3361 = vunpack.c.l.b16 %v255
    %v3362 = vunpack.c.h.b16 %v255
    %v3363 = vunpack.c.l.b16 %v256
    %v3364 = vunpack.c.h.b16 %v256
    %v3365 = vunpack.c.l.b16 %v257
    %v3366 = vunpack.c.h.b16 %v257
    %v3367 = vunpack.c.l.b16 %v258
    %v3368 = vunpack.c.h.b16 %v258
    %v3369 = vunpack.c.l.b16 %v259
    %v3370 = vunpack.c.h.b16 %v259
    %v3371 = vunpack.c.l.b16 %v260
    %v3372 = vunpack.c.h.b16 %v260
    %v3373 = vunpack.c.l.b16 %v261
    %v3374 = vunpack.c.h.b16 %v261
    %v3375 = vunpack.c.l.b16 %v262
    %v3376 = vunpack.c.h.b16 %v262
    %v3377 = vunpack.c.l.b16 %v263
    %v3378 = vunpack.c.h.b16 %v263
    %v3379 = vunpack.c.l.b16 %v264
    %v3380 = vunpack.c.h.b16 %v264
    %v3381 = vunpack.c.l.b16 %v265
    %v3382 = vunpack.c.h.b16 %v265
    %v3383 = vunpack.c.l.b16 %v266
    %v3384 = vunpack.c.h.b16 %v266
    %v3385 = vunpack.c.l.b16 %v267
    %v3386 = vunpack.c.h.b16 %v267
    %v3387 = vunpack.c.l.b16 %v268
    %v3388 = vunpack.c.h.b16 %v268
    %v3389 = vunpack.c.l.b16 %v269
    %v3390 = vunpack.c.h.b16 %v269
    %v3391 = vunpack.c.l.b16 %v270
    %v3392 = vunpack.c.h.b16 %v270
    %v3393 = vunpack.c.l.b16 %v271
    %v3394 = vunpack.c.h.b16 %v271
    %v3395 = vunpack.c.l.b16 %v272
    %v3396 = vunpack.c.h.b16 %v272
    %v3397 = vunpack.c.l.b16 %v273
    %v3398 = vunpack.c.h.b16 %v273
    %v3399 = vunpack.c.l.b16 %v274
    %v3400 = vunpack.c.h.b16 %v274
    %v3401 = vunpack.c.l.b16 %v275
    %v3402 = vunpack.c.h.b16 %v275
    %v3403 = vunpack.c.l.b16 %v276
    %v3404 = vunpack.c.h.b16 %v276
    %v3405 = vunpack.c.l.b16 %v277
    %v3406 = vunpack.c.h.b16 %v277
    %v3407 = vunpack.c.l.b16 %v278
    %v3408 = vunpack.c.h.b16 %v278
    %v3409 = vunpack.c.l.b16 %v279
    %v3410 = vunpack.c.h.b16 %v279
    %v3411 = vunpack.c.l.b16 %v280
    %v3412 = vunpack.c.h.b16 %v280
    %v3413 = vunpack.c.l.b16 %v281
    %v3414 = vunpack.c.h.b16 %v281
    %v3415 = vunpack.c.l.b16 %v282
    %v3416 = vunpack.c.h.b16 %v282
    %v3417 = vunpack.c.l.b16 %v283
    %v3418 = vunpack.c.h.b16 %v283
    %v3419 = vunpack.c.l.b16 %v284
    %v3420 = vunpack.c.h.b16 %v284
    %v3421 = vunpack.c.l.b16 %v285
    %v3422 = vunpack.c.h.b16 %v285
    %v3423 = vunpack.c.l.b16 %v286
    %v3424 = vunpack.c.h.b16 %v286
    %v3425 = vunpack.c.l.b16 %v287
    %v3426 = vunpack.c.h.b16 %v287
    %v3427 = vunpack.c.l.b16 %v288
    %v3428 = vunpack.c.h.b16 %v288
    %v3429 = vunpack.c.l.b16 %v289
    %v3430 = vunpack.c.h.b16 %v289
    %v3431 = vunpack.c.l.b16 %v290
    %v3432 = vunpack.c.h.b16 %v290
    %v3433 = vunpack.c.l.b16 %v291
    %v3434 = vunpack.c.h.b16 %v291
    %v3435 = vunpack.c.l.b16 %v292
    %v3436 = vunpack.c.h.b16 %v292
    %v3437 = vunpack.c.l.b16 %v293
    %v3438 = vunpack.c.h.b16 %v293
    %v3439 = vunpack.c.l.b16 %v294
    %v3440 = vunpack.c.h.b16 %v294
    %v3441 = vunpack.c.l.b16 %v295
    %v3442 = vunpack.c.h.b16 %v295
    %v3443 = vunpack.c.l.b16 %v296
    %v3444 = vunpack.c.h.b16 %v296
    %v3445 = vunpack.c.l.b16 %v297
    %v3446 = vunpack.c.h.b16 %v297
    %v3447 = vunpack.c.l.b16 %v298
    %v3448 = vunpack.c.h.b16 %v298
    %v3449 = vunpack.c.l.b16 %v299
    %v3450 = vunpack.c.h.b16 %v299
    %v3451 = vunpack.c.l.b16 %v300
    %v3452 = vunpack.c.h.b16 %v300
    %v3453 = vunpack.c.l.b16 %v301
    %v3454 = vunpack.c.h.b16 %v301
    %v3455 = vunpack.c.l.b16 %v302
    %v3456 = vunpack.c.h.b16 %v302
    %v3457 = vunpack.c.l.b16 %v303
    %v3458 = vunpack.c.h.b16 %v303
    %v3459 = vunpack.c.l.b16 %v304
    %v3460 = vunpack.c.h.b16 %v304
    %v3461 = vunpack.c.l.b16 %v305
    %v3462 = vunpack.c.h.b16 %v305
    %v3463 = vunpack.c.l.b16 %v306
    %v3464 = vunpack.c.h.b16 %v306
    %v3465 = vunpack.c.l.b16 %v307
    %v3466 = vunpack.c.h.b16 %v307
    %v3467 = vunpack.c.l.b16 %v308
    %v3468 = vunpack.c.h.b16 %v308
    %v3469 = vunpack.c.l.b16 %v309
    %v3470 = vunpack.c.h.b16 %v309
    %v3471 = vunpack.c.l.b16 %v310
    %v3472 = vunpack.c.h.b16 %v310
    %v3473 = vunpack.c.l.b16 %v311
    %v3474 = vunpack.c.h.b16 %v311
    %v3475 = vunpack.c.l.b16 %v312
    %v3476 = vunpack.c.h.b16 %v312
    %v3477 = vunpack.c.l.b16 %v313
    %v3478 = vunpack.c.h.b16 %v313
    %v3479 = vunpack.c.l.b16 %v314
    %v3480 = vunpack.c.h.b16 %v314
    %v3481 = vunpack.c.l.b16 %v315
    %v3482 = vunpack.c.h.b16 %v315
    %v3483 = vunpack.c.l.b16 %v316
    %v3484 = vunpack.c.h.b16 %v316
    %v3485 = vunpack.c.l.b16 %v317
    %v3486 = vunpack.c.h.b16 %v317
    %v3487 = vunpack.c.l.b16 %v318
    %v3488 = vunpack.c.h.b16 %v318
    %v3489 = vunpack.c.l.b16 %v319
    %v3490 = vunpack.c.h.b16 %v319
    %v3491 = vunpack.c.l.b16 %v320
    %v3492 = vunpack.c.h.b16 %v320
    %v3493 = vunpack.c.l.b16 %v321
    %v3494 = vunpack.c.h.b16 %v321
    %v3495 = vunpack.c.l.b16 %v322
    %v3496 = vunpack.c.h.b16 %v322
    %v3497 = vunpack.c.l.b16 %v323
    %v3498 = vunpack.c.h.b16 %v323
    %v3499 = vunpack.c.l.b16 %v324
    %v3500 = vunpack.c.h.b16 %v324
    %v3501 = vunpack.c.l.b16 %v325
    %v3502 = vunpack.c.h.b16 %v325
    %v3503 = vunpack.c.l.b16 %v326
    %v3504 = vunpack.c.h.b16 %v326
    %v3505 = vunpack.c.l.b16 %v327
    %v3506 = vunpack.c.h.b16 %v327
    %v3507 = vunpack.c.l.b16 %v328
    %v3508 = vunpack.c.h.b16 %v328
    %v3509 = vunpack.c.l.b16 %v329
    %v3510 = vunpack.c.h.b16 %v329
    %v3511 = vunpack.c.l.b16 %v330
    %v3512 = vunpack.c.h.b16 %v330
    %v3513 = vunpack.c.l.b16 %v331
    %v3514 = vunpack.c.h.b16 %v331
    %v3515 = vunpack.c.l.b16 %v332
    %v3516 = vunpack.c.h.b16 %v332
    %v3517 = vunpack.c.l.b16 %v333
    %v3518 = vunpack.c.h.b16 %v333
    %v3519 = vunpack.c.l.b16 %v334
    %v3520 = vunpack.c.h.b16 %v334
    %v3521 = vunpack.c.l.b16 %v335
    %v3522 = vunpack.c.h.b16 %v335
    %v3523 = vunpack.c.l.b16 %v336
    %v3524 = vunpack.c.h.b16 %v336
    %v3525 = vunpack.c.l.b16 %v337
    %v3526 = vunpack.c.h.b16 %v337
    %v3527 = vunpack.c.l.b16 %v338
    %v3528 = vunpack.c.h.b16 %v338
    %v3529 = vunpack.c.l.b16 %v339
    %v3530 = vunpack.c.h.b16 %v339
    %v3531 = vunpack.c.l.b16 %v340
    %v3532 = vunpack.c.h.b16 %v340
    %v3533 = vunpack.c.l.b16 %v341
    %v3534 = vunpack.c.h.b16 %v341
    %v3535 = vunpack.c.l.b16 %v342
    %v3536 = vunpack.c.h.b16 %v342
    %v3537 = vunpack.c.l.b16 %v343
    %v3538 = vunpack.c.h.b16 %v343
    %v3539 = vunpack.c.l.b16 %v344
    %v3540 = vunpack.c.h.b16 %v344
    %v3541 = vunpack.c.l.b16 %v345
    %v3542 = vunpack.c.h.b16 %v345
    %v3543 = vunpack.c.l.b16 %v346
    %v3544 = vunpack.c.h.b16 %v346
    %v3545 = vunpack.c.l.b16 %v347
    %v3546 = vunpack.c.h.b16 %v347
    %v3547 = vunpack.c.l.b16 %v348
    %v3548 = vunpack.c.h.b16 %v348
    %v3549 = vunpack.c.l.b16 %v349
    %v3550 = vunpack.c.h.b16 %v349
    %v3551 = vunpack.c.l.b16 %v350
    %v3552 = vunpack.c.h.b16 %v350
    %v3553 = vunpack.c.l.b16 %v351
    %v3554 = vunpack.c.h.b16 %v351
    %v3555 = vunpack.c.l.b16 %v352
    %v3556 = vunpack.c.h.b16 %v352
    %v3557 = vunpack.c.l.b16 %v353
    %v3558 = vunpack.c.h.b16 %v353
    %v3559 = vunpack.c.l.b16 %v354
    %v3560 = vunpack.c.h.b16 %v354
    %v3561 = vunpack.c.l.b16 %v355
    %v3562 = vunpack.c.h.b16 %v355
    %v3563 = vunpack.c.l.b16 %v356
    %v3564 = vunpack.c.h.b16 %v356
    %v3565 = vunpack.c.l.b16 %v357
    %v3566 = vunpack.c.h.b16 %v357
    %v3567 = vunpack.c.l.b16 %v358
    %v3568 = vunpack.c.h.b16 %v358
    %v3569 = vunpack.c.l.b16 %v359
    %v3570 = vunpack.c.h.b16 %v359
    %v3571 = vunpack.c.l.b16 %v360
    %v3572 = vunpack.c.h.b16 %v360
    %v3573 = vunpack.c.l.b16 %v361
    %v3574 = vunpack.c.h.b16 %v361
    %v3575 = vunpack.c.l.b16 %v362
    %v3576 = vunpack.c.h.b16 %v362
    %v3577 = vunpack.c.l.b16 %v363
    %v3578 = vunpack.c.h.b16 %v363
    %v3579 = vunpack.c.l.b16 %v364
    %v3580 = vunpack.c.h.b16 %v364
    %v3581 = vunpack.c.l.b16 %v365
    %v3582 = vunpack.c.h.b16 %v365
    %v3583 = vunpack.c.l.b16 %v366
    %v3584 = vunpack.c.h.b16 %v366
    %v3585 = vunpack.c.l.b16 %v367
    %v3586 = vunpack.c.h.b16 %v367
    %v3587 = vunpack.c.l.b16 %v368
    %v3588 = vunpack.c.h.b16 %v368
    %v3589 = vunpack.c.l.b16 %v369
    %v3590 = vunpack.c.h.b16 %v369
    %v3591 = vunpack.c.l.b16 %v370
    %v3592 = vunpack.c.h.b16 %v370
    %v3593 = vunpack.c.l.b16 %v371
    %v3594 = vunpack.c.h.b16 %v371
    %v3595 = vunpack.c.l.b16 %v372
    %v3596 = vunpack.c.h.b16 %v372
    %v3597 = vunpack.c.l.b16 %v373
    %v3598 = vunpack.c.h.b16 %v373
    %v3599 = vunpack.c.l.b16 %v374
    %v3600 = vunpack.c.h.b16 %v374
    %v3601 = vunpack.c.l.b16 %v375
    %v3602 = vunpack.c.h.b16 %v375
    %v3603 = vunpack.c.l.b16 %v376
    %v3604 = vunpack.c.h.b16 %v376
    %v3605 = vunpack.c.l.b16 %v377
    %v3606 = vunpack.c.h.b16 %v377
    %v3607 = vunpack.c.l.b16 %v378
    %v3608 = vunpack.c.h.b16 %v378
    %v3609 = vunpack.c.l.b16 %v379
    %v3610 = vunpack.c.h.b16 %v379
    %v3611 = vunpack.c.l.b16 %v380
    %v3612 = vunpack.c.h.b16 %v380
    %v3613 = vunpack.c.l.b16 %v381
    %v3614 = vunpack.c.h.b16 %v381
    %v3615 = vunpack.c.l.b16 %v382
    %v3616 = vunpack.c.h.b16 %v382
    %v3617 = vunpack.c.l.b16 %v383
    %v3618 = vunpack.c.h.b16 %v383
    %v3619 = vunpack.c.l.b16 %v384
    %v3620 = vunpack.c.h.b16 %v384
    %v3621 = vunpack.c.l.b16 %v385
    %v3622 = vunpack.c.h.b16 %v385
    %v3623 = vunpack.c.l.b16 %v386
    %v3624 = vunpack.c.h.b16 %v386
    %v3625 = vunpack.c.l.b16 %v387
    %v3626 = vunpack.c.h.b16 %v387
    %v3627 = vunpack.c.l.b16 %v388
    %v3628 = vunpack.c.h.b16 %v388
    %v3629 = vunpack.c.l.b16 %v389
    %v3630 = vunpack.c.h.b16 %v389
    %v3631 = vunpack.c.l.b16 %v390
    %v3632 = vunpack.c.h.b16 %v390
    %v3633 = vunpack.c.l.b16 %v391
    %v3634 = vunpack.c.h.b16 %v391
    %v3635 = vunpack.c.l.b16 %v392
    %v3636 = vunpack.c.h.b16 %v392
    %v3637 = vunpack.c.l.b16 %v393
    %v3638 = vunpack.c.h.b16 %v393
    %v3639 = vunpack.c.l.b16 %v394
    %v3640 = vunpack.c.h.b16 %v394
    %v3641 = vunpack.c.l.b16 %v395
    %v3642 = vunpack.c.h.b16 %v395
    %v3643 = vunpack.c.l.b16 %v396
    %v3644 = vunpack.c.h.b16 %v396
    %v3645 = vunpack.c.l.b16 %v397
    %v3646 = vunpack.c.h.b16 %v397
    %v3647 = vunpack.c.l.b16 %v398
    %v3648 = vunpack.c.h.b16 %v398
    %v3649 = vunpack.c.l.b16 %v399
    %v3650 = vunpack.c.h.b16 %v399
    %v3651 = vunpack.c.l.b16 %v400
    %v3652 = vunpack.c.h.b16 %v400
    %v3653 = vunpack.c.l.b16 %v401
    %v3654 = vunpack.c.h.b16 %v401
    %v3655 = vunpack.c.l.b16 %v402
    %v3656 = vunpack.c.h.b16 %v402
    %v3657 = vunpack.c.l.b16 %v403
    %v3658 = vunpack.c.h.b16 %v403
    %v3659 = vunpack.c.l.b16 %v404
    %v3660 = vunpack.c.h.b16 %v404
    %v3661 = vunpack.c.l.b16 %v405
    %v3662 = vunpack.c.h.b16 %v405
    %v3663 = vunpack.c.l.b16 %v406
    %v3664 = vunpack.c.h.b16 %v406
    %v3665 = vunpack.c.l.b16 %v407
    %v3666 = vunpack.c.h.b16 %v407
    %v3667 = vunpack.c.l.b16 %v408
    %v3668 = vunpack.c.h.b16 %v408
    %v3669 = vunpack.c.l.b16 %v409
    %v3670 = vunpack.c.h.b16 %v409
    %v3671 = vunpack.c.l.b16 %v410
    %v3672 = vunpack.c.h.b16 %v410
    %v3673 = vunpack.c.l.b16 %v411
    %v3674 = vunpack.c.h.b16 %v411
    %v3675 = vunpack.c.l.b16 %v412
    %v3676 = vunpack.c.h.b16 %v412
    %v3677 = vunpack.c.l.b16 %v413
    %v3678 = vunpack.c.h.b16 %v413
    %v3679 = vunpack.c.l.b16 %v414
    %v3680 = vunpack.c.h.b16 %v414
    %v3681 = vunpack.c.l.b16 %v415
    %v3682 = vunpack.c.h.b16 %v415
    %v3683 = vunpack.c.l.b16 %v416
    %v3684 = vunpack.c.h.b16 %v416
    %v3685 = vunpack.c.l.b16 %v417
    %v3686 = vunpack.c.h.b16 %v417
    %v3687 = vunpack.c.l.b16 %v418
    %v3688 = vunpack.c.h.b16 %v418
    %v3689 = vunpack.c.l.b16 %v419
    %v3690 = vunpack.c.h.b16 %v419
    %v3691 = vunpack.c.l.b16 %v420
    %v3692 = vunpack.c.h.b16 %v420
    %v3693 = vunpack.c.l.b16 %v421
    %v3694 = vunpack.c.h.b16 %v421
    %v3695 = vunpack.c.l.b16 %v422
    %v3696 = vunpack.c.h.b16 %v422
    %v3697 = vunpack.c.l.b16 %v423
    %v3698 = vunpack.c.h.b16 %v423
    %v3699 = vunpack.c.l.b16 %v424
    %v3700 = vunpack.c.h.b16 %v424
    %v3701 = vunpack.c.l.b16 %v425
    %v3702 = vunpack.c.h.b16 %v425
    %v3703 = vunpack.c.l.b16 %v426
    %v3704 = vunpack.c.h.b16 %v426
    %v3705 = vunpack.c.l.b16 %v427
    %v3706 = vunpack.c.h.b16 %v427
    %v3707 = vunpack.c.l.b16 %v428
    %v3708 = vunpack.c.h.b16 %v428
    %v3709 = vunpack.c.l.b16 %v429
    %v3710 = vunpack.c.h.b16 %v429
    %v3711 = vunpack.c.l.b16 %v430
    %v3712 = vunpack.c.h.b16 %v430
    %v3713 = vunpack.c.l.b16 %v431
    %v3714 = vunpack.c.h.b16 %v431
    %v3715 = vunpack.c.l.b16 %v432
    %v3716 = vunpack.c.h.b16 %v432
    %v3717 = vunpack.c.l.b16 %v433
    %v3718 = vunpack.c.h.b16 %v433
    %v3719 = vunpack.c.l.b16 %v434
    %v3720 = vunpack.c.h.b16 %v434
    %v3721 = vunpack.c.l.b16 %v435
    %v3722 = vunpack.c.h.b16 %v435
    %v3723 = vunpack.c.l.b16 %v436
    %v3724 = vunpack.c.h.b16 %v436
    %v3725 = vunpack.c.l.b16 %v437
    %v3726 = vunpack.c.h.b16 %v437
    %v3727 = vunpack.c.l.b16 %v438
    %v3728 = vunpack.c.h.b16 %v438
    %v3729 = vunpack.c.l.b16 %v439
    %v3730 = vunpack.c.h.b16 %v439
    %v3731 = vunpack.c.l.b16 %v440
    %v3732 = vunpack.c.h.b16 %v440
    %v3733 = vunpack.c.l.b16 %v441
    %v3734 = vunpack.c.h.b16 %v441
    %v3735 = vunpack.c.l.b16 %v442
    %v3736 = vunpack.c.h.b16 %v442
    %v3737 = vunpack.c.l.b16 %v443
    %v3738 = vunpack.c.h.b16 %v443
    %v3739 = vunpack.c.l.b16 %v444
    %v3740 = vunpack.c.h.b16 %v444
    %v3741 = vunpack.c.l.b16 %v445
    %v3742 = vunpack.c.h.b16 %v445
    %v3743 = vunpack.c.l.b16 %v446
    %v3744 = vunpack.c.h.b16 %v446
    %v3745 = vunpack.c.l.b16 %v447
    %v3746 = vunpack.c.h.b16 %v447
    %v3747 = vunpack.c.l.b16 %v448
    %v3748 = vunpack.c.h.b16 %v448
    %v3749 = vunpack.c.l.b16 %v449
    %v3750 = vunpack.c.h.b16 %v449
    %v3751 = vunpack.c.l.b16 %v450
    %v3752 = vunpack.c.h.b16 %v450
    %v3753 = vunpack.c.l.b16 %v451
    %v3754 = vunpack.c.h.b16 %v451
    %v3755 = vunpack.c.l.b16 %v452
    %v3756 = vunpack.c.h.b16 %v452
    %v3757 = vunpack.c.l.b16 %v453
    %v3758 = vunpack.c.h.b16 %v453
    %v3759 = vunpack.c.l.b16 %v454
    %v3760 = vunpack.c.h.b16 %v454
    %v3761 = vunpack.c.l.b16 %v455
    %v3762 = vunpack.c.h.b16 %v455
    %v3763 = vunpack.c.l.b16 %v456
    %v3764 = vunpack.c.h.b16 %v456
    %v3765 = vunpack.c.l.b16 %v457
    %v3766 = vunpack.c.h.b16 %v457
    %v3767 = vunpack.c.l.b16 %v458
    %v3768 = vunpack.c.h.b16 %v458
    %v3769 = vunpack.c.l.b16 %v459
    %v3770 = vunpack.c.h.b16 %v459
    %v3771 = vunpack.c.l.b16 %v460
    %v3772 = vunpack.c.h.b16 %v460
    %v3773 = vunpack.c.l.b16 %v461
    %v3774 = vunpack.c.h.b16 %v461
    %v3775 = vunpack.c.l.b16 %v462
    %v3776 = vunpack.c.h.b16 %v462
    %v3777 = vunpack.c.l.b16 %v463
    %v3778 = vunpack.c.h.b16 %v463
    %v3779 = vunpack.c.l.b16 %v464
    %v3780 = vunpack.c.h.b16 %v464
    %v3781 = vunpack.c.l.b16 %v465
    %v3782 = vunpack.c.h.b16 %v465
    %v3783 = vunpack.c.l.b16 %v466
    %v3784 = vunpack.c.h.b16 %v466
    %v3785 = vunpack.c.l.b16 %v467
    %v3786 = vunpack.c.h.b16 %v467
    %v3787 = vunpack.c.l.b16 %v468
    %v3788 = vunpack.c.h.b16 %v468
    %v3789 = vunpack.c.l.b16 %v469
    %v3790 = vunpack.c.h.b16 %v469
    %v3791 = vunpack.c.l.b16 %v470
    %v3792 = vunpack.c.h.b16 %v470
    %v3793 = vunpack.c.l.b16 %v471
    %v3794 = vunpack.c.h.b16 %v471
    %v3795 = vunpack.c.l.b16 %v472
    %v3796 = vunpack.c.h.b16 %v472
    %v3797 = vunpack.c.l.b16 %v473
    %v3798 = vunpack.c.h.b16 %v473
    %v3799 = vunpack.c.l.b16 %v474
    %v3800 = vunpack.c.h.b16 %v474
    %v3801 = vunpack.c.l.b16 %v475
    %v3802 = vunpack.c.h.b16 %v475
    %v3803 = vunpack.c.l.b16 %v476
    %v3804 = vunpack.c.h.b16 %v476
    %v3805 = vunpack.c.l.b16 %v477
    %v3806 = vunpack.c.h.b16 %v477
    %v3807 = vunpack.c.l.b16 %v478
    %v3808 = vunpack.c.h.b16 %v478
    %v3809 = vunpack.c.l.b16 %v479
    %v3810 = vunpack.c.h.b16 %v479
    %v3811 = vunpack.c.l.b16 %v480
    %v3812 = vunpack.c.h.b16 %v480
    %v3813 = vunpack.c.l.b16 %v481
    %v3814 = vunpack.c.h.b16 %v481
    %v3815 = vunpack.c.l.b16 %v482
    %v3816 = vunpack.c.h.b16 %v482
    %v3817 = vunpack.c.l.b16 %v483
    %v3818 = vunpack.c.h.b16 %v483
    %v3819 = vunpack.c.l.b16 %v484
    %v3820 = vunpack.c.h.b16 %v484
    %v3821 = vunpack.c.l.b16 %v485
    %v3822 = vunpack.c.h.b16 %v485
    %v3823 = vunpack.c.l.b16 %v486
    %v3824 = vunpack.c.h.b16 %v486
    %v3825 = vunpack.c.l.b16 %v487
    %v3826 = vunpack.c.h.b16 %v487
    %v3827 = vunpack.c.l.b16 %v488
    %v3828 = vunpack.c.h.b16 %v488
    %v3829 = vunpack.c.l.b16 %v489
    %v3830 = vunpack.c.h.b16 %v489
    %v3831 = vunpack.c.l.b16 %v490
    %v3832 = vunpack.c.h.b16 %v490
    %v3833 = vunpack.c.l.b16 %v491
    %v3834 = vunpack.c.h.b16 %v491
    %v3835 = vunpack.c.l.b16 %v492
    %v3836 = vunpack.c.h.b16 %v492
    %v3837 = vunpack.c.l.b16 %v493
    %v3838 = vunpack.c.h.b16 %v493
    %v3839 = vunpack.c.l.b16 %v494
    %v3840 = vunpack.c.h.b16 %v494
    %v3841 = vunpack.c.l.b16 %v495
    %v3842 = vunpack.c.h.b16 %v495
    %v3843 = vunpack.c.l.b16 %v496
    %v3844 = vunpack.c.h.b16 %v496
    %v3845 = vunpack.c.l.b16 %v497
    %v3846 = vunpack.c.h.b16 %v497
    %v3847 = vunpack.c.l.b16 %v498
    %v3848 = vunpack.c.h.b16 %v498
    %v3849 = vunpack.c.l.b16 %v499
    %v3850 = vunpack.c.h.b16 %v499
    %v3851 = vunpack.c.l.b16 %v500
    %v3852 = vunpack.c.h.b16 %v500
    %v3853 = vunpack.c.l.b16 %v501
    %v3854 = vunpack.c.h.b16 %v501
    %v3855 = vunpack.c.l.b16 %v502
    %v3856 = vunpack.c.h.b16 %v502
    %v3857 = vunpack.c.l.b16 %v503
    %v3858 = vunpack.c.h.b16 %v503
    %v3859 = vunpack.c.l.b16 %v504
    %v3860 = vunpack.c.h.b16 %v504
    %v3861 = vunpack.c.l.b16 %v505
    %v3862 = vunpack.c.h.b16 %v505
    %v3863 = vunpack.c.l.b16 %v506
    %v3864 = vunpack.c.h.b16 %v506
    %v3865 = vunpack.c.l.b16 %v507
    %v3866 = vunpack.c.h.b16 %v507
    %v3867 = vunpack.c.l.b16 %v508
    %v3868 = vunpack.c.h.b16 %v508
    %v3869 = vunpack.c.l.b16 %v509
    %v3870 = vunpack.c.h.b16 %v509
    %v3871 = vunpack.c.l.b16 %v510
    %v3872 = vunpack.c.h.b16 %v510
    %v3873 = vunpack.c.l.b16 %v511
    %v3874 = vunpack.c.h.b16 %v511
    %v3875 = vunpack.c.l.b16 %v512
    %v3876 = vunpack.c.h.b16 %v512
    %v3877 = vunpack.c.l.b16 %v513
    %v3878 = vunpack.c.h.b16 %v513
    %v3879 = vunpack.c.l.b16 %v514
    %v3880 = vunpack.c.h.b16 %v514
    %v3881 = vunpack.c.l.b16 %v515
    %v3882 = vunpack.c.h.b16 %v515
    %v3883 = vunpack.c.l.b16 %v516
    %v3884 = vunpack.c.h.b16 %v516
    %v3885 = vunpack.c.l.b16 %v517
    %v3886 = vunpack.c.h.b16 %v517
    %v3887 = vunpack.c.l.b16 %v518
    %v3888 = vunpack.c.h.b16 %v518
    %v3889 = vunpack.c.l.b16 %v519
    %v3890 = vunpack.c.h.b16 %v519
    %v3891 = vunpack.c.l.b16 %v520
    %v3892 = vunpack.c.h.b16 %v520
    %v3893 = vunpack.c.l.b16 %v521
    %v3894 = vunpack.c.h.b16 %v521
    %v3895 = vunpack.c.l.b16 %v522
    %v3896 = vunpack.c.h.b16 %v522
    %v3897 = vunpack.c.l.b16 %v523
    %v3898 = vunpack.c.h.b16 %v523
    %v3899 = vunpack.c.l.b16 %v524
    %v3900 = vunpack.c.h.b16 %v524
    %v3901 = vunpack.c.l.b16 %v525
    %v3902 = vunpack.c.h.b16 %v525
    %v3903 = vunpack.c.l.b16 %v526
    %v3904 = vunpack.c.h.b16 %v526
    %v3905 = vunpack.c.l.b16 %v527
    %v3906 = vunpack.c.h.b16 %v527
    %v3907 = vunpack.c.l.b16 %v528
    %v3908 = vunpack.c.h.b16 %v528
    %v3909 = vunpack.c.l.b16 %v529
    %v3910 = vunpack.c.h.b16 %v529
    %v3911 = vunpack.c.l.b16 %v530
    %v3912 = vunpack.c.h.b16 %v530
    %v3913 = vunpack.c.l.b16 %v531
    %v3914 = vunpack.c.h.b16 %v531
    %v3915 = vunpack.c.l.b16 %v532
    %v3916 = vunpack.c.h.b16 %v532
    %v3917 = vunpack.c.l.b16 %v533
    %v3918 = vunpack.c.h.b16 %v533
    %v3919 = vunpack.c.l.b16 %v534
    %v3920 = vunpack.c.h.b16 %v534
    %v3921 = vunpack.c.l.b16 %v535
    %v3922 = vunpack.c.h.b16 %v535
    %v3923 = vunpack.c.l.b16 %v536
    %v3924 = vunpack.c.h.b16 %v536
    %v3925 = vunpack.c.l.b16 %v537
    %v3926 = vunpack.c.h.b16 %v537
    %v3927 = vunpack.c.l.b16 %v538
    %v3928 = vunpack.c.h.b16 %v538
    %v3929 = vunpack.c.l.b16 %v539
    %v3930 = vunpack.c.h.b16 %v539
    %v3931 = vunpack.c.l.b16 %v540
    %v3932 = vunpack.c.h.b16 %v540
    %v3933 = vunpack.c.l.b16 %v541
    %v3934 = vunpack.c.h.b16 %v541
    %v3935 = vunpack.c.l.b16 %v542
    %v3936 = vunpack.c.h.b16 %v542
    %v3937 = vunpack.c.l.b16 %v543
    %v3938 = vunpack.c.h.b16 %v543
    %v3939 = vunpack.c.l.b16 %v544
    %v3940 = vunpack.c.h.b16 %v544
    %v3941 = vunpack.c.l.b16 %v545
    %v3942 = vunpack.c.h.b16 %v545
    %v3943 = vunpack.c.l.b16 %v546
    %v3944 = vunpack.c.h.b16 %v546
    %v3945 = vunpack.c.l.b16 %v547
    %v3946 = vunpack.c.h.b16 %v547
    %v3947 = vunpack.c.l.b16 %v548
    %v3948 = vunpack.c.h.b16 %v548
    %v3949 = vunpack.c.l.b16 %v549
    %v3950 = vunpack.c.h.b16 %v549
    %v3951 = vunpack.c.l.b16 %v550
    %v3952 = vunpack.c.h.b16 %v550
    %v3953 = vunpack.c.l.b16 %v551
    %v3954 = vunpack.c.h.b16 %v551
    %v3955 = vunpack.c.l.b16 %v552
    %v3956 = vunpack.c.h.b16 %v552
    %v3957 = vunpack.c.l.b16 %v553
    %v3958 = vunpack.c.h.b16 %v553
    %v3959 = vunpack.c.l.b16 %v554
    %v3960 = vunpack.c.h.b16 %v554
    %v3961 = vunpack.c.l.b16 %v555
    %v3962 = vunpack.c.h.b16 %v555
    %v3963 = vunpack.c.l.b16 %v556
    %v3964 = vunpack.c.h.b16 %v556
    %v3965 = vunpack.c.l.b16 %v557
    %v3966 = vunpack.c.h.b16 %v557
    %v3967 = vunpack.c.l.b16 %v558
    %v3968 = vunpack.c.h.b16 %v558
    %v3969 = vunpack.c.l.b16 %v559
    %v3970 = vunpack.c.h.b16 %v559
    %v3971 = vunpack.c.l.b16 %v560
    %v3972 = vunpack.c.h.b16 %v560
    %v3973 = vunpack.c.l.b16 %v561
    %v3974 = vunpack.c.h.b16 %v561
    %v3975 = vunpack.c.l.b16 %v562
    %v3976 = vunpack.c.h.b16 %v562
    %v3977 = vunpack.c.l.b16 %v563
    %v3978 = vunpack.c.h.b16 %v563
    %v3979 = vunpack.c.l.b16 %v564
    %v3980 = vunpack.c.h.b16 %v564
    %v3981 = vunpack.c.l.b16 %v565
    %v3982 = vunpack.c.h.b16 %v565
    %v3983 = vunpack.c.l.b16 %v566
    %v3984 = vunpack.c.h.b16 %v566
    %v3985 = vunpack.c.l.b16 %v567
    %v3986 = vunpack.c.h.b16 %v567
    %v3987 = vunpack.c.l.b16 %v568
    %v3988 = vunpack.c.h.b16 %v568
    %v3989 = vunpack.c.l.b16 %v569
    %v3990 = vunpack.c.h.b16 %v569
    %v3991 = vunpack.c.l.b16 %v570
    %v3992 = vunpack.c.h.b16 %v570
    %v3993 = vunpack.c.l.b16 %v571
    %v3994 = vunpack.c.h.b16 %v571
    %v3995 = vunpack.c.l.b16 %v572
    %v3996 = vunpack.c.h.b16 %v572
    %v3997 = vunpack.c.l.b16 %v573
    %v3998 = vunpack.c.h.b16 %v573
    %v3999 = vunpack.c.l.b16 %v574
    %v4000 = vunpack.c.h.b16 %v574
    %v4001 = vunpack.c.l.b16 %v575
    %v4002 = vunpack.c.h.b16 %v575
    %v4003 = vunpack.c.l.b16 %v576
    %v4004 = vunpack.c.h.b16 %v576
    %v4005 = vunpack.c.l.b16 %v577
    %v4006 = vunpack.c.h.b16 %v577
    %v4007 = vunpack.c.l.b16 %v578
    %v4008 = vunpack.c.h.b16 %v578
    %v4009 = vunpack.c.l.b16 %v579
    %v4010 = vunpack.c.h.b16 %v579
    %v4011 = vunpack.c.l.b16 %v580
    %v4012 = vunpack.c.h.b16 %v580
    %v4013 = vunpack.c.l.b16 %v581
    %v4014 = vunpack.c.h.b16 %v581
    %v4015 = vunpack.c.l.b16 %v582
    %v4016 = vunpack.c.h.b16 %v582
    %v4017 = vunpack.c.l.b16 %v583
    %v4018 = vunpack.c.h.b16 %v583
    %v4019 = vunpack.c.l.b16 %v584
    %v4020 = vunpack.c.h.b16 %v584
    %v4021 = vunpack.c.l.b16 %v585
    %v4022 = vunpack.c.h.b16 %v585
    %v4023 = vunpack.c.l.b16 %v586
    %v4024 = vunpack.c.h.b16 %v586
    %v4025 = vunpack.c.l.b16 %v587
    %v4026 = vunpack.c.h.b16 %v587
    %v4027 = vunpack.c.l.b16 %v588
    %v4028 = vunpack.c.h.b16 %v588
    %v4029 = vunpack.c.l.b16 %v589
    %v4030 = vunpack.c.h.b16 %v589
    %v4031 = vunpack.c.l.b16 %v590
    %v4032 = vunpack.c.h.b16 %v590
    %v4033 = vunpack.c.l.b16 %v591
    %v4034 = vunpack.c.h.b16 %v591
    %v4035 = vunpack.c.l.b16 %v592
    %v4036 = vunpack.c.h.b16 %v592
    %v4037 = vunpack.c.l.b16 %v593
    %v4038 = vunpack.c.h.b16 %v593
    %v4039 = vunpack.c.l.b16 %v594
    %v4040 = vunpack.c.h.b16 %v594
    %v4041 = vunpack.c.l.b16 %v595
    %v4042 = vunpack.c.h.b16 %v595
    %v4043 = vunpack.c.l.b16 %v596
    %v4044 = vunpack.c.h.b16 %v596
    %v4045 = vunpack.c.l.b16 %v597
    %v4046 = vunpack.c.h.b16 %v597
    %v4047 = vunpack.c.l.b16 %v598
    %v4048 = vunpack.c.h.b16 %v598
    %v4049 = vunpack.c.l.b16 %v599
    %v4050 = vunpack.c.h.b16 %v599
    %v4051 = vunpack.c.l.b16 %v600
    %v4052 = vunpack.c.h.b16 %v600
    %v4053 = vunpack.c.l.b16 %v601
    %v4054 = vunpack.c.h.b16 %v601
    %v4055 = vunpack.c.l.b16 %v602
    %v4056 = vunpack.c.h.b16 %v602
    %v4057 = vunpack.c.l.b16 %v603
    %v4058 = vunpack.c.h.b16 %v603
    %v4059 = vunpack.c.l.b16 %v604
    %v4060 = vunpack.c.h.b16 %v604
    %v4061 = vunpack.c.l.b16 %v605
    %v4062 = vunpack.c.h.b16 %v605
    %v4063 = vunpack.c.l.b16 %v606
    %v4064 = vunpack.c.h.b16 %v606
    %v4065 = vunpack.c.l.b16 %v607
    %v4066 = vunpack.c.h.b16 %v607
    %v4067 = vunpack.c.l.b16 %v608
    %v4068 = vunpack.c.h.b16 %v608
    %v4069 = vunpack.c.l.b16 %v609
    %v4070 = vunpack.c.h.b16 %v609
    %v4071 = vunpack.c.l.b16 %v610
    %v4072 = vunpack.c.h.b16 %v610
    %v4073 = vunpack.c.l.b16 %v611
    %v4074 = vunpack.c.h.b16 %v611
    %v4075 = vunpack.c.l.b16 %v612
    %v4076 = vunpack.c.h.b16 %v612
    %v4077 = vunpack.c.l.b16 %v613
    %v4078 = vunpack.c.h.b16 %v613
    %v4079 = vunpack.c.l.b16 %v614
    %v4080 = vunpack.c.h.b16 %v614
    %v4081 = vunpack.c.l.b16 %v615
    %v4082 = vunpack.c.h.b16 %v615
    %v4083 = vunpack.c.l.b16 %v616
    %v4084 = vunpack.c.h.b16 %v616
    %v4085 = vunpack.c.l.b16 %v617
    %v4086 = vunpack.c.h.b16 %v617
    %v4087 = vunpack.c.l.b16 %v618
    %v4088 = vunpack.c.h.b16 %v618
    %v4089 = vunpack.c.l.b16 %v619
    %v4090 = vunpack.c.h.b16 %v619
    %v4091 = vunpack.c.l.b16 %v620
    %v4092 = vunpack.c.h.b16 %v620
    %v4093 = vunpack.c.l.b16 %v621
    %v4094 = vunpack.c.h.b16 %v621
    %v4095 = vunpack.c.l.b16 %v622
    %v4096 = vunpack.c.h.b16 %v622
    %v4097 = vunpack.c.l.b16 %v623
    %v4098 = vunpack.c.h.b16 %v623
    %v4099 = vunpack.c.l.b16 %v624
    %v4100 = vunpack.c.h.b16 %v624
    %v4101 = vunpack.c.l.b16 %v625
    %v4102 = vunpack.c.h.b16 %v625
    %v4103 = vunpack.c.l.b16 %v626
    %v4104 = vunpack.c.h.b16 %v626
    %v4105 = vunpack.c.l.b16 %v627
    %v4106 = vunpack.c.h.b16 %v627
    %v4107 = vunpack.c.l.b16 %v628
    %v4108 = vunpack.c.h.b16 %v628
    %v4109 = vunpack.c.l.b16 %v629
    %v4110 = vunpack.c.h.b16 %v629
    %v4111 = vunpack.c.l.b16 %v630
    %v4112 = vunpack.c.h.b16 %v630
    %v4113 = vunpack.c.l.b16 %v631
    %v4114 = vunpack.c.h.b16 %v631
    %v4115 = vunpack.c.l.b16 %v632
    %v4116 = vunpack.c.h.b16 %v632
    %v4117 = vunpack.c.l.b16 %v633
    %v4118 = vunpack.c.h.b16 %v633
    %v4119 = vunpack.c.l.b16 %v634
    %v4120 = vunpack.c.h.b16 %v634
    %v4121 = vunpack.c.l.b16 %v635
    %v4122 = vunpack.c.h.b16 %v635
    %v4123 = vunpack.c.l.b16 %v636
    %v4124 = vunpack.c.h.b16 %v636
    %v4125 = vunpack.c.l.b16 %v637
    %v4126 = vunpack.c.h.b16 %v637
    %v4127 = vunpack.c.l.b16 %v638
    %v4128 = vunpack.c.h.b16 %v638
    %v4129 = vunpack.c.l.b16 %v639
    %v4130 = vunpack.c.h.b16 %v639
    %v4131 = vunpack.c.l.b16 %v640
    %v4132 = vunpack.c.h.b16 %v640
    %v4133 = vunpack.c.l.b16 %v641
    %v4134 = vunpack.c.h.b16 %v641
    %v4135 = vunpack.c.l.b16 %v642
    %v4136 = vunpack.c.h.b16 %v642
    %v4137 = vunpack.c.l.b16 %v643
    %v4138 = vunpack.c.h.b16 %v643
    %v4139 = vunpack.c.l.b16 %v644
    %v4140 = vunpack.c.h.b16 %v644
    %v4141 = vunpack.c.l.b16 %v645
    %v4142 = vunpack.c.h.b16 %v645
    %v4143 = vunpack.c.l.b16 %v646
    %v4144 = vunpack.c.h.b16 %v646
    %v4145 = vunpack.c.l.b16 %v647
    %v4146 = vunpack.c.h.b16 %v647
    %v4147 = vunpack.c.l.b16 %v648
    %v4148 = vunpack.c.h.b16 %v648
    %v4149 = vunpack.c.l.b16 %v649
    %v4150 = vunpack.c.h.b16 %v649
    %v4151 = vunpack.c.l.b16 %v650
    %v4152 = vunpack.c.h.b16 %v650
    %v4153 = vunpack.c.l.b16 %v651
    %v4154 = vunpack.c.h.b16 %v651
    %v4155 = vunpack.c.l.b16 %v652
    %v4156 = vunpack.c.h.b16 %v652
    %v4157 = vunpack.c.l.b16 %v653
    %v4158 = vunpack.c.h.b16 %v653
    %v4159 = vunpack.c.l.b16 %v654
    %v4160 = vunpack.c.h.b16 %v654
    %v4161 = vunpack.c.l.b16 %v655
    %v4162 = vunpack.c.h.b16 %v655
    %v4163 = vunpack.c.l.b16 %v656
    %v4164 = vunpack.c.h.b16 %v656
    %v4165 = vunpack.c.l.b16 %v657
    %v4166 = vunpack.c.h.b16 %v657
    %v4167 = vunpack.c.l.b16 %v658
    %v4168 = vunpack.c.h.b16 %v658
    %v4169 = vunpack.c.l.b16 %v659
    %v4170 = vunpack.c.h.b16 %v659
    %v4171 = vunpack.c.l.b16 %v660
    %v4172 = vunpack.c.h.b16 %v660
    %v4173 = vunpack.c.l.b16 %v661
    %v4174 = vunpack.c.h.b16 %v661
    %v4175 = vunpack.c.l.b16 %v662
    %v4176 = vunpack.c.h.b16 %v662
    %v4177 = vunpack.c.l.b16 %v663
    %v4178 = vunpack.c.h.b16 %v663
    %v4179 = vunpack.c.l.b16 %v664
    %v4180 = vunpack.c.h.b16 %v664
    %v4181 = vunpack.c.l.b16 %v665
    %v4182 = vunpack.c.h.b16 %v665
    %v4183 = vunpack.c.l.b16 %v666
    %v4184 = vunpack.c.h.b16 %v666
    %v4185 = vunpack.c.l.b16 %v667
    %v4186 = vunpack.c.h.b16 %v667
    %v4187 = vunpack.c.l.b16 %v668
    %v4188 = vunpack.c.h.b16 %v668
    %v4189 = vunpack.c.l.b16 %v669
    %v4190 = vunpack.c.h.b16 %v669
    %v4191 = vunpack.c.l.b16 %v670
    %v4192 = vunpack.c.h.b16 %v670
    %v4193 = vunpack.c.l.b16 %v671
    %v4194 = vunpack.c.h.b16 %v671
    %v4195 = vunpack.c.l.b16 %v672
    %v4196 = vunpack.c.h.b16 %v672
    %v4197 = vunpack.c.l.b16 %v673
    %v4198 = vunpack.c.h.b16 %v673
    %v4199 = vunpack.c.l.b16 %v674
    %v4200 = vunpack.c.h.b16 %v674
    %v4201 = vunpack.c.l.b16 %v675
    %v4202 = vunpack.c.h.b16 %v675
    %v4203 = vunpack.c.l.b16 %v676
    %v4204 = vunpack.c.h.b16 %v676
    %v4205 = vunpack.c.l.b16 %v677
    %v4206 = vunpack.c.h.b16 %v677
    %v4207 = vunpack.c.l.b16 %v678
    %v4208 = vunpack.c.h.b16 %v678
    %v4209 = vunpack.c.l.b16 %v679
    %v4210 = vunpack.c.h.b16 %v679
    %v4211 = vunpack.c.l.b16 %v680
    %v4212 = vunpack.c.h.b16 %v680
    %v4213 = vunpack.c.l.b16 %v681
    %v4214 = vunpack.c.h.b16 %v681
    %v4215 = vunpack.c.l.b16 %v682
    %v4216 = vunpack.c.h.b16 %v682
    %v4217 = vunpack.c.l.b16 %v683
    %v4218 = vunpack.c.h.b16 %v683
    %v4219 = vunpack.c.l.b16 %v684
    %v4220 = vunpack.c.h.b16 %v684
    %v4221 = vunpack.c.l.b16 %v685
    %v4222 = vunpack.c.h.b16 %v685
    %v4223 = vunpack.c.l.b16 %v686
    %v4224 = vunpack.c.h.b16 %v686
    %v4225 = vunpack.c.l.b16 %v687
    %v4226 = vunpack.c.h.b16 %v687
    %v4227 = vunpack.c.l.b16 %v688
    %v4228 = vunpack.c.h.b16 %v688
    %v4229 = vunpack.c.l.b16 %v689
    %v4230 = vunpack.c.h.b16 %v689
    %v4231 = vunpack.c.l.b16 %v690
    %v4232 = vunpack.c.h.b16 %v690
    %v4233 = vunpack.c.l.b16 %v691
    %v4234 = vunpack.c.h.b16 %v691
    %v4235 = vunpack.c.l.b16 %v692
    %v4236 = vunpack.c.h.b16 %v692
    %v4237 = vunpack.c.l.b16 %v693
    %v4238 = vunpack.c.h.b16 %v693
    %v4239 = vunpack.c.l.b16 %v694
    %v4240 = vunpack.c.h.b16 %v694
    %v4241 = vunpack.c.l.b16 %v695
    %v4242 = vunpack.c.h.b16 %v695
    %v4243 = vunpack.c.l.b16 %v696
    %v4244 = vunpack.c.h.b16 %v696
    %v4245 = vunpack.c.l.b16 %v697
    %v4246 = vunpack.c.h.b16 %v697
    %v4247 = vunpack.c.l.b16 %v698
    %v4248 = vunpack.c.h.b16 %v698
    %v4249 = vunpack.c.l.b16 %v699
    %v4250 = vunpack.c.h.b16 %v699
    %v4251 = vunpack.c.l.b16 %v700
    %v4252 = vunpack.c.h.b16 %v700
    %v4253 = vunpack.c.l.b16 %v701
    %v4254 = vunpack.c.h.b16 %v701
    %v4255 = vunpack.c.l.b16 %v702
    %v4256 = vunpack.c.h.b16 %v702
    %v4257 = vunpack.c.l.b16 %v703
    %v4258 = vunpack.c.h.b16 %v703
    %v4259 = vunpack.c.l.b16 %v704
    %v4260 = vunpack.c.h.b16 %v704
    %v4261 = vunpack.c.l.b16 %v705
    %v4262 = vunpack.c.h.b16 %v705
    %v4263 = vunpack.c.l.b16 %v706
    %v4264 = vunpack.c.h.b16 %v706
    %v4265 = vunpack.c.l.b16 %v707
    %v4266 = vunpack.c.h.b16 %v707
    %v4267 = vunpack.c.l.b16 %v708
    %v4268 = vunpack.c.h.b16 %v708
    %v4269 = vunpack.c.l.b16 %v709
    %v4270 = vunpack.c.h.b16 %v709
    %v4271 = vunpack.c.l.b16 %v710
    %v4272 = vunpack.c.h.b16 %v710
    %v4273 = vunpack.c.l.b16 %v711
    %v4274 = vunpack.c.h.b16 %v711
    %v4275 = vunpack.c.l.b16 %v712
    %v4276 = vunpack.c.h.b16 %v712
    %v4277 = vunpack.c.l.b16 %v713
    %v4278 = vunpack.c.h.b16 %v713
    %v4279 = vunpack.c.l.b16 %v714
    %v4280 = vunpack.c.h.b16 %v714
    %v4281 = vunpack.c.l.b16 %v715
    %v4282 = vunpack.c.h.b16 %v715
    %v4283 = vunpack.c.l.b16 %v716
    %v4284 = vunpack.c.h.b16 %v716
    %v4285 = vunpack.c.l.b16 %v717
    %v4286 = vunpack.c.h.b16 %v717
    %v4287 = vunpack.c.l.b16 %v718
    %v4288 = vunpack.c.h.b16 %v718
    %v4289 = vunpack.c.l.b16 %v719
    %v4290 = vunpack.c.h.b16 %v719
    %v4291 = vunpack.c.l.b16 %v720
    %v4292 = vunpack.c.h.b16 %v720
    %v4293 = vunpack.c.l.b16 %v721
    %v4294 = vunpack.c.h.b16 %v721
    %v4295 = vunpack.c.l.b16 %v722
    %v4296 = vunpack.c.h.b16 %v722
    %v4297 = vunpack.c.l.b16 %v723
    %v4298 = vunpack.c.h.b16 %v723
    %v4299 = vunpack.c.l.b16 %v724
    %v4300 = vunpack.c.h.b16 %v724
    %v4301 = vunpack.c.l.b16 %v725
    %v4302 = vunpack.c.h.b16 %v725
    %v4303 = vunpack.c.l.b16 %v726
    %v4304 = vunpack.c.h.b16 %v726
    %v4305 = vunpack.c.l.b16 %v727
    %v4306 = vunpack.c.h.b16 %v727
    %v4307 = vunpack.c.l.b16 %v728
    %v4308 = vunpack.c.h.b16 %v728
    %v4309 = vunpack.c.l.b16 %v729
    %v4310 = vunpack.c.h.b16 %v729
    %v4311 = vunpack.c.l.b16 %v730
    %v4312 = vunpack.c.h.b16 %v730
    %v4313 = vunpack.c.l.b16 %v731
    %v4314 = vunpack.c.h.b16 %v731
    %v4315 = vunpack.c.l.b16 %v732
    %v4316 = vunpack.c.h.b16 %v732
    %v4317 = vunpack.c.l.b16 %v733
    %v4318 = vunpack.c.h.b16 %v733
    %v4319 = vunpack.c.l.b16 %v734
    %v4320 = vunpack.c.h.b16 %v734
    %v4321 = vunpack.c.l.b16 %v735
    %v4322 = vunpack.c.h.b16 %v735
    %v4323 = vunpack.c.l.b16 %v736
    %v4324 = vunpack.c.h.b16 %v736
    %v4325 = vunpack.c.l.b16 %v737
    %v4326 = vunpack.c.h.b16 %v737
    %v4327 = vunpack.c.l.b16 %v738
    %v4328 = vunpack.c.h.b16 %v738
    %v4329 = vunpack.c.l.b16 %v739
    %v4330 = vunpack.c.h.b16 %v739
    %v4331 = vunpack.c.l.b16 %v740
    %v4332 = vunpack.c.h.b16 %v740
    %v4333 = vunpack.c.l.b16 %v741
    %v4334 = vunpack.c.h.b16 %v741
    %v4335 = vunpack.c.l.b16 %v742
    %v4336 = vunpack.c.h.b16 %v742
    %v4337 = vunpack.c.l.b16 %v743
    %v4338 = vunpack.c.h.b16 %v743
    %v4339 = vunpack.c.l.b16 %v744
    %v4340 = vunpack.c.h.b16 %v744
    %v4341 = vunpack.c.l.b16 %v745
    %v4342 = vunpack.c.h.b16 %v745
    %v4343 = vunpack.c.l.b16 %v746
    %v4344 = vunpack.c.h.b16 %v746
    %v4345 = vunpack.c.l.b16 %v747
    %v4346 = vunpack.c.h.b16 %v747
    %v4347 = vunpack.c.l.b16 %v748
    %v4348 = vunpack.c.h.b16 %v748
    %v4349 = vunpack.c.l.b16 %v749
    %v4350 = vunpack.c.h.b16 %v749
    %v4351 = vunpack.c.l.b16 %v750
    %v4352 = vunpack.c.h.b16 %v750
    %v4353 = vunpack.c.l.b16 %v751
    %v4354 = vunpack.c.h.b16 %v751
    %v4355 = vunpack.c.l.b16 %v752
    %v4356 = vunpack.c.h.b16 %v752
    %v4357 = vunpack.c.l.b16 %v753
    %v4358 = vunpack.c.h.b16 %v753
    %v4359 = vunpack.c.l.b16 %v754
    %v4360 = vunpack.c.h.b16 %v754
    %v4361 = vunpack.c.l.b16 %v755
    %v4362 = vunpack.c.h.b16 %v755
    %v4363 = vunpack.c.l.b16 %v756
    %v4364 = vunpack.c.h.b16 %v756
    %v4365 = vunpack.c.l.b16 %v757
    %v4366 = vunpack.c.h.b16 %v757
    %v4367 = vunpack.c.l.b16 %v758
    %v4368 = vunpack.c.h.b16 %v758
    %v4369 = vunpack.c.l.b16 %v759
    %v4370 = vunpack.c.h.b16 %v759
    %v4371 = vunpack.c.l.b16 %v760
    %v4372 = vunpack.c.h.b16 %v760
    %v4373 = vunpack.c.l.b16 %v761
    %v4374 = vunpack.c.h.b16 %v761
    %v4375 = vunpack.c.l.b16 %v762
    %v4376 = vunpack.c.h.b16 %v762
    %v4377 = vunpack.c.l.b16 %v763
    %v4378 = vunpack.c.h.b16 %v763
    %v4379 = vunpack.c.l.b16 %v764
    %v4380 = vunpack.c.h.b16 %v764
    %v4381 = vunpack.c.l.b16 %v765
    %v4382 = vunpack.c.h.b16 %v765
    %v4383 = vunpack.c.l.b16 %v766
    %v4384 = vunpack.c.h.b16 %v766
    %v4385 = vunpack.c.l.b16 %v767
    %v4386 = vunpack.c.h.b16 %v767
    %v4387 = vunpack.c.l.b16 %v768
    %v4388 = vunpack.c.h.b16 %v768
    %v4389 = vunpack.c.l.b16 %v769
    %v4390 = vunpack.c.h.b16 %v769
    %v4391 = vunpack.c.l.b16 %v770
    %v4392 = vunpack.c.h.b16 %v770
    %v4393 = vunpack.c.l.b16 %v771
    %v4394 = vunpack.c.h.b16 %v771
    %v4395 = vunpack.c.l.b16 %v772
    %v4396 = vunpack.c.h.b16 %v772
    %v4397 = vunpack.c.l.b16 %v773
    %v4398 = vunpack.c.h.b16 %v773
    %v4399 = vunpack.c.l.b16 %v774
    %v4400 = vunpack.c.h.b16 %v774
    %v4401 = vunpack.c.l.b16 %v775
    %v4402 = vunpack.c.h.b16 %v775
    %v4403 = vunpack.c.l.b16 %v776
    %v4404 = vunpack.c.h.b16 %v776
    %v4405 = vunpack.c.l.b16 %v777
    %v4406 = vunpack.c.h.b16 %v777
    %v4407 = vunpack.c.l.b16 %v778
    %v4408 = vunpack.c.h.b16 %v778
    %v4409 = vunpack.c.l.b16 %v779
    %v4410 = vunpack.c.h.b16 %v779
    %v4411 = vunpack.c.l.b16 %v780
    %v4412 = vunpack.c.h.b16 %v780
    %v4413 = vunpack.c.l.b16 %v781
    %v4414 = vunpack.c.h.b16 %v781
    %v4415 = vunpack.c.l.b16 %v782
    %v4416 = vunpack.c.h.b16 %v782
    %v4417 = vunpack.c.l.b16 %v783
    %v4418 = vunpack.c.h.b16 %v783
    %v4419 = vunpack.c.l.b16 %v784
    %v4420 = vunpack.c.h.b16 %v784
    %v4421 = vunpack.c.l.b16 %v785
    %v4422 = vunpack.c.h.b16 %v785
    %v4423 = vunpack.c.l.b16 %v786
    %v4424 = vunpack.c.h.b16 %v786
    %v4425 = vunpack.c.l.b16 %v787
    %v4426 = vunpack.c.h.b16 %v787
    %v4427 = vunpack.c.l.b16 %v788
    %v4428 = vunpack.c.h.b16 %v788
    %v4429 = vunpack.c.l.b16 %v789
    %v4430 = vunpack.c.h.b16 %v789
    %v4431 = vunpack.c.l.b16 %v790
    %v4432 = vunpack.c.h.b16 %v790
    %v4433 = vunpack.c.l.b16 %v791
    %v4434 = vunpack.c.h.b16 %v791
    %v4435 = vunpack.c.l.b16 %v792
    %v4436 = vunpack.c.h.b16 %v792
    %v4437 = vunpack.c.l.b16 %v793
    %v4438 = vunpack.c.h.b16 %v793
    %v4439 = vunpack.c.l.b16 %v794
    %v4440 = vunpack.c.h.b16 %v794
    %v4441 = vunpack.c.l.b16 %v795
    %v4442 = vunpack.c.h.b16 %v795
    %v4443 = vunpack.c.l.b16 %v796
    %v4444 = vunpack.c.h.b16 %v796
    %v4445 = vunpack.c.l.b16 %v797
    %v4446 = vunpack.c.h.b16 %v797
    %v4447 = vunpack.c.l.b16 %v798
    %v4448 = vunpack.c.h.b16 %v798
    %v4449 = vunpack.c.l.b16 %v799
    %v4450 = vunpack.c.h.b16 %v799
    %v4451 = vunpack.c.l.b16 %v800
    %v4452 = vunpack.c.h.b16 %v800
    %v4453 = vunpack.c.l.b16 %v801
    %v4454 = vunpack.c.h.b16 %v801
    %v4455 = vunpack.c.l.b16 %v802
    %v4456 = vunpack.c.h.b16 %v802
    %v4457 = vunpack.c.l.b16 %v803
    %v4458 = vunpack.c.h.b16 %v803
    %v4459 = vunpack.c.l.b16 %v804
    %v4460 = vunpack.c.h.b16 %v804
    %v4461 = vunpack.c.l.b16 %v805
    %v4462 = vunpack.c.h.b16 %v805
    %v4463 = vunpack.c.l.b16 %v806
    %v4464 = vunpack.c.h.b16 %v806
    %v4465 = vunpack.c.l.b16 %v807
    %v4466 = vunpack.c.h.b16 %v807
    %v4467 = vunpack.c.l.b16 %v808
    %v4468 = vunpack.c.h.b16 %v808
    %v4469 = vunpack.c.l.b16 %v809
    %v4470 = vunpack.c.h.b16 %v809
    %v4471 = vunpack.c.l.b16 %v810
    %v4472 = vunpack.c.h.b16 %v810
    %v4473 = vunpack.c.l.b16 %v811
    %v4474 = vunpack.c.h.b16 %v811
    %v4475 = vunpack.c.l.b16 %v812
    %v4476 = vunpack.c.h.b16 %v812
    %v4477 = vunpack.c.l.b16 %v813
    %v4478 = vunpack.c.h.b16 %v813
    %v4479 = vunpack.c.l.b16 %v814
    %v4480 = vunpack.c.h.b16 %v814
    %v4481 = vunpack.c.l.b16 %v815
    %v4482 = vunpack.c.h.b16 %v815
    %v4483 = vunpack.c.l.b16 %v816
    %v4484 = vunpack.c.h.b16 %v816
    %v4485 = vunpack.c.l.b16 %v817
    %v4486 = vunpack.c.h.b16 %v817
    %v4487 = vunpack.c.l.b16 %v818
    %v4488 = vunpack.c.h.b16 %v818
    %v4489 = vunpack.c.l.b16 %v819
    %v4490 = vunpack.c.h.b16 %v819
    %v4491 = vunpack.c.l.b16 %v820
    %v4492 = vunpack.c.h.b16 %v820
    %v4493 = vunpack.c.l.b16 %v821
    %v4494 = vunpack.c.h.b16 %v821
    %v4495 = vunpack.c.l.b16 %v822
    %v4496 = vunpack.c.h.b16 %v822
    %v4497 = vunpack.c.l.b16 %v823
    %v4498 = vunpack.c.h.b16 %v823
    %v4499 = vunpack.c.l.b16 %v824
    %v4500 = vunpack.c.h.b16 %v824
    %v4501 = vunpack.c.l.b16 %v825
    %v4502 = vunpack.c.h.b16 %v825
    %v4503 = vunpack.c.l.b16 %v826
    %v4504 = vunpack.c.h.b16 %v826
    %v4505 = vunpack.c.l.b16 %v827
    %v4506 = vunpack.c.h.b16 %v827
    %v4507 = vunpack.c.l.b16 %v828
    %v4508 = vunpack.c.h.b16 %v828
    %v4509 = vunpack.c.l.b16 %v829
    %v4510 = vunpack.c.h.b16 %v829
    %v4511 = vunpack.c.l.b16 %v830
    %v4512 = vunpack.c.h.b16 %v830
    %v4513 = vunpack.c.l.b16 %v831
    %v4514 = vunpack.c.h.b16 %v831
    %v4515 = vunpack.c.l.b16 %v832
    %v4516 = vunpack.c.h.b16 %v832
    %v4517 = vunpack.c.l.b16 %v833
    %v4518 = vunpack.c.h.b16 %v833
    %v4519 = vunpack.c.l.b16 %v834
    %v4520 = vunpack.c.h.b16 %v834
    %v4521 = vunpack.c.l.b16 %v835
    %v4522 = vunpack.c.h.b16 %v835
    %v4523 = vunpack.c.l.b16 %v836
    %v4524 = vunpack.c.h.b16 %v836
    %v4525 = vunpack.c.l.b16 %v837
    %v4526 = vunpack.c.h.b16 %v837
    %v4527 = vunpack.c.l.b16 %v838
    %v4528 = vunpack.c.h.b16 %v838
    %v4529 = vunpack.c.l.b16 %v839
    %v4530 = vunpack.c.h.b16 %v839
    %v4531 = vunpack.c.l.b16 %v840
    %v4532 = vunpack.c.h.b16 %v840
    %v4533 = vunpack.c.l.b16 %v841
    %v4534 = vunpack.c.h.b16 %v841
    %v4535 = vunpack.c.l.b16 %v842
    %v4536 = vunpack.c.h.b16 %v842
    %v4537 = vunpack.c.l.b16 %v843
    %v4538 = vunpack.c.h.b16 %v843
    %v4539 = vunpack.c.l.b16 %v844
    %v4540 = vunpack.c.h.b16 %v844
    %v4541 = vunpack.c.l.b16 %v845
    %v4542 = vunpack.c.h.b16 %v845
    %v4543 = vunpack.c.l.b16 %v846
    %v4544 = vunpack.c.h.b16 %v846
    %v4545 = vunpack.c.l.b16 %v847
    %v4546 = vunpack.c.h.b16 %v847
    %v4547 = vunpack.c.l.b16 %v848
    %v4548 = vunpack.c.h.b16 %v848
    %v4549 = vunpack.c.l.b16 %v849
    %v4550 = vunpack.c.h.b16 %v849
    %v4551 = vunpack.c.l.b16 %v850
    %v4552 = vunpack.c.h.b16 %v850
    %v4553 = vunpack.c.l.b16 %v851
    %v4554 = vunpack.c.h.b16 %v851
    %v4555 = vunpack.c.l.b16 %v852
    %v4556 = vunpack.c.h.b16 %v852
    %v4557 = vunpack.c.l.b16 %v853
    %v4558 = vunpack.c.h.b16 %v853
    %v4559 = vunpack.c.l.b16 %v854
    %v4560 = vunpack.c.h.b16 %v854
    %v4561 = vunpack.c.l.b16 %v855
    %v4562 = vunpack.c.h.b16 %v855
    %v4563 = vunpack.c.l.b16 %v856
    %v4564 = vunpack.c.h.b16 %v856
    %v4565 = vunpack.c.l.b16 %v857
    %v4566 = vunpack.c.h.b16 %v857
    %v4567 = vunpack.c.l.b16 %v858
    %v4568 = vunpack.c.h.b16 %v858
    %v4569 = vunpack.c.l.b16 %v859
    %v4570 = vunpack.c.h.b16 %v859
    %v4571 = vunpack.c.l.b16 %v860
    %v4572 = vunpack.c.h.b16 %v860
    %v4573 = vunpack.c.l.b16 %v861
    %v4574 = vunpack.c.h.b16 %v861
    %v4575 = vunpack.c.l.b16 %v862
    %v4576 = vunpack.c.h.b16 %v862
    %v4577 = vunpack.c.l.b16 %v863
    %v4578 = vunpack.c.h.b16 %v863
    %v4579 = vunpack.c.l.b16 %v864
    %v4580 = vunpack.c.h.b16 %v864
    %v4581 = vunpack.c.l.b16 %v865
    %v4582 = vunpack.c.h.b16 %v865
    %v4583 = vunpack.c.l.b16 %v866
    %v4584 = vunpack.c.h.b16 %v866
    %v4585 = vunpack.c.l.b16 %v867
    %v4586 = vunpack.c.h.b16 %v867
    %v4587 = vunpack.c.l.b16 %v868
    %v4588 = vunpack.c.h.b16 %v868
    %v4589 = vunpack.c.l.b16 %v869
    %v4590 = vunpack.c.h.b16 %v869
    %v4591 = vunpack.c.l.b16 %v870
    %v4592 = vunpack.c.h.b16 %v870
    %v4593 = vunpack.c.l.b16 %v871
    %v4594 = vunpack.c.h.b16 %v871
    %v4595 = vunpack.c.l.b16 %v872
    %v4596 = vunpack.c.h.b16 %v872
    %v4597 = vunpack.c.l.b16 %v873
    %v4598 = vunpack.c.h.b16 %v873
    %v4599 = vunpack.c.l.b16 %v874
    %v4600 = vunpack.c.h.b16 %v874
    %v4601 = vunpack.c.l.b16 %v875
    %v4602 = vunpack.c.h.b16 %v875
    %v4603 = vunpack.c.l.b16 %v876
    %v4604 = vunpack.c.h.b16 %v876
    %v4605 = vunpack.c.l.b16 %v877
    %v4606 = vunpack.c.h.b16 %v877
    %v4607 = vunpack.c.l.b16 %v878
    %v4608 = vunpack.c.h.b16 %v878
    %v4609 = vunpack.c.l.b16 %v879
    %v4610 = vunpack.c.h.b16 %v879
    %v4611 = vunpack.c.l.b16 %v880
    %v4612 = vunpack.c.h.b16 %v880
    %v4613 = vunpack.c.l.b16 %v881
    %v4614 = vunpack.c.h.b16 %v881
    %v4615 = vunpack.c.l.b16 %v882
    %v4616 = vunpack.c.h.b16 %v882
    %v4617 = vunpack.c.l.b16 %v883
    %v4618 = vunpack.c.h.b16 %v883
    %v4619 = vunpack.c.l.b16 %v884
    %v4620 = vunpack.c.h.b16 %v884
    %v4621 = vunpack.c.l.b16 %v885
    %v4622 = vunpack.c.h.b16 %v885
    %v4623 = vunpack.c.l.b16 %v886
    %v4624 = vunpack.c.h.b16 %v886
    %v4625 = vunpack.c.l.b16 %v887
    %v4626 = vunpack.c.h.b16 %v887
    %v4627 = vunpack.c.l.b16 %v888
    %v4628 = vunpack.c.h.b16 %v888
    %v4629 = vunpack.c.l.b16 %v889
    %v4630 = vunpack.c.h.b16 %v889
    %v4631 = vunpack.c.l.b16 %v890
    %v4632 = vunpack.c.h.b16 %v890
    %v4633 = vunpack.c.l.b16 %v891
    %v4634 = vunpack.c.h.b16 %v891
    %v4635 = vunpack.c.l.b16 %v892
    %v4636 = vunpack.c.h.b16 %v892
    %v4637 = vunpack.c.l.b16 %v893
    %v4638 = vunpack.c.h.b16 %v893
    %v4639 = vunpack.c.l.b16 %v894
    %v4640 = vunpack.c.h.b16 %v894
    %v4641 = vunpack.c.l.b16 %v895
    %v4642 = vunpack.c.h.b16 %v895
    %v4643 = vunpack.c.l.b16 %v896
    %v4644 = vunpack.c.h.b16 %v896
    %v4645 = vunpack.c.l.b16 %v897
    %v4646 = vunpack.c.h.b16 %v897
    %v4647 = vunpack.c.l.b16 %v898
    %v4648 = vunpack.c.h.b16 %v898
    %v4649 = vunpack.c.l.b16 %v899
    %v4650 = vunpack.c.h.b16 %v899
    %v4651 = vunpack.c.l.b16 %v900
    %v4652 = vunpack.c.h.b16 %v900
    %v4653 = vunpack.c.l.b16 %v901
    %v4654 = vunpack.c.h.b16 %v901
    %v4655 = vunpack.c.l.b16 %v902
    %v4656 = vunpack.c.h.b16 %v902
    %v4657 = vunpack.c.l.b16 %v903
    %v4658 = vunpack.c.h.b16 %v903
    %v4659 = vunpack.c.l.b16 %v904
    %v4660 = vunpack.c.h.b16 %v904
    %v4661 = vunpack.c.l.b16 %v905
    %v4662 = vunpack.c.h.b16 %v905
    %v4663 = vunpack.c.l.b16 %v906
    %v4664 = vunpack.c.h.b16 %v906
    %v4665 = vunpack.c.l.b16 %v907
    %v4666 = vunpack.c.h.b16 %v907
    %v4667 = vunpack.c.l.b16 %v908
    %v4668 = vunpack.c.h.b16 %v908
    %v4669 = vunpack.c.l.b16 %v909
    %v4670 = vunpack.c.h.b16 %v909
    %v4671 = vunpack.c.l.b16 %v910
    %v4672 = vunpack.c.h.b16 %v910
    %v4673 = vunpack.c.l.b16 %v911
    %v4674 = vunpack.c.h.b16 %v911
    %v4675 = vunpack.c.l.b16 %v912
    %v4676 = vunpack.c.h.b16 %v912
    %v4677 = vunpack.c.l.b16 %v913
    %v4678 = vunpack.c.h.b16 %v913
    %v4679 = vunpack.c.l.b16 %v914
    %v4680 = vunpack.c.h.b16 %v914
    %v4681 = vunpack.c.l.b16 %v915
    %v4682 = vunpack.c.h.b16 %v915
    %v4683 = vunpack.c.l.b16 %v916
    %v4684 = vunpack.c.h.b16 %v916
    %v4685 = vunpack.c.l.b16 %v917
    %v4686 = vunpack.c.h.b16 %v917
    %v4687 = vunpack.c.l.b16 %v918
    %v4688 = vunpack.c.h.b16 %v918
    %v4689 = vunpack.c.l.b16 %v919
    %v4690 = vunpack.c.h.b16 %v919
    %v4691 = vunpack.c.l.b16 %v920
    %v4692 = vunpack.c.h.b16 %v920
    %v4693 = vunpack.c.l.b16 %v921
    %v4694 = vunpack.c.h.b16 %v921
    %v4695 = vunpack.c.l.b16 %v922
    %v4696 = vunpack.c.h.b16 %v922
    %v4697 = vunpack.c.l.b16 %v923
    %v4698 = vunpack.c.h.b16 %v923
    %v4699 = vunpack.c.l.b16 %v924
    %v4700 = vunpack.c.h.b16 %v924
    %v4701 = vunpack.c.l.b16 %v925
    %v4702 = vunpack.c.h.b16 %v925
    %v4703 = vunpack.c.l.b16 %v926
    %v4704 = vunpack.c.h.b16 %v926
    %v4705 = vunpack.c.l.b16 %v927
    %v4706 = vunpack.c.h.b16 %v927
    %v4707 = vunpack.c.l.b16 %v928
    %v4708 = vunpack.c.h.b16 %v928
    %v4709 = vunpack.c.l.b16 %v929
    %v4710 = vunpack.c.h.b16 %v929
    %v4711 = vunpack.c.l.b16 %v930
    %v4712 = vunpack.c.h.b16 %v930
    %v4713 = vunpack.c.l.b16 %v931
    %v4714 = vunpack.c.h.b16 %v931
    %v4715 = vunpack.c.l.b16 %v932
    %v4716 = vunpack.c.h.b16 %v932
    %v4717 = vunpack.c.l.b16 %v933
    %v4718 = vunpack.c.h.b16 %v933
    %v4719 = vunpack.c.l.b16 %v934
    %v4720 = vunpack.c.h.b16 %v934
    %v4721 = vunpack.c.l.b16 %v935
    %v4722 = vunpack.c.h.b16 %v935
    %v4723 = vunpack.c.l.b16 %v936
    %v4724 = vunpack.c.h.b16 %v936
    %v4725 = vunpack.c.l.b16 %v937
    %v4726 = vunpack.c.h.b16 %v937
    %v4727 = vunpack.c.l.b16 %v938
    %v4728 = vunpack.c.h.b16 %v938
    %v4729 = vunpack.c.l.b16 %v939
    %v4730 = vunpack.c.h.b16 %v939
    %v4731 = vunpack.c.l.b16 %v940
    %v4732 = vunpack.c.h.b16 %v940
    %v4733 = vunpack.c.l.b16 %v941
    %v4734 = vunpack.c.h.b16 %v941
    %v4735 = vunpack.c.l.b16 %v942
    %v4736 = vunpack.c.h.b16 %v942
    %v4737 = vunpack.c.l.b16 %v943
    %v4738 = vunpack.c.h.b16 %v943
    %v4739 = vunpack.c.l.b16 %v944
    %v4740 = vunpack.c.h.b16 %v944
    %v4741 = vunpack.c.l.b16 %v945
    %v4742 = vunpack.c.h.b16 %v945
    %v4743 = vunpack.c.l.b16 %v946
    %v4744 = vunpack.c.h.b16 %v946
    %v4745 = vunpack.c.l.b16 %v947
    %v4746 = vunpack.c.h.b16 %v947
    %v4747 = vunpack.c.l.b16 %v948
    %v4748 = vunpack.c.h.b16 %v948
    %v4749 = vunpack.c.l.b16 %v949
    %v4750 = vunpack.c.h.b16 %v949
    %v4751 = vunpack.c.l.b16 %v950
    %v4752 = vunpack.c.h.b16 %v950
    %v4753 = vunpack.c.l.b16 %v951
    %v4754 = vunpack.c.h.b16 %v951
    %v4755 = vunpack.c.l.b16 %v952
    %v4756 = vunpack.c.h.b16 %v952
    %v4757 = vunpack.c.l.b16 %v953
    %v4758 = vunpack.c.h.b16 %v953
    %v4759 = vunpack.c.l.b16 %v954
    %v4760 = vunpack.c.h.b16 %v954
    %v4761 = vunpack.c.l.b16 %v955
    %v4762 = vunpack.c.h.b16 %v955
    %v4763 = vunpack.c.l.b16 %v956
    %v4764 = vunpack.c.h.b16 %v956
    %v4765 = vunpack.c.l.b16 %v957
    %v4766 = vunpack.c.h.b16 %v957
    %v4767 = vunpack.c.l.b16 %v958
    %v4768 = vunpack.c.h.b16 %v958
    %v4769 = vunpack.c.l.b16 %v959
    %v4770 = vunpack.c.h.b16 %v959
    %v4771 = vunpack.c.l.b16 %v960
    %v4772 = vunpack.c.h.b16 %v960
    %v4773 = vunpack.c.l.b16 %v961
    %v4774 = vunpack.c.h.b16 %v961
    %v4775 = vunpack.c.l.b16 %v962
    %v4776 = vunpack.c.h.b16 %v962
    %v4777 = vunpack.c.l.b16 %v963
    %v4778 = vunpack.c.h.b16 %v963
    %v4779 = vunpack.c.l.b16 %v964
    %v4780 = vunpack.c.h.b16 %v964
    %v4781 = vunpack.c.l.b16 %v965
    %v4782 = vunpack.c.h.b16 %v965
    %v4783 = vunpack.c.l.b16 %v966
    %v4784 = vunpack.c.h.b16 %v966
    %v4785 = vunpack.c.l.b16 %v967
    %v4786 = vunpack.c.h.b16 %v967
    %v4787 = vunpack.c.l.b16 %v968
    %v4788 = vunpack.c.h.b16 %v968
    %v4789 = vunpack.c.l.b16 %v969
    %v4790 = vunpack.c.h.b16 %v969
    %v4791 = vunpack.c.l.b16 %v970
    %v4792 = vunpack.c.h.b16 %v970
    %v4793 = vunpack.c.l.b16 %v971
    %v4794 = vunpack.c.h.b16 %v971
    %v4795 = vunpack.c.l.b16 %v972
    %v4796 = vunpack.c.h.b16 %v972
    %v4797 = vunpack.c.l.b16 %v973
    %v4798 = vunpack.c.h.b16 %v973
    %v4799 = vunpack.c.l.b16 %v974
    %v4800 = vunpack.c.h.b16 %v974
    %v4801 = vunpack.c.l.b16 %v975
    %v4802 = vunpack.c.h.b16 %v975
    %v4803 = vunpack.c.l.b16 %v976
    %v4804 = vunpack.c.h.b16 %v976
    %v4805 = vunpack.c.l.b16 %v977
    %v4806 = vunpack.c.h.b16 %v977
    %v4807 = vunpack.c.l.b16 %v978
    %v4808 = vunpack.c.h.b16 %v978
    %v4809 = vunpack.c.l.b16 %v979
    %v4810 = vunpack.c.h.b16 %v979
    %v4811 = vunpack.c.l.b16 %v980
    %v4812 = vunpack.c.h.b16 %v980
    %v4813 = vunpack.c.l.b16 %v981
    %v4814 = vunpack.c.h.b16 %v981
    %v4815 = vunpack.c.l.b16 %v982
    %v4816 = vunpack.c.h.b16 %v982
    %v4817 = vunpack.c.l.b16 %v983
    %v4818 = vunpack.c.h.b16 %v983
    %v4819 = vunpack.c.l.b16 %v984
    %v4820 = vunpack.c.h.b16 %v984
    %v4821 = vunpack.c.l.b16 %v985
    %v4822 = vunpack.c.h.b16 %v985
    %v4823 = vunpack.c.l.b16 %v986
    %v4824 = vunpack.c.h.b16 %v986
    %v4825 = vunpack.c.l.b16 %v987
    %v4826 = vunpack.c.h.b16 %v987
    %v4827 = vunpack.c.l.b16 %v988
    %v4828 = vunpack.c.h.b16 %v988
    %v4829 = vunpack.c.l.b16 %v989
    %v4830 = vunpack.c.h.b16 %v989
    %v4831 = vunpack.c.l.b16 %v990
    %v4832 = vunpack.c.h.b16 %v990
    %v4833 = vunpack.c.l.b16 %v991
    %v4834 = vunpack.c.h.b16 %v991
    %v4835 = vunpack.c.l.b16 %v992
    %v4836 = vunpack.c.h.b16 %v992
    %v4837 = vunpack.c.l.b16 %v993
    %v4838 = vunpack.c.h.b16 %v993
    %v4839 = vunpack.c.l.b16 %v994
    %v4840 = vunpack.c.h.b16 %v994
    %v4841 = vunpack.c.l.b16 %v995
    %v4842 = vunpack.c.h.b16 %v995
    %v4843 = vunpack.c.l.b16 %v996
    %v4844 = vunpack.c.h.b16 %v996
    %v4845 = vunpack.c.l.b16 %v997
    %v4846 = vunpack.c.h.b16 %v997
    %v4847 = vunpack.c.l.b16 %v998
    %v4848 = vunpack.c.h.b16 %v998
    %v4849 = vunpack.c.l.b16 %v999
    %v4850 = vunpack.c.h.b16 %v999
    %v4851 = vunpack.c.l.b16 %v1000
    %v4852 = vunpack.c.h.b16 %v1000
    %v4853 = vunpack.c.l.b16 %v1001
    %v4854 = vunpack.c.h.b16 %v1001
    %v4855 = vunpack.c.l.b16 %v1002
    %v4856 = vunpack.c.h.b16 %v1002
    %v4857 = vunpack.c.l.b16 %v1003
    %v4858 = vunpack.c.h.b16 %v1003
    %v4859 = vunpack.c.l.b16 %v1004
    %v4860 = vunpack.c.h.b16 %v1004
    %v4861 = vunpack.c.l.b16 %v1005
    %v4862 = vunpack.c.h.b16 %v1005
    %v4863 = vunpack.c.l.b16 %v1006
    %v4864 = vunpack.c.h.b16 %v1006
    %v4865 = vunpack.c.l.b16 %v1007
    %v4866 = vunpack.c.h.b16 %v1007
    %v4867 = vunpack.c.l.b16 %v1008
    %v4868 = vunpack.c.h.b16 %v1008
    %v4869 = vunpack.c.l.b16 %v1009
    %v4870 = vunpack.c.h.b16 %v1009
    %v4871 = vunpack.c.l.b16 %v1010
    %v4872 = vunpack.c.h.b16 %v1010
    %v4873 = vunpack.c.l.b16 %v1011
    %v4874 = vunpack.c.h.b16 %v1011
    %v4875 = vunpack.c.l.b16 %v1012
    %v4876 = vunpack.c.h.b16 %v1012
    %v4877 = vunpack.c.l.b16 %v1013
    %v4878 = vunpack.c.h.b16 %v1013
    %v4879 = vunpack.c.l.b16 %v1014
    %v4880 = vunpack.c.h.b16 %v1014
    %v4881 = vunpack.c.l.b16 %v1015
    %v4882 = vunpack.c.h.b16 %v1015
    %v4883 = vunpack.c.l.b16 %v1016
    %v4884 = vunpack.c.h.b16 %v1016
    %v4885 = vunpack.c.l.b16 %v1017
    %v4886 = vunpack.c.h.b16 %v1017
    %v4887 = vunpack.c.l.b16 %v1018
    %v4888 = vunpack.c.h.b16 %v1018
    %v4889 = vunpack.c.l.b16 %v1019
    %v4890 = vunpack.c.h.b16 %v1019
    %v4891 = vunpack.c.l.b16 %v1020
    %v4892 = vunpack.c.h.b16 %v1020
    %v4893 = vunpack.c.l.b16 %v1021
    %v4894 = vunpack.c.h.b16 %v1021
    %v4895 = vunpack.c.l.b16 %v1022
    %v4896 = vunpack.c.h.b16 %v1022
    %v4897 = vunpack.c.l.b16 %v1023
    %v4898 = vunpack.c.h.b16 %v1023
    %v4899 = vunpack.c.l.b16 %v1024
    %v4900 = vunpack.c.h.b16 %v1024
    %v4901 = vunpack.c.l.b16 %v1025
    %v4902 = vunpack.c.h.b16 %v1025
    %v4903 = vunpack.c.l.b16 %v1026
    %v4904 = vunpack.c.h.b16 %v1026
    %v4905 = vunpack.c.l.b16 %v1027
    %v4906 = vunpack.c.h.b16 %v1027
    %v4907 = vunpack.c.l.b16 %v1028
    %v4908 = vunpack.c.h.b16 %v1028
    %v4909 = vunpack.c.l.b16 %v1029
    %v4910 = vunpack.c.h.b16 %v1029
    %v4911 = vunpack.c.l.b16 %v1030
    %v4912 = vunpack.c.h.b16 %v1030
    %v4913 = vunpack.c.l.b16 %v1031
    %v4914 = vunpack.c.h.b16 %v1031
    %v4915 = vunpack.c.l.b16 %v1032
    %v4916 = vunpack.c.h.b16 %v1032
    %v4917 = vunpack.c.l.b16 %v1033
    %v4918 = vunpack.c.h.b16 %v1033
    %v4919 = vunpack.c.l.b16 %v1034
    %v4920 = vunpack.c.h.b16 %v1034
    %v4921 = vunpack.c.l.b16 %v1035
    %v4922 = vunpack.c.h.b16 %v1035
    %v4923 = vunpack.c.l.b16 %v1036
    %v4924 = vunpack.c.h.b16 %v1036
    %v4925 = vunpack.c.l.b16 %v1037
    %v4926 = vunpack.c.h.b16 %v1037
    %v4927 = vunpack.c.l.b16 %v1038
    %v4928 = vunpack.c.h.b16 %v1038
    %v4929 = vunpack.c.l.b16 %v1039
    %v4930 = vunpack.c.h.b16 %v1039
    %v4931 = vunpack.c.l.b16 %v1040
    %v4932 = vunpack.c.h.b16 %v1040
    %v4933 = vunpack.c.l.b16 %v1041
    %v4934 = vunpack.c.h.b16 %v1041
    %v4935 = vunpack.c.l.b16 %v1042
    %v4936 = vunpack.c.h.b16 %v1042
    %v4937 = vunpack.c.l.b16 %v1043
    %v4938 = vunpack.c.h.b16 %v1043
    %v4939 = vunpack.c.l.b16 %v1044
    %v4940 = vunpack.c.h.b16 %v1044
    %v4941 = vunpack.c.l.b16 %v1045
    %v4942 = vunpack.c.h.b16 %v1045
    %v4943 = vunpack.c.l.b16 %v1046
    %v4944 = vunpack.c.h.b16 %v1046
    %v4945 = vunpack.c.l.b16 %v1047
    %v4946 = vunpack.c.h.b16 %v1047
    %v4947 = vunpack.c.l.b16 %v1048
    %v4948 = vunpack.c.h.b16 %v1048
    %v4949 = vunpack.c.l.b16 %v1049
    %v4950 = vunpack.c.h.b16 %v1049
    %v4951 = vunpack.c.l.b16 %v1050
    %v4952 = vunpack.c.h.b16 %v1050
    %v4953 = vunpack.c.l.b16 %v1051
    %v4954 = vunpack.c.h.b16 %v1051
    %v4955 = vunpack.c.l.b16 %v1052
    %v4956 = vunpack.c.h.b16 %v1052
    %v4957 = vunpack.c.l.b16 %v1053
    %v4958 = vunpack.c.h.b16 %v1053
    %v4959 = vunpack.c.l.b16 %v1054
    %v4960 = vunpack.c.h.b16 %v1054
    %v4961 = vunpack.c.l.b16 %v1055
    %v4962 = vunpack.c.h.b16 %v1055
    %v4963 = vunpack.c.l.b16 %v1056
    %v4964 = vunpack.c.h.b16 %v1056
    %v4965 = vunpack.c.l.b16 %v1057
    %v4966 = vunpack.c.h.b16 %v1057
    %v4967 = vunpack.c.l.b16 %v1058
    %v4968 = vunpack.c.h.b16 %v1058
    %v4969 = vunpack.c.l.b16 %v1059
    %v4970 = vunpack.c.h.b16 %v1059
    %v4971 = vunpack.c.l.b16 %v1060
    %v4972 = vunpack.c.h.b16 %v1060
    %v4973 = vunpack.c.l.b16 %v1061
    %v4974 = vunpack.c.h.b16 %v1061
    %v4975 = vunpack.c.l.b16 %v1062
    %v4976 = vunpack.c.h.b16 %v1062
    %v4977 = vunpack.c.l.b16 %v1063
    %v4978 = vunpack.c.h.b16 %v1063
    %v4979 = vunpack.c.l.b16 %v1064
    %v4980 = vunpack.c.h.b16 %v1064
    %v4981 = vunpack.c.l.b16 %v1065
    %v4982 = vunpack.c.h.b16 %v1065
    %v4983 = vunpack.c.l.b16 %v1066
    %v4984 = vunpack.c.h.b16 %v1066
    %v4985 = vunpack.c.l.b16 %v1067
    %v4986 = vunpack.c.h.b16 %v1067
    %v4987 = vunpack.c.l.b16 %v1068
    %v4988 = vunpack.c.h.b16 %v1068
    %v4989 = vunpack.c.l.b16 %v1069
    %v4990 = vunpack.c.h.b16 %v1069
    %v4991 = vunpack.c.l.b16 %v1070
    %v4992 = vunpack.c.h.b16 %v1070
    %v4993 = vunpack.c.l.b16 %v1071
    %v4994 = vunpack.c.h.b16 %v1071
    %v4995 = vunpack.c.l.b16 %v1072
    %v4996 = vunpack.c.h.b16 %v1072
    %v4997 = vunpack.c.l.b16 %v1073
    %v4998 = vunpack.c.h.b16 %v1073
    %v4999 = vunpack.c.l.b16 %v1074
    %v5000 = vunpack.c.h.b16 %v1074
    %v5001 = vunpack.c.l.b16 %v1075
    %v5002 = vunpack.c.h.b16 %v1075
    %v5003 = vunpack.c.l.b16 %v1076
    %v5004 = vunpack.c.h.b16 %v1076
    %v5005 = vunpack.c.l.b16 %v1077
    %v5006 = vunpack.c.h.b16 %v1077
    %v5007 = vunpack.c.l.b16 %v1078
    %v5008 = vunpack.c.h.b16 %v1078
    %v5009 = vunpack.c.l.b16 %v1079
    %v5010 = vunpack.c.h.b16 %v1079
    %v5011 = vunpack.c.l.b16 %v1080
    %v5012 = vunpack.c.h.b16 %v1080
    %v5013 = vunpack.c.l.b16 %v1081
    %v5014 = vunpack.c.h.b16 %v1081
    %v5015 = vunpack.c.l.b16 %v1082
    %v5016 = vunpack.c.h.b16 %v1082
    %v5017 = vunpack.c.l.b16 %v1083
    %v5018 = vunpack.c.h.b16 %v1083
    %v5019 = vunpack.c.l.b16 %v1084
    %v5020 = vunpack.c.h.b16 %v1084
    %v5021 = vunpack.c.l.b16 %v1085
    %v5022 = vunpack.c.h.b16 %v1085
    %v5023 = vunpack.c.l.b16 %v1086
    %v5024 = vunpack.c.h.b16 %v1086
    %v5025 = vunpack.c.l.b16 %v1087
    %v5026 = vunpack.c.h.b16 %v1087
    %v5027 = vunpack.c.l.b16 %v1088
    %v5028 = vunpack.c.h.b16 %v1088
    %v5029 = vunpack.c.l.b16 %v1089
    %v5030 = vunpack.c.h.b16 %v1089
    %v5031 = vunpack.c.l.b16 %v1090
    %v5032 = vunpack.c.h.b16 %v1090
    %v5033 = vunpack.c.l.b16 %v1091
    %v5034 = vunpack.c.h.b16 %v1091
    %v5035 = vunpack.c.l.b16 %v1092
    %v5036 = vunpack.c.h.b16 %v1092
    %v5037 = vunpack.c.l.b16 %v1093
    %v5038 = vunpack.c.h.b16 %v1093
    %v5039 = vunpack.c.l.b16 %v1094
    %v5040 = vunpack.c.h.b16 %v1094
    %v5041 = vunpack.c.l.b16 %v1095
    %v5042 = vunpack.c.h.b16 %v1095
    %v5043 = vunpack.c.l.b16 %v1096
    %v5044 = vunpack.c.h.b16 %v1096
    %v5045 = vunpack.c.l.b16 %v1097
    %v5046 = vunpack.c.h.b16 %v1097
    %v5047 = vunpack.c.l.b16 %v1098
    %v5048 = vunpack.c.h.b16 %v1098
    %v5049 = vunpack.c.l.b16 %v1099
    %v5050 = vunpack.c.h.b16 %v1099
    %v5051 = vunpack.c.l.b16 %v1100
    %v5052 = vunpack.c.h.b16 %v1100
    %v5053 = vunpack.c.l.b16 %v1101
    %v5054 = vunpack.c.h.b16 %v1101
    %v5055 = vunpack.c.l.b16 %v1102
    %v5056 = vunpack.c.h.b16 %v1102
    %v5057 = vunpack.c.l.b16 %v1103
    %v5058 = vunpack.c.h.b16 %v1103
    %v5059 = vunpack.c.l.b16 %v1104
    %v5060 = vunpack.c.h.b16 %v1104
    %v5061 = vunpack.c.l.b16 %v1105
    %v5062 = vunpack.c.h.b16 %v1105
    %v5063 = vunpack.c.l.b16 %v1106
    %v5064 = vunpack.c.h.b16 %v1106
    %v5065 = vunpack.c.l.b16 %v1107
    %v5066 = vunpack.c.h.b16 %v1107
    %v5067 = vunpack.c.l.b16 %v1108
    %v5068 = vunpack.c.h.b16 %v1108
    %v5069 = vunpack.c.l.b16 %v1109
    %v5070 = vunpack.c.h.b16 %v1109
    %v5071 = vunpack.c.l.b16 %v1110
    %v5072 = vunpack.c.h.b16 %v1110
    %v5073 = vunpack.c.l.b16 %v1111
    %v5074 = vunpack.c.h.b16 %v1111
    %v5075 = vunpack.c.l.b16 %v1112
    %v5076 = vunpack.c.h.b16 %v1112
    %v5077 = vunpack.c.l.b16 %v1113
    %v5078 = vunpack.c.h.b16 %v1113
    %v5079 = vunpack.c.l.b16 %v1114
    %v5080 = vunpack.c.h.b16 %v1114
    %v5081 = vunpack.c.l.b16 %v1115
    %v5082 = vunpack.c.h.b16 %v1115
    %v5083 = vunpack.c.l.b16 %v1116
    %v5084 = vunpack.c.h.b16 %v1116
    %v5085 = vunpack.c.l.b16 %v1117
    %v5086 = vunpack.c.h.b16 %v1117
    %v5087 = vunpack.c.l.b16 %v1118
    %v5088 = vunpack.c.h.b16 %v1118
    %v5089 = vunpack.c.l.b16 %v1119
    %v5090 = vunpack.c.h.b16 %v1119
    %v5091 = vunpack.c.l.b16 %v1120
    %v5092 = vunpack.c.h.b16 %v1120
    %v5093 = vunpack.c.l.b16 %v1121
    %v5094 = vunpack.c.h.b16 %v1121
    %v5095 = vunpack.c.l.b16 %v1122
    %v5096 = vunpack.c.h.b16 %v1122
    %v5097 = vunpack.c.l.b16 %v1123
    %v5098 = vunpack.c.h.b16 %v1123
    %v5099 = vunpack.c.l.b16 %v1124
    %v5100 = vunpack.c.h.b16 %v1124
    %v5101 = vunpack.c.l.b16 %v1125
    %v5102 = vunpack.c.h.b16 %v1125
    %v5103 = vunpack.c.l.b16 %v1126
    %v5104 = vunpack.c.h.b16 %v1126
    %v5105 = vunpack.c.l.b16 %v1127
    %v5106 = vunpack.c.h.b16 %v1127
    %v5107 = vunpack.c.l.b16 %v1128
    %v5108 = vunpack.c.h.b16 %v1128
    %v5109 = vunpack.c.l.b16 %v1129
    %v5110 = vunpack.c.h.b16 %v1129
    %v5111 = vunpack.c.l.b16 %v1130
    %v5112 = vunpack.c.h.b16 %v1130
    %v5113 = vunpack.c.l.b16 %v1131
    %v5114 = vunpack.c.h.b16 %v1131
    %v5115 = vunpack.c.l.b16 %v1132
    %v5116 = vunpack.c.h.b16 %v1132
    %v5117 = vunpack.c.l.b16 %v1133
    %v5118 = vunpack.c.h.b16 %v1133
    %v5119 = vunpack.c.l.b16 %v1134
    %v5120 = vunpack.c.h.b16 %v1134
    %v5121 = vunpack.c.l.b16 %v1135
    %v5122 = vunpack.c.h.b16 %v1135
    %v5123 = vunpack.c.l.b16 %v1136
    %v5124 = vunpack.c.h.b16 %v1136
    %v5125 = vunpack.c.l.b16 %v1137
    %v5126 = vunpack.c.h.b16 %v1137
    %v5127 = vunpack.c.l.b16 %v1138
    %v5128 = vunpack.c.h.b16 %v1138
    %v5129 = vunpack.c.l.b16 %v1139
    %v5130 = vunpack.c.h.b16 %v1139
    %v5131 = vunpack.c.l.b16 %v1140
    %v5132 = vunpack.c.h.b16 %v1140
    %v5133 = vunpack.c.l.b16 %v1141
    %v5134 = vunpack.c.h.b16 %v1141
    %v5135 = vunpack.c.l.b16 %v1142
    %v5136 = vunpack.c.h.b16 %v1142
    %v5137 = vunpack.c.l.b16 %v1143
    %v5138 = vunpack.c.h.b16 %v1143
    %v5139 = vunpack.c.l.b16 %v1144
    %v5140 = vunpack.c.h.b16 %v1144
    %v5141 = vunpack.c.l.b16 %v1145
    %v5142 = vunpack.c.h.b16 %v1145
    %v5143 = vunpack.c.l.b16 %v1146
    %v5144 = vunpack.c.h.b16 %v1146
    %v5145 = vunpack.c.l.b16 %v1147
    %v5146 = vunpack.c.h.b16 %v1147
    %v5147 = vunpack.c.l.b16 %v1148
    %v5148 = vunpack.c.h.b16 %v1148
    %v5149 = vunpack.c.l.b16 %v1149
    %v5150 = vunpack.c.h.b16 %v1149
    %v5151 = vunpack.c.l.b16 %v1150
    %v5152 = vunpack.c.h.b16 %v1150
    %v5153 = vunpack.c.l.b16 %v1151
    %v5154 = vunpack.c.h.b16 %v1151
    %v5155 = vunpack.c.l.b16 %v1152
    %v5156 = vunpack.c.h.b16 %v1152
    %v5157 = vunpack.c.l.b16 %v1153
    %v5158 = vunpack.c.h.b16 %v1153
    %v5159 = vunpack.c.l.b16 %v1154
    %v5160 = vunpack.c.h.b16 %v1154
    %v5161 = vunpack.c.l.b16 %v1155
    %v5162 = vunpack.c.h.b16 %v1155
    %v5163 = vunpack.c.l.b16 %v1156
    %v5164 = vunpack.c.h.b16 %v1156
    %v5165 = vunpack.c.l.b16 %v1157
    %v5166 = vunpack.c.h.b16 %v1157
    %v5167 = vunpack.c.l.b16 %v1158
    %v5168 = vunpack.c.h.b16 %v1158
    %v5169 = vunpack.c.l.b16 %v1159
    %v5170 = vunpack.c.h.b16 %v1159
    %v5171 = vunpack.c.l.b16 %v1160
    %v5172 = vunpack.c.h.b16 %v1160
    %v5173 = vunpack.c.l.b16 %v1161
    %v5174 = vunpack.c.h.b16 %v1161
    %v5175 = vunpack.c.l.b16 %v1162
    %v5176 = vunpack.c.h.b16 %v1162
    %v5177 = vunpack.c.l.b16 %v1163
    %v5178 = vunpack.c.h.b16 %v1163
    %v5179 = vunpack.c.l.b16 %v1164
    %v5180 = vunpack.c.h.b16 %v1164
    %v5181 = vunpack.c.l.b16 %v1165
    %v5182 = vunpack.c.h.b16 %v1165
    %v5183 = vunpack.c.l.b16 %v1166
    %v5184 = vunpack.c.h.b16 %v1166
    %v5185 = vunpack.c.l.b16 %v1167
    %v5186 = vunpack.c.h.b16 %v1167
    %v5187 = vunpack.c.l.b16 %v1168
    %v5188 = vunpack.c.h.b16 %v1168
    %v5189 = vunpack.c.l.b16 %v1169
    %v5190 = vunpack.c.h.b16 %v1169
    %v5191 = vunpack.c.l.b16 %v1170
    %v5192 = vunpack.c.h.b16 %v1170
    %v5193 = vunpack.c.l.b16 %v1171
    %v5194 = vunpack.c.h.b16 %v1171
    %v5195 = vunpack.c.l.b16 %v1172
    %v5196 = vunpack.c.h.b16 %v1172
    %v5197 = vunpack.c.l.b16 %v1173
    %v5198 = vunpack.c.h.b16 %v1173
    %v5199 = vunpack.c.l.b16 %v1174
    %v5200 = vunpack.c.h.b16 %v1174
    %v5201 = vunpack.c.l.b16 %v1175
    %v5202 = vunpack.c.h.b16 %v1175
    %v5203 = vunpack.c.l.b16 %v1176
    %v5204 = vunpack.c.h.b16 %v1176
    %v5205 = vunpack.c.l.b16 %v1177
    %v5206 = vunpack.c.h.b16 %v1177
    %v5207 = vunpack.c.l.b16 %v1178
    %v5208 = vunpack.c.h.b16 %v1178
    %v5209 = vunpack.c.l.b16 %v1179
    %v5210 = vunpack.c.h.b16 %v1179
    %v5211 = vunpack.c.l.b16 %v1180
    %v5212 = vunpack.c.h.b16 %v1180
    %v5213 = vunpack.c.l.b16 %v1181
    %v5214 = vunpack.c.h.b16 %v1181
    %v5215 = vunpack.c.l.b16 %v1182
    %v5216 = vunpack.c.h.b16 %v1182
    %v5217 = vunpack.c.l.b16 %v1183
    %v5218 = vunpack.c.h.b16 %v1183
    %v5219 = vunpack.c.l.b16 %v1184
    %v5220 = vunpack.c.h.b16 %v1184
    %v5221 = vunpack.c.l.b16 %v1185
    %v5222 = vunpack.c.h.b16 %v1185
    %v5223 = vunpack.c.l.b16 %v1186
    %v5224 = vunpack.c.h.b16 %v1186
    %v5225 = vunpack.c.l.b16 %v1187
    %v5226 = vunpack.c.h.b16 %v1187
    %v5227 = vunpack.c.l.b16 %v1188
    %v5228 = vunpack.c.h.b16 %v1188
    %v5229 = vunpack.c.l.b16 %v1189
    %v5230 = vunpack.c.h.b16 %v1189
    %v5231 = vunpack.c.l.b16 %v1190
    %v5232 = vunpack.c.h.b16 %v1190
    %v5233 = vunpack.c.l.b16 %v1191
    %v5234 = vunpack.c.h.b16 %v1191
    %v5235 = vpack.c.b16 %v3195, %v3187
    %v5236 = vpack.c.b16 %v3196, %v3188
    %v5237 = vpack.c.b16 %v3197, %v3189
    %v5238 = vpack.c.b16 %v3198, %v3190
    %v5239 = vpack.c.b16 %v3199, %v3191
    %v5240 = vpack.c.b16 %v3200, %v3192
    %v5241 = vpack.c.b16 %v3201, %v3193
    %v5242 = vpack.c.b16 %v3202, %v3194
    %v5243 = vpack.c.b16 %v3211, %v3203
    %v5244 = vpack.c.b16 %v3212, %v3204
    %v5245 = vpack.c.b16 %v3213, %v3205
    %v5246 = vpack.c.b16 %v3214, %v3206
    %v5247 = vpack.c.b16 %v3215, %v3207
    %v5248 = vpack.c.b16 %v3216, %v3208
    %v5249 = vpack.c.b16 %v3217, %v3209
    %v5250 = vpack.c.b16 %v3218, %v3210
    %v5251 = vpack.c.b16 %v3227, %v3219
    %v5252 = vpack.c.b16 %v3228, %v3220
    %v5253 = vpack.c.b16 %v3229, %v3221
    %v5254 = vpack.c.b16 %v3230, %v3222
    %v5255 = vpack.c.b16 %v3231, %v3223
    %v5256 = vpack.c.b16 %v3232, %v3224
    %v5257 = vpack.c.b16 %v3233, %v3225
    %v5258 = vpack.c.b16 %v3234, %v3226
    %v5259 = vpack.c.b16 %v3243, %v3235
    %v5260 = vpack.c.b16 %v3244, %v3236
    %v5261 = vpack.c.b16 %v3245, %v3237
    %v5262 = vpack.c.b16 %v3246, %v3238
    %v5263 = vpack.c.b16 %v3247, %v3239
    %v5264 = vpack.c.b16 %v3248, %v3240
    %v5265 = vpack.c.b16 %v3249, %v3241
    %v5266 = vpack.c.b16 %v3250, %v3242
    %v5267 = vpack.c.b16 %v3259, %v3251
    %v5268 = vpack.c.b16 %v3260, %v3252
    %v5269 = vpack.c.b16 %v3261, %v3253
    %v5270 = vpack.c.b16 %v3262, %v3254
    %v5271 = vpack.c.b16 %v3263, %v3255
    %v5272 = vpack.c.b16 %v3264, %v3256
    %v5273 = vpack.c.b16 %v3265, %v3257
    %v5274 = vpack.c.b16 %v3266, %v3258
    %v5275 = vpack.c.b16 %v3275, %v3267
    %v5276 = vpack.c.b16 %v3276, %v3268
    %v5277 = vpack.c.b16 %v3277, %v3269
    %v5278 = vpack.c.b16 %v3278, %v3270
    %v5279 = vpack.c.b16 %v3279, %v3271
    %v5280 = vpack.c.b16 %v3280, %v3272
    %v5281 = vpack.c.b16 %v3281, %v3273
    %v5282 = vpack.c.b16 %v3282, %v3274
    %v5283 = vpack.c.b16 %v3291, %v3283
    %v5284 = vpack.c.b16 %v3292, %v3284
    %v5285 = vpack.c.b16 %v3293, %v3285
    %v5286 = vpack.c.b16 %v3294, %v3286
    %v5287 = vpack.c.b16 %v3295, %v3287
    %v5288 = vpack.c.b16 %v3296, %v3288
    %v5289 = vpack.c.b16 %v3297, %v3289
    %v5290 = vpack.c.b16 %v3298, %v3290
    %v5291 = vpack.c.b16 %v3307, %v3299
    %v5292 = vpack.c.b16 %v3308, %v3300
    %v5293 = vpack.c.b16 %v3309, %v3301
    %v5294 = vpack.c.b16 %v3310, %v3302
    %v5295 = vpack.c.b16 %v3311, %v3303
    %v5296 = vpack.c.b16 %v3312, %v3304
    %v5297 = vpack.c.b16 %v3313, %v3305
    %v5298 = vpack.c.b16 %v3314, %v3306
    %v5299 = vpack.c.b16 %v3323, %v3315
    %v5300 = vpack.c.b16 %v3324, %v3316
    %v5301 = vpack.c.b16 %v3325, %v3317
    %v5302 = vpack.c.b16 %v3326, %v3318
    %v5303 = vpack.c.b16 %v3327, %v3319
    %v5304 = vpack.c.b16 %v3328, %v3320
    %v5305 = vpack.c.b16 %v3329, %v3321
    %v5306 = vpack.c.b16 %v3330, %v3322
    %v5307 = vpack.c.b16 %v3339, %v3331
    %v5308 = vpack.c.b16 %v3340, %v3332
    %v5309 = vpack.c.b16 %v3341, %v3333
    %v5310 = vpack.c.b16 %v3342, %v3334
    %v5311 = vpack.c.b16 %v3343, %v3335
    %v5312 = vpack.c.b16 %v3344, %v3336
    %v5313 = vpack.c.b16 %v3345, %v3337
    %v5314 = vpack.c.b16 %v3346, %v3338
    %v5315 = vpack.c.b16 %v3355, %v3347
    %v5316 = vpack.c.b16 %v3356, %v3348
    %v5317 = vpack.c.b16 %v3357, %v3349
    %v5318 = vpack.c.b16 %v3358, %v3350
    %v5319 = vpack.c.b16 %v3359, %v3351
    %v5320 = vpack.c.b16 %v3360, %v3352
    %v5321 = vpack.c.b16 %v3361, %v3353
    %v5322 = vpack.c.b16 %v3362, %v3354
    %v5323 = vpack.c.b16 %v3371, %v3363
    %v5324 = vpack.c.b16 %v3372, %v3364
    %v5325 = vpack.c.b16 %v3373, %v3365
    %v5326 = vpack.c.b16 %v3374, %v3366
    %v5327 = vpack.c.b16 %v3375, %v3367
    %v5328 = vpack.c.b16 %v3376, %v3368
    %v5329 = vpack.c.b16 %v3377, %v3369
    %v5330 = vpack.c.b16 %v3378, %v3370
    %v5331 = vpack.c.b16 %v3387, %v3379
    %v5332 = vpack.c.b16 %v3388, %v3380
    %v5333 = vpack.c.b16 %v3389, %v3381
    %v5334 = vpack.c.b16 %v3390, %v3382
    %v5335 = vpack.c.b16 %v3391, %v3383
    %v5336 = vpack.c.b16 %v3392, %v3384
    %v5337 = vpack.c.b16 %v3393, %v3385
    %v5338 = vpack.c.b16 %v3394, %v3386
    %v5339 = vpack.c.b16 %v3403, %v3395
    %v5340 = vpack.c.b16 %v3404, %v3396
    %v5341 = vpack.c.b16 %v3405, %v3397
    %v5342 = vpack.c.b16 %v3406, %v3398
    %v5343 = vpack.c.b16 %v3407, %v3399
    %v5344 = vpack.c.b16 %v3408, %v3400
    %v5345 = vpack.c.b16 %v3409, %v3401
    %v5346 = vpack.c.b16 %v3410, %v3402
    %v5347 = vpack.c.b16 %v3419, %v3411
    %v5348 = vpack.c.b16 %v3420, %v3412
    %v5349 = vpack.c.b16 %v3421, %v3413
    %v5350 = vpack.c.b16 %v3422, %v3414
    %v5351 = vpack.c.b16 %v3423, %v3415
    %v5352 = vpack.c.b16 %v3424, %v3416
    %v5353 = vpack.c.b16 %v3425, %v3417
    %v5354 = vpack.c.b16 %v3426, %v3418
    %v5355 = vpack.c.b16 %v3435, %v3427
    %v5356 = vpack.c.b16 %v3436, %v3428
    %v5357 = vpack.c.b16 %v3437, %v3429
    %v5358 = vpack.c.b16 %v3438, %v3430
    %v5359 = vpack.c.b16 %v3439, %v3431
    %v5360 = vpack.c.b16 %v3440, %v3432
    %v5361 = vpack.c.b16 %v3441, %v3433
    %v5362 = vpack.c.b16 %v3442, %v3434
    %v5363 = vpack.c.b16 %v3451, %v3443
    %v5364 = vpack.c.b16 %v3452, %v3444
    %v5365 = vpack.c.b16 %v3453, %v3445
    %v5366 = vpack.c.b16 %v3454, %v3446
    %v5367 = vpack.c.b16 %v3455, %v3447
    %v5368 = vpack.c.b16 %v3456, %v3448
    %v5369 = vpack.c.b16 %v3457, %v3449
    %v5370 = vpack.c.b16 %v3458, %v3450
    %v5371 = vpack.c.b16 %v3467, %v3459
    %v5372 = vpack.c.b16 %v3468, %v3460
    %v5373 = vpack.c.b16 %v3469, %v3461
    %v5374 = vpack.c.b16 %v3470, %v3462
    %v5375 = vpack.c.b16 %v3471, %v3463
    %v5376 = vpack.c.b16 %v3472, %v3464
    %v5377 = vpack.c.b16 %v3473, %v3465
    %v5378 = vpack.c.b16 %v3474, %v3466
    %v5379 = vpack.c.b16 %v3483, %v3475
    %v5380 = vpack.c.b16 %v3484, %v3476
    %v5381 = vpack.c.b16 %v3485, %v3477
    %v5382 = vpack.c.b16 %v3486, %v3478
    %v5383 = vpack.c.b16 %v3487, %v3479
    %v5384 = vpack.c.b16 %v3488, %v3480
    %v5385 = vpack.c.b16 %v3489, %v3481
    %v5386 = vpack.c.b16 %v3490, %v3482
    %v5387 = vpack.c.b16 %v3499, %v3491
    %v5388 = vpack.c.b16 %v3500, %v3492
    %v5389 = vpack.c.b16 %v3501, %v3493
    %v5390 = vpack.c.b16 %v3502, %v3494
    %v5391 = vpack.c.b16 %v3503, %v3495
    %v5392 = vpack.c.b16 %v3504, %v3496
    %v5393 = vpack.c.b16 %v3505, %v3497
    %v5394 = vpack.c.b16 %v3506, %v3498
    %v5395 = vpack.c.b16 %v3515, %v3507
    %v5396 = vpack.c.b16 %v3516, %v3508
    %v5397 = vpack.c.b16 %v3517, %v3509
    %v5398 = vpack.c.b16 %v3518, %v3510
    %v5399 = vpack.c.b16 %v3519, %v3511
    %v5400 = vpack.c.b16 %v3520, %v3512
    %v5401 = vpack.c.b16 %v3521, %v3513
    %v5402 = vpack.c.b16 %v3522, %v3514
    %v5403 = vpack.c.b16 %v3531, %v3523
    %v5404 = vpack.c.b16 %v3532, %v3524
    %v5405 = vpack.c.b16 %v3533, %v3525
    %v5406 = vpack.c.b16 %v3534, %v3526
    %v5407 = vpack.c.b16 %v3535, %v3527
    %v5408 = vpack.c.b16 %v3536, %v3528
    %v5409 = vpack.c.b16 %v3537, %v3529
    %v5410 = vpack.c.b16 %v3538, %v3530
    %v5411 = vpack.c.b16 %v3547, %v3539
    %v5412 = vpack.c.b16 %v3548, %v3540
    %v5413 = vpack.c.b16 %v3549, %v3541
    %v5414 = vpack.c.b16 %v3550, %v3542
    %v5415 = vpack.c.b16 %v3551, %v3543
    %v5416 = vpack.c.b16 %v3552, %v3544
    %v5417 = vpack.c.b16 %v3553, %v3545
    %v5418 = vpack.c.b16 %v3554, %v3546
    %v5419 = vpack.c.b16 %v3563, %v3555
    %v5420 = vpack.c.b16 %v3564, %v3556
    %v5421 = vpack.c.b16 %v3565, %v3557
    %v5422 = vpack.c.b16 %v3566, %v3558
    %v5423 = vpack.c.b16 %v3567, %v3559
    %v5424 = vpack.c.b16 %v3568, %v3560
    %v5425 = vpack.c.b16 %v3569, %v3561
    %v5426 = vpack.c.b16 %v3570, %v3562
    %v5427 = vpack.c.b16 %v3579, %v3571
    %v5428 = vpack.c.b16 %v3580, %v3572
    %v5429 = vpack.c.b16 %v3581, %v3573
    %v5430 = vpack.c.b16 %v3582, %v3574
    %v5431 = vpack.c.b16 %v3583, %v3575
    %v5432 = vpack.c.b16 %v3584, %v3576
    %v5433 = vpack.c.b16 %v3585, %v3577
    %v5434 = vpack.c.b16 %v3586, %v3578
    %v5435 = vpack.c.b16 %v3595, %v3587
    %v5436 = vpack.c.b16 %v3596, %v3588
    %v5437 = vpack.c.b16 %v3597, %v3589
    %v5438 = vpack.c.b16 %v3598, %v3590
    %v5439 = vpack.c.b16 %v3599, %v3591
    %v5440 = vpack.c.b16 %v3600, %v3592
    %v5441 = vpack.c.b16 %v3601, %v3593
    %v5442 = vpack.c.b16 %v3602, %v3594
    %v5443 = vpack.c.b16 %v3611, %v3603
    %v5444 = vpack.c.b16 %v3612, %v3604
    %v5445 = vpack.c.b16 %v3613, %v3605
    %v5446 = vpack.c.b16 %v3614, %v3606
    %v5447 = vpack.c.b16 %v3615, %v3607
    %v5448 = vpack.c.b16 %v3616, %v3608
    %v5449 = vpack.c.b16 %v3617, %v3609
    %v5450 = vpack.c.b16 %v3618, %v3610
    %v5451 = vpack.c.b16 %v3627, %v3619
    %v5452 = vpack.c.b16 %v3628, %v3620
    %v5453 = vpack.c.b16 %v3629, %v3621
    %v5454 = vpack.c.b16 %v3630, %v3622
    %v5455 = vpack.c.b16 %v3631, %v3623
    %v5456 = vpack.c.b16 %v3632, %v3624
    %v5457 = vpack.c.b16 %v3633, %v3625
    %v5458 = vpack.c.b16 %v3634, %v3626
    %v5459 = vpack.c.b16 %v3643, %v3635
    %v5460 = vpack.c.b16 %v3644, %v3636
    %v5461 = vpack.c.b16 %v3645, %v3637
    %v5462 = vpack.c.b16 %v3646, %v3638
    %v5463 = vpack.c.b16 %v3647, %v3639
    %v5464 = vpack.c.b16 %v3648, %v3640
    %v5465 = vpack.c.b16 %v3649, %v3641
    %v5466 = vpack.c.b16 %v3650, %v3642
    %v5467 = vpack.c.b16 %v3659, %v3651
    %v5468 = vpack.c.b16 %v3660, %v3652
    %v5469 = vpack.c.b16 %v3661, %v3653
    %v5470 = vpack.c.b16 %v3662, %v3654
    %v5471 = vpack.c.b16 %v3663, %v3655
    %v5472 = vpack.c.b16 %v3664, %v3656
    %v5473 = vpack.c.b16 %v3665, %v3657
    %v5474 = vpack.c.b16 %v3666, %v3658
    %v5475 = vpack.c.b16 %v3675, %v3667
    %v5476 = vpack.c.b16 %v3676, %v3668
    %v5477 = vpack.c.b16 %v3677, %v3669
    %v5478 = vpack.c.b16 %v3678, %v3670
    %v5479 = vpack.c.b16 %v3679, %v3671
    %v5480 = vpack.c.b16 %v3680, %v3672
    %v5481 = vpack.c.b16 %v3681, %v3673
    %v5482 = vpack.c.b16 %v3682, %v3674
    %v5483 = vpack.c.b16 %v3691, %v3683
    %v5484 = vpack.c.b16 %v3692, %v3684
    %v5485 = vpack.c.b16 %v3693, %v3685
    %v5486 = vpack.c.b16 %v3694, %v3686
    %v5487 = vpack.c.b16 %v3695, %v3687
    %v5488 = vpack.c.b16 %v3696, %v3688
    %v5489 = vpack.c.b16 %v3697, %v3689
    %v5490 = vpack.c.b16 %v3698, %v3690
    %v5491 = vpack.c.b16 %v3707, %v3699
    %v5492 = vpack.c.b16 %v3708, %v3700
    %v5493 = vpack.c.b16 %v3709, %v3701
    %v5494 = vpack.c.b16 %v3710, %v3702
    %v5495 = vpack.c.b16 %v3711, %v3703
    %v5496 = vpack.c.b16 %v3712, %v3704
    %v5497 = vpack.c.b16 %v3713, %v3705
    %v5498 = vpack.c.b16 %v3714, %v3706
    %v5499 = vpack.c.b16 %v3723, %v3715
    %v5500 = vpack.c.b16 %v3724, %v3716
    %v5501 = vpack.c.b16 %v3725, %v3717
    %v5502 = vpack.c.b16 %v3726, %v3718
    %v5503 = vpack.c.b16 %v3727, %v3719
    %v5504 = vpack.c.b16 %v3728, %v3720
    %v5505 = vpack.c.b16 %v3729, %v3721
    %v5506 = vpack.c.b16 %v3730, %v3722
    %v5507 = vpack.c.b16 %v3739, %v3731
    %v5508 = vpack.c.b16 %v3740, %v3732
    %v5509 = vpack.c.b16 %v3741, %v3733
    %v5510 = vpack.c.b16 %v3742, %v3734
    %v5511 = vpack.c.b16 %v3743, %v3735
    %v5512 = vpack.c.b16 %v3744, %v3736
    %v5513 = vpack.c.b16 %v3745, %v3737
    %v5514 = vpack.c.b16 %v3746, %v3738
    %v5515 = vpack.c.b16 %v3755, %v3747
    %v5516 = vpack.c.b16 %v3756, %v3748
    %v5517 = vpack.c.b16 %v3757, %v3749
    %v5518 = vpack.c.b16 %v3758, %v3750
    %v5519 = vpack.c.b16 %v3759, %v3751
    %v5520 = vpack.c.b16 %v3760, %v3752
    %v5521 = vpack.c.b16 %v3761, %v3753
    %v5522 = vpack.c.b16 %v3762, %v3754
    %v5523 = vpack.c.b16 %v3771, %v3763
    %v5524 = vpack.c.b16 %v3772, %v3764
    %v5525 = vpack.c.b16 %v3773, %v3765
    %v5526 = vpack.c.b16 %v3774, %v3766
    %v5527 = vpack.c.b16 %v3775, %v3767
    %v5528 = vpack.c.b16 %v3776, %v3768
    %v5529 = vpack.c.b16 %v3777, %v3769
    %v5530 = vpack.c.b16 %v3778, %v3770
    %v5531 = vpack.c.b16 %v3787, %v3779
    %v5532 = vpack.c.b16 %v3788, %v3780
    %v5533 = vpack.c.b16 %v3789, %v3781
    %v5534 = vpack.c.b16 %v3790, %v3782
    %v5535 = vpack.c.b16 %v3791, %v3783
    %v5536 = vpack.c.b16 %v3792, %v3784
    %v5537 = vpack.c.b16 %v3793, %v3785
    %v5538 = vpack.c.b16 %v3794, %v3786
    %v5539 = vpack.c.b16 %v3803, %v3795
    %v5540 = vpack.c.b16 %v3804, %v3796
    %v5541 = vpack.c.b16 %v3805, %v3797
    %v5542 = vpack.c.b16 %v3806, %v3798
    %v5543 = vpack.c.b16 %v3807, %v3799
    %v5544 = vpack.c.b16 %v3808, %v3800
    %v5545 = vpack.c.b16 %v3809, %v3801
    %v5546 = vpack.c.b16 %v3810, %v3802
    %v5547 = vpack.c.b16 %v3819, %v3811
    %v5548 = vpack.c.b16 %v3820, %v3812
    %v5549 = vpack.c.b16 %v3821, %v3813
    %v5550 = vpack.c.b16 %v3822, %v3814
    %v5551 = vpack.c.b16 %v3823, %v3815
    %v5552 = vpack.c.b16 %v3824, %v3816
    %v5553 = vpack.c.b16 %v3825, %v3817
    %v5554 = vpack.c.b16 %v3826, %v3818
    %v5555 = vpack.c.b16 %v3835, %v3827
    %v5556 = vpack.c.b16 %v3836, %v3828
    %v5557 = vpack.c.b16 %v3837, %v3829
    %v5558 = vpack.c.b16 %v3838, %v3830
    %v5559 = vpack.c.b16 %v3839, %v3831
    %v5560 = vpack.c.b16 %v3840, %v3832
    %v5561 = vpack.c.b16 %v3841, %v3833
    %v5562 = vpack.c.b16 %v3842, %v3834
    %v5563 = vpack.c.b16 %v3851, %v3843
    %v5564 = vpack.c.b16 %v3852, %v3844
    %v5565 = vpack.c.b16 %v3853, %v3845
    %v5566 = vpack.c.b16 %v3854, %v3846
    %v5567 = vpack.c.b16 %v3855, %v3847
    %v5568 = vpack.c.b16 %v3856, %v3848
    %v5569 = vpack.c.b16 %v3857, %v3849
    %v5570 = vpack.c.b16 %v3858, %v3850
    %v5571 = vpack.c.b16 %v3867, %v3859
    %v5572 = vpack.c.b16 %v3868, %v3860
    %v5573 = vpack.c.b16 %v3869, %v3861
    %v5574 = vpack.c.b16 %v3870, %v3862
    %v5575 = vpack.c.b16 %v3871, %v3863
    %v5576 = vpack.c.b16 %v3872, %v3864
    %v5577 = vpack.c.b16 %v3873, %v3865
    %v5578 = vpack.c.b16 %v3874, %v3866
    %v5579 = vpack.c.b16 %v3883, %v3875
    %v5580 = vpack.c.b16 %v3884, %v3876
    %v5581 = vpack.c.b16 %v3885, %v3877
    %v5582 = vpack.c.b16 %v3886, %v3878
    %v5583 = vpack.c.b16 %v3887, %v3879
    %v5584 = vpack.c.b16 %v3888, %v3880
    %v5585 = vpack.c.b16 %v3889, %v3881
    %v5586 = vpack.c.b16 %v3890, %v3882
    %v5587 = vpack.c.b16 %v3899, %v3891
    %v5588 = vpack.c.b16 %v3900, %v3892
    %v5589 = vpack.c.b16 %v3901, %v3893
    %v5590 = vpack.c.b16 %v3902, %v3894
    %v5591 = vpack.c.b16 %v3903, %v3895
    %v5592 = vpack.c.b16 %v3904, %v3896
    %v5593 = vpack.c.b16 %v3905, %v3897
    %v5594 = vpack.c.b16 %v3906, %v3898
    %v5595 = vpack.c.b16 %v3915, %v3907
    %v5596 = vpack.c.b16 %v3916, %v3908
    %v5597 = vpack.c.b16 %v3917, %v3909
    %v5598 = vpack.c.b16 %v3918, %v3910
    %v5599 = vpack.c.b16 %v3919, %v3911
    %v5600 = vpack.c.b16 %v3920, %v3912
    %v5601 = vpack.c.b16 %v3921, %v3913
    %v5602 = vpack.c.b16 %v3922, %v3914
    %v5603 = vpack.c.b16 %v3931, %v3923
    %v5604 = vpack.c.b16 %v3932, %v3924
    %v5605 = vpack.c.b16 %v3933, %v3925
    %v5606 = vpack.c.b16 %v3934, %v3926
    %v5607 = vpack.c.b16 %v3935, %v3927
    %v5608 = vpack.c.b16 %v3936, %v3928
    %v5609 = vpack.c.b16 %v3937, %v3929
    %v5610 = vpack.c.b16 %v3938, %v3930
    %v5611 = vpack.c.b16 %v3947, %v3939
    %v5612 = vpack.c.b16 %v3948, %v3940
    %v5613 = vpack.c.b16 %v3949, %v3941
    %v5614 = vpack.c.b16 %v3950, %v3942
    %v5615 = vpack.c.b16 %v3951, %v3943
    %v5616 = vpack.c.b16 %v3952, %v3944
    %v5617 = vpack.c.b16 %v3953, %v3945
    %v5618 = vpack.c.b16 %v3954, %v3946
    %v5619 = vpack.c.b16 %v3963, %v3955
    %v5620 = vpack.c.b16 %v3964, %v3956
    %v5621 = vpack.c.b16 %v3965, %v3957
    %v5622 = vpack.c.b16 %v3966, %v3958
    %v5623 = vpack.c.b16 %v3967, %v3959
    %v5624 = vpack.c.b16 %v3968, %v3960
    %v5625 = vpack.c.b16 %v3969, %v3961
    %v5626 = vpack.c.b16 %v3970, %v3962
    %v5627 = vpack.c.b16 %v3979, %v3971
    %v5628 = vpack.c.b16 %v3980, %v3972
    %v5629 = vpack.c.b16 %v3981, %v3973
    %v5630 = vpack.c.b16 %v3982, %v3974
    %v5631 = vpack.c.b16 %v3983, %v3975
    %v5632 = vpack.c.b16 %v3984, %v3976
    %v5633 = vpack.c.b16 %v3985, %v3977
    %v5634 = vpack.c.b16 %v3986, %v3978
    %v5635 = vpack.c.b16 %v3995, %v3987
    %v5636 = vpack.c.b16 %v3996, %v3988
    %v5637 = vpack.c.b16 %v3997, %v3989
    %v5638 = vpack.c.b16 %v3998, %v3990
    %v5639 = vpack.c.b16 %v3999, %v3991
    %v5640 = vpack.c.b16 %v4000, %v3992
    %v5641 = vpack.c.b16 %v4001, %v3993
    %v5642 = vpack.c.b16 %v4002, %v3994
    %v5643 = vpack.c.b16 %v4011, %v4003
    %v5644 = vpack.c.b16 %v4012, %v4004
    %v5645 = vpack.c.b16 %v4013, %v4005
    %v5646 = vpack.c.b16 %v4014, %v4006
    %v5647 = vpack.c.b16 %v4015, %v4007
    %v5648 = vpack.c.b16 %v4016, %v4008
    %v5649 = vpack.c.b16 %v4017, %v4009
    %v5650 = vpack.c.b16 %v4018, %v4010
    %v5651 = vpack.c.b16 %v4027, %v4019
    %v5652 = vpack.c.b16 %v4028, %v4020
    %v5653 = vpack.c.b16 %v4029, %v4021
    %v5654 = vpack.c.b16 %v4030, %v4022
    %v5655 = vpack.c.b16 %v4031, %v4023
    %v5656 = vpack.c.b16 %v4032, %v4024
    %v5657 = vpack.c.b16 %v4033, %v4025
    %v5658 = vpack.c.b16 %v4034, %v4026
    %v5659 = vpack.c.b16 %v4043, %v4035
    %v5660 = vpack.c.b16 %v4044, %v4036
    %v5661 = vpack.c.b16 %v4045, %v4037
    %v5662 = vpack.c.b16 %v4046, %v4038
    %v5663 = vpack.c.b16 %v4047, %v4039
    %v5664 = vpack.c.b16 %v4048, %v4040
    %v5665 = vpack.c.b16 %v4049, %v4041
    %v5666 = vpack.c.b16 %v4050, %v4042
    %v5667 = vpack.c.b16 %v4059, %v4051
    %v5668 = vpack.c.b16 %v4060, %v4052
    %v5669 = vpack.c.b16 %v4061, %v4053
    %v5670 = vpack.c.b16 %v4062, %v4054
    %v5671 = vpack.c.b16 %v4063, %v4055
    %v5672 = vpack.c.b16 %v4064, %v4056
    %v5673 = vpack.c.b16 %v4065, %v4057
    %v5674 = vpack.c.b16 %v4066, %v4058
    %v5675 = vpack.c.b16 %v4075, %v4067
    %v5676 = vpack.c.b16 %v4076, %v4068
    %v5677 = vpack.c.b16 %v4077, %v4069
    %v5678 = vpack.c.b16 %v4078, %v4070
    %v5679 = vpack.c.b16 %v4079, %v4071
    %v5680 = vpack.c.b16 %v4080, %v4072
    %v5681 = vpack.c.b16 %v4081, %v4073
    %v5682 = vpack.c.b16 %v4082, %v4074
    %v5683 = vpack.c.b16 %v4091, %v4083
    %v5684 = vpack.c.b16 %v4092, %v4084
    %v5685 = vpack.c.b16 %v4093, %v4085
    %v5686 = vpack.c.b16 %v4094, %v4086
    %v5687 = vpack.c.b16 %v4095, %v4087
    %v5688 = vpack.c.b16 %v4096, %v4088
    %v5689 = vpack.c.b16 %v4097, %v4089
    %v5690 = vpack.c.b16 %v4098, %v4090
    %v5691 = vpack.c.b16 %v4107, %v4099
    %v5692 = vpack.c.b16 %v4108, %v4100
    %v5693 = vpack.c.b16 %v4109, %v4101
    %v5694 = vpack.c.b16 %v4110, %v4102
    %v5695 = vpack.c.b16 %v4111, %v4103
    %v5696 = vpack.c.b16 %v4112, %v4104
    %v5697 = vpack.c.b16 %v4113, %v4105
    %v5698 = vpack.c.b16 %v4114, %v4106
    %v5699 = vpack.c.b16 %v4123, %v4115
    %v5700 = vpack.c.b16 %v4124, %v4116
    %v5701 = vpack.c.b16 %v4125, %v4117
    %v5702 = vpack.c.b16 %v4126, %v4118
    %v5703 = vpack.c.b16 %v4127, %v4119
    %v5704 = vpack.c.b16 %v4128, %v4120
    %v5705 = vpack.c.b16 %v4129, %v4121
    %v5706 = vpack.c.b16 %v4130, %v4122
    %v5707 = vpack.c.b16 %v4139, %v4131
    %v5708 = vpack.c.b16 %v4140, %v4132
    %v5709 = vpack.c.b16 %v4141, %v4133
    %v5710 = vpack.c.b16 %v4142, %v4134
    %v5711 = vpack.c.b16 %v4143, %v4135
    %v5712 = vpack.c.b16 %v4144, %v4136
    %v5713 = vpack.c.b16 %v4145, %v4137
    %v5714 = vpack.c.b16 %v4146, %v4138
    %v5715 = vpack.c.b16 %v4155, %v4147
    %v5716 = vpack.c.b16 %v4156, %v4148
    %v5717 = vpack.c.b16 %v4157, %v4149
    %v5718 = vpack.c.b16 %v4158, %v4150
    %v5719 = vpack.c.b16 %v4159, %v4151
    %v5720 = vpack.c.b16 %v4160, %v4152
    %v5721 = vpack.c.b16 %v4161, %v4153
    %v5722 = vpack.c.b16 %v4162, %v4154
    %v5723 = vpack.c.b16 %v4171, %v4163
    %v5724 = vpack.c.b16 %v4172, %v4164
    %v5725 = vpack.c.b16 %v4173, %v4165
    %v5726 = vpack.c.b16 %v4174, %v4166
    %v5727 = vpack.c.b16 %v4175, %v4167
    %v5728 = vpack.c.b16 %v4176, %v4168
    %v5729 = vpack.c.b16 %v4177, %v4169
    %v5730 = vpack.c.b16 %v4178, %v4170
    %v5731 = vpack.c.b16 %v4187, %v4179
    %v5732 = vpack.c.b16 %v4188, %v4180
    %v5733 = vpack.c.b16 %v4189, %v4181
    %v5734 = vpack.c.b16 %v4190, %v4182
    %v5735 = vpack.c.b16 %v4191, %v4183
    %v5736 = vpack.c.b16 %v4192, %v4184
    %v5737 = vpack.c.b16 %v4193, %v4185
    %v5738 = vpack.c.b16 %v4194, %v4186
    %v5739 = vpack.c.b16 %v4203, %v4195
    %v5740 = vpack.c.b16 %v4204, %v4196
    %v5741 = vpack.c.b16 %v4205, %v4197
    %v5742 = vpack.c.b16 %v4206, %v4198
    %v5743 = vpack.c.b16 %v4207, %v4199
    %v5744 = vpack.c.b16 %v4208, %v4200
    %v5745 = vpack.c.b16 %v4209, %v4201
    %v5746 = vpack.c.b16 %v4210, %v4202
    %v5747 = vpack.c.b16 %v4219, %v4211
    %v5748 = vpack.c.b16 %v4220, %v4212
    %v5749 = vpack.c.b16 %v4221, %v4213
    %v5750 = vpack.c.b16 %v4222, %v4214
    %v5751 = vpack.c.b16 %v4223, %v4215
    %v5752 = vpack.c.b16 %v4224, %v4216
    %v5753 = vpack.c.b16 %v4225, %v4217
    %v5754 = vpack.c.b16 %v4226, %v4218
    %v5755 = vpack.c.b16 %v4235, %v4227
    %v5756 = vpack.c.b16 %v4236, %v4228
    %v5757 = vpack.c.b16 %v4237, %v4229
    %v5758 = vpack.c.b16 %v4238, %v4230
    %v5759 = vpack.c.b16 %v4239, %v4231
    %v5760 = vpack.c.b16 %v4240, %v4232
    %v5761 = vpack.c.b16 %v4241, %v4233
    %v5762 = vpack.c.b16 %v4242, %v4234
    %v5763 = vpack.c.b16 %v4251, %v4243
    %v5764 = vpack.c.b16 %v4252, %v4244
    %v5765 = vpack.c.b16 %v4253, %v4245
    %v5766 = vpack.c.b16 %v4254, %v4246
    %v5767 = vpack.c.b16 %v4255, %v4247
    %v5768 = vpack.c.b16 %v4256, %v4248
    %v5769 = vpack.c.b16 %v4257, %v4249
    %v5770 = vpack.c.b16 %v4258, %v4250
    %v5771 = vpack.c.b16 %v4267, %v4259
    %v5772 = vpack.c.b16 %v4268, %v4260
    %v5773 = vpack.c.b16 %v4269, %v4261
    %v5774 = vpack.c.b16 %v4270, %v4262
    %v5775 = vpack.c.b16 %v4271, %v4263
    %v5776 = vpack.c.b16 %v4272, %v4264
    %v5777 = vpack.c.b16 %v4273, %v4265
    %v5778 = vpack.c.b16 %v4274, %v4266
    %v5779 = vpack.c.b16 %v4283, %v4275
    %v5780 = vpack.c.b16 %v4284, %v4276
    %v5781 = vpack.c.b16 %v4285, %v4277
    %v5782 = vpack.c.b16 %v4286, %v4278
    %v5783 = vpack.c.b16 %v4287, %v4279
    %v5784 = vpack.c.b16 %v4288, %v4280
    %v5785 = vpack.c.b16 %v4289, %v4281
    %v5786 = vpack.c.b16 %v4290, %v4282
    %v5787 = vpack.c.b16 %v4299, %v4291
    %v5788 = vpack.c.b16 %v4300, %v4292
    %v5789 = vpack.c.b16 %v4301, %v4293
    %v5790 = vpack.c.b16 %v4302, %v4294
    %v5791 = vpack.c.b16 %v4303, %v4295
    %v5792 = vpack.c.b16 %v4304, %v4296
    %v5793 = vpack.c.b16 %v4305, %v4297
    %v5794 = vpack.c.b16 %v4306, %v4298
    %v5795 = vpack.c.b16 %v4315, %v4307
    %v5796 = vpack.c.b16 %v4316, %v4308
    %v5797 = vpack.c.b16 %v4317, %v4309
    %v5798 = vpack.c.b16 %v4318, %v4310
    %v5799 = vpack.c.b16 %v4319, %v4311
    %v5800 = vpack.c.b16 %v4320, %v4312
    %v5801 = vpack.c.b16 %v4321, %v4313
    %v5802 = vpack.c.b16 %v4322, %v4314
    %v5803 = vpack.c.b16 %v4331, %v4323
    %v5804 = vpack.c.b16 %v4332, %v4324
    %v5805 = vpack.c.b16 %v4333, %v4325
    %v5806 = vpack.c.b16 %v4334, %v4326
    %v5807 = vpack.c.b16 %v4335, %v4327
    %v5808 = vpack.c.b16 %v4336, %v4328
    %v5809 = vpack.c.b16 %v4337, %v4329
    %v5810 = vpack.c.b16 %v4338, %v4330
    %v5811 = vpack.c.b16 %v4347, %v4339
    %v5812 = vpack.c.b16 %v4348, %v4340
    %v5813 = vpack.c.b16 %v4349, %v4341
    %v5814 = vpack.c.b16 %v4350, %v4342
    %v5815 = vpack.c.b16 %v4351, %v4343
    %v5816 = vpack.c.b16 %v4352, %v4344
    %v5817 = vpack.c.b16 %v4353, %v4345
    %v5818 = vpack.c.b16 %v4354, %v4346
    %v5819 = vpack.c.b16 %v4363, %v4355
    %v5820 = vpack.c.b16 %v4364, %v4356
    %v5821 = vpack.c.b16 %v4365, %v4357
    %v5822 = vpack.c.b16 %v4366, %v4358
    %v5823 = vpack.c.b16 %v4367, %v4359
    %v5824 = vpack.c.b16 %v4368, %v4360
    %v5825 = vpack.c.b16 %v4369, %v4361
    %v5826 = vpack.c.b16 %v4370, %v4362
    %v5827 = vpack.c.b16 %v4379, %v4371
    %v5828 = vpack.c.b16 %v4380, %v4372
    %v5829 = vpack.c.b16 %v4381, %v4373
    %v5830 = vpack.c.b16 %v4382, %v4374
    %v5831 = vpack.c.b16 %v4383, %v4375
    %v5832 = vpack.c.b16 %v4384, %v4376
    %v5833 = vpack.c.b16 %v4385, %v4377
    %v5834 = vpack.c.b16 %v4386, %v4378
    %v5835 = vpack.c.b16 %v4395, %v4387
    %v5836 = vpack.c.b16 %v4396, %v4388
    %v5837 = vpack.c.b16 %v4397, %v4389
    %v5838 = vpack.c.b16 %v4398, %v4390
    %v5839 = vpack.c.b16 %v4399, %v4391
    %v5840 = vpack.c.b16 %v4400, %v4392
    %v5841 = vpack.c.b16 %v4401, %v4393
    %v5842 = vpack.c.b16 %v4402, %v4394
    %v5843 = vpack.c.b16 %v4411, %v4403
    %v5844 = vpack.c.b16 %v4412, %v4404
    %v5845 = vpack.c.b16 %v4413, %v4405
    %v5846 = vpack.c.b16 %v4414, %v4406
    %v5847 = vpack.c.b16 %v4415, %v4407
    %v5848 = vpack.c.b16 %v4416, %v4408
    %v5849 = vpack.c.b16 %v4417, %v4409
    %v5850 = vpack.c.b16 %v4418, %v4410
    %v5851 = vpack.c.b16 %v4427, %v4419
    %v5852 = vpack.c.b16 %v4428, %v4420
    %v5853 = vpack.c.b16 %v4429, %v4421
    %v5854 = vpack.c.b16 %v4430, %v4422
    %v5855 = vpack.c.b16 %v4431, %v4423
    %v5856 = vpack.c.b16 %v4432, %v4424
    %v5857 = vpack.c.b16 %v4433, %v4425
    %v5858 = vpack.c.b16 %v4434, %v4426
    %v5859 = vpack.c.b16 %v4443, %v4435
    %v5860 = vpack.c.b16 %v4444, %v4436
    %v5861 = vpack.c.b16 %v4445, %v4437
    %v5862 = vpack.c.b16 %v4446, %v4438
    %v5863 = vpack.c.b16 %v4447, %v4439
    %v5864 = vpack.c.b16 %v4448, %v4440
    %v5865 = vpack.c.b16 %v4449, %v4441
    %v5866 = vpack.c.b16 %v4450, %v4442
    %v5867 = vpack.c.b16 %v4459, %v4451
    %v5868 = vpack.c.b16 %v4460, %v4452
    %v5869 = vpack.c.b16 %v4461, %v4453
    %v5870 = vpack.c.b16 %v4462, %v4454
    %v5871 = vpack.c.b16 %v4463, %v4455
    %v5872 = vpack.c.b16 %v4464, %v4456
    %v5873 = vpack.c.b16 %v4465, %v4457
    %v5874 = vpack.c.b16 %v4466, %v4458
    %v5875 = vpack.c.b16 %v4475, %v4467
    %v5876 = vpack.c.b16 %v4476, %v4468
    %v5877 = vpack.c.b16 %v4477, %v4469
    %v5878 = vpack.c.b16 %v4478, %v4470
    %v5879 = vpack.c.b16 %v4479, %v4471
    %v5880 = vpack.c.b16 %v4480, %v4472
    %v5881 = vpack.c.b16 %v4481, %v4473
    %v5882 = vpack.c.b16 %v4482, %v4474
    %v5883 = vpack.c.b16 %v4491, %v4483
    %v5884 = vpack.c.b16 %v4492, %v4484
    %v5885 = vpack.c.b16 %v4493, %v4485
    %v5886 = vpack.c.b16 %v4494, %v4486
    %v5887 = vpack.c.b16 %v4495, %v4487
    %v5888 = vpack.c.b16 %v4496, %v4488
    %v5889 = vpack.c.b16 %v4497, %v4489
    %v5890 = vpack.c.b16 %v4498, %v4490
    %v5891 = vpack.c.b16 %v4507, %v4499
    %v5892 = vpack.c.b16 %v4508, %v4500
    %v5893 = vpack.c.b16 %v4509, %v4501
    %v5894 = vpack.c.b16 %v4510, %v4502
    %v5895 = vpack.c.b16 %v4511, %v4503
    %v5896 = vpack.c.b16 %v4512, %v4504
    %v5897 = vpack.c.b16 %v4513, %v4505
    %v5898 = vpack.c.b16 %v4514, %v4506
    %v5899 = vpack.c.b16 %v4523, %v4515
    %v5900 = vpack.c.b16 %v4524, %v4516
    %v5901 = vpack.c.b16 %v4525, %v4517
    %v5902 = vpack.c.b16 %v4526, %v4518
    %v5903 = vpack.c.b16 %v4527, %v4519
    %v5904 = vpack.c.b16 %v4528, %v4520
    %v5905 = vpack.c.b16 %v4529, %v4521
    %v5906 = vpack.c.b16 %v4530, %v4522
    %v5907 = vpack.c.b16 %v4539, %v4531
    %v5908 = vpack.c.b16 %v4540, %v4532
    %v5909 = vpack.c.b16 %v4541, %v4533
    %v5910 = vpack.c.b16 %v4542, %v4534
    %v5911 = vpack.c.b16 %v4543, %v4535
    %v5912 = vpack.c.b16 %v4544, %v4536
    %v5913 = vpack.c.b16 %v4545, %v4537
    %v5914 = vpack.c.b16 %v4546, %v4538
    %v5915 = vpack.c.b16 %v4555, %v4547
    %v5916 = vpack.c.b16 %v4556, %v4548
    %v5917 = vpack.c.b16 %v4557, %v4549
    %v5918 = vpack.c.b16 %v4558, %v4550
    %v5919 = vpack.c.b16 %v4559, %v4551
    %v5920 = vpack.c.b16 %v4560, %v4552
    %v5921 = vpack.c.b16 %v4561, %v4553
    %v5922 = vpack.c.b16 %v4562, %v4554
    %v5923 = vpack.c.b16 %v4571, %v4563
    %v5924 = vpack.c.b16 %v4572, %v4564
    %v5925 = vpack.c.b16 %v4573, %v4565
    %v5926 = vpack.c.b16 %v4574, %v4566
    %v5927 = vpack.c.b16 %v4575, %v4567
    %v5928 = vpack.c.b16 %v4576, %v4568
    %v5929 = vpack.c.b16 %v4577, %v4569
    %v5930 = vpack.c.b16 %v4578, %v4570
    %v5931 = vpack.c.b16 %v4587, %v4579
    %v5932 = vpack.c.b16 %v4588, %v4580
    %v5933 = vpack.c.b16 %v4589, %v4581
    %v5934 = vpack.c.b16 %v4590, %v4582
    %v5935 = vpack.c.b16 %v4591, %v4583
    %v5936 = vpack.c.b16 %v4592, %v4584
    %v5937 = vpack.c.b16 %v4593, %v4585
    %v5938 = vpack.c.b16 %v4594, %v4586
    %v5939 = vpack.c.b16 %v4603, %v4595
    %v5940 = vpack.c.b16 %v4604, %v4596
    %v5941 = vpack.c.b16 %v4605, %v4597
    %v5942 = vpack.c.b16 %v4606, %v4598
    %v5943 = vpack.c.b16 %v4607, %v4599
    %v5944 = vpack.c.b16 %v4608, %v4600
    %v5945 = vpack.c.b16 %v4609, %v4601
    %v5946 = vpack.c.b16 %v4610, %v4602
    %v5947 = vpack.c.b16 %v4619, %v4611
    %v5948 = vpack.c.b16 %v4620, %v4612
    %v5949 = vpack.c.b16 %v4621, %v4613
    %v5950 = vpack.c.b16 %v4622, %v4614
    %v5951 = vpack.c.b16 %v4623, %v4615
    %v5952 = vpack.c.b16 %v4624, %v4616
    %v5953 = vpack.c.b16 %v4625, %v4617
    %v5954 = vpack.c.b16 %v4626, %v4618
    %v5955 = vpack.c.b16 %v4635, %v4627
    %v5956 = vpack.c.b16 %v4636, %v4628
    %v5957 = vpack.c.b16 %v4637, %v4629
    %v5958 = vpack.c.b16 %v4638, %v4630
    %v5959 = vpack.c.b16 %v4639, %v4631
    %v5960 = vpack.c.b16 %v4640, %v4632
    %v5961 = vpack.c.b16 %v4641, %v4633
    %v5962 = vpack.c.b16 %v4642, %v4634
    %v5963 = vpack.c.b16 %v4651, %v4643
    %v5964 = vpack.c.b16 %v4652, %v4644
    %v5965 = vpack.c.b16 %v4653, %v4645
    %v5966 = vpack.c.b16 %v4654, %v4646
    %v5967 = vpack.c.b16 %v4655, %v4647
    %v5968 = vpack.c.b16 %v4656, %v4648
    %v5969 = vpack.c.b16 %v4657, %v4649
    %v5970 = vpack.c.b16 %v4658, %v4650
    %v5971 = vpack.c.b16 %v4667, %v4659
    %v5972 = vpack.c.b16 %v4668, %v4660
    %v5973 = vpack.c.b16 %v4669, %v4661
    %v5974 = vpack.c.b16 %v4670, %v4662
    %v5975 = vpack.c.b16 %v4671, %v4663
    %v5976 = vpack.c.b16 %v4672, %v4664
    %v5977 = vpack.c.b16 %v4673, %v4665
    %v5978 = vpack.c.b16 %v4674, %v4666
    %v5979 = vpack.c.b16 %v4683, %v4675
    %v5980 = vpack.c.b16 %v4684, %v4676
    %v5981 = vpack.c.b16 %v4685, %v4677
    %v5982 = vpack.c.b16 %v4686, %v4678
    %v5983 = vpack.c.b16 %v4687, %v4679
    %v5984 = vpack.c.b16 %v4688, %v4680
    %v5985 = vpack.c.b16 %v4689, %v4681
    %v5986 = vpack.c.b16 %v4690, %v4682
    %v5987 = vpack.c.b16 %v4699, %v4691
    %v5988 = vpack.c.b16 %v4700, %v4692
    %v5989 = vpack.c.b16 %v4701, %v4693
    %v5990 = vpack.c.b16 %v4702, %v4694
    %v5991 = vpack.c.b16 %v4703, %v4695
    %v5992 = vpack.c.b16 %v4704, %v4696
    %v5993 = vpack.c.b16 %v4705, %v4697
    %v5994 = vpack.c.b16 %v4706, %v4698
    %v5995 = vpack.c.b16 %v4715, %v4707
    %v5996 = vpack.c.b16 %v4716, %v4708
    %v5997 = vpack.c.b16 %v4717, %v4709
    %v5998 = vpack.c.b16 %v4718, %v4710
    %v5999 = vpack.c.b16 %v4719, %v4711
    %v6000 = vpack.c.b16 %v4720, %v4712
    %v6001 = vpack.c.b16 %v4721, %v4713
    %v6002 = vpack.c.b16 %v4722, %v4714
    %v6003 = vpack.c.b16 %v4731, %v4723
    %v6004 = vpack.c.b16 %v4732, %v4724
    %v6005 = vpack.c.b16 %v4733, %v4725
    %v6006 = vpack.c.b16 %v4734, %v4726
    %v6007 = vpack.c.b16 %v4735, %v4727
    %v6008 = vpack.c.b16 %v4736, %v4728
    %v6009 = vpack.c.b16 %v4737, %v4729
    %v6010 = vpack.c.b16 %v4738, %v4730
    %v6011 = vpack.c.b16 %v4747, %v4739
    %v6012 = vpack.c.b16 %v4748, %v4740
    %v6013 = vpack.c.b16 %v4749, %v4741
    %v6014 = vpack.c.b16 %v4750, %v4742
    %v6015 = vpack.c.b16 %v4751, %v4743
    %v6016 = vpack.c.b16 %v4752, %v4744
    %v6017 = vpack.c.b16 %v4753, %v4745
    %v6018 = vpack.c.b16 %v4754, %v4746
    %v6019 = vpack.c.b16 %v4763, %v4755
    %v6020 = vpack.c.b16 %v4764, %v4756
    %v6021 = vpack.c.b16 %v4765, %v4757
    %v6022 = vpack.c.b16 %v4766, %v4758
    %v6023 = vpack.c.b16 %v4767, %v4759
    %v6024 = vpack.c.b16 %v4768, %v4760
    %v6025 = vpack.c.b16 %v4769, %v4761
    %v6026 = vpack.c.b16 %v4770, %v4762
    %v6027 = vpack.c.b16 %v4779, %v4771
    %v6028 = vpack.c.b16 %v4780, %v4772
    %v6029 = vpack.c.b16 %v4781, %v4773
    %v6030 = vpack.c.b16 %v4782, %v4774
    %v6031 = vpack.c.b16 %v4783, %v4775
    %v6032 = vpack.c.b16 %v4784, %v4776
    %v6033 = vpack.c.b16 %v4785, %v4777
    %v6034 = vpack.c.b16 %v4786, %v4778
    %v6035 = vpack.c.b16 %v4795, %v4787
    %v6036 = vpack.c.b16 %v4796, %v4788
    %v6037 = vpack.c.b16 %v4797, %v4789
    %v6038 = vpack.c.b16 %v4798, %v4790
    %v6039 = vpack.c.b16 %v4799, %v4791
    %v6040 = vpack.c.b16 %v4800, %v4792
    %v6041 = vpack.c.b16 %v4801, %v4793
    %v6042 = vpack.c.b16 %v4802, %v4794
    %v6043 = vpack.c.b16 %v4811, %v4803
    %v6044 = vpack.c.b16 %v4812, %v4804
    %v6045 = vpack.c.b16 %v4813, %v4805
    %v6046 = vpack.c.b16 %v4814, %v4806
    %v6047 = vpack.c.b16 %v4815, %v4807
    %v6048 = vpack.c.b16 %v4816, %v4808
    %v6049 = vpack.c.b16 %v4817, %v4809
    %v6050 = vpack.c.b16 %v4818, %v4810
    %v6051 = vpack.c.b16 %v4827, %v4819
    %v6052 = vpack.c.b16 %v4828, %v4820
    %v6053 = vpack.c.b16 %v4829, %v4821
    %v6054 = vpack.c.b16 %v4830, %v4822
    %v6055 = vpack.c.b16 %v4831, %v4823
    %v6056 = vpack.c.b16 %v4832, %v4824
    %v6057 = vpack.c.b16 %v4833, %v4825
    %v6058 = vpack.c.b16 %v4834, %v4826
    %v6059 = vpack.c.b16 %v4843, %v4835
    %v6060 = vpack.c.b16 %v4844, %v4836
    %v6061 = vpack.c.b16 %v4845, %v4837
    %v6062 = vpack.c.b16 %v4846, %v4838
    %v6063 = vpack.c.b16 %v4847, %v4839
    %v6064 = vpack.c.b16 %v4848, %v4840
    %v6065 = vpack.c.b16 %v4849, %v4841
    %v6066 = vpack.c.b16 %v4850, %v4842
    %v6067 = vpack.c.b16 %v4859, %v4851
    %v6068 = vpack.c.b16 %v4860, %v4852
    %v6069 = vpack.c.b16 %v4861, %v4853
    %v6070 = vpack.c.b16 %v4862, %v4854
    %v6071 = vpack.c.b16 %v4863, %v4855
    %v6072 = vpack.c.b16 %v4864, %v4856
    %v6073 = vpack.c.b16 %v4865, %v4857
    %v6074 = vpack.c.b16 %v4866, %v4858
    %v6075 = vpack.c.b16 %v4875, %v4867
    %v6076 = vpack.c.b16 %v4876, %v4868
    %v6077 = vpack.c.b16 %v4877, %v4869
    %v6078 = vpack.c.b16 %v4878, %v4870
    %v6079 = vpack.c.b16 %v4879, %v4871
    %v6080 = vpack.c.b16 %v4880, %v4872
    %v6081 = vpack.c.b16 %v4881, %v4873
    %v6082 = vpack.c.b16 %v4882, %v4874
    %v6083 = vpack.c.b16 %v4891, %v4883
    %v6084 = vpack.c.b16 %v4892, %v4884
    %v6085 = vpack.c.b16 %v4893, %v4885
    %v6086 = vpack.c.b16 %v4894, %v4886
    %v6087 = vpack.c.b16 %v4895, %v4887
    %v6088 = vpack.c.b16 %v4896, %v4888
    %v6089 = vpack.c.b16 %v4897, %v4889
    %v6090 = vpack.c.b16 %v4898, %v4890
    %v6091 = vpack.c.b16 %v4907, %v4899
    %v6092 = vpack.c.b16 %v4908, %v4900
    %v6093 = vpack.c.b16 %v4909, %v4901
    %v6094 = vpack.c.b16 %v4910, %v4902
    %v6095 = vpack.c.b16 %v4911, %v4903
    %v6096 = vpack.c.b16 %v4912, %v4904
    %v6097 = vpack.c.b16 %v4913, %v4905
    %v6098 = vpack.c.b16 %v4914, %v4906
    %v6099 = vpack.c.b16 %v4923, %v4915
    %v6100 = vpack.c.b16 %v4924, %v4916
    %v6101 = vpack.c.b16 %v4925, %v4917
    %v6102 = vpack.c.b16 %v4926, %v4918
    %v6103 = vpack.c.b16 %v4927, %v4919
    %v6104 = vpack.c.b16 %v4928, %v4920
    %v6105 = vpack.c.b16 %v4929, %v4921
    %v6106 = vpack.c.b16 %v4930, %v4922
    %v6107 = vpack.c.b16 %v4939, %v4931
    %v6108 = vpack.c.b16 %v4940, %v4932
    %v6109 = vpack.c.b16 %v4941, %v4933
    %v6110 = vpack.c.b16 %v4942, %v4934
    %v6111 = vpack.c.b16 %v4943, %v4935
    %v6112 = vpack.c.b16 %v4944, %v4936
    %v6113 = vpack.c.b16 %v4945, %v4937
    %v6114 = vpack.c.b16 %v4946, %v4938
    %v6115 = vpack.c.b16 %v4955, %v4947
    %v6116 = vpack.c.b16 %v4956, %v4948
    %v6117 = vpack.c.b16 %v4957, %v4949
    %v6118 = vpack.c.b16 %v4958, %v4950
    %v6119 = vpack.c.b16 %v4959, %v4951
    %v6120 = vpack.c.b16 %v4960, %v4952
    %v6121 = vpack.c.b16 %v4961, %v4953
    %v6122 = vpack.c.b16 %v4962, %v4954
    %v6123 = vpack.c.b16 %v4971, %v4963
    %v6124 = vpack.c.b16 %v4972, %v4964
    %v6125 = vpack.c.b16 %v4973, %v4965
    %v6126 = vpack.c.b16 %v4974, %v4966
    %v6127 = vpack.c.b16 %v4975, %v4967
    %v6128 = vpack.c.b16 %v4976, %v4968
    %v6129 = vpack.c.b16 %v4977, %v4969
    %v6130 = vpack.c.b16 %v4978, %v4970
    %v6131 = vpack.c.b16 %v4987, %v4979
    %v6132 = vpack.c.b16 %v4988, %v4980
    %v6133 = vpack.c.b16 %v4989, %v4981
    %v6134 = vpack.c.b16 %v4990, %v4982
    %v6135 = vpack.c.b16 %v4991, %v4983
    %v6136 = vpack.c.b16 %v4992, %v4984
    %v6137 = vpack.c.b16 %v4993, %v4985
    %v6138 = vpack.c.b16 %v4994, %v4986
    %v6139 = vpack.c.b16 %v5003, %v4995
    %v6140 = vpack.c.b16 %v5004, %v4996
    %v6141 = vpack.c.b16 %v5005, %v4997
    %v6142 = vpack.c.b16 %v5006, %v4998
    %v6143 = vpack.c.b16 %v5007, %v4999
    %v6144 = vpack.c.b16 %v5008, %v5000
    %v6145 = vpack.c.b16 %v5009, %v5001
    %v6146 = vpack.c.b16 %v5010, %v5002
    %v6147 = vpack.c.b16 %v5019, %v5011
    %v6148 = vpack.c.b16 %v5020, %v5012
    %v6149 = vpack.c.b16 %v5021, %v5013
    %v6150 = vpack.c.b16 %v5022, %v5014
    %v6151 = vpack.c.b16 %v5023, %v5015
    %v6152 = vpack.c.b16 %v5024, %v5016
    %v6153 = vpack.c.b16 %v5025, %v5017
    %v6154 = vpack.c.b16 %v5026, %v5018
    %v6155 = vpack.c.b16 %v5035, %v5027
    %v6156 = vpack.c.b16 %v5036, %v5028
    %v6157 = vpack.c.b16 %v5037, %v5029
    %v6158 = vpack.c.b16 %v5038, %v5030
    %v6159 = vpack.c.b16 %v5039, %v5031
    %v6160 = vpack.c.b16 %v5040, %v5032
    %v6161 = vpack.c.b16 %v5041, %v5033
    %v6162 = vpack.c.b16 %v5042, %v5034
    %v6163 = vpack.c.b16 %v5051, %v5043
    %v6164 = vpack.c.b16 %v5052, %v5044
    %v6165 = vpack.c.b16 %v5053, %v5045
    %v6166 = vpack.c.b16 %v5054, %v5046
    %v6167 = vpack.c.b16 %v5055, %v5047
    %v6168 = vpack.c.b16 %v5056, %v5048
    %v6169 = vpack.c.b16 %v5057, %v5049
    %v6170 = vpack.c.b16 %v5058, %v5050
    %v6171 = vpack.c.b16 %v5067, %v5059
    %v6172 = vpack.c.b16 %v5068, %v5060
    %v6173 = vpack.c.b16 %v5069, %v5061
    %v6174 = vpack.c.b16 %v5070, %v5062
    %v6175 = vpack.c.b16 %v5071, %v5063
    %v6176 = vpack.c.b16 %v5072, %v5064
    %v6177 = vpack.c.b16 %v5073, %v5065
    %v6178 = vpack.c.b16 %v5074, %v5066
    %v6179 = vpack.c.b16 %v5083, %v5075
    %v6180 = vpack.c.b16 %v5084, %v5076
    %v6181 = vpack.c.b16 %v5085, %v5077
    %v6182 = vpack.c.b16 %v5086, %v5078
    %v6183 = vpack.c.b16 %v5087, %v5079
    %v6184 = vpack.c.b16 %v5088, %v5080
    %v6185 = vpack.c.b16 %v5089, %v5081
    %v6186 = vpack.c.b16 %v5090, %v5082
    %v6187 = vpack.c.b16 %v5099, %v5091
    %v6188 = vpack.c.b16 %v5100, %v5092
    %v6189 = vpack.c.b16 %v5101, %v5093
    %v6190 = vpack.c.b16 %v5102, %v5094
    %v6191 = vpack.c.b16 %v5103, %v5095
    %v6192 = vpack.c.b16 %v5104, %v5096
    %v6193 = vpack.c.b16 %v5105, %v5097
    %v6194 = vpack.c.b16 %v5106, %v5098
    %v6195 = vpack.c.b16 %v5115, %v5107
    %v6196 = vpack.c.b16 %v5116, %v5108
    %v6197 = vpack.c.b16 %v5117, %v5109
    %v6198 = vpack.c.b16 %v5118, %v5110
    %v6199 = vpack.c.b16 %v5119, %v5111
    %v6200 = vpack.c.b16 %v5120, %v5112
    %v6201 = vpack.c.b16 %v5121, %v5113
    %v6202 = vpack.c.b16 %v5122, %v5114
    %v6203 = vpack.c.b16 %v5131, %v5123
    %v6204 = vpack.c.b16 %v5132, %v5124
    %v6205 = vpack.c.b16 %v5133, %v5125
    %v6206 = vpack.c.b16 %v5134, %v5126
    %v6207 = vpack.c.b16 %v5135, %v5127
    %v6208 = vpack.c.b16 %v5136, %v5128
    %v6209 = vpack.c.b16 %v5137, %v5129
    %v6210 = vpack.c.b16 %v5138, %v5130
    %v6211 = vpack.c.b16 %v5147, %v5139
    %v6212 = vpack.c.b16 %v5148, %v5140
    %v6213 = vpack.c.b16 %v5149, %v5141
    %v6214 = vpack.c.b16 %v5150, %v5142
    %v6215 = vpack.c.b16 %v5151, %v5143
    %v6216 = vpack.c.b16 %v5152, %v5144
    %v6217 = vpack.c.b16 %v5153, %v5145
    %v6218 = vpack.c.b16 %v5154, %v5146
    %v6219 = vpack.c.b16 %v5163, %v5155
    %v6220 = vpack.c.b16 %v5164, %v5156
    %v6221 = vpack.c.b16 %v5165, %v5157
    %v6222 = vpack.c.b16 %v5166, %v5158
    %v6223 = vpack.c.b16 %v5167, %v5159
    %v6224 = vpack.c.b16 %v5168, %v5160
    %v6225 = vpack.c.b16 %v5169, %v5161
    %v6226 = vpack.c.b16 %v5170, %v5162
    %v6227 = vpack.c.b16 %v5179, %v5171
    %v6228 = vpack.c.b16 %v5180, %v5172
    %v6229 = vpack.c.b16 %v5181, %v5173
    %v6230 = vpack.c.b16 %v5182, %v5174
    %v6231 = vpack.c.b16 %v5183, %v5175
    %v6232 = vpack.c.b16 %v5184, %v5176
    %v6233 = vpack.c.b16 %v5185, %v5177
    %v6234 = vpack.c.b16 %v5186, %v5178
    %v6235 = vpack.c.b16 %v5195, %v5187
    %v6236 = vpack.c.b16 %v5196, %v5188
    %v6237 = vpack.c.b16 %v5197, %v5189
    %v6238 = vpack.c.b16 %v5198, %v5190
    %v6239 = vpack.c.b16 %v5199, %v5191
    %v6240 = vpack.c.b16 %v5200, %v5192
    %v6241 = vpack.c.b16 %v5201, %v5193
    %v6242 = vpack.c.b16 %v5202, %v5194
    %v6243 = vpack.c.b16 %v5211, %v5203
    %v6244 = vpack.c.b16 %v5212, %v5204
    %v6245 = vpack.c.b16 %v5213, %v5205
    %v6246 = vpack.c.b16 %v5214, %v5206
    %v6247 = vpack.c.b16 %v5215, %v5207
    %v6248 = vpack.c.b16 %v5216, %v5208
    %v6249 = vpack.c.b16 %v5217, %v5209
    %v6250 = vpack.c.b16 %v5218, %v5210
    %v6251 = vpack.c.b16 %v5227, %v5219
    %v6252 = vpack.c.b16 %v5228, %v5220
    %v6253 = vpack.c.b16 %v5229, %v5221
    %v6254 = vpack.c.b16 %v5230, %v5222
    %v6255 = vpack.c.b16 %v5231, %v5223
    %v6256 = vpack.c.b16 %v5232, %v5224
    %v6257 = vpack.c.b16 %v5233, %v5225
    %v6258 = vpack.c.b16 %v5234, %v5226
    %7283 = vmatprep.subr.bf16.mxu0 %v5236
    %7284 = vmatpush1.bf16.msra.mxu0 %v5235
    %7285 = vmatprep.subr.bf16.mxu0 %v5244
    %7286 = vmatpush1.bf16.msra.mxu0 %v5243
    %7287 = vmatprep.subr.bf16.mxu0 %v5252
    %7288 = vmatpush1.bf16.msra.mxu0 %v5251
    %7289 = vmatprep.subr.bf16.mxu0 %v5260
    %7290 = vmatpush1.bf16.msra.mxu0 %v5259
    %7291 = vmatprep.subr.bf16.mxu0 %v5268
    %7292 = vmatpush1.bf16.msra.mxu0 %v5267
    %7293 = vmatprep.subr.bf16.mxu0 %v5276
    %7294 = vmatpush1.bf16.msra.mxu0 %v5275
    %7295 = vmatprep.subr.bf16.mxu0 %v5284
    %7296 = vmatpush1.bf16.msra.mxu0 %v5283
    %7297 = vmatprep.subr.bf16.mxu0 %v5292
    %7298 = vmatpush1.bf16.msra.mxu0 %v5291
    %7299 = vmatprep.subr.bf16.mxu0 %v5300
    %7300 = vmatpush1.bf16.msra.mxu0 %v5299
    %7301 = vmatprep.subr.bf16.mxu0 %v5308
    %7302 = vmatpush1.bf16.msra.mxu0 %v5307
    %7303 = vmatprep.subr.bf16.mxu0 %v5316
    %7304 = vmatpush1.bf16.msra.mxu0 %v5315
    %7305 = vmatprep.subr.bf16.mxu0 %v5324
    %7306 = vmatpush1.bf16.msra.mxu0 %v5323
    %7307 = vmatprep.subr.bf16.mxu0 %v5332
    %7308 = vmatpush1.bf16.msra.mxu0 %v5331
    %7309 = vmatprep.subr.bf16.mxu0 %v5340
    %7310 = vmatpush1.bf16.msra.mxu0 %v5339
    %7311 = vmatprep.subr.bf16.mxu0 %v5348
    %7312 = vmatpush1.bf16.msra.mxu0 %v5347
    %7313 = vmatprep.subr.bf16.mxu0 %v5356
    %7314 = vmatpush1.bf16.msra.mxu0 %v5355
    %7315 = vmatprep.mubr.bf16.mxu0 %v2107
    %7316 = vmatmul.mubr.bf16.gmra.mrb[0].mxu0 %v2106
    %v7317 = vpop.f32.mrb[0].mxu0
    %v7318 = vadd.f32 %v2126, %v7317
    %v7319 = vpop.f32.mrb[0].mxu0
    %v7320 = vadd.f32 %v2130, %v7319
    %v7321 = vpop.f32.mrb[0].mxu0
    %v7322 = vpop.f32.mrb[0].mxu0
    %7323 = vdwg.mxu0
    %7324 = vmatprep.subr.bf16.mxu0 %v5364
    %7325 = vmatpush1.bf16.msra.mxu0 %v5363
    %7326 = vmatprep.subr.bf16.mxu0 %v5372
    %7327 = vmatpush1.bf16.msra.mxu0 %v5371
    %7328 = vmatprep.subr.bf16.mxu0 %v5380
    %7329 = vmatpush1.bf16.msra.mxu0 %v5379
    %7330 = vmatprep.subr.bf16.mxu0 %v5388
    %7331 = vmatpush1.bf16.msra.mxu0 %v5387
    %7332 = vmatprep.subr.bf16.mxu0 %v5396
    %7333 = vmatpush1.bf16.msra.mxu0 %v5395
    %7334 = vmatprep.subr.bf16.mxu0 %v5404
    %7335 = vmatpush1.bf16.msra.mxu0 %v5403
    %7336 = vmatprep.subr.bf16.mxu0 %v5412
    %7337 = vmatpush1.bf16.msra.mxu0 %v5411
    %7338 = vmatprep.subr.bf16.mxu0 %v5420
    %7339 = vmatpush1.bf16.msra.mxu0 %v5419
    %7340 = vmatprep.subr.bf16.mxu0 %v5428
    %7341 = vmatpush1.bf16.msra.mxu0 %v5427
    %7342 = vmatprep.subr.bf16.mxu0 %v5436
    %7343 = vmatpush1.bf16.msra.mxu0 %v5435
    %7344 = vmatprep.subr.bf16.mxu0 %v5444
    %7345 = vmatpush1.bf16.msra.mxu0 %v5443
    %7346 = vmatprep.subr.bf16.mxu0 %v5452
    %7347 = vmatpush1.bf16.msra.mxu0 %v5451
    %7348 = vmatprep.subr.bf16.mxu0 %v5460
    %7349 = vmatpush1.bf16.msra.mxu0 %v5459
    %7350 = vmatprep.subr.bf16.mxu0 %v5468
    %7351 = vmatpush1.bf16.msra.mxu0 %v5467
    %7352 = vmatprep.subr.bf16.mxu0 %v5476
    %7353 = vmatpush1.bf16.msra.mxu0 %v5475
    %7354 = vmatprep.subr.bf16.mxu0 %v5484
    %7355 = vmatpush1.bf16.msra.mxu0 %v5483
    %7356 = vmatprep.mubr.bf16.mxu0 %v2109
    %7357 = vmatmul.mubr.bf16.gmra.mrb[0].mxu0 %v2108
    %v7358 = vpop.f32.mrb[0].mxu0
    %v7359 = vadd.f32 %v7318, %v7358
    %v7360 = vpop.f32.mrb[0].mxu0
    %v7361 = vadd.f32 %v7320, %v7360
    %v7362 = vpop.f32.mrb[0].mxu0
    %v7363 = vpop.f32.mrb[0].mxu0
    %7364 = vdwg.mxu0
    %7365 = vmatprep.subr.bf16.mxu0 %v5492
    %7366 = vmatpush1.bf16.msra.mxu0 %v5491
    %7367 = vmatprep.subr.bf16.mxu0 %v5500
    %7368 = vmatpush1.bf16.msra.mxu0 %v5499
    %7369 = vmatprep.subr.bf16.mxu0 %v5508
    %7370 = vmatpush1.bf16.msra.mxu0 %v5507
    %7371 = vmatprep.subr.bf16.mxu0 %v5516
    %7372 = vmatpush1.bf16.msra.mxu0 %v5515
    %7373 = vmatprep.subr.bf16.mxu0 %v5524
    %7374 = vmatpush1.bf16.msra.mxu0 %v5523
    %7375 = vmatprep.subr.bf16.mxu0 %v5532
    %7376 = vmatpush1.bf16.msra.mxu0 %v5531
    %7377 = vmatprep.subr.bf16.mxu0 %v5540
    %7378 = vmatpush1.bf16.msra.mxu0 %v5539
    %7379 = vmatprep.subr.bf16.mxu0 %v5548
    %7380 = vmatpush1.bf16.msra.mxu0 %v5547
    %7381 = vmatprep.subr.bf16.mxu0 %v5556
    %7382 = vmatpush1.bf16.msra.mxu0 %v5555
    %7383 = vmatprep.subr.bf16.mxu0 %v5564
    %7384 = vmatpush1.bf16.msra.mxu0 %v5563
    %7385 = vmatprep.subr.bf16.mxu0 %v5572
    %7386 = vmatpush1.bf16.msra.mxu0 %v5571
    %7387 = vmatprep.subr.bf16.mxu0 %v5580
    %7388 = vmatpush1.bf16.msra.mxu0 %v5579
    %7389 = vmatprep.subr.bf16.mxu0 %v5588
    %7390 = vmatpush1.bf16.msra.mxu0 %v5587
    %7391 = vmatprep.subr.bf16.mxu0 %v5596
    %7392 = vmatpush1.bf16.msra.mxu0 %v5595
    %7393 = vmatprep.subr.bf16.mxu0 %v5604
    %7394 = vmatpush1.bf16.msra.mxu0 %v5603
    %7395 = vmatprep.subr.bf16.mxu0 %v5612
    %7396 = vmatpush1.bf16.msra.mxu0 %v5611
    %7397 = vmatprep.mubr.bf16.mxu0 %v2111
    %7398 = vmatmul.mubr.bf16.gmra.mrb[0].mxu0 %v2110
    %v7399 = vpop.f32.mrb[0].mxu0
    %v7400 = vadd.f32 %v7359, %v7399
    %v7401 = vpop.f32.mrb[0].mxu0
    %v7402 = vadd.f32 %v7361, %v7401
    %v7403 = vpop.f32.mrb[0].mxu0
    %v7404 = vpop.f32.mrb[0].mxu0
    %7405 = vdwg.mxu0
    %7406 = vmatprep.subr.bf16.mxu0 %v5620
    %7407 = vmatpush1.bf16.msra.mxu0 %v5619
    %7408 = vmatprep.subr.bf16.mxu0 %v5628
    %7409 = vmatpush1.bf16.msra.mxu0 %v5627
    %7410 = vmatprep.subr.bf16.mxu0 %v5636
    %7411 = vmatpush1.bf16.msra.mxu0 %v5635
    %7412 = vmatprep.subr.bf16.mxu0 %v5644
    %7413 = vmatpush1.bf16.msra.mxu0 %v5643
    %7414 = vmatprep.subr.bf16.mxu0 %v5652
    %7415 = vmatpush1.bf16.msra.mxu0 %v5651
    %7416 = vmatprep.subr.bf16.mxu0 %v5660
    %7417 = vmatpush1.bf16.msra.mxu0 %v5659
    %7418 = vmatprep.subr.bf16.mxu0 %v5668
    %7419 = vmatpush1.bf16.msra.mxu0 %v5667
    %7420 = vmatprep.subr.bf16.mxu0 %v5676
    %7421 = vmatpush1.bf16.msra.mxu0 %v5675
    %7422 = vmatprep.subr.bf16.mxu0 %v5684
    %7423 = vmatpush1.bf16.msra.mxu0 %v5683
    %7424 = vmatprep.subr.bf16.mxu0 %v5692
    %7425 = vmatpush1.bf16.msra.mxu0 %v5691
    %7426 = vmatprep.subr.bf16.mxu0 %v5700
    %7427 = vmatpush1.bf16.msra.mxu0 %v5699
    %7428 = vmatprep.subr.bf16.mxu0 %v5708
    %7429 = vmatpush1.bf16.msra.mxu0 %v5707
    %7430 = vmatprep.subr.bf16.mxu0 %v5716
    %7431 = vmatpush1.bf16.msra.mxu0 %v5715
    %7432 = vmatprep.subr.bf16.mxu0 %v5724
    %7433 = vmatpush1.bf16.msra.mxu0 %v5723
    %7434 = vmatprep.subr.bf16.mxu0 %v5732
    %7435 = vmatpush1.bf16.msra.mxu0 %v5731
    %7436 = vmatprep.subr.bf16.mxu0 %v5740
    %7437 = vmatpush1.bf16.msra.mxu0 %v5739
    %7438 = vmatprep.mubr.bf16.mxu0 %v2113
    %7439 = vmatmul.mubr.bf16.gmra.mrb[0].mxu0 %v2112
    %v7440 = vpop.f32.mrb[0].mxu0
    %v7441 = vadd.f32 %v7400, %v7440
    %v7442 = vpop.f32.mrb[0].mxu0
    %v7443 = vadd.f32 %v7402, %v7442
    %v7444 = vpop.f32.mrb[0].mxu0
    %v7445 = vpop.f32.mrb[0].mxu0
    %7446 = vdwg.mxu0
    %7447 = vmatprep.subr.bf16.mxu0 %v5748
    %7448 = vmatpush1.bf16.msra.mxu0 %v5747
    %7449 = vmatprep.subr.bf16.mxu0 %v5756
    %7450 = vmatpush1.bf16.msra.mxu0 %v5755
    %7451 = vmatprep.subr.bf16.mxu0 %v5764
    %7452 = vmatpush1.bf16.msra.mxu0 %v5763
    %7453 = vmatprep.subr.bf16.mxu0 %v5772
    %7454 = vmatpush1.bf16.msra.mxu0 %v5771
    %7455 = vmatprep.subr.bf16.mxu0 %v5780
    %7456 = vmatpush1.bf16.msra.mxu0 %v5779
    %7457 = vmatprep.subr.bf16.mxu0 %v5788
    %7458 = vmatpush1.bf16.msra.mxu0 %v5787
    %7459 = vmatprep.subr.bf16.mxu0 %v5796
    %7460 = vmatpush1.bf16.msra.mxu0 %v5795
    %7461 = vmatprep.subr.bf16.mxu0 %v5804
    %7462 = vmatpush1.bf16.msra.mxu0 %v5803
    %7463 = vmatprep.subr.bf16.mxu0 %v5812
    %7464 = vmatpush1.bf16.msra.mxu0 %v5811
    %7465 = vmatprep.subr.bf16.mxu0 %v5820
    %7466 = vmatpush1.bf16.msra.mxu0 %v5819
    %7467 = vmatprep.subr.bf16.mxu0 %v5828
    %7468 = vmatpush1.bf16.msra.mxu0 %v5827
    %7469 = vmatprep.subr.bf16.mxu0 %v5836
    %7470 = vmatpush1.bf16.msra.mxu0 %v5835
    %7471 = vmatprep.subr.bf16.mxu0 %v5844
    %7472 = vmatpush1.bf16.msra.mxu0 %v5843
    %7473 = vmatprep.subr.bf16.mxu0 %v5852
    %7474 = vmatpush1.bf16.msra.mxu0 %v5851
    %7475 = vmatprep.subr.bf16.mxu0 %v5860
    %7476 = vmatpush1.bf16.msra.mxu0 %v5859
    %7477 = vmatprep.subr.bf16.mxu0 %v5868
    %7478 = vmatpush1.bf16.msra.mxu0 %v5867
    %7479 = vmatprep.mubr.bf16.mxu0 %v2115
    %7480 = vmatmul.mubr.bf16.gmra.mrb[0].mxu0 %v2114
    %v7481 = vpop.f32.mrb[0].mxu0
    %v7482 = vadd.f32 %v7441, %v7481
    %v7483 = vpop.f32.mrb[0].mxu0
    %v7484 = vadd.f32 %v7443, %v7483
    %v7485 = vpop.f32.mrb[0].mxu0
    %v7486 = vpop.f32.mrb[0].mxu0
    %7487 = vdwg.mxu0
    %7488 = vmatprep.subr.bf16.mxu0 %v5876
    %7489 = vmatpush1.bf16.msra.mxu0 %v5875
    %7490 = vmatprep.subr.bf16.mxu0 %v5884
    %7491 = vmatpush1.bf16.msra.mxu0 %v5883
    %7492 = vmatprep.subr.bf16.mxu0 %v5892
    %7493 = vmatpush1.bf16.msra.mxu0 %v5891
    %7494 = vmatprep.subr.bf16.mxu0 %v5900
    %7495 = vmatpush1.bf16.msra.mxu0 %v5899
    %7496 = vmatprep.subr.bf16.mxu0 %v5908
    %7497 = vmatpush1.bf16.msra.mxu0 %v5907
    %7498 = vmatprep.subr.bf16.mxu0 %v5916
    %7499 = vmatpush1.bf16.msra.mxu0 %v5915
    %7500 = vmatprep.subr.bf16.mxu0 %v5924
    %7501 = vmatpush1.bf16.msra.mxu0 %v5923
    %7502 = vmatprep.subr.bf16.mxu0 %v5932
    %7503 = vmatpush1.bf16.msra.mxu0 %v5931
    %7504 = vmatprep.subr.bf16.mxu0 %v5940
    %7505 = vmatpush1.bf16.msra.mxu0 %v5939
    %7506 = vmatprep.subr.bf16.mxu0 %v5948
    %7507 = vmatpush1.bf16.msra.mxu0 %v5947
    %7508 = vmatprep.subr.bf16.mxu0 %v5956
    %7509 = vmatpush1.bf16.msra.mxu0 %v5955
    %7510 = vmatprep.subr.bf16.mxu0 %v5964
    %7511 = vmatpush1.bf16.msra.mxu0 %v5963
    %7512 = vmatprep.subr.bf16.mxu0 %v5972
    %7513 = vmatpush1.bf16.msra.mxu0 %v5971
    %7514 = vmatprep.subr.bf16.mxu0 %v5980
    %7515 = vmatpush1.bf16.msra.mxu0 %v5979
    %7516 = vmatprep.subr.bf16.mxu0 %v5988
    %7517 = vmatpush1.bf16.msra.mxu0 %v5987
    %7518 = vmatprep.subr.bf16.mxu0 %v5996
    %7519 = vmatpush1.bf16.msra.mxu0 %v5995
    %7520 = vmatprep.mubr.bf16.mxu0 %v2117
    %7521 = vmatmul.mubr.bf16.gmra.mrb[0].mxu0 %v2116
    %v7522 = vpop.f32.mrb[0].mxu0
    %v7523 = vadd.f32 %v7482, %v7522
    %v7524 = vpop.f32.mrb[0].mxu0
    %v7525 = vadd.f32 %v7484, %v7524
    %v7526 = vpop.f32.mrb[0].mxu0
    %v7527 = vpop.f32.mrb[0].mxu0
    %7528 = vdwg.mxu0
    %7529 = vmatprep.subr.bf16.mxu0 %v6004
    %7530 = vmatpush1.bf16.msra.mxu0 %v6003
    %7531 = vmatprep.subr.bf16.mxu0 %v6012
    %7532 = vmatpush1.bf16.msra.mxu0 %v6011
    %7533 = vmatprep.subr.bf16.mxu0 %v6020
    %7534 = vmatpush1.bf16.msra.mxu0 %v6019
    %7535 = vmatprep.subr.bf16.mxu0 %v6028
    %7536 = vmatpush1.bf16.msra.mxu0 %v6027
    %7537 = vmatprep.subr.bf16.mxu0 %v6036
    %7538 = vmatpush1.bf16.msra.mxu0 %v6035
    %7539 = vmatprep.subr.bf16.mxu0 %v6044
    %7540 = vmatpush1.bf16.msra.mxu0 %v6043
    %7541 = vmatprep.subr.bf16.mxu0 %v6052
    %7542 = vmatpush1.bf16.msra.mxu0 %v6051
    %7543 = vmatprep.subr.bf16.mxu0 %v6060
    %7544 = vmatpush1.bf16.msra.mxu0 %v6059
    %7545 = vmatprep.subr.bf16.mxu0 %v6068
    %7546 = vmatpush1.bf16.msra.mxu0 %v6067
    %7547 = vmatprep.subr.bf16.mxu0 %v6076
    %7548 = vmatpush1.bf16.msra.mxu0 %v6075
    %7549 = vmatprep.subr.bf16.mxu0 %v6084
    %7550 = vmatpush1.bf16.msra.mxu0 %v6083
    %7551 = vmatprep.subr.bf16.mxu0 %v6092
    %7552 = vmatpush1.bf16.msra.mxu0 %v6091
    %7553 = vmatprep.subr.bf16.mxu0 %v6100
    %7554 = vmatpush1.bf16.msra.mxu0 %v6099
    %7555 = vmatprep.subr.bf16.mxu0 %v6108
    %7556 = vmatpush1.bf16.msra.mxu0 %v6107
    %7557 = vmatprep.subr.bf16.mxu0 %v6116
    %7558 = vmatpush1.bf16.msra.mxu0 %v6115
    %7559 = vmatprep.subr.bf16.mxu0 %v6124
    %7560 = vmatpush1.bf16.msra.mxu0 %v6123
    %7561 = vmatprep.mubr.bf16.mxu0 %v2119
    %7562 = vmatmul.mubr.bf16.gmra.mrb[0].mxu0 %v2118
    %v7563 = vpop.f32.mrb[0].mxu0
    %v7564 = vadd.f32 %v7523, %v7563
    %v7565 = vpop.f32.mrb[0].mxu0
    %v7566 = vadd.f32 %v7525, %v7565
    %v7567 = vpop.f32.mrb[0].mxu0
    %v7568 = vpop.f32.mrb[0].mxu0
    %7569 = vdwg.mxu0
    %7570 = vmatprep.subr.bf16.mxu0 %v6132
    %7571 = vmatpush1.bf16.msra.mxu0 %v6131
    %7572 = vmatprep.subr.bf16.mxu0 %v6140
    %7573 = vmatpush1.bf16.msra.mxu0 %v6139
    %7574 = vmatprep.subr.bf16.mxu0 %v6148
    %7575 = vmatpush1.bf16.msra.mxu0 %v6147
    %7576 = vmatprep.subr.bf16.mxu0 %v6156
    %7577 = vmatpush1.bf16.msra.mxu0 %v6155
    %7578 = vmatprep.subr.bf16.mxu0 %v6164
    %7579 = vmatpush1.bf16.msra.mxu0 %v6163
    %7580 = vmatprep.subr.bf16.mxu0 %v6172
    %7581 = vmatpush1.bf16.msra.mxu0 %v6171
    %7582 = vmatprep.subr.bf16.mxu0 %v6180
    %7583 = vmatpush1.bf16.msra.mxu0 %v6179
    %7584 = vmatprep.subr.bf16.mxu0 %v6188
    %7585 = vmatpush1.bf16.msra.mxu0 %v6187
    %7586 = vmatprep.subr.bf16.mxu0 %v6196
    %7587 = vmatpush1.bf16.msra.mxu0 %v6195
    %7588 = vmatprep.subr.bf16.mxu0 %v6204
    %7589 = vmatpush1.bf16.msra.mxu0 %v6203
    %7590 = vmatprep.subr.bf16.mxu0 %v6212
    %7591 = vmatpush1.bf16.msra.mxu0 %v6211
    %7592 = vmatprep.subr.bf16.mxu0 %v6220
    %7593 = vmatpush1.bf16.msra.mxu0 %v6219
    %7594 = vmatprep.subr.bf16.mxu0 %v6228
    %7595 = vmatpush1.bf16.msra.mxu0 %v6227
    %7596 = vmatprep.subr.bf16.mxu0 %v6236
    %7597 = vmatpush1.bf16.msra.mxu0 %v6235
    %7598 = vmatprep.subr.bf16.mxu0 %v6244
    %7599 = vmatpush1.bf16.msra.mxu0 %v6243
    %7600 = vmatprep.subr.bf16.mxu0 %v6252
    %7601 = vmatpush1.bf16.msra.mxu0 %v6251
    %7602 = vmatprep.mubr.bf16.mxu0 %v2121
    %7603 = vmatmul.mubr.bf16.gmra.mrb[0].mxu0 %v2120
    %v7604 = vpop.f32.mrb[0].mxu0
    %v7605 = vadd.f32 %v7564, %v7604
    %v7606 = vpop.f32.mrb[0].mxu0
    %v7607 = vadd.f32 %v7566, %v7606
    %v7608 = vpop.f32.mrb[0].mxu0
    %v7609 = vpop.f32.mrb[0].mxu0
    %7610 = vdwg.mxu0
    %7611 = vmatprep.subr.bf16.mxu0 %v5238
    %7612 = vmatpush1.bf16.msra.mxu0 %v5237
    %7613 = vmatprep.subr.bf16.mxu0 %v5246
    %7614 = vmatpush1.bf16.msra.mxu0 %v5245
    %7615 = vmatprep.subr.bf16.mxu0 %v5254
    %7616 = vmatpush1.bf16.msra.mxu0 %v5253
    %7617 = vmatprep.subr.bf16.mxu0 %v5262
    %7618 = vmatpush1.bf16.msra.mxu0 %v5261
    %7619 = vmatprep.subr.bf16.mxu0 %v5270
    %7620 = vmatpush1.bf16.msra.mxu0 %v5269
    %7621 = vmatprep.subr.bf16.mxu0 %v5278
    %7622 = vmatpush1.bf16.msra.mxu0 %v5277
    %7623 = vmatprep.subr.bf16.mxu0 %v5286
    %7624 = vmatpush1.bf16.msra.mxu0 %v5285
    %7625 = vmatprep.subr.bf16.mxu0 %v5294
    %7626 = vmatpush1.bf16.msra.mxu0 %v5293
    %7627 = vmatprep.subr.bf16.mxu0 %v5302
    %7628 = vmatpush1.bf16.msra.mxu0 %v5301
    %7629 = vmatprep.subr.bf16.mxu0 %v5310
    %7630 = vmatpush1.bf16.msra.mxu0 %v5309
    %7631 = vmatprep.subr.bf16.mxu0 %v5318
    %7632 = vmatpush1.bf16.msra.mxu0 %v5317
    %7633 = vmatprep.subr.bf16.mxu0 %v5326
    %7634 = vmatpush1.bf16.msra.mxu0 %v5325
    %7635 = vmatprep.subr.bf16.mxu0 %v5334
    %7636 = vmatpush1.bf16.msra.mxu0 %v5333
    %7637 = vmatprep.subr.bf16.mxu0 %v5342
    %7638 = vmatpush1.bf16.msra.mxu0 %v5341
    %7639 = vmatprep.subr.bf16.mxu0 %v5350
    %7640 = vmatpush1.bf16.msra.mxu0 %v5349
    %7641 = vmatprep.subr.bf16.mxu0 %v5358
    %7642 = vmatpush1.bf16.msra.mxu0 %v5357
    %7643 = vmatprep.mubr.bf16.mxu0 %v2107
    %7644 = vmatmul.mubr.bf16.gmra.mrb[0].mxu0 %v2106
    %v7645 = vpop.f32.mrb[0].mxu0
    %v7646 = vadd.f32 %v2134, %v7645
    %v7647 = vpop.f32.mrb[0].mxu0
    %v7648 = vadd.f32 %v2138, %v7647
    %v7649 = vpop.f32.mrb[0].mxu0
    %v7650 = vpop.f32.mrb[0].mxu0
    %7651 = vdwg.mxu0
    %7652 = vmatprep.subr.bf16.mxu0 %v5366
    %7653 = vmatpush1.bf16.msra.mxu0 %v5365
    %7654 = vmatprep.subr.bf16.mxu0 %v5374
    %7655 = vmatpush1.bf16.msra.mxu0 %v5373
    %7656 = vmatprep.subr.bf16.mxu0 %v5382
    %7657 = vmatpush1.bf16.msra.mxu0 %v5381
    %7658 = vmatprep.subr.bf16.mxu0 %v5390
    %7659 = vmatpush1.bf16.msra.mxu0 %v5389
    %7660 = vmatprep.subr.bf16.mxu0 %v5398
    %7661 = vmatpush1.bf16.msra.mxu0 %v5397
    %7662 = vmatprep.subr.bf16.mxu0 %v5406
    %7663 = vmatpush1.bf16.msra.mxu0 %v5405
    %7664 = vmatprep.subr.bf16.mxu0 %v5414
    %7665 = vmatpush1.bf16.msra.mxu0 %v5413
    %7666 = vmatprep.subr.bf16.mxu0 %v5422
    %7667 = vmatpush1.bf16.msra.mxu0 %v5421
    %7668 = vmatprep.subr.bf16.mxu0 %v5430
    %7669 = vmatpush1.bf16.msra.mxu0 %v5429
    %7670 = vmatprep.subr.bf16.mxu0 %v5438
    %7671 = vmatpush1.bf16.msra.mxu0 %v5437
    %7672 = vmatprep.subr.bf16.mxu0 %v5446
    %7673 = vmatpush1.bf16.msra.mxu0 %v5445
    %7674 = vmatprep.subr.bf16.mxu0 %v5454
    %7675 = vmatpush1.bf16.msra.mxu0 %v5453
    %7676 = vmatprep.subr.bf16.mxu0 %v5462
    %7677 = vmatpush1.bf16.msra.mxu0 %v5461
    %7678 = vmatprep.subr.bf16.mxu0 %v5470
    %7679 = vmatpush1.bf16.msra.mxu0 %v5469
    %7680 = vmatprep.subr.bf16.mxu0 %v5478
    %7681 = vmatpush1.bf16.msra.mxu0 %v5477
    %7682 = vmatprep.subr.bf16.mxu0 %v5486
    %7683 = vmatpush1.bf16.msra.mxu0 %v5485
    %7684 = vmatprep.mubr.bf16.mxu0 %v2109
    %7685 = vmatmul.mubr.bf16.gmra.mrb[0].mxu0 %v2108
    %v7686 = vpop.f32.mrb[0].mxu0
    %v7687 = vadd.f32 %v7646, %v7686
    %v7688 = vpop.f32.mrb[0].mxu0
    %v7689 = vadd.f32 %v7648, %v7688
    %v7690 = vpop.f32.mrb[0].mxu0
    %v7691 = vpop.f32.mrb[0].mxu0
    %7692 = vdwg.mxu0
    %7693 = vmatprep.subr.bf16.mxu0 %v5494
    %7694 = vmatpush1.bf16.msra.mxu0 %v5493
    %7695 = vmatprep.subr.bf16.mxu0 %v5502
    %7696 = vmatpush1.bf16.msra.mxu0 %v5501
    %7697 = vmatprep.subr.bf16.mxu0 %v5510
    %7698 = vmatpush1.bf16.msra.mxu0 %v5509
    %7699 = vmatprep.subr.bf16.mxu0 %v5518
    %7700 = vmatpush1.bf16.msra.mxu0 %v5517
    %7701 = vmatprep.subr.bf16.mxu0 %v5526
    %7702 = vmatpush1.bf16.msra.mxu0 %v5525
    %7703 = vmatprep.subr.bf16.mxu0 %v5534
    %7704 = vmatpush1.bf16.msra.mxu0 %v5533
    %7705 = vmatprep.subr.bf16.mxu0 %v5542
    %7706 = vmatpush1.bf16.msra.mxu0 %v5541
    %7707 = vmatprep.subr.bf16.mxu0 %v5550
    %7708 = vmatpush1.bf16.msra.mxu0 %v5549
    %7709 = vmatprep.subr.bf16.mxu0 %v5558
    %7710 = vmatpush1.bf16.msra.mxu0 %v5557
    %7711 = vmatprep.subr.bf16.mxu0 %v5566
    %7712 = vmatpush1.bf16.msra.mxu0 %v5565
    %7713 = vmatprep.subr.bf16.mxu0 %v5574
    %7714 = vmatpush1.bf16.msra.mxu0 %v5573
    %7715 = vmatprep.subr.bf16.mxu0 %v5582
    %7716 = vmatpush1.bf16.msra.mxu0 %v5581
    %7717 = vmatprep.subr.bf16.mxu0 %v5590
    %7718 = vmatpush1.bf16.msra.mxu0 %v5589
    %7719 = vmatprep.subr.bf16.mxu0 %v5598
    %7720 = vmatpush1.bf16.msra.mxu0 %v5597
    %7721 = vmatprep.subr.bf16.mxu0 %v5606
    %7722 = vmatpush1.bf16.msra.mxu0 %v5605
    %7723 = vmatprep.subr.bf16.mxu0 %v5614
    %7724 = vmatpush1.bf16.msra.mxu0 %v5613
    %7725 = vmatprep.mubr.bf16.mxu0 %v2111
    %7726 = vmatmul.mubr.bf16.gmra.mrb[0].mxu0 %v2110
    %v7727 = vpop.f32.mrb[0].mxu0
    %v7728 = vadd.f32 %v7687, %v7727
    %v7729 = vpop.f32.mrb[0].mxu0
    %v7730 = vadd.f32 %v7689, %v7729
    %v7731 = vpop.f32.mrb[0].mxu0
    %v7732 = vpop.f32.mrb[0].mxu0
    %7733 = vdwg.mxu0
    %7734 = vmatprep.subr.bf16.mxu0 %v5622
    %7735 = vmatpush1.bf16.msra.mxu0 %v5621
    %7736 = vmatprep.subr.bf16.mxu0 %v5630
    %7737 = vmatpush1.bf16.msra.mxu0 %v5629
    %7738 = vmatprep.subr.bf16.mxu0 %v5638
    %7739 = vmatpush1.bf16.msra.mxu0 %v5637
    %7740 = vmatprep.subr.bf16.mxu0 %v5646
    %7741 = vmatpush1.bf16.msra.mxu0 %v5645
    %7742 = vmatprep.subr.bf16.mxu0 %v5654
    %7743 = vmatpush1.bf16.msra.mxu0 %v5653
    %7744 = vmatprep.subr.bf16.mxu0 %v5662
    %7745 = vmatpush1.bf16.msra.mxu0 %v5661
    %7746 = vmatprep.subr.bf16.mxu0 %v5670
    %7747 = vmatpush1.bf16.msra.mxu0 %v5669
    %7748 = vmatprep.subr.bf16.mxu0 %v5678
    %7749 = vmatpush1.bf16.msra.mxu0 %v5677
    %7750 = vmatprep.subr.bf16.mxu0 %v5686
    %7751 = vmatpush1.bf16.msra.mxu0 %v5685
    %7752 = vmatprep.subr.bf16.mxu0 %v5694
    %7753 = vmatpush1.bf16.msra.mxu0 %v5693
    %7754 = vmatprep.subr.bf16.mxu0 %v5702
    %7755 = vmatpush1.bf16.msra.mxu0 %v5701
    %7756 = vmatprep.subr.bf16.mxu0 %v5710
    %7757 = vmatpush1.bf16.msra.mxu0 %v5709
    %7758 = vmatprep.subr.bf16.mxu0 %v5718
    %7759 = vmatpush1.bf16.msra.mxu0 %v5717
    %7760 = vmatprep.subr.bf16.mxu0 %v5726
    %7761 = vmatpush1.bf16.msra.mxu0 %v5725
    %7762 = vmatprep.subr.bf16.mxu0 %v5734
    %7763 = vmatpush1.bf16.msra.mxu0 %v5733
    %7764 = vmatprep.subr.bf16.mxu0 %v5742
    %7765 = vmatpush1.bf16.msra.mxu0 %v5741
    %7766 = vmatprep.mubr.bf16.mxu0 %v2113
    %7767 = vmatmul.mubr.bf16.gmra.mrb[0].mxu0 %v2112
    %v7768 = vpop.f32.mrb[0].mxu0
    %v7769 = vadd.f32 %v7728, %v7768
    %v7770 = vpop.f32.mrb[0].mxu0
    %v7771 = vadd.f32 %v7730, %v7770
    %v7772 = vpop.f32.mrb[0].mxu0
    %v7773 = vpop.f32.mrb[0].mxu0
    %7774 = vdwg.mxu0
    %7775 = vmatprep.subr.bf16.mxu0 %v5750
    %7776 = vmatpush1.bf16.msra.mxu0 %v5749
    %7777 = vmatprep.subr.bf16.mxu0 %v5758
    %7778 = vmatpush1.bf16.msra.mxu0 %v5757
    %7779 = vmatprep.subr.bf16.mxu0 %v5766
    %7780 = vmatpush1.bf16.msra.mxu0 %v5765
    %7781 = vmatprep.subr.bf16.mxu0 %v5774
    %7782 = vmatpush1.bf16.msra.mxu0 %v5773
    %7783 = vmatprep.subr.bf16.mxu0 %v5782
    %7784 = vmatpush1.bf16.msra.mxu0 %v5781
    %7785 = vmatprep.subr.bf16.mxu0 %v5790
    %7786 = vmatpush1.bf16.msra.mxu0 %v5789
    %7787 = vmatprep.subr.bf16.mxu0 %v5798
    %7788 = vmatpush1.bf16.msra.mxu0 %v5797
    %7789 = vmatprep.subr.bf16.mxu0 %v5806
    %7790 = vmatpush1.bf16.msra.mxu0 %v5805
    %7791 = vmatprep.subr.bf16.mxu0 %v5814
    %7792 = vmatpush1.bf16.msra.mxu0 %v5813
    %7793 = vmatprep.subr.bf16.mxu0 %v5822
    %7794 = vmatpush1.bf16.msra.mxu0 %v5821
    %7795 = vmatprep.subr.bf16.mxu0 %v5830
    %7796 = vmatpush1.bf16.msra.mxu0 %v5829
    %7797 = vmatprep.subr.bf16.mxu0 %v5838
    %7798 = vmatpush1.bf16.msra.mxu0 %v5837
    %7799 = vmatprep.subr.bf16.mxu0 %v5846
    %7800 = vmatpush1.bf16.msra.mxu0 %v5845
    %7801 = vmatprep.subr.bf16.mxu0 %v5854
    %7802 = vmatpush1.bf16.msra.mxu0 %v5853
    %7803 = vmatprep.subr.bf16.mxu0 %v5862
    %7804 = vmatpush1.bf16.msra.mxu0 %v5861
    %7805 = vmatprep.subr.bf16.mxu0 %v5870
    %7806 = vmatpush1.bf16.msra.mxu0 %v5869
    %7807 = vmatprep.mubr.bf16.mxu0 %v2115
    %7808 = vmatmul.mubr.bf16.gmra.mrb[0].mxu0 %v2114
    %v7809 = vpop.f32.mrb[0].mxu0
    %v7810 = vadd.f32 %v7769, %v7809
    %v7811 = vpop.f32.mrb[0].mxu0
    %v7812 = vadd.f32 %v7771, %v7811
    %v7813 = vpop.f32.mrb[0].mxu0
    %v7814 = vpop.f32.mrb[0].mxu0
    %7815 = vdwg.mxu0
    %7816 = vmatprep.subr.bf16.mxu0 %v5878
    %7817 = vmatpush1.bf16.msra.mxu0 %v5877
    %7818 = vmatprep.subr.bf16.mxu0 %v5886
    %7819 = vmatpush1.bf16.msra.mxu0 %v5885
    %7820 = vmatprep.subr.bf16.mxu0 %v5894
    %7821 = vmatpush1.bf16.msra.mxu0 %v5893
    %7822 = vmatprep.subr.bf16.mxu0 %v5902
    %7823 = vmatpush1.bf16.msra.mxu0 %v5901
    %7824 = vmatprep.subr.bf16.mxu0 %v5910
    %7825 = vmatpush1.bf16.msra.mxu0 %v5909
    %7826 = vmatprep.subr.bf16.mxu0 %v5918
    %7827 = vmatpush1.bf16.msra.mxu0 %v5917
    %7828 = vmatprep.subr.bf16.mxu0 %v5926
    %7829 = vmatpush1.bf16.msra.mxu0 %v5925
    %7830 = vmatprep.subr.bf16.mxu0 %v5934
    %7831 = vmatpush1.bf16.msra.mxu0 %v5933
    %7832 = vmatprep.subr.bf16.mxu0 %v5942
    %7833 = vmatpush1.bf16.msra.mxu0 %v5941
    %7834 = vmatprep.subr.bf16.mxu0 %v5950
    %7835 = vmatpush1.bf16.msra.mxu0 %v5949
    %7836 = vmatprep.subr.bf16.mxu0 %v5958
    %7837 = vmatpush1.bf16.msra.mxu0 %v5957
    %7838 = vmatprep.subr.bf16.mxu0 %v5966
    %7839 = vmatpush1.bf16.msra.mxu0 %v5965
    %7840 = vmatprep.subr.bf16.mxu0 %v5974
    %7841 = vmatpush1.bf16.msra.mxu0 %v5973
    %7842 = vmatprep.subr.bf16.mxu0 %v5982
    %7843 = vmatpush1.bf16.msra.mxu0 %v5981
    %7844 = vmatprep.subr.bf16.mxu0 %v5990
    %7845 = vmatpush1.bf16.msra.mxu0 %v5989
    %7846 = vmatprep.subr.bf16.mxu0 %v5998
    %7847 = vmatpush1.bf16.msra.mxu0 %v5997
    %7848 = vmatprep.mubr.bf16.mxu0 %v2117
    %7849 = vmatmul.mubr.bf16.gmra.mrb[0].mxu0 %v2116
    %v7850 = vpop.f32.mrb[0].mxu0
    %v7851 = vadd.f32 %v7810, %v7850
    %v7852 = vpop.f32.mrb[0].mxu0
    %v7853 = vadd.f32 %v7812, %v7852
    %v7854 = vpop.f32.mrb[0].mxu0
    %v7855 = vpop.f32.mrb[0].mxu0
    %7856 = vdwg.mxu0
    %7857 = vmatprep.subr.bf16.mxu0 %v6006
    %7858 = vmatpush1.bf16.msra.mxu0 %v6005
    %7859 = vmatprep.subr.bf16.mxu0 %v6014
    %7860 = vmatpush1.bf16.msra.mxu0 %v6013
    %7861 = vmatprep.subr.bf16.mxu0 %v6022
    %7862 = vmatpush1.bf16.msra.mxu0 %v6021
    %7863 = vmatprep.subr.bf16.mxu0 %v6030
    %7864 = vmatpush1.bf16.msra.mxu0 %v6029
    %7865 = vmatprep.subr.bf16.mxu0 %v6038
    %7866 = vmatpush1.bf16.msra.mxu0 %v6037
    %7867 = vmatprep.subr.bf16.mxu0 %v6046
    %7868 = vmatpush1.bf16.msra.mxu0 %v6045
    %7869 = vmatprep.subr.bf16.mxu0 %v6054
    %7870 = vmatpush1.bf16.msra.mxu0 %v6053
    %7871 = vmatprep.subr.bf16.mxu0 %v6062
    %7872 = vmatpush1.bf16.msra.mxu0 %v6061
    %7873 = vmatprep.subr.bf16.mxu0 %v6070
    %7874 = vmatpush1.bf16.msra.mxu0 %v6069
    %7875 = vmatprep.subr.bf16.mxu0 %v6078
    %7876 = vmatpush1.bf16.msra.mxu0 %v6077
    %7877 = vmatprep.subr.bf16.mxu0 %v6086
    %7878 = vmatpush1.bf16.msra.mxu0 %v6085
    %7879 = vmatprep.subr.bf16.mxu0 %v6094
    %7880 = vmatpush1.bf16.msra.mxu0 %v6093
    %7881 = vmatprep.subr.bf16.mxu0 %v6102
    %7882 = vmatpush1.bf16.msra.mxu0 %v6101
    %7883 = vmatprep.subr.bf16.mxu0 %v6110
    %7884 = vmatpush1.bf16.msra.mxu0 %v6109
    %7885 = vmatprep.subr.bf16.mxu0 %v6118
    %7886 = vmatpush1.bf16.msra.mxu0 %v6117
    %7887 = vmatprep.subr.bf16.mxu0 %v6126
    %7888 = vmatpush1.bf16.msra.mxu0 %v6125
    %7889 = vmatprep.mubr.bf16.mxu0 %v2119
    %7890 = vmatmul.mubr.bf16.gmra.mrb[0].mxu0 %v2118
    %v7891 = vpop.f32.mrb[0].mxu0
    %v7892 = vadd.f32 %v7851, %v7891
    %v7893 = vpop.f32.mrb[0].mxu0
    %v7894 = vadd.f32 %v7853, %v7893
    %v7895 = vpop.f32.mrb[0].mxu0
    %v7896 = vpop.f32.mrb[0].mxu0
    %7897 = vdwg.mxu0
    %7898 = vmatprep.subr.bf16.mxu0 %v6134
    %7899 = vmatpush1.bf16.msra.mxu0 %v6133
    %7900 = vmatprep.subr.bf16.mxu0 %v6142
    %7901 = vmatpush1.bf16.msra.mxu0 %v6141
    %7902 = vmatprep.subr.bf16.mxu0 %v6150
    %7903 = vmatpush1.bf16.msra.mxu0 %v6149
    %7904 = vmatprep.subr.bf16.mxu0 %v6158
    %7905 = vmatpush1.bf16.msra.mxu0 %v6157
    %7906 = vmatprep.subr.bf16.mxu0 %v6166
    %7907 = vmatpush1.bf16.msra.mxu0 %v6165
    %7908 = vmatprep.subr.bf16.mxu0 %v6174
    %7909 = vmatpush1.bf16.msra.mxu0 %v6173
    %7910 = vmatprep.subr.bf16.mxu0 %v6182
    %7911 = vmatpush1.bf16.msra.mxu0 %v6181
    %7912 = vmatprep.subr.bf16.mxu0 %v6190
    %7913 = vmatpush1.bf16.msra.mxu0 %v6189
    %7914 = vmatprep.subr.bf16.mxu0 %v6198
    %7915 = vmatpush1.bf16.msra.mxu0 %v6197
    %7916 = vmatprep.subr.bf16.mxu0 %v6206
    %7917 = vmatpush1.bf16.msra.mxu0 %v6205
    %7918 = vmatprep.subr.bf16.mxu0 %v6214
    %7919 = vmatpush1.bf16.msra.mxu0 %v6213
    %7920 = vmatprep.subr.bf16.mxu0 %v6222
    %7921 = vmatpush1.bf16.msra.mxu0 %v6221
    %7922 = vmatprep.subr.bf16.mxu0 %v6230
    %7923 = vmatpush1.bf16.msra.mxu0 %v6229
    %7924 = vmatprep.subr.bf16.mxu0 %v6238
    %7925 = vmatpush1.bf16.msra.mxu0 %v6237
    %7926 = vmatprep.subr.bf16.mxu0 %v6246
    %7927 = vmatpush1.bf16.msra.mxu0 %v6245
    %7928 = vmatprep.subr.bf16.mxu0 %v6254
    %7929 = vmatpush1.bf16.msra.mxu0 %v6253
    %7930 = vmatprep.mubr.bf16.mxu0 %v2121
    %7931 = vmatmul.mubr.bf16.gmra.mrb[0].mxu0 %v2120
    %v7932 = vpop.f32.mrb[0].mxu0
    %v7933 = vadd.f32 %v7892, %v7932
    %v7934 = vpop.f32.mrb[0].mxu0
    %v7935 = vadd.f32 %v7894, %v7934
    %v7936 = vpop.f32.mrb[0].mxu0
    %v7937 = vpop.f32.mrb[0].mxu0
    %7938 = vdwg.mxu0
    %7939 = vmatprep.subr.bf16.mxu0 %v5240
    %7940 = vmatpush1.bf16.msra.mxu0 %v5239
    %7941 = vmatprep.subr.bf16.mxu0 %v5248
    %7942 = vmatpush1.bf16.msra.mxu0 %v5247
    %7943 = vmatprep.subr.bf16.mxu0 %v5256
    %7944 = vmatpush1.bf16.msra.mxu0 %v5255
    %7945 = vmatprep.subr.bf16.mxu0 %v5264
    %7946 = vmatpush1.bf16.msra.mxu0 %v5263
    %7947 = vmatprep.subr.bf16.mxu0 %v5272
    %7948 = vmatpush1.bf16.msra.mxu0 %v5271
    %7949 = vmatprep.subr.bf16.mxu0 %v5280
    %7950 = vmatpush1.bf16.msra.mxu0 %v5279
    %7951 = vmatprep.subr.bf16.mxu0 %v5288
    %7952 = vmatpush1.bf16.msra.mxu0 %v5287
    %7953 = vmatprep.subr.bf16.mxu0 %v5296
    %7954 = vmatpush1.bf16.msra.mxu0 %v5295
    %7955 = vmatprep.subr.bf16.mxu0 %v5304
    %7956 = vmatpush1.bf16.msra.mxu0 %v5303
    %7957 = vmatprep.subr.bf16.mxu0 %v5312
    %7958 = vmatpush1.bf16.msra.mxu0 %v5311
    %7959 = vmatprep.subr.bf16.mxu0 %v5320
    %7960 = vmatpush1.bf16.msra.mxu0 %v5319
    %7961 = vmatprep.subr.bf16.mxu0 %v5328
    %7962 = vmatpush1.bf16.msra.mxu0 %v5327
    %7963 = vmatprep.subr.bf16.mxu0 %v5336
    %7964 = vmatpush1.bf16.msra.mxu0 %v5335
    %7965 = vmatprep.subr.bf16.mxu0 %v5344
    %7966 = vmatpush1.bf16.msra.mxu0 %v5343
    %7967 = vmatprep.subr.bf16.mxu0 %v5352
    %7968 = vmatpush1.bf16.msra.mxu0 %v5351
    %7969 = vmatprep.subr.bf16.mxu0 %v5360
    %7970 = vmatpush1.bf16.msra.mxu0 %v5359
    %7971 = vmatprep.mubr.bf16.mxu0 %v2107
    %7972 = vmatmul.mubr.bf16.gmra.mrb[0].mxu0 %v2106
    %v7973 = vpop.f32.mrb[0].mxu0
    %v7974 = vadd.f32 %v2142, %v7973
    %v7975 = vpop.f32.mrb[0].mxu0
    %v7976 = vadd.f32 %v2146, %v7975
    %v7977 = vpop.f32.mrb[0].mxu0
    %v7978 = vpop.f32.mrb[0].mxu0
    %7979 = vdwg.mxu0
    %7980 = vmatprep.subr.bf16.mxu0 %v5368
    %7981 = vmatpush1.bf16.msra.mxu0 %v5367
    %7982 = vmatprep.subr.bf16.mxu0 %v5376
    %7983 = vmatpush1.bf16.msra.mxu0 %v5375
    %7984 = vmatprep.subr.bf16.mxu0 %v5384
    %7985 = vmatpush1.bf16.msra.mxu0 %v5383
    %7986 = vmatprep.subr.bf16.mxu0 %v5392
    %7987 = vmatpush1.bf16.msra.mxu0 %v5391
    %7988 = vmatprep.subr.bf16.mxu0 %v5400
    %7989 = vmatpush1.bf16.msra.mxu0 %v5399
    %7990 = vmatprep.subr.bf16.mxu0 %v5408
    %7991 = vmatpush1.bf16.msra.mxu0 %v5407
    %7992 = vmatprep.subr.bf16.mxu0 %v5416
    %7993 = vmatpush1.bf16.msra.mxu0 %v5415
    %7994 = vmatprep.subr.bf16.mxu0 %v5424
    %7995 = vmatpush1.bf16.msra.mxu0 %v5423
    %7996 = vmatprep.subr.bf16.mxu0 %v5432
    %7997 = vmatpush1.bf16.msra.mxu0 %v5431
    %7998 = vmatprep.subr.bf16.mxu0 %v5440
    %7999 = vmatpush1.bf16.msra.mxu0 %v5439
    %8000 = vmatprep.subr.bf16.mxu0 %v5448
    %8001 = vmatpush1.bf16.msra.mxu0 %v5447
    %8002 = vmatprep.subr.bf16.mxu0 %v5456
    %8003 = vmatpush1.bf16.msra.mxu0 %v5455
    %8004 = vmatprep.subr.bf16.mxu0 %v5464
    %8005 = vmatpush1.bf16.msra.mxu0 %v5463
    %8006 = vmatprep.subr.bf16.mxu0 %v5472
    %8007 = vmatpush1.bf16.msra.mxu0 %v5471
    %8008 = vmatprep.subr.bf16.mxu0 %v5480
    %8009 = vmatpush1.bf16.msra.mxu0 %v5479
    %8010 = vmatprep.subr.bf16.mxu0 %v5488
    %8011 = vmatpush1.bf16.msra.mxu0 %v5487
    %8012 = vmatprep.mubr.bf16.mxu0 %v2109
    %8013 = vmatmul.mubr.bf16.gmra.mrb[0].mxu0 %v2108
    %v8014 = vpop.f32.mrb[0].mxu0
    %v8015 = vadd.f32 %v7974, %v8014
    %v8016 = vpop.f32.mrb[0].mxu0
    %v8017 = vadd.f32 %v7976, %v8016
    %v8018 = vpop.f32.mrb[0].mxu0
    %v8019 = vpop.f32.mrb[0].mxu0
    %8020 = vdwg.mxu0
    %8021 = vmatprep.subr.bf16.mxu0 %v5496
    %8022 = vmatpush1.bf16.msra.mxu0 %v5495
    %8023 = vmatprep.subr.bf16.mxu0 %v5504
    %8024 = vmatpush1.bf16.msra.mxu0 %v5503
    %8025 = vmatprep.subr.bf16.mxu0 %v5512
    %8026 = vmatpush1.bf16.msra.mxu0 %v5511
    %8027 = vmatprep.subr.bf16.mxu0 %v5520
    %8028 = vmatpush1.bf16.msra.mxu0 %v5519
    %8029 = vmatprep.subr.bf16.mxu0 %v5528
    %8030 = vmatpush1.bf16.msra.mxu0 %v5527
    %8031 = vmatprep.subr.bf16.mxu0 %v5536
    %8032 = vmatpush1.bf16.msra.mxu0 %v5535
    %8033 = vmatprep.subr.bf16.mxu0 %v5544
    %8034 = vmatpush1.bf16.msra.mxu0 %v5543
    %8035 = vmatprep.subr.bf16.mxu0 %v5552
    %8036 = vmatpush1.bf16.msra.mxu0 %v5551
    %8037 = vmatprep.subr.bf16.mxu0 %v5560
    %8038 = vmatpush1.bf16.msra.mxu0 %v5559
    %8039 = vmatprep.subr.bf16.mxu0 %v5568
    %8040 = vmatpush1.bf16.msra.mxu0 %v5567
    %8041 = vmatprep.subr.bf16.mxu0 %v5576
    %8042 = vmatpush1.bf16.msra.mxu0 %v5575
    %8043 = vmatprep.subr.bf16.mxu0 %v5584
    %8044 = vmatpush1.bf16.msra.mxu0 %v5583
    %8045 = vmatprep.subr.bf16.mxu0 %v5592
    %8046 = vmatpush1.bf16.msra.mxu0 %v5591
    %8047 = vmatprep.subr.bf16.mxu0 %v5600
    %8048 = vmatpush1.bf16.msra.mxu0 %v5599
    %8049 = vmatprep.subr.bf16.mxu0 %v5608
    %8050 = vmatpush1.bf16.msra.mxu0 %v5607
    %8051 = vmatprep.subr.bf16.mxu0 %v5616
    %8052 = vmatpush1.bf16.msra.mxu0 %v5615
    %8053 = vmatprep.mubr.bf16.mxu0 %v2111
    %8054 = vmatmul.mubr.bf16.gmra.mrb[0].mxu0 %v2110
    %v8055 = vpop.f32.mrb[0].mxu0
    %v8056 = vadd.f32 %v8015, %v8055
    %v8057 = vpop.f32.mrb[0].mxu0
    %v8058 = vadd.f32 %v8017, %v8057
    %v8059 = vpop.f32.mrb[0].mxu0
    %v8060 = vpop.f32.mrb[0].mxu0
    %8061 = vdwg.mxu0
    %8062 = vmatprep.subr.bf16.mxu0 %v5624
    %8063 = vmatpush1.bf16.msra.mxu0 %v5623
    %8064 = vmatprep.subr.bf16.mxu0 %v5632
    %8065 = vmatpush1.bf16.msra.mxu0 %v5631
    %8066 = vmatprep.subr.bf16.mxu0 %v5640
    %8067 = vmatpush1.bf16.msra.mxu0 %v5639
    %8068 = vmatprep.subr.bf16.mxu0 %v5648
    %8069 = vmatpush1.bf16.msra.mxu0 %v5647
    %8070 = vmatprep.subr.bf16.mxu0 %v5656
    %8071 = vmatpush1.bf16.msra.mxu0 %v5655
    %8072 = vmatprep.subr.bf16.mxu0 %v5664
    %8073 = vmatpush1.bf16.msra.mxu0 %v5663
    %8074 = vmatprep.subr.bf16.mxu0 %v5672
    %8075 = vmatpush1.bf16.msra.mxu0 %v5671
    %8076 = vmatprep.subr.bf16.mxu0 %v5680
    %8077 = vmatpush1.bf16.msra.mxu0 %v5679
    %8078 = vmatprep.subr.bf16.mxu0 %v5688
    %8079 = vmatpush1.bf16.msra.mxu0 %v5687
    %8080 = vmatprep.subr.bf16.mxu0 %v5696
    %8081 = vmatpush1.bf16.msra.mxu0 %v5695
    %8082 = vmatprep.subr.bf16.mxu0 %v5704
    %8083 = vmatpush1.bf16.msra.mxu0 %v5703
    %8084 = vmatprep.subr.bf16.mxu0 %v5712
    %8085 = vmatpush1.bf16.msra.mxu0 %v5711
    %8086 = vmatprep.subr.bf16.mxu0 %v5720
    %8087 = vmatpush1.bf16.msra.mxu0 %v5719
    %8088 = vmatprep.subr.bf16.mxu0 %v5728
    %8089 = vmatpush1.bf16.msra.mxu0 %v5727
    %8090 = vmatprep.subr.bf16.mxu0 %v5736
    %8091 = vmatpush1.bf16.msra.mxu0 %v5735
    %8092 = vmatprep.subr.bf16.mxu0 %v5744
    %8093 = vmatpush1.bf16.msra.mxu0 %v5743
    %8094 = vmatprep.mubr.bf16.mxu0 %v2113
    %8095 = vmatmul.mubr.bf16.gmra.mrb[0].mxu0 %v2112
    %v8096 = vpop.f32.mrb[0].mxu0
    %v8097 = vadd.f32 %v8056, %v8096
    %v8098 = vpop.f32.mrb[0].mxu0
    %v8099 = vadd.f32 %v8058, %v8098
    %v8100 = vpop.f32.mrb[0].mxu0
    %v8101 = vpop.f32.mrb[0].mxu0
    %8102 = vdwg.mxu0
    %8103 = vmatprep.subr.bf16.mxu0 %v5752
    %8104 = vmatpush1.bf16.msra.mxu0 %v5751
    %8105 = vmatprep.subr.bf16.mxu0 %v5760
    %8106 = vmatpush1.bf16.msra.mxu0 %v5759
    %8107 = vmatprep.subr.bf16.mxu0 %v5768
    %8108 = vmatpush1.bf16.msra.mxu0 %v5767
    %8109 = vmatprep.subr.bf16.mxu0 %v5776
    %8110 = vmatpush1.bf16.msra.mxu0 %v5775
    %8111 = vmatprep.subr.bf16.mxu0 %v5784
    %8112 = vmatpush1.bf16.msra.mxu0 %v5783
    %8113 = vmatprep.subr.bf16.mxu0 %v5792
    %8114 = vmatpush1.bf16.msra.mxu0 %v5791
    %8115 = vmatprep.subr.bf16.mxu0 %v5800
    %8116 = vmatpush1.bf16.msra.mxu0 %v5799
    %8117 = vmatprep.subr.bf16.mxu0 %v5808
    %8118 = vmatpush1.bf16.msra.mxu0 %v5807
    %8119 = vmatprep.subr.bf16.mxu0 %v5816
    %8120 = vmatpush1.bf16.msra.mxu0 %v5815
    %8121 = vmatprep.subr.bf16.mxu0 %v5824
    %8122 = vmatpush1.bf16.msra.mxu0 %v5823
    %8123 = vmatprep.subr.bf16.mxu0 %v5832
    %8124 = vmatpush1.bf16.msra.mxu0 %v5831
    %8125 = vmatprep.subr.bf16.mxu0 %v5840
    %8126 = vmatpush1.bf16.msra.mxu0 %v5839
    %8127 = vmatprep.subr.bf16.mxu0 %v5848
    %8128 = vmatpush1.bf16.msra.mxu0 %v5847
    %8129 = vmatprep.subr.bf16.mxu0 %v5856
    %8130 = vmatpush1.bf16.msra.mxu0 %v5855
    %8131 = vmatprep.subr.bf16.mxu0 %v5864
    %8132 = vmatpush1.bf16.msra.mxu0 %v5863
    %8133 = vmatprep.subr.bf16.mxu0 %v5872
    %8134 = vmatpush1.bf16.msra.mxu0 %v5871
    %8135 = vmatprep.mubr.bf16.mxu0 %v2115
    %8136 = vmatmul.mubr.bf16.gmra.mrb[0].mxu0 %v2114
    %v8137 = vpop.f32.mrb[0].mxu0
    %v8138 = vadd.f32 %v8097, %v8137
    %v8139 = vpop.f32.mrb[0].mxu0
    %v8140 = vadd.f32 %v8099, %v8139
    %v8141 = vpop.f32.mrb[0].mxu0
    %v8142 = vpop.f32.mrb[0].mxu0
    %8143 = vdwg.mxu0
    %8144 = vmatprep.subr.bf16.mxu0 %v5880
    %8145 = vmatpush1.bf16.msra.mxu0 %v5879
    %8146 = vmatprep.subr.bf16.mxu0 %v5888
    %8147 = vmatpush1.bf16.msra.mxu0 %v5887
    %8148 = vmatprep.subr.bf16.mxu0 %v5896
    %8149 = vmatpush1.bf16.msra.mxu0 %v5895
    %8150 = vmatprep.subr.bf16.mxu0 %v5904
    %8151 = vmatpush1.bf16.msra.mxu0 %v5903
    %8152 = vmatprep.subr.bf16.mxu0 %v5912
    %8153 = vmatpush1.bf16.msra.mxu0 %v5911
    %8154 = vmatprep.subr.bf16.mxu0 %v5920
    %8155 = vmatpush1.bf16.msra.mxu0 %v5919
    %8156 = vmatprep.subr.bf16.mxu0 %v5928
    %8157 = vmatpush1.bf16.msra.mxu0 %v5927
    %8158 = vmatprep.subr.bf16.mxu0 %v5936
    %8159 = vmatpush1.bf16.msra.mxu0 %v5935
    %8160 = vmatprep.subr.bf16.mxu0 %v5944
    %8161 = vmatpush1.bf16.msra.mxu0 %v5943
    %8162 = vmatprep.subr.bf16.mxu0 %v5952
    %8163 = vmatpush1.bf16.msra.mxu0 %v5951
    %8164 = vmatprep.subr.bf16.mxu0 %v5960
    %8165 = vmatpush1.bf16.msra.mxu0 %v5959
    %8166 = vmatprep.subr.bf16.mxu0 %v5968
    %8167 = vmatpush1.bf16.msra.mxu0 %v5967
    %8168 = vmatprep.subr.bf16.mxu0 %v5976
    %8169 = vmatpush1.bf16.msra.mxu0 %v5975
    %8170 = vmatprep.subr.bf16.mxu0 %v5984
    %8171 = vmatpush1.bf16.msra.mxu0 %v5983
    %8172 = vmatprep.subr.bf16.mxu0 %v5992
    %8173 = vmatpush1.bf16.msra.mxu0 %v5991
    %8174 = vmatprep.subr.bf16.mxu0 %v6000
    %8175 = vmatpush1.bf16.msra.mxu0 %v5999
    %8176 = vmatprep.mubr.bf16.mxu0 %v2117
    %8177 = vmatmul.mubr.bf16.gmra.mrb[0].mxu0 %v2116
    %v8178 = vpop.f32.mrb[0].mxu0
    %v8179 = vadd.f32 %v8138, %v8178
    %v8180 = vpop.f32.mrb[0].mxu0
    %v8181 = vadd.f32 %v8140, %v8180
    %v8182 = vpop.f32.mrb[0].mxu0
    %v8183 = vpop.f32.mrb[0].mxu0
    %8184 = vdwg.mxu0
    %8185 = vmatprep.subr.bf16.mxu0 %v6008
    %8186 = vmatpush1.bf16.msra.mxu0 %v6007
    %8187 = vmatprep.subr.bf16.mxu0 %v6016
    %8188 = vmatpush1.bf16.msra.mxu0 %v6015
    %8189 = vmatprep.subr.bf16.mxu0 %v6024
    %8190 = vmatpush1.bf16.msra.mxu0 %v6023
    %8191 = vmatprep.subr.bf16.mxu0 %v6032
    %8192 = vmatpush1.bf16.msra.mxu0 %v6031
    %8193 = vmatprep.subr.bf16.mxu0 %v6040
    %8194 = vmatpush1.bf16.msra.mxu0 %v6039
    %8195 = vmatprep.subr.bf16.mxu0 %v6048
    %8196 = vmatpush1.bf16.msra.mxu0 %v6047
    %8197 = vmatprep.subr.bf16.mxu0 %v6056
    %8198 = vmatpush1.bf16.msra.mxu0 %v6055
    %8199 = vmatprep.subr.bf16.mxu0 %v6064
    %8200 = vmatpush1.bf16.msra.mxu0 %v6063
    %8201 = vmatprep.subr.bf16.mxu0 %v6072
    %8202 = vmatpush1.bf16.msra.mxu0 %v6071
    %8203 = vmatprep.subr.bf16.mxu0 %v6080
    %8204 = vmatpush1.bf16.msra.mxu0 %v6079
    %8205 = vmatprep.subr.bf16.mxu0 %v6088
    %8206 = vmatpush1.bf16.msra.mxu0 %v6087
    %8207 = vmatprep.subr.bf16.mxu0 %v6096
    %8208 = vmatpush1.bf16.msra.mxu0 %v6095
    %8209 = vmatprep.subr.bf16.mxu0 %v6104
    %8210 = vmatpush1.bf16.msra.mxu0 %v6103
    %8211 = vmatprep.subr.bf16.mxu0 %v6112
    %8212 = vmatpush1.bf16.msra.mxu0 %v6111
    %8213 = vmatprep.subr.bf16.mxu0 %v6120
    %8214 = vmatpush1.bf16.msra.mxu0 %v6119
    %8215 = vmatprep.subr.bf16.mxu0 %v6128
    %8216 = vmatpush1.bf16.msra.mxu0 %v6127
    %8217 = vmatprep.mubr.bf16.mxu0 %v2119
    %8218 = vmatmul.mubr.bf16.gmra.mrb[0].mxu0 %v2118
    %v8219 = vpop.f32.mrb[0].mxu0
    %v8220 = vadd.f32 %v8179, %v8219
    %v8221 = vpop.f32.mrb[0].mxu0
    %v8222 = vadd.f32 %v8181, %v8221
    %v8223 = vpop.f32.mrb[0].mxu0
    %v8224 = vpop.f32.mrb[0].mxu0
    %8225 = vdwg.mxu0
    %8226 = vmatprep.subr.bf16.mxu0 %v6136
    %8227 = vmatpush1.bf16.msra.mxu0 %v6135
    %8228 = vmatprep.subr.bf16.mxu0 %v6144
    %8229 = vmatpush1.bf16.msra.mxu0 %v6143
    %8230 = vmatprep.subr.bf16.mxu0 %v6152
    %8231 = vmatpush1.bf16.msra.mxu0 %v6151
    %8232 = vmatprep.subr.bf16.mxu0 %v6160
    %8233 = vmatpush1.bf16.msra.mxu0 %v6159
    %8234 = vmatprep.subr.bf16.mxu0 %v6168
    %8235 = vmatpush1.bf16.msra.mxu0 %v6167
    %8236 = vmatprep.subr.bf16.mxu0 %v6176
    %8237 = vmatpush1.bf16.msra.mxu0 %v6175
    %8238 = vmatprep.subr.bf16.mxu0 %v6184
    %8239 = vmatpush1.bf16.msra.mxu0 %v6183
    %8240 = vmatprep.subr.bf16.mxu0 %v6192
    %8241 = vmatpush1.bf16.msra.mxu0 %v6191
    %8242 = vmatprep.subr.bf16.mxu0 %v6200
    %8243 = vmatpush1.bf16.msra.mxu0 %v6199
    %8244 = vmatprep.subr.bf16.mxu0 %v6208
    %8245 = vmatpush1.bf16.msra.mxu0 %v6207
    %8246 = vmatprep.subr.bf16.mxu0 %v6216
    %8247 = vmatpush1.bf16.msra.mxu0 %v6215
    %8248 = vmatprep.subr.bf16.mxu0 %v6224
    %8249 = vmatpush1.bf16.msra.mxu0 %v6223
    %8250 = vmatprep.subr.bf16.mxu0 %v6232
    %8251 = vmatpush1.bf16.msra.mxu0 %v6231
    %8252 = vmatprep.subr.bf16.mxu0 %v6240
    %8253 = vmatpush1.bf16.msra.mxu0 %v6239
    %8254 = vmatprep.subr.bf16.mxu0 %v6248
    %8255 = vmatpush1.bf16.msra.mxu0 %v6247
    %8256 = vmatprep.subr.bf16.mxu0 %v6256
    %8257 = vmatpush1.bf16.msra.mxu0 %v6255
    %8258 = vmatprep.mubr.bf16.mxu0 %v2121
    %8259 = vmatmul.mubr.bf16.gmra.mrb[0].mxu0 %v2120
    %v8260 = vpop.f32.mrb[0].mxu0
    %v8261 = vadd.f32 %v8220, %v8260
    %v8262 = vpop.f32.mrb[0].mxu0
    %v8263 = vadd.f32 %v8222, %v8262
    %v8264 = vpop.f32.mrb[0].mxu0
    %v8265 = vpop.f32.mrb[0].mxu0
    %8266 = vdwg.mxu0
    %8267 = vmatprep.subr.bf16.mxu0 %v5242
    %8268 = vmatpush1.bf16.msra.mxu0 %v5241
    %8269 = vmatprep.subr.bf16.mxu0 %v5250
    %8270 = vmatpush1.bf16.msra.mxu0 %v5249
    %8271 = vmatprep.subr.bf16.mxu0 %v5258
    %8272 = vmatpush1.bf16.msra.mxu0 %v5257
    %8273 = vmatprep.subr.bf16.mxu0 %v5266
    %8274 = vmatpush1.bf16.msra.mxu0 %v5265
    %8275 = vmatprep.subr.bf16.mxu0 %v5274
    %8276 = vmatpush1.bf16.msra.mxu0 %v5273
    %8277 = vmatprep.subr.bf16.mxu0 %v5282
    %8278 = vmatpush1.bf16.msra.mxu0 %v5281
    %8279 = vmatprep.subr.bf16.mxu0 %v5290
    %8280 = vmatpush1.bf16.msra.mxu0 %v5289
    %8281 = vmatprep.subr.bf16.mxu0 %v5298
    %8282 = vmatpush1.bf16.msra.mxu0 %v5297
    %8283 = vmatprep.subr.bf16.mxu0 %v5306
    %8284 = vmatpush1.bf16.msra.mxu0 %v5305
    %8285 = vmatprep.subr.bf16.mxu0 %v5314
    %8286 = vmatpush1.bf16.msra.mxu0 %v5313
    %8287 = vmatprep.subr.bf16.mxu0 %v5322
    %8288 = vmatpush1.bf16.msra.mxu0 %v5321
    %8289 = vmatprep.subr.bf16.mxu0 %v5330
    %8290 = vmatpush1.bf16.msra.mxu0 %v5329
    %8291 = vmatprep.subr.bf16.mxu0 %v5338
    %8292 = vmatpush1.bf16.msra.mxu0 %v5337
    %8293 = vmatprep.subr.bf16.mxu0 %v5346
    %8294 = vmatpush1.bf16.msra.mxu0 %v5345
    %8295 = vmatprep.subr.bf16.mxu0 %v5354
    %8296 = vmatpush1.bf16.msra.mxu0 %v5353
    %8297 = vmatprep.subr.bf16.mxu0 %v5362
    %8298 = vmatpush1.bf16.msra.mxu0 %v5361
    %8299 = vmatprep.mubr.bf16.mxu0 %v2107
    %8300 = vmatmul.mubr.bf16.gmra.mrb[0].mxu0 %v2106
    %v8301 = vpop.f32.mrb[0].mxu0
    %v8302 = vadd.f32 %v2150, %v8301
    %v8303 = vpop.f32.mrb[0].mxu0
    %v8304 = vadd.f32 %v2154, %v8303
    %v8305 = vpop.f32.mrb[0].mxu0
    %v8306 = vpop.f32.mrb[0].mxu0
    %8307 = vdwg.mxu0
    %8308 = vmatprep.subr.bf16.mxu0 %v5370
    %8309 = vmatpush1.bf16.msra.mxu0 %v5369
    %8310 = vmatprep.subr.bf16.mxu0 %v5378
    %8311 = vmatpush1.bf16.msra.mxu0 %v5377
    %8312 = vmatprep.subr.bf16.mxu0 %v5386
    %8313 = vmatpush1.bf16.msra.mxu0 %v5385
    %8314 = vmatprep.subr.bf16.mxu0 %v5394
    %8315 = vmatpush1.bf16.msra.mxu0 %v5393
    %8316 = vmatprep.subr.bf16.mxu0 %v5402
    %8317 = vmatpush1.bf16.msra.mxu0 %v5401
    %8318 = vmatprep.subr.bf16.mxu0 %v5410
    %8319 = vmatpush1.bf16.msra.mxu0 %v5409
    %8320 = vmatprep.subr.bf16.mxu0 %v5418
    %8321 = vmatpush1.bf16.msra.mxu0 %v5417
    %8322 = vmatprep.subr.bf16.mxu0 %v5426
    %8323 = vmatpush1.bf16.msra.mxu0 %v5425
    %8324 = vmatprep.subr.bf16.mxu0 %v5434
    %8325 = vmatpush1.bf16.msra.mxu0 %v5433
    %8326 = vmatprep.subr.bf16.mxu0 %v5442
    %8327 = vmatpush1.bf16.msra.mxu0 %v5441
    %8328 = vmatprep.subr.bf16.mxu0 %v5450
    %8329 = vmatpush1.bf16.msra.mxu0 %v5449
    %8330 = vmatprep.subr.bf16.mxu0 %v5458
    %8331 = vmatpush1.bf16.msra.mxu0 %v5457
    %8332 = vmatprep.subr.bf16.mxu0 %v5466
    %8333 = vmatpush1.bf16.msra.mxu0 %v5465
    %8334 = vmatprep.subr.bf16.mxu0 %v5474
    %8335 = vmatpush1.bf16.msra.mxu0 %v5473
    %8336 = vmatprep.subr.bf16.mxu0 %v5482
    %8337 = vmatpush1.bf16.msra.mxu0 %v5481
    %8338 = vmatprep.subr.bf16.mxu0 %v5490
    %8339 = vmatpush1.bf16.msra.mxu0 %v5489
    %8340 = vmatprep.mubr.bf16.mxu0 %v2109
    %8341 = vmatmul.mubr.bf16.gmra.mrb[0].mxu0 %v2108
    %v8342 = vpop.f32.mrb[0].mxu0
    %v8343 = vadd.f32 %v8302, %v8342
    %v8344 = vpop.f32.mrb[0].mxu0
    %v8345 = vadd.f32 %v8304, %v8344
    %v8346 = vpop.f32.mrb[0].mxu0
    %v8347 = vpop.f32.mrb[0].mxu0
    %8348 = vdwg.mxu0
    %8349 = vmatprep.subr.bf16.mxu0 %v5498
    %8350 = vmatpush1.bf16.msra.mxu0 %v5497
    %8351 = vmatprep.subr.bf16.mxu0 %v5506
    %8352 = vmatpush1.bf16.msra.mxu0 %v5505
    %8353 = vmatprep.subr.bf16.mxu0 %v5514
    %8354 = vmatpush1.bf16.msra.mxu0 %v5513
    %8355 = vmatprep.subr.bf16.mxu0 %v5522
    %8356 = vmatpush1.bf16.msra.mxu0 %v5521
    %8357 = vmatprep.subr.bf16.mxu0 %v5530
    %8358 = vmatpush1.bf16.msra.mxu0 %v5529
    %8359 = vmatprep.subr.bf16.mxu0 %v5538
    %8360 = vmatpush1.bf16.msra.mxu0 %v5537
    %8361 = vmatprep.subr.bf16.mxu0 %v5546
    %8362 = vmatpush1.bf16.msra.mxu0 %v5545
    %8363 = vmatprep.subr.bf16.mxu0 %v5554
    %8364 = vmatpush1.bf16.msra.mxu0 %v5553
    %8365 = vmatprep.subr.bf16.mxu0 %v5562
    %8366 = vmatpush1.bf16.msra.mxu0 %v5561
    %8367 = vmatprep.subr.bf16.mxu0 %v5570
    %8368 = vmatpush1.bf16.msra.mxu0 %v5569
    %8369 = vmatprep.subr.bf16.mxu0 %v5578
    %8370 = vmatpush1.bf16.msra.mxu0 %v5577
    %8371 = vmatprep.subr.bf16.mxu0 %v5586
    %8372 = vmatpush1.bf16.msra.mxu0 %v5585
    %8373 = vmatprep.subr.bf16.mxu0 %v5594
    %8374 = vmatpush1.bf16.msra.mxu0 %v5593
    %8375 = vmatprep.subr.bf16.mxu0 %v5602
    %8376 = vmatpush1.bf16.msra.mxu0 %v5601
    %8377 = vmatprep.subr.bf16.mxu0 %v5610
    %8378 = vmatpush1.bf16.msra.mxu0 %v5609
    %8379 = vmatprep.subr.bf16.mxu0 %v5618
    %8380 = vmatpush1.bf16.msra.mxu0 %v5617
    %8381 = vmatprep.mubr.bf16.mxu0 %v2111
    %8382 = vmatmul.mubr.bf16.gmra.mrb[0].mxu0 %v2110
    %v8383 = vpop.f32.mrb[0].mxu0
    %v8384 = vadd.f32 %v8343, %v8383
    %v8385 = vpop.f32.mrb[0].mxu0
    %v8386 = vadd.f32 %v8345, %v8385
    %v8387 = vpop.f32.mrb[0].mxu0
    %v8388 = vpop.f32.mrb[0].mxu0
    %8389 = vdwg.mxu0
    %8390 = vmatprep.subr.bf16.mxu0 %v5626
    %8391 = vmatpush1.bf16.msra.mxu0 %v5625
    %8392 = vmatprep.subr.bf16.mxu0 %v5634
    %8393 = vmatpush1.bf16.msra.mxu0 %v5633
    %8394 = vmatprep.subr.bf16.mxu0 %v5642
    %8395 = vmatpush1.bf16.msra.mxu0 %v5641
    %8396 = vmatprep.subr.bf16.mxu0 %v5650
    %8397 = vmatpush1.bf16.msra.mxu0 %v5649
    %8398 = vmatprep.subr.bf16.mxu0 %v5658
    %8399 = vmatpush1.bf16.msra.mxu0 %v5657
    %8400 = vmatprep.subr.bf16.mxu0 %v5666
    %8401 = vmatpush1.bf16.msra.mxu0 %v5665
    %8402 = vmatprep.subr.bf16.mxu0 %v5674
    %8403 = vmatpush1.bf16.msra.mxu0 %v5673
    %8404 = vmatprep.subr.bf16.mxu0 %v5682
    %8405 = vmatpush1.bf16.msra.mxu0 %v5681
    %8406 = vmatprep.subr.bf16.mxu0 %v5690
    %8407 = vmatpush1.bf16.msra.mxu0 %v5689
    %8408 = vmatprep.subr.bf16.mxu0 %v5698
    %8409 = vmatpush1.bf16.msra.mxu0 %v5697
    %8410 = vmatprep.subr.bf16.mxu0 %v5706
    %8411 = vmatpush1.bf16.msra.mxu0 %v5705
    %8412 = vmatprep.subr.bf16.mxu0 %v5714
    %8413 = vmatpush1.bf16.msra.mxu0 %v5713
    %8414 = vmatprep.subr.bf16.mxu0 %v5722
    %8415 = vmatpush1.bf16.msra.mxu0 %v5721
    %8416 = vmatprep.subr.bf16.mxu0 %v5730
    %8417 = vmatpush1.bf16.msra.mxu0 %v5729
    %8418 = vmatprep.subr.bf16.mxu0 %v5738
    %8419 = vmatpush1.bf16.msra.mxu0 %v5737
    %8420 = vmatprep.subr.bf16.mxu0 %v5746
    %8421 = vmatpush1.bf16.msra.mxu0 %v5745
    %8422 = vmatprep.mubr.bf16.mxu0 %v2113
    %8423 = vmatmul.mubr.bf16.gmra.mrb[0].mxu0 %v2112
    %v8424 = vpop.f32.mrb[0].mxu0
    %v8425 = vadd.f32 %v8384, %v8424
    %v8426 = vpop.f32.mrb[0].mxu0
    %v8427 = vadd.f32 %v8386, %v8426
    %v8428 = vpop.f32.mrb[0].mxu0
    %v8429 = vpop.f32.mrb[0].mxu0
    %8430 = vdwg.mxu0
    %8431 = vmatprep.subr.bf16.mxu0 %v5754
    %8432 = vmatpush1.bf16.msra.mxu0 %v5753
    %8433 = vmatprep.subr.bf16.mxu0 %v5762
    %8434 = vmatpush1.bf16.msra.mxu0 %v5761
    %8435 = vmatprep.subr.bf16.mxu0 %v5770
    %8436 = vmatpush1.bf16.msra.mxu0 %v5769
    %8437 = vmatprep.subr.bf16.mxu0 %v5778
    %8438 = vmatpush1.bf16.msra.mxu0 %v5777
    %8439 = vmatprep.subr.bf16.mxu0 %v5786
    %8440 = vmatpush1.bf16.msra.mxu0 %v5785
    %8441 = vmatprep.subr.bf16.mxu0 %v5794
    %8442 = vmatpush1.bf16.msra.mxu0 %v5793
    %8443 = vmatprep.subr.bf16.mxu0 %v5802
    %8444 = vmatpush1.bf16.msra.mxu0 %v5801
    %8445 = vmatprep.subr.bf16.mxu0 %v5810
    %8446 = vmatpush1.bf16.msra.mxu0 %v5809
    %8447 = vmatprep.subr.bf16.mxu0 %v5818
    %8448 = vmatpush1.bf16.msra.mxu0 %v5817
    %8449 = vmatprep.subr.bf16.mxu0 %v5826
    %8450 = vmatpush1.bf16.msra.mxu0 %v5825
    %8451 = vmatprep.subr.bf16.mxu0 %v5834
    %8452 = vmatpush1.bf16.msra.mxu0 %v5833
    %8453 = vmatprep.subr.bf16.mxu0 %v5842
    %8454 = vmatpush1.bf16.msra.mxu0 %v5841
    %8455 = vmatprep.subr.bf16.mxu0 %v5850
    %8456 = vmatpush1.bf16.msra.mxu0 %v5849
    %8457 = vmatprep.subr.bf16.mxu0 %v5858
    %8458 = vmatpush1.bf16.msra.mxu0 %v5857
    %8459 = vmatprep.subr.bf16.mxu0 %v5866
    %8460 = vmatpush1.bf16.msra.mxu0 %v5865
    %8461 = vmatprep.subr.bf16.mxu0 %v5874
    %8462 = vmatpush1.bf16.msra.mxu0 %v5873
    %8463 = vmatprep.mubr.bf16.mxu0 %v2115
    %8464 = vmatmul.mubr.bf16.gmra.mrb[0].mxu0 %v2114
    %v8465 = vpop.f32.mrb[0].mxu0
    %v8466 = vadd.f32 %v8425, %v8465
    %v8467 = vpop.f32.mrb[0].mxu0
    %v8468 = vadd.f32 %v8427, %v8467
    %v8469 = vpop.f32.mrb[0].mxu0
    %v8470 = vpop.f32.mrb[0].mxu0
    %8471 = vdwg.mxu0
    %8472 = vmatprep.subr.bf16.mxu0 %v5882
    %8473 = vmatpush1.bf16.msra.mxu0 %v5881
    %8474 = vmatprep.subr.bf16.mxu0 %v5890
    %8475 = vmatpush1.bf16.msra.mxu0 %v5889
    %8476 = vmatprep.subr.bf16.mxu0 %v5898
    %8477 = vmatpush1.bf16.msra.mxu0 %v5897
    %8478 = vmatprep.subr.bf16.mxu0 %v5906
    %8479 = vmatpush1.bf16.msra.mxu0 %v5905
    %8480 = vmatprep.subr.bf16.mxu0 %v5914
    %8481 = vmatpush1.bf16.msra.mxu0 %v5913
    %8482 = vmatprep.subr.bf16.mxu0 %v5922
    %8483 = vmatpush1.bf16.msra.mxu0 %v5921
    %8484 = vmatprep.subr.bf16.mxu0 %v5930
    %8485 = vmatpush1.bf16.msra.mxu0 %v5929
    %8486 = vmatprep.subr.bf16.mxu0 %v5938
    %8487 = vmatpush1.bf16.msra.mxu0 %v5937
    %8488 = vmatprep.subr.bf16.mxu0 %v5946
    %8489 = vmatpush1.bf16.msra.mxu0 %v5945
    %8490 = vmatprep.subr.bf16.mxu0 %v5954
    %8491 = vmatpush1.bf16.msra.mxu0 %v5953
    %8492 = vmatprep.subr.bf16.mxu0 %v5962
    %8493 = vmatpush1.bf16.msra.mxu0 %v5961
    %8494 = vmatprep.subr.bf16.mxu0 %v5970
    %8495 = vmatpush1.bf16.msra.mxu0 %v5969
    %8496 = vmatprep.subr.bf16.mxu0 %v5978
    %8497 = vmatpush1.bf16.msra.mxu0 %v5977
    %8498 = vmatprep.subr.bf16.mxu0 %v5986
    %8499 = vmatpush1.bf16.msra.mxu0 %v5985
    %8500 = vmatprep.subr.bf16.mxu0 %v5994
    %8501 = vmatpush1.bf16.msra.mxu0 %v5993
    %8502 = vmatprep.subr.bf16.mxu0 %v6002
    %8503 = vmatpush1.bf16.msra.mxu0 %v6001
    %8504 = vmatprep.mubr.bf16.mxu0 %v2117
    %8505 = vmatmul.mubr.bf16.gmra.mrb[0].mxu0 %v2116
    %v8506 = vpop.f32.mrb[0].mxu0
    %v8507 = vadd.f32 %v8466, %v8506
    %v8508 = vpop.f32.mrb[0].mxu0
    %v8509 = vadd.f32 %v8468, %v8508
    %v8510 = vpop.f32.mrb[0].mxu0
    %v8511 = vpop.f32.mrb[0].mxu0
    %8512 = vdwg.mxu0
    %8513 = vmatprep.subr.bf16.mxu0 %v6010
    %8514 = vmatpush1.bf16.msra.mxu0 %v6009
    %8515 = vmatprep.subr.bf16.mxu0 %v6018
    %8516 = vmatpush1.bf16.msra.mxu0 %v6017
    %8517 = vmatprep.subr.bf16.mxu0 %v6026
    %8518 = vmatpush1.bf16.msra.mxu0 %v6025
    %8519 = vmatprep.subr.bf16.mxu0 %v6034
    %8520 = vmatpush1.bf16.msra.mxu0 %v6033
    %8521 = vmatprep.subr.bf16.mxu0 %v6042
    %8522 = vmatpush1.bf16.msra.mxu0 %v6041
    %8523 = vmatprep.subr.bf16.mxu0 %v6050
    %8524 = vmatpush1.bf16.msra.mxu0 %v6049
    %8525 = vmatprep.subr.bf16.mxu0 %v6058
    %8526 = vmatpush1.bf16.msra.mxu0 %v6057
    %8527 = vmatprep.subr.bf16.mxu0 %v6066
    %8528 = vmatpush1.bf16.msra.mxu0 %v6065
    %8529 = vmatprep.subr.bf16.mxu0 %v6074
    %8530 = vmatpush1.bf16.msra.mxu0 %v6073
    %8531 = vmatprep.subr.bf16.mxu0 %v6082
    %8532 = vmatpush1.bf16.msra.mxu0 %v6081
    %8533 = vmatprep.subr.bf16.mxu0 %v6090
    %8534 = vmatpush1.bf16.msra.mxu0 %v6089
    %8535 = vmatprep.subr.bf16.mxu0 %v6098
    %8536 = vmatpush1.bf16.msra.mxu0 %v6097
    %8537 = vmatprep.subr.bf16.mxu0 %v6106
    %8538 = vmatpush1.bf16.msra.mxu0 %v6105
    %8539 = vmatprep.subr.bf16.mxu0 %v6114
    %8540 = vmatpush1.bf16.msra.mxu0 %v6113
    %8541 = vmatprep.subr.bf16.mxu0 %v6122
    %8542 = vmatpush1.bf16.msra.mxu0 %v6121
    %8543 = vmatprep.subr.bf16.mxu0 %v6130
    %8544 = vmatpush1.bf16.msra.mxu0 %v6129
    %8545 = vmatprep.mubr.bf16.mxu0 %v2119
    %8546 = vmatmul.mubr.bf16.gmra.mrb[0].mxu0 %v2118
    %v8547 = vpop.f32.mrb[0].mxu0
    %v8548 = vadd.f32 %v8507, %v8547
    %v8549 = vpop.f32.mrb[0].mxu0
    %v8550 = vadd.f32 %v8509, %v8549
    %v8551 = vpop.f32.mrb[0].mxu0
    %v8552 = vpop.f32.mrb[0].mxu0
    %8553 = vdwg.mxu0
    %8554 = vmatprep.subr.bf16.mxu0 %v6138
    %8555 = vmatpush1.bf16.msra.mxu0 %v6137
    %8556 = vmatprep.subr.bf16.mxu0 %v6146
    %8557 = vmatpush1.bf16.msra.mxu0 %v6145
    %8558 = vmatprep.subr.bf16.mxu0 %v6154
    %8559 = vmatpush1.bf16.msra.mxu0 %v6153
    %8560 = vmatprep.subr.bf16.mxu0 %v6162
    %8561 = vmatpush1.bf16.msra.mxu0 %v6161
    %8562 = vmatprep.subr.bf16.mxu0 %v6170
    %8563 = vmatpush1.bf16.msra.mxu0 %v6169
    %8564 = vmatprep.subr.bf16.mxu0 %v6178
    %8565 = vmatpush1.bf16.msra.mxu0 %v6177
    %8566 = vmatprep.subr.bf16.mxu0 %v6186
    %8567 = vmatpush1.bf16.msra.mxu0 %v6185
    %8568 = vmatprep.subr.bf16.mxu0 %v6194
    %8569 = vmatpush1.bf16.msra.mxu0 %v6193
    %8570 = vmatprep.subr.bf16.mxu0 %v6202
    %8571 = vmatpush1.bf16.msra.mxu0 %v6201
    %8572 = vmatprep.subr.bf16.mxu0 %v6210
    %8573 = vmatpush1.bf16.msra.mxu0 %v6209
    %8574 = vmatprep.subr.bf16.mxu0 %v6218
    %8575 = vmatpush1.bf16.msra.mxu0 %v6217
    %8576 = vmatprep.subr.bf16.mxu0 %v6226
    %8577 = vmatpush1.bf16.msra.mxu0 %v6225
    %8578 = vmatprep.subr.bf16.mxu0 %v6234
    %8579 = vmatpush1.bf16.msra.mxu0 %v6233
    %8580 = vmatprep.subr.bf16.mxu0 %v6242
    %8581 = vmatpush1.bf16.msra.mxu0 %v6241
    %8582 = vmatprep.subr.bf16.mxu0 %v6250
    %8583 = vmatpush1.bf16.msra.mxu0 %v6249
    %8584 = vmatprep.subr.bf16.mxu0 %v6258
    %8585 = vmatpush1.bf16.msra.mxu0 %v6257
    %8586 = vmatprep.mubr.bf16.mxu0 %v2121
    %8587 = vmatmul.mubr.bf16.gmra.mrb[0].mxu0 %v2120
    %v8588 = vpop.f32.mrb[0].mxu0
    %v8589 = vadd.f32 %v8548, %v8588
    %v8590 = vpop.f32.mrb[0].mxu0
    %v8591 = vadd.f32 %v8550, %v8590
    %v8592 = vpop.f32.mrb[0].mxu0
    %v8593 = vpop.f32.mrb[0].mxu0
    %8594 = vdwg.mxu0
    %v8595 = vmax.f32 %v7605, 0.0
    %v8596 = vmax.f32 %v7607, 0.0
    %v8597 = vmax.f32 %v7933, 0.0
    %v8598 = vmax.f32 %v7935, 0.0
    %v8599 = vmax.f32 %v8261, 0.0
    %v8600 = vmax.f32 %v8263, 0.0
    %v8601 = vmax.f32 %v8589, 0.0
    %v8602 = vmax.f32 %v8591, 0.0
    %v8603 = vpack.c.bf16 %v8595, %v8595
    %v8604 = vpack.c.bf16 %v8596, %v8596
    %v8605 = vpack.c.bf16 %v8597, %v8597
    %v8606 = vpack.c.bf16 %v8598, %v8598
    %v8607 = vpack.c.bf16 %v8599, %v8599
    %v8608 = vpack.c.bf16 %v8600, %v8600
    %v8609 = vpack.c.bf16 %v8601, %v8601
    %v8610 = vpack.c.bf16 %v8602, %v8602
    %v8612 = vlaneseq
    %v8613 = vshrl.u32 %v8612, 7
    %v8614 = vsub.s32 0, %v8613
    %v8615 = vrot.slane %v1449, %v8614
    %v8616 = vlaneseq
    %v8617 = vshrl.u32 %v8616, 7
    %v8618 = vsub.s32 1, %v8617
    %v8619 = vrot.slane %v1449, %v8618
    %v8620 = vlaneseq
    %v8621 = vshrl.u32 %v8620, 7
    %v8622 = vsub.s32 2, %v8621
    %v8623 = vrot.slane %v1449, %v8622
    %v8624 = vlaneseq
    %v8625 = vshrl.u32 %v8624, 7
    %v8626 = vsub.s32 3, %v8625
    %v8627 = vrot.slane %v1449, %v8626
    %v8888 = vunpack.c.l.b16 %v1193
    %v8889 = vunpack.c.h.b16 %v1193
    %v8890 = vunpack.c.l.b16 %v1194
    %v8891 = vunpack.c.h.b16 %v1194
    %v8892 = vunpack.c.l.b16 %v1195
    %v8893 = vunpack.c.h.b16 %v1195
    %v8894 = vunpack.c.l.b16 %v1196
    %v8895 = vunpack.c.h.b16 %v1196
    %v8896 = vunpack.c.l.b16 %v1197
    %v8897 = vunpack.c.h.b16 %v1197
    %v8898 = vunpack.c.l.b16 %v1198
    %v8899 = vunpack.c.h.b16 %v1198
    %v8900 = vunpack.c.l.b16 %v1199
    %v8901 = vunpack.c.h.b16 %v1199
    %v8902 = vunpack.c.l.b16 %v1200
    %v8903 = vunpack.c.h.b16 %v1200
    %v8904 = vunpack.c.l.b16 %v1201
    %v8905 = vunpack.c.h.b16 %v1201
    %v8906 = vunpack.c.l.b16 %v1202
    %v8907 = vunpack.c.h.b16 %v1202
    %v8908 = vunpack.c.l.b16 %v1203
    %v8909 = vunpack.c.h.b16 %v1203
    %v8910 = vunpack.c.l.b16 %v1204
    %v8911 = vunpack.c.h.b16 %v1204
    %v8912 = vunpack.c.l.b16 %v1205
    %v8913 = vunpack.c.h.b16 %v1205
    %v8914 = vunpack.c.l.b16 %v1206
    %v8915 = vunpack.c.h.b16 %v1206
    %v8916 = vunpack.c.l.b16 %v1207
    %v8917 = vunpack.c.h.b16 %v1207
    %v8918 = vunpack.c.l.b16 %v1208
    %v8919 = vunpack.c.h.b16 %v1208
    %v8920 = vunpack.c.l.b16 %v1209
    %v8921 = vunpack.c.h.b16 %v1209
    %v8922 = vunpack.c.l.b16 %v1210
    %v8923 = vunpack.c.h.b16 %v1210
    %v8924 = vunpack.c.l.b16 %v1211
    %v8925 = vunpack.c.h.b16 %v1211
    %v8926 = vunpack.c.l.b16 %v1212
    %v8927 = vunpack.c.h.b16 %v1212
    %v8928 = vunpack.c.l.b16 %v1213
    %v8929 = vunpack.c.h.b16 %v1213
    %v8930 = vunpack.c.l.b16 %v1214
    %v8931 = vunpack.c.h.b16 %v1214
    %v8932 = vunpack.c.l.b16 %v1215
    %v8933 = vunpack.c.h.b16 %v1215
    %v8934 = vunpack.c.l.b16 %v1216
    %v8935 = vunpack.c.h.b16 %v1216
    %v8936 = vunpack.c.l.b16 %v1217
    %v8937 = vunpack.c.h.b16 %v1217
    %v8938 = vunpack.c.l.b16 %v1218
    %v8939 = vunpack.c.h.b16 %v1218
    %v8940 = vunpack.c.l.b16 %v1219
    %v8941 = vunpack.c.h.b16 %v1219
    %v8942 = vunpack.c.l.b16 %v1220
    %v8943 = vunpack.c.h.b16 %v1220
    %v8944 = vunpack.c.l.b16 %v1221
    %v8945 = vunpack.c.h.b16 %v1221
    %v8946 = vunpack.c.l.b16 %v1222
    %v8947 = vunpack.c.h.b16 %v1222
    %v8948 = vunpack.c.l.b16 %v1223
    %v8949 = vunpack.c.h.b16 %v1223
    %v8950 = vunpack.c.l.b16 %v1224
    %v8951 = vunpack.c.h.b16 %v1224
    %v8952 = vunpack.c.l.b16 %v1225
    %v8953 = vunpack.c.h.b16 %v1225
    %v8954 = vunpack.c.l.b16 %v1226
    %v8955 = vunpack.c.h.b16 %v1226
    %v8956 = vunpack.c.l.b16 %v1227
    %v8957 = vunpack.c.h.b16 %v1227
    %v8958 = vunpack.c.l.b16 %v1228
    %v8959 = vunpack.c.h.b16 %v1228
    %v8960 = vunpack.c.l.b16 %v1229
    %v8961 = vunpack.c.h.b16 %v1229
    %v8962 = vunpack.c.l.b16 %v1230
    %v8963 = vunpack.c.h.b16 %v1230
    %v8964 = vunpack.c.l.b16 %v1231
    %v8965 = vunpack.c.h.b16 %v1231
    %v8966 = vunpack.c.l.b16 %v1232
    %v8967 = vunpack.c.h.b16 %v1232
    %v8968 = vunpack.c.l.b16 %v1233
    %v8969 = vunpack.c.h.b16 %v1233
    %v8970 = vunpack.c.l.b16 %v1234
    %v8971 = vunpack.c.h.b16 %v1234
    %v8972 = vunpack.c.l.b16 %v1235
    %v8973 = vunpack.c.h.b16 %v1235
    %v8974 = vunpack.c.l.b16 %v1236
    %v8975 = vunpack.c.h.b16 %v1236
    %v8976 = vunpack.c.l.b16 %v1237
    %v8977 = vunpack.c.h.b16 %v1237
    %v8978 = vunpack.c.l.b16 %v1238
    %v8979 = vunpack.c.h.b16 %v1238
    %v8980 = vunpack.c.l.b16 %v1239
    %v8981 = vunpack.c.h.b16 %v1239
    %v8982 = vunpack.c.l.b16 %v1240
    %v8983 = vunpack.c.h.b16 %v1240
    %v8984 = vunpack.c.l.b16 %v1241
    %v8985 = vunpack.c.h.b16 %v1241
    %v8986 = vunpack.c.l.b16 %v1242
    %v8987 = vunpack.c.h.b16 %v1242
    %v8988 = vunpack.c.l.b16 %v1243
    %v8989 = vunpack.c.h.b16 %v1243
    %v8990 = vunpack.c.l.b16 %v1244
    %v8991 = vunpack.c.h.b16 %v1244
    %v8992 = vunpack.c.l.b16 %v1245
    %v8993 = vunpack.c.h.b16 %v1245
    %v8994 = vunpack.c.l.b16 %v1246
    %v8995 = vunpack.c.h.b16 %v1246
    %v8996 = vunpack.c.l.b16 %v1247
    %v8997 = vunpack.c.h.b16 %v1247
    %v8998 = vunpack.c.l.b16 %v1248
    %v8999 = vunpack.c.h.b16 %v1248
    %v9000 = vunpack.c.l.b16 %v1249
    %v9001 = vunpack.c.h.b16 %v1249
    %v9002 = vunpack.c.l.b16 %v1250
    %v9003 = vunpack.c.h.b16 %v1250
    %v9004 = vunpack.c.l.b16 %v1251
    %v9005 = vunpack.c.h.b16 %v1251
    %v9006 = vunpack.c.l.b16 %v1252
    %v9007 = vunpack.c.h.b16 %v1252
    %v9008 = vunpack.c.l.b16 %v1253
    %v9009 = vunpack.c.h.b16 %v1253
    %v9010 = vunpack.c.l.b16 %v1254
    %v9011 = vunpack.c.h.b16 %v1254
    %v9012 = vunpack.c.l.b16 %v1255
    %v9013 = vunpack.c.h.b16 %v1255
    %v9014 = vunpack.c.l.b16 %v1256
    %v9015 = vunpack.c.h.b16 %v1256
    %v9016 = vunpack.c.l.b16 %v1257
    %v9017 = vunpack.c.h.b16 %v1257
    %v9018 = vunpack.c.l.b16 %v1258
    %v9019 = vunpack.c.h.b16 %v1258
    %v9020 = vunpack.c.l.b16 %v1259
    %v9021 = vunpack.c.h.b16 %v1259
    %v9022 = vunpack.c.l.b16 %v1260
    %v9023 = vunpack.c.h.b16 %v1260
    %v9024 = vunpack.c.l.b16 %v1261
    %v9025 = vunpack.c.h.b16 %v1261
    %v9026 = vunpack.c.l.b16 %v1262
    %v9027 = vunpack.c.h.b16 %v1262
    %v9028 = vunpack.c.l.b16 %v1263
    %v9029 = vunpack.c.h.b16 %v1263
    %v9030 = vunpack.c.l.b16 %v1264
    %v9031 = vunpack.c.h.b16 %v1264
    %v9032 = vunpack.c.l.b16 %v1265
    %v9033 = vunpack.c.h.b16 %v1265
    %v9034 = vunpack.c.l.b16 %v1266
    %v9035 = vunpack.c.h.b16 %v1266
    %v9036 = vunpack.c.l.b16 %v1267
    %v9037 = vunpack.c.h.b16 %v1267
    %v9038 = vunpack.c.l.b16 %v1268
    %v9039 = vunpack.c.h.b16 %v1268
    %v9040 = vunpack.c.l.b16 %v1269
    %v9041 = vunpack.c.h.b16 %v1269
    %v9042 = vunpack.c.l.b16 %v1270
    %v9043 = vunpack.c.h.b16 %v1270
    %v9044 = vunpack.c.l.b16 %v1271
    %v9045 = vunpack.c.h.b16 %v1271
    %v9046 = vunpack.c.l.b16 %v1272
    %v9047 = vunpack.c.h.b16 %v1272
    %v9048 = vunpack.c.l.b16 %v1273
    %v9049 = vunpack.c.h.b16 %v1273
    %v9050 = vunpack.c.l.b16 %v1274
    %v9051 = vunpack.c.h.b16 %v1274
    %v9052 = vunpack.c.l.b16 %v1275
    %v9053 = vunpack.c.h.b16 %v1275
    %v9054 = vunpack.c.l.b16 %v1276
    %v9055 = vunpack.c.h.b16 %v1276
    %v9056 = vunpack.c.l.b16 %v1277
    %v9057 = vunpack.c.h.b16 %v1277
    %v9058 = vunpack.c.l.b16 %v1278
    %v9059 = vunpack.c.h.b16 %v1278
    %v9060 = vunpack.c.l.b16 %v1279
    %v9061 = vunpack.c.h.b16 %v1279
    %v9062 = vunpack.c.l.b16 %v1280
    %v9063 = vunpack.c.h.b16 %v1280
    %v9064 = vunpack.c.l.b16 %v1281
    %v9065 = vunpack.c.h.b16 %v1281
    %v9066 = vunpack.c.l.b16 %v1282
    %v9067 = vunpack.c.h.b16 %v1282
    %v9068 = vunpack.c.l.b16 %v1283
    %v9069 = vunpack.c.h.b16 %v1283
    %v9070 = vunpack.c.l.b16 %v1284
    %v9071 = vunpack.c.h.b16 %v1284
    %v9072 = vunpack.c.l.b16 %v1285
    %v9073 = vunpack.c.h.b16 %v1285
    %v9074 = vunpack.c.l.b16 %v1286
    %v9075 = vunpack.c.h.b16 %v1286
    %v9076 = vunpack.c.l.b16 %v1287
    %v9077 = vunpack.c.h.b16 %v1287
    %v9078 = vunpack.c.l.b16 %v1288
    %v9079 = vunpack.c.h.b16 %v1288
    %v9080 = vunpack.c.l.b16 %v1289
    %v9081 = vunpack.c.h.b16 %v1289
    %v9082 = vunpack.c.l.b16 %v1290
    %v9083 = vunpack.c.h.b16 %v1290
    %v9084 = vunpack.c.l.b16 %v1291
    %v9085 = vunpack.c.h.b16 %v1291
    %v9086 = vunpack.c.l.b16 %v1292
    %v9087 = vunpack.c.h.b16 %v1292
    %v9088 = vunpack.c.l.b16 %v1293
    %v9089 = vunpack.c.h.b16 %v1293
    %v9090 = vunpack.c.l.b16 %v1294
    %v9091 = vunpack.c.h.b16 %v1294
    %v9092 = vunpack.c.l.b16 %v1295
    %v9093 = vunpack.c.h.b16 %v1295
    %v9094 = vunpack.c.l.b16 %v1296
    %v9095 = vunpack.c.h.b16 %v1296
    %v9096 = vunpack.c.l.b16 %v1297
    %v9097 = vunpack.c.h.b16 %v1297
    %v9098 = vunpack.c.l.b16 %v1298
    %v9099 = vunpack.c.h.b16 %v1298
    %v9100 = vunpack.c.l.b16 %v1299
    %v9101 = vunpack.c.h.b16 %v1299
    %v9102 = vunpack.c.l.b16 %v1300
    %v9103 = vunpack.c.h.b16 %v1300
    %v9104 = vunpack.c.l.b16 %v1301
    %v9105 = vunpack.c.h.b16 %v1301
    %v9106 = vunpack.c.l.b16 %v1302
    %v9107 = vunpack.c.h.b16 %v1302
    %v9108 = vunpack.c.l.b16 %v1303
    %v9109 = vunpack.c.h.b16 %v1303
    %v9110 = vunpack.c.l.b16 %v1304
    %v9111 = vunpack.c.h.b16 %v1304
    %v9112 = vunpack.c.l.b16 %v1305
    %v9113 = vunpack.c.h.b16 %v1305
    %v9114 = vunpack.c.l.b16 %v1306
    %v9115 = vunpack.c.h.b16 %v1306
    %v9116 = vunpack.c.l.b16 %v1307
    %v9117 = vunpack.c.h.b16 %v1307
    %v9118 = vunpack.c.l.b16 %v1308
    %v9119 = vunpack.c.h.b16 %v1308
    %v9120 = vunpack.c.l.b16 %v1309
    %v9121 = vunpack.c.h.b16 %v1309
    %v9122 = vunpack.c.l.b16 %v1310
    %v9123 = vunpack.c.h.b16 %v1310
    %v9124 = vunpack.c.l.b16 %v1311
    %v9125 = vunpack.c.h.b16 %v1311
    %v9126 = vunpack.c.l.b16 %v1312
    %v9127 = vunpack.c.h.b16 %v1312
    %v9128 = vunpack.c.l.b16 %v1313
    %v9129 = vunpack.c.h.b16 %v1313
    %v9130 = vunpack.c.l.b16 %v1314
    %v9131 = vunpack.c.h.b16 %v1314
    %v9132 = vunpack.c.l.b16 %v1315
    %v9133 = vunpack.c.h.b16 %v1315
    %v9134 = vunpack.c.l.b16 %v1316
    %v9135 = vunpack.c.h.b16 %v1316
    %v9136 = vunpack.c.l.b16 %v1317
    %v9137 = vunpack.c.h.b16 %v1317
    %v9138 = vunpack.c.l.b16 %v1318
    %v9139 = vunpack.c.h.b16 %v1318
    %v9140 = vunpack.c.l.b16 %v1319
    %v9141 = vunpack.c.h.b16 %v1319
    %v9142 = vunpack.c.l.b16 %v1320
    %v9143 = vunpack.c.h.b16 %v1320
    %v9144 = vunpack.c.l.b16 %v1321
    %v9145 = vunpack.c.h.b16 %v1321
    %v9146 = vunpack.c.l.b16 %v1322
    %v9147 = vunpack.c.h.b16 %v1322
    %v9148 = vunpack.c.l.b16 %v1323
    %v9149 = vunpack.c.h.b16 %v1323
    %v9150 = vunpack.c.l.b16 %v1324
    %v9151 = vunpack.c.h.b16 %v1324
    %v9152 = vunpack.c.l.b16 %v1325
    %v9153 = vunpack.c.h.b16 %v1325
    %v9154 = vunpack.c.l.b16 %v1326
    %v9155 = vunpack.c.h.b16 %v1326
    %v9156 = vunpack.c.l.b16 %v1327
    %v9157 = vunpack.c.h.b16 %v1327
    %v9158 = vunpack.c.l.b16 %v1328
    %v9159 = vunpack.c.h.b16 %v1328
    %v9160 = vunpack.c.l.b16 %v1329
    %v9161 = vunpack.c.h.b16 %v1329
    %v9162 = vunpack.c.l.b16 %v1330
    %v9163 = vunpack.c.h.b16 %v1330
    %v9164 = vunpack.c.l.b16 %v1331
    %v9165 = vunpack.c.h.b16 %v1331
    %v9166 = vunpack.c.l.b16 %v1332
    %v9167 = vunpack.c.h.b16 %v1332
    %v9168 = vunpack.c.l.b16 %v1333
    %v9169 = vunpack.c.h.b16 %v1333
    %v9170 = vunpack.c.l.b16 %v1334
    %v9171 = vunpack.c.h.b16 %v1334
    %v9172 = vunpack.c.l.b16 %v1335
    %v9173 = vunpack.c.h.b16 %v1335
    %v9174 = vunpack.c.l.b16 %v1336
    %v9175 = vunpack.c.h.b16 %v1336
    %v9176 = vunpack.c.l.b16 %v1337
    %v9177 = vunpack.c.h.b16 %v1337
    %v9178 = vunpack.c.l.b16 %v1338
    %v9179 = vunpack.c.h.b16 %v1338
    %v9180 = vunpack.c.l.b16 %v1339
    %v9181 = vunpack.c.h.b16 %v1339
    %v9182 = vunpack.c.l.b16 %v1340
    %v9183 = vunpack.c.h.b16 %v1340
    %v9184 = vunpack.c.l.b16 %v1341
    %v9185 = vunpack.c.h.b16 %v1341
    %v9186 = vunpack.c.l.b16 %v1342
    %v9187 = vunpack.c.h.b16 %v1342
    %v9188 = vunpack.c.l.b16 %v1343
    %v9189 = vunpack.c.h.b16 %v1343
    %v9190 = vunpack.c.l.b16 %v1344
    %v9191 = vunpack.c.h.b16 %v1344
    %v9192 = vunpack.c.l.b16 %v1345
    %v9193 = vunpack.c.h.b16 %v1345
    %v9194 = vunpack.c.l.b16 %v1346
    %v9195 = vunpack.c.h.b16 %v1346
    %v9196 = vunpack.c.l.b16 %v1347
    %v9197 = vunpack.c.h.b16 %v1347
    %v9198 = vunpack.c.l.b16 %v1348
    %v9199 = vunpack.c.h.b16 %v1348
    %v9200 = vunpack.c.l.b16 %v1349
    %v9201 = vunpack.c.h.b16 %v1349
    %v9202 = vunpack.c.l.b16 %v1350
    %v9203 = vunpack.c.h.b16 %v1350
    %v9204 = vunpack.c.l.b16 %v1351
    %v9205 = vunpack.c.h.b16 %v1351
    %v9206 = vunpack.c.l.b16 %v1352
    %v9207 = vunpack.c.h.b16 %v1352
    %v9208 = vunpack.c.l.b16 %v1353
    %v9209 = vunpack.c.h.b16 %v1353
    %v9210 = vunpack.c.l.b16 %v1354
    %v9211 = vunpack.c.h.b16 %v1354
    %v9212 = vunpack.c.l.b16 %v1355
    %v9213 = vunpack.c.h.b16 %v1355
    %v9214 = vunpack.c.l.b16 %v1356
    %v9215 = vunpack.c.h.b16 %v1356
    %v9216 = vunpack.c.l.b16 %v1357
    %v9217 = vunpack.c.h.b16 %v1357
    %v9218 = vunpack.c.l.b16 %v1358
    %v9219 = vunpack.c.h.b16 %v1358
    %v9220 = vunpack.c.l.b16 %v1359
    %v9221 = vunpack.c.h.b16 %v1359
    %v9222 = vunpack.c.l.b16 %v1360
    %v9223 = vunpack.c.h.b16 %v1360
    %v9224 = vunpack.c.l.b16 %v1361
    %v9225 = vunpack.c.h.b16 %v1361
    %v9226 = vunpack.c.l.b16 %v1362
    %v9227 = vunpack.c.h.b16 %v1362
    %v9228 = vunpack.c.l.b16 %v1363
    %v9229 = vunpack.c.h.b16 %v1363
    %v9230 = vunpack.c.l.b16 %v1364
    %v9231 = vunpack.c.h.b16 %v1364
    %v9232 = vunpack.c.l.b16 %v1365
    %v9233 = vunpack.c.h.b16 %v1365
    %v9234 = vunpack.c.l.b16 %v1366
    %v9235 = vunpack.c.h.b16 %v1366
    %v9236 = vunpack.c.l.b16 %v1367
    %v9237 = vunpack.c.h.b16 %v1367
    %v9238 = vunpack.c.l.b16 %v1368
    %v9239 = vunpack.c.h.b16 %v1368
    %v9240 = vunpack.c.l.b16 %v1369
    %v9241 = vunpack.c.h.b16 %v1369
    %v9242 = vunpack.c.l.b16 %v1370
    %v9243 = vunpack.c.h.b16 %v1370
    %v9244 = vunpack.c.l.b16 %v1371
    %v9245 = vunpack.c.h.b16 %v1371
    %v9246 = vunpack.c.l.b16 %v1372
    %v9247 = vunpack.c.h.b16 %v1372
    %v9248 = vunpack.c.l.b16 %v1373
    %v9249 = vunpack.c.h.b16 %v1373
    %v9250 = vunpack.c.l.b16 %v1374
    %v9251 = vunpack.c.h.b16 %v1374
    %v9252 = vunpack.c.l.b16 %v1375
    %v9253 = vunpack.c.h.b16 %v1375
    %v9254 = vunpack.c.l.b16 %v1376
    %v9255 = vunpack.c.h.b16 %v1376
    %v9256 = vunpack.c.l.b16 %v1377
    %v9257 = vunpack.c.h.b16 %v1377
    %v9258 = vunpack.c.l.b16 %v1378
    %v9259 = vunpack.c.h.b16 %v1378
    %v9260 = vunpack.c.l.b16 %v1379
    %v9261 = vunpack.c.h.b16 %v1379
    %v9262 = vunpack.c.l.b16 %v1380
    %v9263 = vunpack.c.h.b16 %v1380
    %v9264 = vunpack.c.l.b16 %v1381
    %v9265 = vunpack.c.h.b16 %v1381
    %v9266 = vunpack.c.l.b16 %v1382
    %v9267 = vunpack.c.h.b16 %v1382
    %v9268 = vunpack.c.l.b16 %v1383
    %v9269 = vunpack.c.h.b16 %v1383
    %v9270 = vunpack.c.l.b16 %v1384
    %v9271 = vunpack.c.h.b16 %v1384
    %v9272 = vunpack.c.l.b16 %v1385
    %v9273 = vunpack.c.h.b16 %v1385
    %v9274 = vunpack.c.l.b16 %v1386
    %v9275 = vunpack.c.h.b16 %v1386
    %v9276 = vunpack.c.l.b16 %v1387
    %v9277 = vunpack.c.h.b16 %v1387
    %v9278 = vunpack.c.l.b16 %v1388
    %v9279 = vunpack.c.h.b16 %v1388
    %v9280 = vunpack.c.l.b16 %v1389
    %v9281 = vunpack.c.h.b16 %v1389
    %v9282 = vunpack.c.l.b16 %v1390
    %v9283 = vunpack.c.h.b16 %v1390
    %v9284 = vunpack.c.l.b16 %v1391
    %v9285 = vunpack.c.h.b16 %v1391
    %v9286 = vunpack.c.l.b16 %v1392
    %v9287 = vunpack.c.h.b16 %v1392
    %v9288 = vunpack.c.l.b16 %v1393
    %v9289 = vunpack.c.h.b16 %v1393
    %v9290 = vunpack.c.l.b16 %v1394
    %v9291 = vunpack.c.h.b16 %v1394
    %v9292 = vunpack.c.l.b16 %v1395
    %v9293 = vunpack.c.h.b16 %v1395
    %v9294 = vunpack.c.l.b16 %v1396
    %v9295 = vunpack.c.h.b16 %v1396
    %v9296 = vunpack.c.l.b16 %v1397
    %v9297 = vunpack.c.h.b16 %v1397
    %v9298 = vunpack.c.l.b16 %v1398
    %v9299 = vunpack.c.h.b16 %v1398
    %v9300 = vunpack.c.l.b16 %v1399
    %v9301 = vunpack.c.h.b16 %v1399
    %v9302 = vunpack.c.l.b16 %v1400
    %v9303 = vunpack.c.h.b16 %v1400
    %v9304 = vunpack.c.l.b16 %v1401
    %v9305 = vunpack.c.h.b16 %v1401
    %v9306 = vunpack.c.l.b16 %v1402
    %v9307 = vunpack.c.h.b16 %v1402
    %v9308 = vunpack.c.l.b16 %v1403
    %v9309 = vunpack.c.h.b16 %v1403
    %v9310 = vunpack.c.l.b16 %v1404
    %v9311 = vunpack.c.h.b16 %v1404
    %v9312 = vunpack.c.l.b16 %v1405
    %v9313 = vunpack.c.h.b16 %v1405
    %v9314 = vunpack.c.l.b16 %v1406
    %v9315 = vunpack.c.h.b16 %v1406
    %v9316 = vunpack.c.l.b16 %v1407
    %v9317 = vunpack.c.h.b16 %v1407
    %v9318 = vunpack.c.l.b16 %v1408
    %v9319 = vunpack.c.h.b16 %v1408
    %v9320 = vunpack.c.l.b16 %v1409
    %v9321 = vunpack.c.h.b16 %v1409
    %v9322 = vunpack.c.l.b16 %v1410
    %v9323 = vunpack.c.h.b16 %v1410
    %v9324 = vunpack.c.l.b16 %v1411
    %v9325 = vunpack.c.h.b16 %v1411
    %v9326 = vunpack.c.l.b16 %v1412
    %v9327 = vunpack.c.h.b16 %v1412
    %v9328 = vunpack.c.l.b16 %v1413
    %v9329 = vunpack.c.h.b16 %v1413
    %v9330 = vunpack.c.l.b16 %v1414
    %v9331 = vunpack.c.h.b16 %v1414
    %v9332 = vunpack.c.l.b16 %v1415
    %v9333 = vunpack.c.h.b16 %v1415
    %v9334 = vunpack.c.l.b16 %v1416
    %v9335 = vunpack.c.h.b16 %v1416
    %v9336 = vunpack.c.l.b16 %v1417
    %v9337 = vunpack.c.h.b16 %v1417
    %v9338 = vunpack.c.l.b16 %v1418
    %v9339 = vunpack.c.h.b16 %v1418
    %v9340 = vunpack.c.l.b16 %v1419
    %v9341 = vunpack.c.h.b16 %v1419
    %v9342 = vunpack.c.l.b16 %v1420
    %v9343 = vunpack.c.h.b16 %v1420
    %v9344 = vunpack.c.l.b16 %v1421
    %v9345 = vunpack.c.h.b16 %v1421
    %v9346 = vunpack.c.l.b16 %v1422
    %v9347 = vunpack.c.h.b16 %v1422
    %v9348 = vunpack.c.l.b16 %v1423
    %v9349 = vunpack.c.h.b16 %v1423
    %v9350 = vunpack.c.l.b16 %v1424
    %v9351 = vunpack.c.h.b16 %v1424
    %v9352 = vunpack.c.l.b16 %v1425
    %v9353 = vunpack.c.h.b16 %v1425
    %v9354 = vunpack.c.l.b16 %v1426
    %v9355 = vunpack.c.h.b16 %v1426
    %v9356 = vunpack.c.l.b16 %v1427
    %v9357 = vunpack.c.h.b16 %v1427
    %v9358 = vunpack.c.l.b16 %v1428
    %v9359 = vunpack.c.h.b16 %v1428
    %v9360 = vunpack.c.l.b16 %v1429
    %v9361 = vunpack.c.h.b16 %v1429
    %v9362 = vunpack.c.l.b16 %v1430
    %v9363 = vunpack.c.h.b16 %v1430
    %v9364 = vunpack.c.l.b16 %v1431
    %v9365 = vunpack.c.h.b16 %v1431
    %v9366 = vunpack.c.l.b16 %v1432
    %v9367 = vunpack.c.h.b16 %v1432
    %v9368 = vunpack.c.l.b16 %v1433
    %v9369 = vunpack.c.h.b16 %v1433
    %v9370 = vunpack.c.l.b16 %v1434
    %v9371 = vunpack.c.h.b16 %v1434
    %v9372 = vunpack.c.l.b16 %v1435
    %v9373 = vunpack.c.h.b16 %v1435
    %v9374 = vunpack.c.l.b16 %v1436
    %v9375 = vunpack.c.h.b16 %v1436
    %v9376 = vunpack.c.l.b16 %v1437
    %v9377 = vunpack.c.h.b16 %v1437
    %v9378 = vunpack.c.l.b16 %v1438
    %v9379 = vunpack.c.h.b16 %v1438
    %v9380 = vunpack.c.l.b16 %v1439
    %v9381 = vunpack.c.h.b16 %v1439
    %v9382 = vunpack.c.l.b16 %v1440
    %v9383 = vunpack.c.h.b16 %v1440
    %v9384 = vunpack.c.l.b16 %v1441
    %v9385 = vunpack.c.h.b16 %v1441
    %v9386 = vunpack.c.l.b16 %v1442
    %v9387 = vunpack.c.h.b16 %v1442
    %v9388 = vunpack.c.l.b16 %v1443
    %v9389 = vunpack.c.h.b16 %v1443
    %v9390 = vunpack.c.l.b16 %v1444
    %v9391 = vunpack.c.h.b16 %v1444
    %v9392 = vunpack.c.l.b16 %v1445
    %v9393 = vunpack.c.h.b16 %v1445
    %v9394 = vunpack.c.l.b16 %v1446
    %v9395 = vunpack.c.h.b16 %v1446
    %v9396 = vunpack.c.l.b16 %v1447
    %v9397 = vunpack.c.h.b16 %v1447
    %v9398 = vunpack.c.l.b16 %v1448
    %v9399 = vunpack.c.h.b16 %v1448
    %v9400 = vpack.c.b16 %v8892, %v8888
    %v9401 = vpack.c.b16 %v8893, %v8889
    %v9402 = vpack.c.b16 %v8894, %v8890
    %v9403 = vpack.c.b16 %v8895, %v8891
    %v9404 = vpack.c.b16 %v8900, %v8896
    %v9405 = vpack.c.b16 %v8901, %v8897
    %v9406 = vpack.c.b16 %v8902, %v8898
    %v9407 = vpack.c.b16 %v8903, %v8899
    %v9408 = vpack.c.b16 %v8908, %v8904
    %v9409 = vpack.c.b16 %v8909, %v8905
    %v9410 = vpack.c.b16 %v8910, %v8906
    %v9411 = vpack.c.b16 %v8911, %v8907
    %v9412 = vpack.c.b16 %v8916, %v8912
    %v9413 = vpack.c.b16 %v8917, %v8913
    %v9414 = vpack.c.b16 %v8918, %v8914
    %v9415 = vpack.c.b16 %v8919, %v8915
    %v9416 = vpack.c.b16 %v8924, %v8920
    %v9417 = vpack.c.b16 %v8925, %v8921
    %v9418 = vpack.c.b16 %v8926, %v8922
    %v9419 = vpack.c.b16 %v8927, %v8923
    %v9420 = vpack.c.b16 %v8932, %v8928
    %v9421 = vpack.c.b16 %v8933, %v8929
    %v9422 = vpack.c.b16 %v8934, %v8930
    %v9423 = vpack.c.b16 %v8935, %v8931
    %v9424 = vpack.c.b16 %v8940, %v8936
    %v9425 = vpack.c.b16 %v8941, %v8937
    %v9426 = vpack.c.b16 %v8942, %v8938
    %v9427 = vpack.c.b16 %v8943, %v8939
    %v9428 = vpack.c.b16 %v8948, %v8944
    %v9429 = vpack.c.b16 %v8949, %v8945
    %v9430 = vpack.c.b16 %v8950, %v8946
    %v9431 = vpack.c.b16 %v8951, %v8947
    %v9432 = vpack.c.b16 %v8956, %v8952
    %v9433 = vpack.c.b16 %v8957, %v8953
    %v9434 = vpack.c.b16 %v8958, %v8954
    %v9435 = vpack.c.b16 %v8959, %v8955
    %v9436 = vpack.c.b16 %v8964, %v8960
    %v9437 = vpack.c.b16 %v8965, %v8961
    %v9438 = vpack.c.b16 %v8966, %v8962
    %v9439 = vpack.c.b16 %v8967, %v8963
    %v9440 = vpack.c.b16 %v8972, %v8968
    %v9441 = vpack.c.b16 %v8973, %v8969
    %v9442 = vpack.c.b16 %v8974, %v8970
    %v9443 = vpack.c.b16 %v8975, %v8971
    %v9444 = vpack.c.b16 %v8980, %v8976
    %v9445 = vpack.c.b16 %v8981, %v8977
    %v9446 = vpack.c.b16 %v8982, %v8978
    %v9447 = vpack.c.b16 %v8983, %v8979
    %v9448 = vpack.c.b16 %v8988, %v8984
    %v9449 = vpack.c.b16 %v8989, %v8985
    %v9450 = vpack.c.b16 %v8990, %v8986
    %v9451 = vpack.c.b16 %v8991, %v8987
    %v9452 = vpack.c.b16 %v8996, %v8992
    %v9453 = vpack.c.b16 %v8997, %v8993
    %v9454 = vpack.c.b16 %v8998, %v8994
    %v9455 = vpack.c.b16 %v8999, %v8995
    %v9456 = vpack.c.b16 %v9004, %v9000
    %v9457 = vpack.c.b16 %v9005, %v9001
    %v9458 = vpack.c.b16 %v9006, %v9002
    %v9459 = vpack.c.b16 %v9007, %v9003
    %v9460 = vpack.c.b16 %v9012, %v9008
    %v9461 = vpack.c.b16 %v9013, %v9009
    %v9462 = vpack.c.b16 %v9014, %v9010
    %v9463 = vpack.c.b16 %v9015, %v9011
    %v9464 = vpack.c.b16 %v9020, %v9016
    %v9465 = vpack.c.b16 %v9021, %v9017
    %v9466 = vpack.c.b16 %v9022, %v9018
    %v9467 = vpack.c.b16 %v9023, %v9019
    %v9468 = vpack.c.b16 %v9028, %v9024
    %v9469 = vpack.c.b16 %v9029, %v9025
    %v9470 = vpack.c.b16 %v9030, %v9026
    %v9471 = vpack.c.b16 %v9031, %v9027
    %v9472 = vpack.c.b16 %v9036, %v9032
    %v9473 = vpack.c.b16 %v9037, %v9033
    %v9474 = vpack.c.b16 %v9038, %v9034
    %v9475 = vpack.c.b16 %v9039, %v9035
    %v9476 = vpack.c.b16 %v9044, %v9040
    %v9477 = vpack.c.b16 %v9045, %v9041
    %v9478 = vpack.c.b16 %v9046, %v9042
    %v9479 = vpack.c.b16 %v9047, %v9043
    %v9480 = vpack.c.b16 %v9052, %v9048
    %v9481 = vpack.c.b16 %v9053, %v9049
    %v9482 = vpack.c.b16 %v9054, %v9050
    %v9483 = vpack.c.b16 %v9055, %v9051
    %v9484 = vpack.c.b16 %v9060, %v9056
    %v9485 = vpack.c.b16 %v9061, %v9057
    %v9486 = vpack.c.b16 %v9062, %v9058
    %v9487 = vpack.c.b16 %v9063, %v9059
    %v9488 = vpack.c.b16 %v9068, %v9064
    %v9489 = vpack.c.b16 %v9069, %v9065
    %v9490 = vpack.c.b16 %v9070, %v9066
    %v9491 = vpack.c.b16 %v9071, %v9067
    %v9492 = vpack.c.b16 %v9076, %v9072
    %v9493 = vpack.c.b16 %v9077, %v9073
    %v9494 = vpack.c.b16 %v9078, %v9074
    %v9495 = vpack.c.b16 %v9079, %v9075
    %v9496 = vpack.c.b16 %v9084, %v9080
    %v9497 = vpack.c.b16 %v9085, %v9081
    %v9498 = vpack.c.b16 %v9086, %v9082
    %v9499 = vpack.c.b16 %v9087, %v9083
    %v9500 = vpack.c.b16 %v9092, %v9088
    %v9501 = vpack.c.b16 %v9093, %v9089
    %v9502 = vpack.c.b16 %v9094, %v9090
    %v9503 = vpack.c.b16 %v9095, %v9091
    %v9504 = vpack.c.b16 %v9100, %v9096
    %v9505 = vpack.c.b16 %v9101, %v9097
    %v9506 = vpack.c.b16 %v9102, %v9098
    %v9507 = vpack.c.b16 %v9103, %v9099
    %v9508 = vpack.c.b16 %v9108, %v9104
    %v9509 = vpack.c.b16 %v9109, %v9105
    %v9510 = vpack.c.b16 %v9110, %v9106
    %v9511 = vpack.c.b16 %v9111, %v9107
    %v9512 = vpack.c.b16 %v9116, %v9112
    %v9513 = vpack.c.b16 %v9117, %v9113
    %v9514 = vpack.c.b16 %v9118, %v9114
    %v9515 = vpack.c.b16 %v9119, %v9115
    %v9516 = vpack.c.b16 %v9124, %v9120
    %v9517 = vpack.c.b16 %v9125, %v9121
    %v9518 = vpack.c.b16 %v9126, %v9122
    %v9519 = vpack.c.b16 %v9127, %v9123
    %v9520 = vpack.c.b16 %v9132, %v9128
    %v9521 = vpack.c.b16 %v9133, %v9129
    %v9522 = vpack.c.b16 %v9134, %v9130
    %v9523 = vpack.c.b16 %v9135, %v9131
    %v9524 = vpack.c.b16 %v9140, %v9136
    %v9525 = vpack.c.b16 %v9141, %v9137
    %v9526 = vpack.c.b16 %v9142, %v9138
    %v9527 = vpack.c.b16 %v9143, %v9139
    %v9528 = vpack.c.b16 %v9148, %v9144
    %v9529 = vpack.c.b16 %v9149, %v9145
    %v9530 = vpack.c.b16 %v9150, %v9146
    %v9531 = vpack.c.b16 %v9151, %v9147
    %v9532 = vpack.c.b16 %v9156, %v9152
    %v9533 = vpack.c.b16 %v9157, %v9153
    %v9534 = vpack.c.b16 %v9158, %v9154
    %v9535 = vpack.c.b16 %v9159, %v9155
    %v9536 = vpack.c.b16 %v9164, %v9160
    %v9537 = vpack.c.b16 %v9165, %v9161
    %v9538 = vpack.c.b16 %v9166, %v9162
    %v9539 = vpack.c.b16 %v9167, %v9163
    %v9540 = vpack.c.b16 %v9172, %v9168
    %v9541 = vpack.c.b16 %v9173, %v9169
    %v9542 = vpack.c.b16 %v9174, %v9170
    %v9543 = vpack.c.b16 %v9175, %v9171
    %v9544 = vpack.c.b16 %v9180, %v9176
    %v9545 = vpack.c.b16 %v9181, %v9177
    %v9546 = vpack.c.b16 %v9182, %v9178
    %v9547 = vpack.c.b16 %v9183, %v9179
    %v9548 = vpack.c.b16 %v9188, %v9184
    %v9549 = vpack.c.b16 %v9189, %v9185
    %v9550 = vpack.c.b16 %v9190, %v9186
    %v9551 = vpack.c.b16 %v9191, %v9187
    %v9552 = vpack.c.b16 %v9196, %v9192
    %v9553 = vpack.c.b16 %v9197, %v9193
    %v9554 = vpack.c.b16 %v9198, %v9194
    %v9555 = vpack.c.b16 %v9199, %v9195
    %v9556 = vpack.c.b16 %v9204, %v9200
    %v9557 = vpack.c.b16 %v9205, %v9201
    %v9558 = vpack.c.b16 %v9206, %v9202
    %v9559 = vpack.c.b16 %v9207, %v9203
    %v9560 = vpack.c.b16 %v9212, %v9208
    %v9561 = vpack.c.b16 %v9213, %v9209
    %v9562 = vpack.c.b16 %v9214, %v9210
    %v9563 = vpack.c.b16 %v9215, %v9211
    %v9564 = vpack.c.b16 %v9220, %v9216
    %v9565 = vpack.c.b16 %v9221, %v9217
    %v9566 = vpack.c.b16 %v9222, %v9218
    %v9567 = vpack.c.b16 %v9223, %v9219
    %v9568 = vpack.c.b16 %v9228, %v9224
    %v9569 = vpack.c.b16 %v9229, %v9225
    %v9570 = vpack.c.b16 %v9230, %v9226
    %v9571 = vpack.c.b16 %v9231, %v9227
    %v9572 = vpack.c.b16 %v9236, %v9232
    %v9573 = vpack.c.b16 %v9237, %v9233
    %v9574 = vpack.c.b16 %v9238, %v9234
    %v9575 = vpack.c.b16 %v9239, %v9235
    %v9576 = vpack.c.b16 %v9244, %v9240
    %v9577 = vpack.c.b16 %v9245, %v9241
    %v9578 = vpack.c.b16 %v9246, %v9242
    %v9579 = vpack.c.b16 %v9247, %v9243
    %v9580 = vpack.c.b16 %v9252, %v9248
    %v9581 = vpack.c.b16 %v9253, %v9249
    %v9582 = vpack.c.b16 %v9254, %v9250
    %v9583 = vpack.c.b16 %v9255, %v9251
    %v9584 = vpack.c.b16 %v9260, %v9256
    %v9585 = vpack.c.b16 %v9261, %v9257
    %v9586 = vpack.c.b16 %v9262, %v9258
    %v9587 = vpack.c.b16 %v9263, %v9259
    %v9588 = vpack.c.b16 %v9268, %v9264
    %v9589 = vpack.c.b16 %v9269, %v9265
    %v9590 = vpack.c.b16 %v9270, %v9266
    %v9591 = vpack.c.b16 %v9271, %v9267
    %v9592 = vpack.c.b16 %v9276, %v9272
    %v9593 = vpack.c.b16 %v9277, %v9273
    %v9594 = vpack.c.b16 %v9278, %v9274
    %v9595 = vpack.c.b16 %v9279, %v9275
    %v9596 = vpack.c.b16 %v9284, %v9280
    %v9597 = vpack.c.b16 %v9285, %v9281
    %v9598 = vpack.c.b16 %v9286, %v9282
    %v9599 = vpack.c.b16 %v9287, %v9283
    %v9600 = vpack.c.b16 %v9292, %v9288
    %v9601 = vpack.c.b16 %v9293, %v9289
    %v9602 = vpack.c.b16 %v9294, %v9290
    %v9603 = vpack.c.b16 %v9295, %v9291
    %v9604 = vpack.c.b16 %v9300, %v9296
    %v9605 = vpack.c.b16 %v9301, %v9297
    %v9606 = vpack.c.b16 %v9302, %v9298
    %v9607 = vpack.c.b16 %v9303, %v9299
    %v9608 = vpack.c.b16 %v9308, %v9304
    %v9609 = vpack.c.b16 %v9309, %v9305
    %v9610 = vpack.c.b16 %v9310, %v9306
    %v9611 = vpack.c.b16 %v9311, %v9307
    %v9612 = vpack.c.b16 %v9316, %v9312
    %v9613 = vpack.c.b16 %v9317, %v9313
    %v9614 = vpack.c.b16 %v9318, %v9314
    %v9615 = vpack.c.b16 %v9319, %v9315
    %v9616 = vpack.c.b16 %v9324, %v9320
    %v9617 = vpack.c.b16 %v9325, %v9321
    %v9618 = vpack.c.b16 %v9326, %v9322
    %v9619 = vpack.c.b16 %v9327, %v9323
    %v9620 = vpack.c.b16 %v9332, %v9328
    %v9621 = vpack.c.b16 %v9333, %v9329
    %v9622 = vpack.c.b16 %v9334, %v9330
    %v9623 = vpack.c.b16 %v9335, %v9331
    %v9624 = vpack.c.b16 %v9340, %v9336
    %v9625 = vpack.c.b16 %v9341, %v9337
    %v9626 = vpack.c.b16 %v9342, %v9338
    %v9627 = vpack.c.b16 %v9343, %v9339
    %v9628 = vpack.c.b16 %v9348, %v9344
    %v9629 = vpack.c.b16 %v9349, %v9345
    %v9630 = vpack.c.b16 %v9350, %v9346
    %v9631 = vpack.c.b16 %v9351, %v9347
    %v9632 = vpack.c.b16 %v9356, %v9352
    %v9633 = vpack.c.b16 %v9357, %v9353
    %v9634 = vpack.c.b16 %v9358, %v9354
    %v9635 = vpack.c.b16 %v9359, %v9355
    %v9636 = vpack.c.b16 %v9364, %v9360
    %v9637 = vpack.c.b16 %v9365, %v9361
    %v9638 = vpack.c.b16 %v9366, %v9362
    %v9639 = vpack.c.b16 %v9367, %v9363
    %v9640 = vpack.c.b16 %v9372, %v9368
    %v9641 = vpack.c.b16 %v9373, %v9369
    %v9642 = vpack.c.b16 %v9374, %v9370
    %v9643 = vpack.c.b16 %v9375, %v9371
    %v9644 = vpack.c.b16 %v9380, %v9376
    %v9645 = vpack.c.b16 %v9381, %v9377
    %v9646 = vpack.c.b16 %v9382, %v9378
    %v9647 = vpack.c.b16 %v9383, %v9379
    %v9648 = vpack.c.b16 %v9388, %v9384
    %v9649 = vpack.c.b16 %v9389, %v9385
    %v9650 = vpack.c.b16 %v9390, %v9386
    %v9651 = vpack.c.b16 %v9391, %v9387
    %v9652 = vpack.c.b16 %v9396, %v9392
    %v9653 = vpack.c.b16 %v9397, %v9393
    %v9654 = vpack.c.b16 %v9398, %v9394
    %v9655 = vpack.c.b16 %v9399, %v9395
    %9912 = vmatprep.subr.bf16.mxu0 %v9401
    %9913 = vmatpush1.bf16.msra.mxu0 %v9400
    %9914 = vmatprep.subr.bf16.mxu0 %v9405
    %9915 = vmatpush1.bf16.msra.mxu0 %v9404
    %9916 = vmatprep.subr.bf16.mxu0 %v9409
    %9917 = vmatpush1.bf16.msra.mxu0 %v9408
    %9918 = vmatprep.subr.bf16.mxu0 %v9413
    %9919 = vmatpush1.bf16.msra.mxu0 %v9412
    %9920 = vmatprep.subr.bf16.mxu0 %v9417
    %9921 = vmatpush1.bf16.msra.mxu0 %v9416
    %9922 = vmatprep.subr.bf16.mxu0 %v9421
    %9923 = vmatpush1.bf16.msra.mxu0 %v9420
    %9924 = vmatprep.subr.bf16.mxu0 %v9425
    %9925 = vmatpush1.bf16.msra.mxu0 %v9424
    %9926 = vmatprep.subr.bf16.mxu0 %v9429
    %9927 = vmatpush1.bf16.msra.mxu0 %v9428
    %9928 = vmatprep.subr.bf16.mxu0 %v9433
    %9929 = vmatpush1.bf16.msra.mxu0 %v9432
    %9930 = vmatprep.subr.bf16.mxu0 %v9437
    %9931 = vmatpush1.bf16.msra.mxu0 %v9436
    %9932 = vmatprep.subr.bf16.mxu0 %v9441
    %9933 = vmatpush1.bf16.msra.mxu0 %v9440
    %9934 = vmatprep.subr.bf16.mxu0 %v9445
    %9935 = vmatpush1.bf16.msra.mxu0 %v9444
    %9936 = vmatprep.subr.bf16.mxu0 %v9449
    %9937 = vmatpush1.bf16.msra.mxu0 %v9448
    %9938 = vmatprep.subr.bf16.mxu0 %v9453
    %9939 = vmatpush1.bf16.msra.mxu0 %v9452
    %9940 = vmatprep.subr.bf16.mxu0 %v9457
    %9941 = vmatpush1.bf16.msra.mxu0 %v9456
    %9942 = vmatprep.subr.bf16.mxu0 %v9461
    %9943 = vmatpush1.bf16.msra.mxu0 %v9460
    %9944 = vmatprep.mubr.bf16.mxu0 %v8604
    %9945 = vmatmul.mubr.bf16.gmra.mrb[0].mxu0 %v8603
    %v9946 = vpop.f32.mrb[0].mxu0
    %v9947 = vadd.f32 %v8615, %v9946
    %v9948 = vpop.f32.mrb[0].mxu0
    %v9949 = vadd.f32 %v8619, %v9948
    %v9950 = vpop.f32.mrb[0].mxu0
    %v9951 = vpop.f32.mrb[0].mxu0
    %9952 = vdwg.mxu0
    %9953 = vmatprep.subr.bf16.mxu0 %v9465
    %9954 = vmatpush1.bf16.msra.mxu0 %v9464
    %9955 = vmatprep.subr.bf16.mxu0 %v9469
    %9956 = vmatpush1.bf16.msra.mxu0 %v9468
    %9957 = vmatprep.subr.bf16.mxu0 %v9473
    %9958 = vmatpush1.bf16.msra.mxu0 %v9472
    %9959 = vmatprep.subr.bf16.mxu0 %v9477
    %9960 = vmatpush1.bf16.msra.mxu0 %v9476
    %9961 = vmatprep.subr.bf16.mxu0 %v9481
    %9962 = vmatpush1.bf16.msra.mxu0 %v9480
    %9963 = vmatprep.subr.bf16.mxu0 %v9485
    %9964 = vmatpush1.bf16.msra.mxu0 %v9484
    %9965 = vmatprep.subr.bf16.mxu0 %v9489
    %9966 = vmatpush1.bf16.msra.mxu0 %v9488
    %9967 = vmatprep.subr.bf16.mxu0 %v9493
    %9968 = vmatpush1.bf16.msra.mxu0 %v9492
    %9969 = vmatprep.subr.bf16.mxu0 %v9497
    %9970 = vmatpush1.bf16.msra.mxu0 %v9496
    %9971 = vmatprep.subr.bf16.mxu0 %v9501
    %9972 = vmatpush1.bf16.msra.mxu0 %v9500
    %9973 = vmatprep.subr.bf16.mxu0 %v9505
    %9974 = vmatpush1.bf16.msra.mxu0 %v9504
    %9975 = vmatprep.subr.bf16.mxu0 %v9509
    %9976 = vmatpush1.bf16.msra.mxu0 %v9508
    %9977 = vmatprep.subr.bf16.mxu0 %v9513
    %9978 = vmatpush1.bf16.msra.mxu0 %v9512
    %9979 = vmatprep.subr.bf16.mxu0 %v9517
    %9980 = vmatpush1.bf16.msra.mxu0 %v9516
    %9981 = vmatprep.subr.bf16.mxu0 %v9521
    %9982 = vmatpush1.bf16.msra.mxu0 %v9520
    %9983 = vmatprep.subr.bf16.mxu0 %v9525
    %9984 = vmatpush1.bf16.msra.mxu0 %v9524
    %9985 = vmatprep.mubr.bf16.mxu0 %v8606
    %9986 = vmatmul.mubr.bf16.gmra.mrb[0].mxu0 %v8605
    %v9987 = vpop.f32.mrb[0].mxu0
    %v9988 = vadd.f32 %v9947, %v9987
    %v9989 = vpop.f32.mrb[0].mxu0
    %v9990 = vadd.f32 %v9949, %v9989
    %v9991 = vpop.f32.mrb[0].mxu0
    %v9992 = vpop.f32.mrb[0].mxu0
    %9993 = vdwg.mxu0
    %9994 = vmatprep.subr.bf16.mxu0 %v9529
    %9995 = vmatpush1.bf16.msra.mxu0 %v9528
    %9996 = vmatprep.subr.bf16.mxu0 %v9533
    %9997 = vmatpush1.bf16.msra.mxu0 %v9532
    %9998 = vmatprep.subr.bf16.mxu0 %v9537
    %9999 = vmatpush1.bf16.msra.mxu0 %v9536
    %10000 = vmatprep.subr.bf16.mxu0 %v9541
    %10001 = vmatpush1.bf16.msra.mxu0 %v9540
    %10002 = vmatprep.subr.bf16.mxu0 %v9545
    %10003 = vmatpush1.bf16.msra.mxu0 %v9544
    %10004 = vmatprep.subr.bf16.mxu0 %v9549
    %10005 = vmatpush1.bf16.msra.mxu0 %v9548
    %10006 = vmatprep.subr.bf16.mxu0 %v9553
    %10007 = vmatpush1.bf16.msra.mxu0 %v9552
    %10008 = vmatprep.subr.bf16.mxu0 %v9557
    %10009 = vmatpush1.bf16.msra.mxu0 %v9556
    %10010 = vmatprep.subr.bf16.mxu0 %v9561
    %10011 = vmatpush1.bf16.msra.mxu0 %v9560
    %10012 = vmatprep.subr.bf16.mxu0 %v9565
    %10013 = vmatpush1.bf16.msra.mxu0 %v9564
    %10014 = vmatprep.subr.bf16.mxu0 %v9569
    %10015 = vmatpush1.bf16.msra.mxu0 %v9568
    %10016 = vmatprep.subr.bf16.mxu0 %v9573
    %10017 = vmatpush1.bf16.msra.mxu0 %v9572
    %10018 = vmatprep.subr.bf16.mxu0 %v9577
    %10019 = vmatpush1.bf16.msra.mxu0 %v9576
    %10020 = vmatprep.subr.bf16.mxu0 %v9581
    %10021 = vmatpush1.bf16.msra.mxu0 %v9580
    %10022 = vmatprep.subr.bf16.mxu0 %v9585
    %10023 = vmatpush1.bf16.msra.mxu0 %v9584
    %10024 = vmatprep.subr.bf16.mxu0 %v9589
    %10025 = vmatpush1.bf16.msra.mxu0 %v9588
    %10026 = vmatprep.mubr.bf16.mxu0 %v8608
    %10027 = vmatmul.mubr.bf16.gmra.mrb[0].mxu0 %v8607
    %v10028 = vpop.f32.mrb[0].mxu0
    %v10029 = vadd.f32 %v9988, %v10028
    %v10030 = vpop.f32.mrb[0].mxu0
    %v10031 = vadd.f32 %v9990, %v10030
    %v10032 = vpop.f32.mrb[0].mxu0
    %v10033 = vpop.f32.mrb[0].mxu0
    %10034 = vdwg.mxu0
    %10035 = vmatprep.subr.bf16.mxu0 %v9593
    %10036 = vmatpush1.bf16.msra.mxu0 %v9592
    %10037 = vmatprep.subr.bf16.mxu0 %v9597
    %10038 = vmatpush1.bf16.msra.mxu0 %v9596
    %10039 = vmatprep.subr.bf16.mxu0 %v9601
    %10040 = vmatpush1.bf16.msra.mxu0 %v9600
    %10041 = vmatprep.subr.bf16.mxu0 %v9605
    %10042 = vmatpush1.bf16.msra.mxu0 %v9604
    %10043 = vmatprep.subr.bf16.mxu0 %v9609
    %10044 = vmatpush1.bf16.msra.mxu0 %v9608
    %10045 = vmatprep.subr.bf16.mxu0 %v9613
    %10046 = vmatpush1.bf16.msra.mxu0 %v9612
    %10047 = vmatprep.subr.bf16.mxu0 %v9617
    %10048 = vmatpush1.bf16.msra.mxu0 %v9616
    %10049 = vmatprep.subr.bf16.mxu0 %v9621
    %10050 = vmatpush1.bf16.msra.mxu0 %v9620
    %10051 = vmatprep.subr.bf16.mxu0 %v9625
    %10052 = vmatpush1.bf16.msra.mxu0 %v9624
    %10053 = vmatprep.subr.bf16.mxu0 %v9629
    %10054 = vmatpush1.bf16.msra.mxu0 %v9628
    %10055 = vmatprep.subr.bf16.mxu0 %v9633
    %10056 = vmatpush1.bf16.msra.mxu0 %v9632
    %10057 = vmatprep.subr.bf16.mxu0 %v9637
    %10058 = vmatpush1.bf16.msra.mxu0 %v9636
    %10059 = vmatprep.subr.bf16.mxu0 %v9641
    %10060 = vmatpush1.bf16.msra.mxu0 %v9640
    %10061 = vmatprep.subr.bf16.mxu0 %v9645
    %10062 = vmatpush1.bf16.msra.mxu0 %v9644
    %10063 = vmatprep.subr.bf16.mxu0 %v9649
    %10064 = vmatpush1.bf16.msra.mxu0 %v9648
    %10065 = vmatprep.subr.bf16.mxu0 %v9653
    %10066 = vmatpush1.bf16.msra.mxu0 %v9652
    %10067 = vmatprep.mubr.bf16.mxu0 %v8610
    %10068 = vmatmul.mubr.bf16.gmra.mrb[0].mxu0 %v8609
    %v10069 = vpop.f32.mrb[0].mxu0
    %v10070 = vadd.f32 %v10029, %v10069
    %v10071 = vpop.f32.mrb[0].mxu0
    %v10072 = vadd.f32 %v10031, %v10071
    %v10073 = vpop.f32.mrb[0].mxu0
    %v10074 = vpop.f32.mrb[0].mxu0
    %10075 = vdwg.mxu0
    %10076 = vmatprep.subr.bf16.mxu0 %v9403
    %10077 = vmatpush1.bf16.msra.mxu0 %v9402
    %10078 = vmatprep.subr.bf16.mxu0 %v9407
    %10079 = vmatpush1.bf16.msra.mxu0 %v9406
    %10080 = vmatprep.subr.bf16.mxu0 %v9411
    %10081 = vmatpush1.bf16.msra.mxu0 %v9410
    %10082 = vmatprep.subr.bf16.mxu0 %v9415
    %10083 = vmatpush1.bf16.msra.mxu0 %v9414
    %10084 = vmatprep.subr.bf16.mxu0 %v9419
    %10085 = vmatpush1.bf16.msra.mxu0 %v9418
    %10086 = vmatprep.subr.bf16.mxu0 %v9423
    %10087 = vmatpush1.bf16.msra.mxu0 %v9422
    %10088 = vmatprep.subr.bf16.mxu0 %v9427
    %10089 = vmatpush1.bf16.msra.mxu0 %v9426
    %10090 = vmatprep.subr.bf16.mxu0 %v9431
    %10091 = vmatpush1.bf16.msra.mxu0 %v9430
    %10092 = vmatprep.subr.bf16.mxu0 %v9435
    %10093 = vmatpush1.bf16.msra.mxu0 %v9434
    %10094 = vmatprep.subr.bf16.mxu0 %v9439
    %10095 = vmatpush1.bf16.msra.mxu0 %v9438
    %10096 = vmatprep.subr.bf16.mxu0 %v9443
    %10097 = vmatpush1.bf16.msra.mxu0 %v9442
    %10098 = vmatprep.subr.bf16.mxu0 %v9447
    %10099 = vmatpush1.bf16.msra.mxu0 %v9446
    %10100 = vmatprep.subr.bf16.mxu0 %v9451
    %10101 = vmatpush1.bf16.msra.mxu0 %v9450
    %10102 = vmatprep.subr.bf16.mxu0 %v9455
    %10103 = vmatpush1.bf16.msra.mxu0 %v9454
    %10104 = vmatprep.subr.bf16.mxu0 %v9459
    %10105 = vmatpush1.bf16.msra.mxu0 %v9458
    %10106 = vmatprep.subr.bf16.mxu0 %v9463
    %10107 = vmatpush1.bf16.msra.mxu0 %v9462
    %10108 = vmatprep.mubr.bf16.mxu0 %v8604
    %10109 = vmatmul.mubr.bf16.gmra.mrb[0].mxu0 %v8603
    %v10110 = vpop.f32.mrb[0].mxu0
    %v10111 = vadd.f32 %v8623, %v10110
    %v10112 = vpop.f32.mrb[0].mxu0
    %v10113 = vadd.f32 %v8627, %v10112
    %v10114 = vpop.f32.mrb[0].mxu0
    %v10115 = vpop.f32.mrb[0].mxu0
    %10116 = vdwg.mxu0
    %10117 = vmatprep.subr.bf16.mxu0 %v9467
    %10118 = vmatpush1.bf16.msra.mxu0 %v9466
    %10119 = vmatprep.subr.bf16.mxu0 %v9471
    %10120 = vmatpush1.bf16.msra.mxu0 %v9470
    %10121 = vmatprep.subr.bf16.mxu0 %v9475
    %10122 = vmatpush1.bf16.msra.mxu0 %v9474
    %10123 = vmatprep.subr.bf16.mxu0 %v9479
    %10124 = vmatpush1.bf16.msra.mxu0 %v9478
    %10125 = vmatprep.subr.bf16.mxu0 %v9483
    %10126 = vmatpush1.bf16.msra.mxu0 %v9482
    %10127 = vmatprep.subr.bf16.mxu0 %v9487
    %10128 = vmatpush1.bf16.msra.mxu0 %v9486
    %10129 = vmatprep.subr.bf16.mxu0 %v9491
    %10130 = vmatpush1.bf16.msra.mxu0 %v9490
    %10131 = vmatprep.subr.bf16.mxu0 %v9495
    %10132 = vmatpush1.bf16.msra.mxu0 %v9494
    %10133 = vmatprep.subr.bf16.mxu0 %v9499
    %10134 = vmatpush1.bf16.msra.mxu0 %v9498
    %10135 = vmatprep.subr.bf16.mxu0 %v9503
    %10136 = vmatpush1.bf16.msra.mxu0 %v9502
    %10137 = vmatprep.subr.bf16.mxu0 %v9507
    %10138 = vmatpush1.bf16.msra.mxu0 %v9506
    %10139 = vmatprep.subr.bf16.mxu0 %v9511
    %10140 = vmatpush1.bf16.msra.mxu0 %v9510
    %10141 = vmatprep.subr.bf16.mxu0 %v9515
    %10142 = vmatpush1.bf16.msra.mxu0 %v9514
    %10143 = vmatprep.subr.bf16.mxu0 %v9519
    %10144 = vmatpush1.bf16.msra.mxu0 %v9518
    %10145 = vmatprep.subr.bf16.mxu0 %v9523
    %10146 = vmatpush1.bf16.msra.mxu0 %v9522
    %10147 = vmatprep.subr.bf16.mxu0 %v9527
    %10148 = vmatpush1.bf16.msra.mxu0 %v9526
    %10149 = vmatprep.mubr.bf16.mxu0 %v8606
    %10150 = vmatmul.mubr.bf16.gmra.mrb[0].mxu0 %v8605
    %v10151 = vpop.f32.mrb[0].mxu0
    %v10152 = vadd.f32 %v10111, %v10151
    %v10153 = vpop.f32.mrb[0].mxu0
    %v10154 = vadd.f32 %v10113, %v10153
    %v10155 = vpop.f32.mrb[0].mxu0
    %v10156 = vpop.f32.mrb[0].mxu0
    %10157 = vdwg.mxu0
    %10158 = vmatprep.subr.bf16.mxu0 %v9531
    %10159 = vmatpush1.bf16.msra.mxu0 %v9530
    %10160 = vmatprep.subr.bf16.mxu0 %v9535
    %10161 = vmatpush1.bf16.msra.mxu0 %v9534
    %10162 = vmatprep.subr.bf16.mxu0 %v9539
    %10163 = vmatpush1.bf16.msra.mxu0 %v9538
    %10164 = vmatprep.subr.bf16.mxu0 %v9543
    %10165 = vmatpush1.bf16.msra.mxu0 %v9542
    %10166 = vmatprep.subr.bf16.mxu0 %v9547
    %10167 = vmatpush1.bf16.msra.mxu0 %v9546
    %10168 = vmatprep.subr.bf16.mxu0 %v9551
    %10169 = vmatpush1.bf16.msra.mxu0 %v9550
    %10170 = vmatprep.subr.bf16.mxu0 %v9555
    %10171 = vmatpush1.bf16.msra.mxu0 %v9554
    %10172 = vmatprep.subr.bf16.mxu0 %v9559
    %10173 = vmatpush1.bf16.msra.mxu0 %v9558
    %10174 = vmatprep.subr.bf16.mxu0 %v9563
    %10175 = vmatpush1.bf16.msra.mxu0 %v9562
    %10176 = vmatprep.subr.bf16.mxu0 %v9567
    %10177 = vmatpush1.bf16.msra.mxu0 %v9566
    %10178 = vmatprep.subr.bf16.mxu0 %v9571
    %10179 = vmatpush1.bf16.msra.mxu0 %v9570
    %10180 = vmatprep.subr.bf16.mxu0 %v9575
    %10181 = vmatpush1.bf16.msra.mxu0 %v9574
    %10182 = vmatprep.subr.bf16.mxu0 %v9579
    %10183 = vmatpush1.bf16.msra.mxu0 %v9578
    %10184 = vmatprep.subr.bf16.mxu0 %v9583
    %10185 = vmatpush1.bf16.msra.mxu0 %v9582
    %10186 = vmatprep.subr.bf16.mxu0 %v9587
    %10187 = vmatpush1.bf16.msra.mxu0 %v9586
    %10188 = vmatprep.subr.bf16.mxu0 %v9591
    %10189 = vmatpush1.bf16.msra.mxu0 %v9590
    %10190 = vmatprep.mubr.bf16.mxu0 %v8608
    %10191 = vmatmul.mubr.bf16.gmra.mrb[0].mxu0 %v8607
    %v10192 = vpop.f32.mrb[0].mxu0
    %v10193 = vadd.f32 %v10152, %v10192
    %v10194 = vpop.f32.mrb[0].mxu0
    %v10195 = vadd.f32 %v10154, %v10194
    %v10196 = vpop.f32.mrb[0].mxu0
    %v10197 = vpop.f32.mrb[0].mxu0
    %10198 = vdwg.mxu0
    %10199 = vmatprep.subr.bf16.mxu0 %v9595
    %10200 = vmatpush1.bf16.msra.mxu0 %v9594
    %10201 = vmatprep.subr.bf16.mxu0 %v9599
    %10202 = vmatpush1.bf16.msra.mxu0 %v9598
    %10203 = vmatprep.subr.bf16.mxu0 %v9603
    %10204 = vmatpush1.bf16.msra.mxu0 %v9602
    %10205 = vmatprep.subr.bf16.mxu0 %v9607
    %10206 = vmatpush1.bf16.msra.mxu0 %v9606
    %10207 = vmatprep.subr.bf16.mxu0 %v9611
    %10208 = vmatpush1.bf16.msra.mxu0 %v9610
    %10209 = vmatprep.subr.bf16.mxu0 %v9615
    %10210 = vmatpush1.bf16.msra.mxu0 %v9614
    %10211 = vmatprep.subr.bf16.mxu0 %v9619
    %10212 = vmatpush1.bf16.msra.mxu0 %v9618
    %10213 = vmatprep.subr.bf16.mxu0 %v9623
    %10214 = vmatpush1.bf16.msra.mxu0 %v9622
    %10215 = vmatprep.subr.bf16.mxu0 %v9627
    %10216 = vmatpush1.bf16.msra.mxu0 %v9626
    %10217 = vmatprep.subr.bf16.mxu0 %v9631
    %10218 = vmatpush1.bf16.msra.mxu0 %v9630
    %10219 = vmatprep.subr.bf16.mxu0 %v9635
    %10220 = vmatpush1.bf16.msra.mxu0 %v9634
    %10221 = vmatprep.subr.bf16.mxu0 %v9639
    %10222 = vmatpush1.bf16.msra.mxu0 %v9638
    %10223 = vmatprep.subr.bf16.mxu0 %v9643
    %10224 = vmatpush1.bf16.msra.mxu0 %v9642
    %10225 = vmatprep.subr.bf16.mxu0 %v9647
    %10226 = vmatpush1.bf16.msra.mxu0 %v9646
    %10227 = vmatprep.subr.bf16.mxu0 %v9651
    %10228 = vmatpush1.bf16.msra.mxu0 %v9650
    %10229 = vmatprep.subr.bf16.mxu0 %v9655
    %10230 = vmatpush1.bf16.msra.mxu0 %v9654
    %10231 = vmatprep.mubr.bf16.mxu0 %v8610
    %10232 = vmatmul.mubr.bf16.gmra.mrb[0].mxu0 %v8609
    %v10233 = vpop.f32.mrb[0].mxu0
    %v10234 = vadd.f32 %v10193, %v10233
    %v10235 = vpop.f32.mrb[0].mxu0
    %v10236 = vadd.f32 %v10195, %v10235
    %v10237 = vpop.f32.mrb[0].mxu0
    %v10238 = vpop.f32.mrb[0].mxu0
    %10239 = vdwg.mxu0
    %v10240 = vmax.f32 %v10070, 0.0
    %v10241 = vmax.f32 %v10072, 0.0
    %v10242 = vmax.f32 %v10234, 0.0
    %v10243 = vmax.f32 %v10236, 0.0
    %v10244 = vpack.c.bf16 %v10240, %v10240
    %v10245 = vpack.c.bf16 %v10241, %v10241
    %v10246 = vpack.c.bf16 %v10242, %v10242
    %v10247 = vpack.c.bf16 %v10243, %v10243
    %v10249 = vlaneseq
    %v10250 = vshrl.u32 %v10249, 7
    %v10251 = vsub.s32 0, %v10250
    %v10252 = vrot.slane %v1514, %v10251
    %v10318 = vunpack.c.l.b16 %v1450
    %v10319 = vunpack.c.l.b16 %v1451
    %v10320 = vunpack.c.l.b16 %v1452
    %v10321 = vunpack.c.l.b16 %v1453
    %v10322 = vunpack.c.l.b16 %v1454
    %v10323 = vunpack.c.l.b16 %v1455
    %v10324 = vunpack.c.l.b16 %v1456
    %v10325 = vunpack.c.l.b16 %v1457
    %v10326 = vunpack.c.l.b16 %v1458
    %v10327 = vunpack.c.l.b16 %v1459
    %v10328 = vunpack.c.l.b16 %v1460
    %v10329 = vunpack.c.l.b16 %v1461
    %v10330 = vunpack.c.l.b16 %v1462
    %v10331 = vunpack.c.l.b16 %v1463
    %v10332 = vunpack.c.l.b16 %v1464
    %v10333 = vunpack.c.l.b16 %v1465
    %v10334 = vunpack.c.l.b16 %v1466
    %v10335 = vunpack.c.l.b16 %v1467
    %v10336 = vunpack.c.l.b16 %v1468
    %v10337 = vunpack.c.l.b16 %v1469
    %v10338 = vunpack.c.l.b16 %v1470
    %v10339 = vunpack.c.l.b16 %v1471
    %v10340 = vunpack.c.l.b16 %v1472
    %v10341 = vunpack.c.l.b16 %v1473
    %v10342 = vunpack.c.l.b16 %v1474
    %v10343 = vunpack.c.l.b16 %v1475
    %v10344 = vunpack.c.l.b16 %v1476
    %v10345 = vunpack.c.l.b16 %v1477
    %v10346 = vunpack.c.l.b16 %v1478
    %v10347 = vunpack.c.l.b16 %v1479
    %v10348 = vunpack.c.l.b16 %v1480
    %v10349 = vunpack.c.l.b16 %v1481
    %v10350 = vunpack.c.l.b16 %v1482
    %v10351 = vunpack.c.l.b16 %v1483
    %v10352 = vunpack.c.l.b16 %v1484
    %v10353 = vunpack.c.l.b16 %v1485
    %v10354 = vunpack.c.l.b16 %v1486
    %v10355 = vunpack.c.l.b16 %v1487
    %v10356 = vunpack.c.l.b16 %v1488
    %v10357 = vunpack.c.l.b16 %v1489
    %v10358 = vunpack.c.l.b16 %v1490
    %v10359 = vunpack.c.l.b16 %v1491
    %v10360 = vunpack.c.l.b16 %v1492
    %v10361 = vunpack.c.l.b16 %v1493
    %v10362 = vunpack.c.l.b16 %v1494
    %v10363 = vunpack.c.l.b16 %v1495
    %v10364 = vunpack.c.l.b16 %v1496
    %v10365 = vunpack.c.l.b16 %v1497
    %v10366 = vunpack.c.l.b16 %v1498
    %v10367 = vunpack.c.l.b16 %v1499
    %v10368 = vunpack.c.l.b16 %v1500
    %v10369 = vunpack.c.l.b16 %v1501
    %v10370 = vunpack.c.l.b16 %v1502
    %v10371 = vunpack.c.l.b16 %v1503
    %v10372 = vunpack.c.l.b16 %v1504
    %v10373 = vunpack.c.l.b16 %v1505
    %v10374 = vunpack.c.l.b16 %v1506
    %v10375 = vunpack.c.l.b16 %v1507
    %v10376 = vunpack.c.l.b16 %v1508
    %v10377 = vunpack.c.l.b16 %v1509
    %v10378 = vunpack.c.l.b16 %v1510
    %v10379 = vunpack.c.l.b16 %v1511
    %v10380 = vunpack.c.l.b16 %v1512
    %v10381 = vunpack.c.l.b16 %v1513
    %v10382 = vpack.c.b16 %v10319, %v10318
    %v10383 = vpack.c.b16 %v10321, %v10320
    %v10384 = vpack.c.b16 %v10323, %v10322
    %v10385 = vpack.c.b16 %v10325, %v10324
    %v10386 = vpack.c.b16 %v10327, %v10326
    %v10387 = vpack.c.b16 %v10329, %v10328
    %v10388 = vpack.c.b16 %v10331, %v10330
    %v10389 = vpack.c.b16 %v10333, %v10332
    %v10390 = vpack.c.b16 %v10335, %v10334
    %v10391 = vpack.c.b16 %v10337, %v10336
    %v10392 = vpack.c.b16 %v10339, %v10338
    %v10393 = vpack.c.b16 %v10341, %v10340
    %v10394 = vpack.c.b16 %v10343, %v10342
    %v10395 = vpack.c.b16 %v10345, %v10344
    %v10396 = vpack.c.b16 %v10347, %v10346
    %v10397 = vpack.c.b16 %v10349, %v10348
    %v10398 = vpack.c.b16 %v10351, %v10350
    %v10399 = vpack.c.b16 %v10353, %v10352
    %v10400 = vpack.c.b16 %v10355, %v10354
    %v10401 = vpack.c.b16 %v10357, %v10356
    %v10402 = vpack.c.b16 %v10359, %v10358
    %v10403 = vpack.c.b16 %v10361, %v10360
    %v10404 = vpack.c.b16 %v10363, %v10362
    %v10405 = vpack.c.b16 %v10365, %v10364
    %v10406 = vpack.c.b16 %v10367, %v10366
    %v10407 = vpack.c.b16 %v10369, %v10368
    %v10408 = vpack.c.b16 %v10371, %v10370
    %v10409 = vpack.c.b16 %v10373, %v10372
    %v10410 = vpack.c.b16 %v10375, %v10374
    %v10411 = vpack.c.b16 %v10377, %v10376
    %v10412 = vpack.c.b16 %v10379, %v10378
    %v10413 = vpack.c.b16 %v10381, %v10380
    %10446 = vmatprep.subr.bf16.mxu0 0
    %10447 = vmatpush1.bf16.msra.mxu0 %v10382
    %10448 = vmatprep.subr.bf16.mxu0 0
    %10449 = vmatpush1.bf16.msra.mxu0 %v10383
    %10450 = vmatprep.subr.bf16.mxu0 0
    %10451 = vmatpush1.bf16.msra.mxu0 %v10384
    %10452 = vmatprep.subr.bf16.mxu0 0
    %10453 = vmatpush1.bf16.msra.mxu0 %v10385
    %10454 = vmatprep.subr.bf16.mxu0 0
    %10455 = vmatpush1.bf16.msra.mxu0 %v10386
    %10456 = vmatprep.subr.bf16.mxu0 0
    %10457 = vmatpush1.bf16.msra.mxu0 %v10387
    %10458 = vmatprep.subr.bf16.mxu0 0
    %10459 = vmatpush1.bf16.msra.mxu0 %v10388
    %10460 = vmatprep.subr.bf16.mxu0 0
    %10461 = vmatpush1.bf16.msra.mxu0 %v10389
    %10462 = vmatprep.subr.bf16.mxu0 0
    %10463 = vmatpush1.bf16.msra.mxu0 %v10390
    %10464 = vmatprep.subr.bf16.mxu0 0
    %10465 = vmatpush1.bf16.msra.mxu0 %v10391
    %10466 = vmatprep.subr.bf16.mxu0 0
    %10467 = vmatpush1.bf16.msra.mxu0 %v10392
    %10468 = vmatprep.subr.bf16.mxu0 0
    %10469 = vmatpush1.bf16.msra.mxu0 %v10393
    %10470 = vmatprep.subr.bf16.mxu0 0
    %10471 = vmatpush1.bf16.msra.mxu0 %v10394
    %10472 = vmatprep.subr.bf16.mxu0 0
    %10473 = vmatpush1.bf16.msra.mxu0 %v10395
    %10474 = vmatprep.subr.bf16.mxu0 0
    %10475 = vmatpush1.bf16.msra.mxu0 %v10396
    %10476 = vmatprep.subr.bf16.mxu0 0
    %10477 = vmatpush1.bf16.msra.mxu0 %v10397
    %10478 = vmatprep.mubr.bf16.mxu0 %v10245
    %10479 = vmatmul.mubr.bf16.gmra.mrb[0].mxu0 %v10244
    %v10480 = vpop.f32.mrb[0].mxu0
    %v10481 = vadd.f32 %v10252, %v10480
    %v10482 = vpop.f32.mrb[0].mxu0
    %v10483 = vpop.f32.mrb[0].mxu0
    %v10484 = vpop.f32.mrb[0].mxu0
    %10485 = vdwg.mxu0
    %10486 = vmatprep.subr.bf16.mxu0 0
    %10487 = vmatpush1.bf16.msra.mxu0 %v10398
    %10488 = vmatprep.subr.bf16.mxu0 0
    %10489 = vmatpush1.bf16.msra.mxu0 %v10399
    %10490 = vmatprep.subr.bf16.mxu0 0
    %10491 = vmatpush1.bf16.msra.mxu0 %v10400
    %10492 = vmatprep.subr.bf16.mxu0 0
    %10493 = vmatpush1.bf16.msra.mxu0 %v10401
    %10494 = vmatprep.subr.bf16.mxu0 0
    %10495 = vmatpush1.bf16.msra.mxu0 %v10402
    %10496 = vmatprep.subr.bf16.mxu0 0
    %10497 = vmatpush1.bf16.msra.mxu0 %v10403
    %10498 = vmatprep.subr.bf16.mxu0 0
    %10499 = vmatpush1.bf16.msra.mxu0 %v10404
    %10500 = vmatprep.subr.bf16.mxu0 0
    %10501 = vmatpush1.bf16.msra.mxu0 %v10405
    %10502 = vmatprep.subr.bf16.mxu0 0
    %10503 = vmatpush1.bf16.msra.mxu0 %v10406
    %10504 = vmatprep.subr.bf16.mxu0 0
    %10505 = vmatpush1.bf16.msra.mxu0 %v10407
    %10506 = vmatprep.subr.bf16.mxu0 0
    %10507 = vmatpush1.bf16.msra.mxu0 %v10408
    %10508 = vmatprep.subr.bf16.mxu0 0
    %10509 = vmatpush1.bf16.msra.mxu0 %v10409
    %10510 = vmatprep.subr.bf16.mxu0 0
    %10511 = vmatpush1.bf16.msra.mxu0 %v10410
    %10512 = vmatprep.subr.bf16.mxu0 0
    %10513 = vmatpush1.bf16.msra.mxu0 %v10411
    %10514 = vmatprep.subr.bf16.mxu0 0
    %10515 = vmatpush1.bf16.msra.mxu0 %v10412
    %10516 = vmatprep.subr.bf16.mxu0 0
    %10517 = vmatpush1.bf16.msra.mxu0 %v10413
    %10518 = vmatprep.mubr.bf16.mxu0 %v10247
    %10519 = vmatmul.mubr.bf16.gmra.mrb[0].mxu0 %v10246
    %v10520 = vpop.f32.mrb[0].mxu0
    %v10521 = vadd.f32 %v10481, %v10520
    %v10522 = vpop.f32.mrb[0].mxu0
    %v10523 = vpop.f32.mrb[0].mxu0
    %v10524 = vpop.f32.mrb[0].mxu0
    %10525 = vdwg.mxu0
    %vm10526 = vcmask 58368
    %10527 = vst.msk [vmem:[#allocation16] sm:$0x3] %vm10526, %v10521
    // Predicated region
    $region70: #{rdn_forward.1} parent=1 // pred_check
      _
    $region71: #{rdn_forward.1} parent=1 // pred_check_branch
      %10529 = sbr.rel (0) target = $region73
    $region72: #{rdn_forward.1} parent=1 // pred_region
      %s10531 = ssub.s32 32, 32
      %10532 = vsyncadd [#allocation4], %s10531
      %s10534 = sshll.u32 [#allocation16], 4
      %s10535 = int_to_ptr.vmem [resolvable:$true] %s10534
      %10537 = dma.vmem_to_hbm [thread:$0]  %s10535, 32, %s9, [#allocation4]
    $region73: #{rdn_forward.1} parent=1 // pred_fallthru
      _
    // Predicated region
    $region74: #{rdn_forward.1} parent=1 // pred_check
      _
    $region75: #{rdn_forward.1} parent=1 // pred_check_branch
      %10539 = sbr.rel (0) target = $region77
    $region76: #{rdn_forward.1} parent=1 // pred_region
      %10540 = dma.done [#allocation4], 32
    $region77: #{rdn_forward.1} parent=1 // pred_fallthru
      _
    %10541 = vsyncpa [#allocation3], 1
    %10542 = vsyncpa [#allocation6], 1
    %10543 = vsyncpa [#allocation9], 1
    %10544 = vsyncpa [#allocation12], 1
    %10545 = vsyncpa [#allocation15], 1
    %10546 = vsyncpa [#allocation4], 1

</llo_original>
